<compile_context>
chip_gen: v7x
topology: tpu7x:2x2x1
jax: 0.10.0
libtpu: 0.0.40
codegen_flags: <defaults>
</compile_context>

<pallas_src>
import functools
import math

import numpy as np
import jax
import jax.numpy as jnp
from jax.experimental import pallas as pl
from jax.experimental.pallas import tpu as pltpu

ATOM_NUM_PER_RESIDUE = 14
LN_EPS = 1e-5


# ----------------------------- helpers ------------------------------------
def _ln(x, axis=-1, eps=LN_EPS):
    mu = jnp.mean(x, axis=axis, keepdims=True)
    var = jnp.mean(jnp.square(x - mu), axis=axis, keepdims=True)
    return (x - mu) * jax.lax.rsqrt(var + eps)


# ----------------------- tiny q-projection kernel --------------------------
def _matmul_kernel(x_ref, w_ref, o_ref):
    o_ref[...] = jnp.dot(
        x_ref[...], w_ref[...], preferred_element_type=jnp.float32
    ).astype(o_ref.dtype)


def pallas_matmul(x, W):
    M, K = x.shape
    _, Nout = W.shape
    return pl.pallas_call(
        _matmul_kernel,
        out_shape=jax.ShapeDtypeStruct((M, Nout), x.dtype),
        grid=(1,),
        in_specs=[
            pl.BlockSpec((M, K), lambda i: (0, 0)),
            pl.BlockSpec((K, Nout), lambda i: (0, 0)),
        ],
        out_specs=pl.BlockSpec((M, Nout), lambda i: (0, 0)),
    )(x, W)


# ------------------- fully fused decoder transformer -----------------------
def _decoder_kernel(
    a_ref, s_ref, z_ref, beta_ref, zW_ref, zb_ref,
    aw2_ref, aadaW_ref, aadab_ref, Wqkvg_ref, bqkvg_ref, Wo_ref, Wgs_ref, bgs_ref,
    tw2_ref, tadaW_ref, tadab_ref, W12_ref, W3_ref,
    rw_ref, rb_ref, Wr_ref,
    r_ref,
    acc_scr, sn_scr, zn_scr,
    *, n_head, head_dim, n_cz, n_block,
):
    k = pl.program_id(1)
    D = n_head * head_dim

    # ---- block-invariant work: once per batch element (block index 0) ------
    @pl.when(k == 0)
    def _init():
        acc_scr[...] = a_ref[0].astype(jnp.float32)
        sn_scr[...] = _ln(s_ref[0].astype(jnp.float32))
        # affine-free LN over the (small) channel axis of the channel-major
        # pair tensor; all math stays on lane-dense (N, N) 2-D slabs.
        zs = [z_ref[0, c].astype(jnp.float32) for c in range(n_cz)]
        mu = zs[0]
        for c in range(1, n_cz):
            mu = mu + zs[c]
        mu = mu * (1.0 / n_cz)
        var = jnp.square(zs[0] - mu)
        for c in range(1, n_cz):
            var = var + jnp.square(zs[c] - mu)
        var = var * (1.0 / n_cz)
        inv = jax.lax.rsqrt(var + LN_EPS)
        for c in range(n_cz):
            zn_scr[c] = (zs[c] - mu) * inv

    a = acc_scr[...]                              # (N, D) carried activations
    sn = sn_scr[...]                              # affine-free LN(s), hoisted
    sraw = s_ref[0].astype(jnp.float32)
    beta = beta_ref[...].astype(jnp.float32)

    a_norm = _ln(a)                               # shared by both AdaLNs

    # s-conditioned output gates (attention | transition), one packed matmul
    gs = jax.nn.sigmoid(
        jnp.dot(sraw, Wgs_ref[0], preferred_element_type=jnp.float32) + bgs_ref[0]
    )
    gs_a, gs_t = gs[:, :D], gs[:, D:]

    # -------------------- AttentionPairBias --------------------------------
    ada_a = (
        jnp.dot(sn * aw2_ref[0], aadaW_ref[0], preferred_element_type=jnp.float32)
        + aadab_ref[0]
    )
    a_ln = jax.nn.sigmoid(ada_a[:, :D]) * a_norm + ada_a[:, D:]

    # packed Q|K|V|G projection (1/sqrt(Dh) already folded into Wq/bq)
    qkvg = (
        jnp.dot(a_ln, Wqkvg_ref[0], preferred_element_type=jnp.float32) + bqkvg_ref[0]
    )

    o_heads = []
    for h in range(n_head):
        lo = h * head_dim
        qh = qkvg[:, lo:lo + head_dim]
        kh = qkvg[:, D + lo:D + lo + head_dim]
        vh = qkvg[:, 2 * D + lo:2 * D + lo + head_dim]

        # per-head pair bias: (LN(z)*w_z + b_z) @ W_inj[:, h] + beta, built
        # from the normalized channel-major pair scratch with SMEM scalars.
        bias_h = beta + zb_ref[k, h]
        for c in range(n_cz):
            bias_h = bias_h + zn_scr[c] * zW_ref[k * n_cz + c, h]

        logits = jax.lax.dot_general(
            qh, kh, (((1,), (1,)), ((), ())), preferred_element_type=jnp.float32
        ) + bias_h
        logits = logits - jnp.max(logits, axis=-1, keepdims=True)
        p = jnp.exp(logits)
        p = p * pl.reciprocal(jnp.sum(p, axis=-1, keepdims=True), approx=True)
        o_heads.append(jnp.dot(p, vh, preferred_element_type=jnp.float32))

    o = jnp.concatenate(o_heads, axis=-1) * jax.nn.sigmoid(qkvg[:, 3 * D:])
    b_out = gs_a * jnp.dot(o, Wo_ref[0], preferred_element_type=jnp.float32)

    # -------------------- ConditionedTransitionBlock -----------------------
    ada_t = (
        jnp.dot(sn * tw2_ref[0], tadaW_ref[0], preferred_element_type=jnp.float32)
        + tadab_ref[0]
    )
    a_ln_t = jax.nn.sigmoid(ada_t[:, :D]) * a_norm + ada_t[:, D:]
    h12 = jnp.dot(a_ln_t, W12_ref[0], preferred_element_type=jnp.float32)
    h1, h2 = h12[:, :2 * D], h12[:, 2 * D:]
    bmid = (h1 * jax.nn.sigmoid(h1)) * h2               # SiLU(a@W1) * (a@W2)
    # reference: gating_s(s) * a_ln * linear_3(b)
    t_out = gs_t * a_ln_t * jnp.dot(bmid, W3_ref[0], preferred_element_type=jnp.float32)

    a_new = b_out + t_out
    acc_scr[...] = a_new

    # ------------- fused final LayerNorm + r projection at last block -------
    @pl.when(k == n_block - 1)
    def _final():
        y = _ln(a_new) * rw_ref[...] + rb_ref[...]
        r_ref[0] = jnp.dot(
            y, Wr_ref[...], preferred_element_type=jnp.float32
        ).astype(r_ref.dtype)


def fused_decoder(a_i, s_raw, z_cm, beta, zW_s, zb_s, w, rw, rb, Wr,
                  *, n_head, head_dim, n_block):
    B, N, D = a_i.shape
    Cz = z_cm.shape[1]
    kernel = functools.partial(
        _decoder_kernel, n_head=n_head, head_dim=head_dim, n_cz=Cz, n_block=n_block
    )
    smem = pl.BlockSpec(memory_space=pltpu.MemorySpace.SMEM)

    def per_block(shape):
        # stacked per-block weight, selected by the block grid index
        return pl.BlockSpec((1,) + shape, lambda b, k: (k,) + (0,) * len(shape))

    return pl.pallas_call(
        kernel,
        out_shape=jax.ShapeDtypeStruct((B, N, 3), a_i.dtype),
        grid=(B, n_block),
        in_specs=[
            pl.BlockSpec((1, N, D), lambda b, k: (b, 0, 0)),          # a_init
            pl.BlockSpec((1, N, D), lambda b, k: (b, 0, 0)),          # s raw
            pl.BlockSpec((1, Cz, N, N), lambda b, k: (b, 0, 0, 0)),   # z (ch-major)
            pl.BlockSpec((N, N), lambda b, k: (0, 0)),                # beta mask
            smem,                                                     # zW  (nb*Cz, H)
            smem,                                                     # zb  (nb, H)
            per_block((1, D)),          # attn adaln ln2_w
            per_block((D, 2 * D)),      # attn adaln [lin | nobias]
            per_block((1, 2 * D)),      # attn adaln bias
            per_block((D, 4 * D)),      # Wqkvg
            per_block((1, 4 * D)),      # bqkvg
            per_block((D, D)),          # Wo
            per_block((D, 2 * D)),      # [Wgs_attn | Wgs_trans]
            per_block((1, 2 * D)),      # [bgs_attn | bgs_trans]
            per_block((1, D)),          # trans adaln ln2_w
            per_block((D, 2 * D)),      # trans adaln [lin | nobias]
            per_block((1, 2 * D)),      # trans adaln bias
            per_block((D, 4 * D)),      # [W1 | W2]
            per_block((2 * D, D)),      # W3
            pl.BlockSpec((1, D), lambda b, k: (0, 0)),                # r_ln weight
            pl.BlockSpec((1, D), lambda b, k: (0, 0)),                # r_ln bias
            pl.BlockSpec((D, 3), lambda b, k: (0, 0)),                # r projection
        ],
        out_specs=pl.BlockSpec((1, N, 3), lambda b, k: (b, 0, 0)),
        scratch_shapes=[
            pltpu.VMEM((N, D), jnp.float32),        # a_i carry across blocks
            pltpu.VMEM((N, D), jnp.float32),        # affine-free LN(s)
            pltpu.VMEM((Cz, N, N), jnp.float32),    # affine-free LN(z), ch-major
        ],
        compiler_params=pltpu.CompilerParams(
            dimension_semantics=("parallel", "arbitrary")),
    )(a_i, s_raw, z_cm, beta, zW_s, zb_s,
      w["aw2"], w["aadaW"], w["aadab"], w["Wqkvg"], w["bqkvg"], w["Wo"],
      w["Wgs"], w["bgs"], w["tw2"], w["tadaW"], w["tadab"], w["W12"], w["W3"],
      rw, rb, Wr)


# ----------------------------- model composition ---------------------------
def atom_attention_decoder(params, a, q_skip, c_skip, p_skip, aatype, beta_full, *, n_head):
    # eval mode: batch_dims = (B,)
    B, R = aatype.shape
    N = R * ATOM_NUM_PER_RESIDUE
    c_atom = q_skip.shape[-1]
    c_token = a.shape[-1]
    Cz = p_skip.shape[-1]
    H = n_head
    Dh = c_atom // H
    scale = 1.0 / math.sqrt(Dh)
    n_block = len(params["blocks"])

    # q = q_skip.view(B,R,14,c_atom) + q_linearnobias(a).view(B,R,1,c_atom)
    qa = pallas_matmul(a.reshape(B * R, c_token), params["q_lin_W"])
    a_i = (
        q_skip.reshape(B, R, ATOM_NUM_PER_RESIDUE, c_atom)
        + qa.reshape(B, R, 1, c_atom)
    ).reshape(B, N, c_atom)

    beta = beta_full[:N, :N]                       # local attention mask (0 / -1e10)
    z_cm = p_skip.transpose(0, 3, 1, 2)            # (B, Cz, N, N) channel-major

    zeros_D = jnp.zeros((c_atom,), jnp.float32)
    zeros_3D = jnp.zeros((3 * c_atom,), jnp.float32)

    def pack(blk):
        at, tr = blk["attn"], blk["trans"]
        return dict(
            # fold LN(z) affine + z_injection into per-channel/per-head scalars
            zW=at["ln_z_w"][:, None] * at["z_inj_W"],                    # (Cz, H)
            zb=at["ln_z_b"] @ at["z_inj_W"],                             # (H,)
            aw2=at["adaln"]["ln2_w"].reshape(1, c_atom),
            aadaW=jnp.concatenate([at["adaln"]["lin_W"], at["adaln"]["nb_W"]], axis=1),
            aadab=jnp.concatenate([at["adaln"]["lin_b"], zeros_D]).reshape(1, 2 * c_atom),
            Wqkvg=jnp.concatenate([at["Wq"] * scale, at["Wk"], at["Wv"], at["Wg"]], axis=1),
            bqkvg=jnp.concatenate([at["bq"] * scale, zeros_3D]).reshape(1, 4 * c_atom),
            Wo=at["Wo"],
            Wgs=jnp.concatenate([at["Wgs"], tr["Wgs"]], axis=1),
            bgs=jnp.concatenate([at["bgs"], tr["bgs"]]).reshape(1, 2 * c_atom),
            tw2=tr["adaln"]["ln2_w"].reshape(1, c_atom),
            tadaW=jnp.concatenate([tr["adaln"]["lin_W"], tr["adaln"]["nb_W"]], axis=1),
            tadab=jnp.concatenate([tr["adaln"]["lin_b"], zeros_D]).reshape(1, 2 * c_atom),
            W12=jnp.concatenate([tr["W1"], tr["W2"]], axis=1),
            W3=tr["W3"],
        )

    packed = [pack(blk) for blk in params["blocks"]]
    stk = {key: jnp.stack([p[key] for p in packed], axis=0) for key in packed[0]}
    zW_s = stk.pop("zW").reshape(n_block * Cz, H)       # SMEM scalar table
    zb_s = stk.pop("zb")                                # (n_block, H)

    r = fused_decoder(
        a_i, c_skip, z_cm, beta, zW_s, zb_s, stk,
        params["r_ln_w"].reshape(1, c_atom),
        params["r_ln_b"].reshape(1, c_atom),
        params["r_lin_W"],
        n_head=H, head_dim=Dh, n_block=n_block,
    )
    return r


# ----------------------------- params & mask -------------------------------
def build_beta(max_seq_len, n_queries, n_keys):
    l = np.arange(max_seq_len)[:, None]
    m = np.arange(max_seq_len)[None, :]
    hq = round(n_queries / 2, 1)
    hk = round(n_keys / 2, 1)
    con = np.zeros((max_seq_len, max_seq_len), dtype=bool)
    for c in np.arange(hq, max_seq_len, n_queries):
        con |= (np.abs(l - c) < hq) & (np.abs(m - c) < hk)
    beta = np.where(con, 0.0, -1e10).astype(np.float32)
    return jnp.asarray(beta)


def init_params(key, cfg):
    c_atom, c_pair, c_token = cfg["c_atom"], cfg["c_atompair"], cfg["c_token"]
    H, n_block = cfg["n_head"], cfg["n_block"]
    keys = iter(jax.random.split(key, 512))

    def w(shape, scale=0.02):
        return jax.random.normal(next(keys), shape, jnp.float32) * scale

    def adaln_params(d1, d2):
        return dict(
            ln2_w=jnp.ones((d2,), jnp.float32),
            lin_W=w((d2, d1)),
            lin_b=w((d1,)),
            nb_W=w((d2, d1)),
        )

    blocks = []
    for _ in range(n_block):
        attn = dict(
            adaln=adaln_params(c_atom, c_atom),
            ln_z_w=jnp.ones((c_pair,), jnp.float32),
            ln_z_b=jnp.zeros((c_pair,), jnp.float32),
            z_inj_W=w((c_pair, H)),
            Wq=w((c_atom, c_atom)), bq=w((c_atom,)),
            Wk=w((c_atom, c_atom)),
            Wv=w((c_atom, c_atom)),
            Wg=w((c_atom, c_atom)),
            Wo=w((c_atom, c_atom)),
            Wgs=w((c_atom, c_atom)),
            bgs=jnp.full((c_atom,), -2.0, jnp.float32),
        )
        trans = dict(
            adaln=adaln_params(c_atom, c_atom),
            W1=w((c_atom, 2 * c_atom)),
            W2=w((c_atom, 2 * c_atom)),
            W3=w((2 * c_atom, c_atom)),
            Wgs=w((c_atom, c_atom)),
            bgs=jnp.full((c_atom,), -2.0, jnp.float32),
        )
        blocks.append(dict(attn=attn, trans=trans))

    return dict(
        blocks=blocks,
        q_lin_W=w((c_token, c_atom)),
        r_ln_w=jnp.ones((c_atom,), jnp.float32),
        r_ln_b=jnp.zeros((c_atom,), jnp.float32),
        r_lin_W=w((c_atom, 3)),
    )


# ----------------------------- main -----------------------------------------
if __name__ == "__main__":
    cfg = dict(
        c_atom=32, c_atompair=8, c_token=48,
        n_head=4, n_block=2,
        n_queries=32, n_keys=128, max_seq_len=128,
    )
    B, R = 2, 8
    N = R * ATOM_NUM_PER_RESIDUE  # 112

    key = jax.random.PRNGKey(0)
    kp, ka, kq, kc, kz = jax.random.split(key, 5)
    params = init_params(kp, cfg)

    a = jax.random.normal(ka, (B, R, cfg["c_token"]), jnp.float32)
    q_skip = jax.random.normal(kq, (B, N, cfg["c_atom"]), jnp.float32)
    c_skip = jax.random.normal(kc, (B, N, cfg["c_atom"]), jnp.float32)
    p_skip = jax.random.normal(kz, (B, N, N, cfg["c_atompair"]), jnp.float32)
    aatype = jnp.zeros((B, R), jnp.int32)
    beta_full = build_beta(cfg["max_seq_len"], cfg["n_queries"], cfg["n_keys"])

    fwd = jax.jit(functools.partial(atom_attention_decoder, n_head=cfg["n_head"]))
    out = fwd(params, a, q_skip, c_skip, p_skip, aatype, beta_full)
    out = jax.block_until_ready(out)

    assert out.shape == (B, N, 3), out.shape
    assert bool(jnp.all(jnp.isfinite(out)))
    # TODO(synk): training-mode path (TRAIN_AUGMENTATION_SAMPLES batch dim) not exercised; eval semantics only.
    print("KERNEL_OK")
</pallas_src>

<mosaic_0001>
module attributes {stable_mosaic.version = 11 : i64} {
  func.func @_matmul_kernel(%arg0: i32, %arg1: memref<16x48xf32, #tpu.memory_space<vmem>>, %arg2: memref<48x32xf32, #tpu.memory_space<vmem>>, %arg3: memref<16x32xf32, #tpu.memory_space<vmem>>) attributes {dimension_semantics = [#tpu.dimension_semantics<arbitrary>], iteration_bounds = array<i64: 1>, scalar_prefetch = 0 : i64, scratch_operands = 0 : i64, tpu.core_type = #tpu.core_type<tc>, window_params = [{pipeline_mode = #tpu.pipeline_mode<synchronous>, transform_indices = @transform_0, window_bounds = array<i64: 16, 48>}, {pipeline_mode = #tpu.pipeline_mode<synchronous>, transform_indices = @transform_1, window_bounds = array<i64: 48, 32>}, {pipeline_mode = #tpu.pipeline_mode<synchronous>, transform_indices = @transform_2, window_bounds = array<i64: 16, 32>}]} {
    %c0 = arith.constant 0 : index
    %c0_0 = arith.constant 0 : index
    %0 = vector.load %arg1[%c0, %c0_0] : memref<16x48xf32, #tpu.memory_space<vmem>>, vector<16x48xf32>
    %c0_1 = arith.constant 0 : index
    %c0_2 = arith.constant 0 : index
    %1 = vector.load %arg2[%c0_1, %c0_2] : memref<48x32xf32, #tpu.memory_space<vmem>>, vector<48x32xf32>
    %cst = arith.constant dense<0.000000e+00> : vector<16x32xf32>
    %2 = tpu.matmul %0, %1, %cst {dimension_numbers = #tpu.dot_dimension_numbers<[1], [0], [0], [1], [0, 0, 1, 1], [], []>} : vector<16x48xf32>, vector<48x32xf32>, vector<16x32xf32> -> vector<16x32xf32>
    %c0_3 = arith.constant 0 : index
    %c0_4 = arith.constant 0 : index
    %3 = vector.load %arg3[%c0_3, %c0_4] : memref<16x32xf32, #tpu.memory_space<vmem>>, vector<16x32xf32>
    tpu.vector_store %arg3[%c0_3, %c0_4], %2 {strides = array<i32>} : memref<16x32xf32, #tpu.memory_space<vmem>>, vector<16x32xf32>,
    return
  }
  func.func @transform_0(%arg0: i32) -> (i32, i32) {
    %c0_i32 = arith.constant 0 : i32
    %c0_i32_0 = arith.constant 0 : i32
    %c0_i32_1 = arith.constant 0 : i32
    return %c0_i32, %c0_i32_0 : i32, i32
  }
  func.func @transform_1(%arg0: i32) -> (i32, i32) {
    %c0_i32 = arith.constant 0 : i32
    %c0_i32_0 = arith.constant 0 : i32
    %c0_i32_1 = arith.constant 0 : i32
    return %c0_i32, %c0_i32_0 : i32, i32
  }
  func.func @transform_2(%arg0: i32) -> (i32, i32) {
    %c0_i32 = arith.constant 0 : i32
    %c0_i32_0 = arith.constant 0 : i32
    %c0_i32_1 = arith.constant 0 : i32
    return %c0_i32, %c0_i32_0 : i32, i32
  }
}

module attributes {stable_mosaic.version = 11 : i64} {
  func.func @_decoder_kernel(%arg0: i32, %arg1: i32, %arg2: memref<1x112x32xf32, #tpu.memory_space<vmem>>, %arg3: memref<1x112x32xf32, #tpu.memory_space<vmem>>, %arg4: memref<1x8x112x112xf32, #tpu.memory_space<vmem>>, %arg5: memref<112x112xf32, #tpu.memory_space<vmem>>, %arg6: memref<16x4xf32, #tpu.memory_space<smem>>, %arg7: memref<2x4xf32, #tpu.memory_space<smem>>, %arg8: memref<1x1x32xf32, #tpu.memory_space<vmem>>, %arg9: memref<1x32x64xf32, #tpu.memory_space<vmem>>, %arg10: memref<1x1x64xf32, #tpu.memory_space<vmem>>, %arg11: memref<1x32x128xf32, #tpu.memory_space<vmem>>, %arg12: memref<1x1x128xf32, #tpu.memory_space<vmem>>, %arg13: memref<1x32x32xf32, #tpu.memory_space<vmem>>, %arg14: memref<1x32x64xf32, #tpu.memory_space<vmem>>, %arg15: memref<1x1x64xf32, #tpu.memory_space<vmem>>, %arg16: memref<1x1x32xf32, #tpu.memory_space<vmem>>, %arg17: memref<1x32x64xf32, #tpu.memory_space<vmem>>, %arg18: memref<1x1x64xf32, #tpu.memory_space<vmem>>, %arg19: memref<1x32x128xf32, #tpu.memory_space<vmem>>, %arg20: memref<1x64x32xf32, #tpu.memory_space<vmem>>, %arg21: memref<1x32xf32, #tpu.memory_space<vmem>>, %arg22: memref<1x32xf32, #tpu.memory_space<vmem>>, %arg23: memref<32x3xf32, #tpu.memory_space<vmem>>, %arg24: memref<1x112x3xf32, #tpu.memory_space<vmem>>, %arg25: memref<112x32xf32, #tpu.memory_space<vmem>>, %arg26: memref<112x32xf32, #tpu.memory_space<vmem>>, %arg27: memref<8x112x112xf32, #tpu.memory_space<vmem>>) attributes {dimension_semantics = [#tpu.dimension_semantics<parallel>, #tpu.dimension_semantics<arbitrary>], iteration_bounds = array<i64: 2, 2>, scalar_prefetch = 0 : i64, scratch_operands = 3 : i64, tpu.core_type = #tpu.core_type<tc>, window_params = [{transform_indices = @transform_0, window_bounds = array<i64: 1, 112, 32>}, {transform_indices = @transform_1, window_bounds = array<i64: 1, 112, 32>}, {transform_indices = @transform_2, window_bounds = array<i64: 1, 8, 112, 112>}, {pipeline_mode = #tpu.pipeline_mode<synchronous>, transform_indices = @transform_3, window_bounds = array<i64: 112, 112>}, {transform_indices = @transform_4, window_bounds = array<i64: 16, 4>}, {transform_indices = @transform_5, window_bounds = array<i64: 2, 4>}, {transform_indices = @transform_6, window_bounds = array<i64: 1, 1, 32>}, {transform_indices = @transform_7, window_bounds = array<i64: 1, 32, 64>}, {transform_indices = @transform_8, window_bounds = array<i64: 1, 1, 64>}, {transform_indices = @transform_9, window_bounds = array<i64: 1, 32, 128>}, {transform_indices = @transform_10, window_bounds = array<i64: 1, 1, 128>}, {transform_indices = @transform_11, window_bounds = array<i64: 1, 32, 32>}, {transform_indices = @transform_12, window_bounds = array<i64: 1, 32, 64>}, {transform_indices = @transform_13, window_bounds = array<i64: 1, 1, 64>}, {transform_indices = @transform_14, window_bounds = array<i64: 1, 1, 32>}, {transform_indices = @transform_15, window_bounds = array<i64: 1, 32, 64>}, {transform_indices = @transform_16, window_bounds = array<i64: 1, 1, 64>}, {transform_indices = @transform_17, window_bounds = array<i64: 1, 32, 128>}, {transform_indices = @transform_18, window_bounds = array<i64: 1, 64, 32>}, {pipeline_mode = #tpu.pipeline_mode<synchronous>, transform_indices = @transform_19, window_bounds = array<i64: 1, 32>}, {pipeline_mode = #tpu.pipeline_mode<synchronous>, transform_indices = @transform_20, window_bounds = array<i64: 1, 32>}, {pipeline_mode = #tpu.pipeline_mode<synchronous>, transform_indices = @transform_21, window_bounds = array<i64: 32, 3>}, {transform_indices = @transform_22, window_bounds = array<i64: 1, 112, 3>}]} {
    %c0_i32 = arith.constant 0 : i32
    %0 = arith.cmpi eq, %arg1, %c0_i32 : i32
    %1 = arith.extui %0 : i1 to i32
    %c0_i32_0 = arith.constant 0 : i32
    %2 = arith.cmpi ne, %1, %c0_i32_0 : i32
    scf.if %2 {
      %c0_265 = arith.constant 0 : index
      %c0_266 = arith.constant 0 : index
      %c0_267 = arith.constant 0 : index
      %489 = vector.load %arg2[%c0_265, %c0_266, %c0_267] : memref<1x112x32xf32, #tpu.memory_space<vmem>>, vector<1x112x32xf32>
      %490 = vector.shape_cast %489 : vector<1x112x32xf32> to vector<112x32xf32>
      %c0_268 = arith.constant 0 : index
      %c0_269 = arith.constant 0 : index
      %491 = vector.load %arg25[%c0_268, %c0_269] : memref<112x32xf32, #tpu.memory_space<vmem>>, vector<112x32xf32>
      tpu.vector_store %arg25[%c0_268, %c0_269], %490 {strides = array<i32>} : memref<112x32xf32, #tpu.memory_space<vmem>>, vector<112x32xf32>,
      %c0_270 = arith.constant 0 : index
      %c0_271 = arith.constant 0 : index
      %c0_272 = arith.constant 0 : index
      %492 = vector.load %arg3[%c0_270, %c0_271, %c0_272] : memref<1x112x32xf32, #tpu.memory_space<vmem>>, vector<1x112x32xf32>
      %493 = vector.shape_cast %492 : vector<1x112x32xf32> to vector<112x32xf32>
      %cst_273 = arith.constant dense<0.000000e+00> : vector<112xf32>
      %494 = vector.multi_reduction <add>, %493, %cst_273 [1] : vector<112x32xf32> to vector<112xf32>
      %495 = vector.shape_cast %494 : vector<112xf32> to vector<112x1xf32>
      %cst_274 = arith.constant 3.200000e+01 : f32
      %496 = vector.broadcast %cst_274 : f32 to vector<112x1xf32>
      %497 = arith.divf %495, %496 : vector<112x1xf32>
      %498 = vector.broadcast %497 : vector<112x1xf32> to vector<112x32xf32>
      %499 = arith.subf %493, %498 : vector<112x32xf32>
      %500 = arith.mulf %499, %499 : vector<112x32xf32>
      %cst_275 = arith.constant dense<0.000000e+00> : vector<112xf32>
      %501 = vector.multi_reduction <add>, %500, %cst_275 [1] : vector<112x32xf32> to vector<112xf32>
      %502 = vector.shape_cast %501 : vector<112xf32> to vector<112x1xf32>
      %cst_276 = arith.constant 3.200000e+01 : f32
      %503 = vector.broadcast %cst_276 : f32 to vector<112x1xf32>
      %504 = arith.divf %502, %503 : vector<112x1xf32>
      %505 = vector.broadcast %497 : vector<112x1xf32> to vector<112x32xf32>
      %506 = arith.subf %493, %505 : vector<112x32xf32>
      %cst_277 = arith.constant 9.99999974E-6 : f32
      %507 = vector.broadcast %cst_277 : f32 to vector<112x1xf32>
      %508 = arith.addf %504, %507 : vector<112x1xf32>
      %509 = math.rsqrt %508 : vector<112x1xf32>
      %510 = vector.broadcast %509 : vector<112x1xf32> to vector<112x32xf32>
      %511 = arith.mulf %506, %510 : vector<112x32xf32>
      %c0_278 = arith.constant 0 : index
      %c0_279 = arith.constant 0 : index
      %512 = vector.load %arg26[%c0_278, %c0_279] : memref<112x32xf32, #tpu.memory_space<vmem>>, vector<112x32xf32>
      tpu.vector_store %arg26[%c0_278, %c0_279], %511 {strides = array<i32>} : memref<112x32xf32, #tpu.memory_space<vmem>>, vector<112x32xf32>,
      %c0_280 = arith.constant 0 : index
      %c0_281 = arith.constant 0 : index
      %c0_282 = arith.constant 0 : index
      %c0_283 = arith.constant 0 : index
      %513 = vector.load %arg4[%c0_280, %c0_281, %c0_282, %c0_283] : memref<1x8x112x112xf32, #tpu.memory_space<vmem>>, vector<1x1x112x112xf32>
      %514 = vector.shape_cast %513 : vector<1x1x112x112xf32> to vector<112x112xf32>
      %c0_284 = arith.constant 0 : index
      %c1_285 = arith.constant 1 : index
      %c0_286 = arith.constant 0 : index
      %c0_287 = arith.constant 0 : index
      %515 = vector.load %arg4[%c0_284, %c1_285, %c0_286, %c0_287] : memref<1x8x112x112xf32, #tpu.memory_space<vmem>>, vector<1x1x112x112xf32>
      %516 = vector.shape_cast %515 : vector<1x1x112x112xf32> to vector<112x112xf32>
      %c0_288 = arith.constant 0 : index
      %c2_289 = arith.constant 2 : index
      %c0_290 = arith.constant 0 : index
      %c0_291 = arith.constant 0 : index
      %517 = vector.load %arg4[%c0_288, %c2_289, %c0_290, %c0_291] : memref<1x8x112x112xf32, #tpu.memory_space<vmem>>, vector<1x1x112x112xf32>
      %518 = vector.shape_cast %517 : vector<1x1x112x112xf32> to vector<112x112xf32>
      %c0_292 = arith.constant 0 : index
      %c3_293 = arith.constant 3 : index
      %c0_294 = arith.constant 0 : index
      %c0_295 = arith.constant 0 : index
      %519 = vector.load %arg4[%c0_292, %c3_293, %c0_294, %c0_295] : memref<1x8x112x112xf32, #tpu.memory_space<vmem>>, vector<1x1x112x112xf32>
      %520 = vector.shape_cast %519 : vector<1x1x112x112xf32> to vector<112x112xf32>
      %c0_296 = arith.constant 0 : index
      %c4_297 = arith.constant 4 : index
      %c0_298 = arith.constant 0 : index
      %c0_299 = arith.constant 0 : index
      %521 = vector.load %arg4[%c0_296, %c4_297, %c0_298, %c0_299] : memref<1x8x112x112xf32, #tpu.memory_space<vmem>>, vector<1x1x112x112xf32>
      %522 = vector.shape_cast %521 : vector<1x1x112x112xf32> to vector<112x112xf32>
      %c0_300 = arith.constant 0 : index
      %c5_301 = arith.constant 5 : index
      %c0_302 = arith.constant 0 : index
      %c0_303 = arith.constant 0 : index
      %523 = vector.load %arg4[%c0_300, %c5_301, %c0_302, %c0_303] : memref<1x8x112x112xf32, #tpu.memory_space<vmem>>, vector<1x1x112x112xf32>
      %524 = vector.shape_cast %523 : vector<1x1x112x112xf32> to vector<112x112xf32>
      %c0_304 = arith.constant 0 : index
      %c6_305 = arith.constant 6 : index
      %c0_306 = arith.constant 0 : index
      %c0_307 = arith.constant 0 : index
      %525 = vector.load %arg4[%c0_304, %c6_305, %c0_306, %c0_307] : memref<1x8x112x112xf32, #tpu.memory_space<vmem>>, vector<1x1x112x112xf32>
      %526 = vector.shape_cast %525 : vector<1x1x112x112xf32> to vector<112x112xf32>
      %c0_308 = arith.constant 0 : index
      %c7_309 = arith.constant 7 : index
      %c0_310 = arith.constant 0 : index
      %c0_311 = arith.constant 0 : index
      %527 = vector.load %arg4[%c0_308, %c7_309, %c0_310, %c0_311] : memref<1x8x112x112xf32, #tpu.memory_space<vmem>>, vector<1x1x112x112xf32>
      %528 = vector.shape_cast %527 : vector<1x1x112x112xf32> to vector<112x112xf32>
      %529 = arith.addf %514, %516 : vector<112x112xf32>
      %530 = arith.addf %529, %518 : vector<112x112xf32>
      %531 = arith.addf %530, %520 : vector<112x112xf32>
      %532 = arith.addf %531, %522 : vector<112x112xf32>
      %533 = arith.addf %532, %524 : vector<112x112xf32>
      %534 = arith.addf %533, %526 : vector<112x112xf32>
      %535 = arith.addf %534, %528 : vector<112x112xf32>
      %cst_312 = arith.constant 1.250000e-01 : f32
      %536 = vector.broadcast %cst_312 : f32 to vector<112x112xf32>
      %537 = arith.mulf %535, %536 : vector<112x112xf32>
      %538 = arith.subf %514, %537 : vector<112x112xf32>
      %539 = arith.mulf %538, %538 : vector<112x112xf32>
      %540 = arith.subf %516, %537 : vector<112x112xf32>
      %541 = arith.mulf %540, %540 : vector<112x112xf32>
      %542 = arith.addf %539, %541 : vector<112x112xf32>
      %543 = arith.subf %518, %537 : vector<112x112xf32>
      %544 = arith.mulf %543, %543 : vector<112x112xf32>
      %545 = arith.addf %542, %544 : vector<112x112xf32>
      %546 = arith.subf %520, %537 : vector<112x112xf32>
      %547 = arith.mulf %546, %546 : vector<112x112xf32>
      %548 = arith.addf %545, %547 : vector<112x112xf32>
      %549 = arith.subf %522, %537 : vector<112x112xf32>
      %550 = arith.mulf %549, %549 : vector<112x112xf32>
      %551 = arith.addf %548, %550 : vector<112x112xf32>
      %552 = arith.subf %524, %537 : vector<112x112xf32>
      %553 = arith.mulf %552, %552 : vector<112x112xf32>
      %554 = arith.addf %551, %553 : vector<112x112xf32>
      %555 = arith.subf %526, %537 : vector<112x112xf32>
      %556 = arith.mulf %555, %555 : vector<112x112xf32>
      %557 = arith.addf %554, %556 : vector<112x112xf32>
      %558 = arith.subf %528, %537 : vector<112x112xf32>
      %559 = arith.mulf %558, %558 : vector<112x112xf32>
      %560 = arith.addf %557, %559 : vector<112x112xf32>
      %cst_313 = arith.constant 1.250000e-01 : f32
      %561 = vector.broadcast %cst_313 : f32 to vector<112x112xf32>
      %562 = arith.mulf %560, %561 : vector<112x112xf32>
      %cst_314 = arith.constant 9.99999974E-6 : f32
      %563 = vector.broadcast %cst_314 : f32 to vector<112x112xf32>
      %564 = arith.addf %562, %563 : vector<112x112xf32>
      %565 = math.rsqrt %564 : vector<112x112xf32>
      %566 = arith.subf %514, %537 : vector<112x112xf32>
      %567 = arith.mulf %566, %565 : vector<112x112xf32>
      %c0_315 = arith.constant 0 : index
      %c0_316 = arith.constant 0 : index
      %c0_317 = arith.constant 0 : index
      %568 = vector.load %arg27[%c0_315, %c0_316, %c0_317] : memref<8x112x112xf32, #tpu.memory_space<vmem>>, vector<1x112x112xf32>
      %569 = vector.shape_cast %568 : vector<1x112x112xf32> to vector<112x112xf32>
      %570 = vector.shape_cast %567 : vector<112x112xf32> to vector<1x112x112xf32>
      tpu.vector_store %arg27[%c0_315, %c0_316, %c0_317], %570 {strides = array<i32>} : memref<8x112x112xf32, #tpu.memory_space<vmem>>, vector<1x112x112xf32>,
      %571 = arith.subf %516, %537 : vector<112x112xf32>
      %572 = arith.mulf %571, %565 : vector<112x112xf32>
      %c1_318 = arith.constant 1 : index
      %c0_319 = arith.constant 0 : index
      %c0_320 = arith.constant 0 : index
      %573 = vector.load %arg27[%c1_318, %c0_319, %c0_320] : memref<8x112x112xf32, #tpu.memory_space<vmem>>, vector<1x112x112xf32>
      %574 = vector.shape_cast %573 : vector<1x112x112xf32> to vector<112x112xf32>
      %575 = vector.shape_cast %572 : vector<112x112xf32> to vector<1x112x112xf32>
      tpu.vector_store %arg27[%c1_318, %c0_319, %c0_320], %575 {strides = array<i32>} : memref<8x112x112xf32, #tpu.memory_space<vmem>>, vector<1x112x112xf32>,
      %576 = arith.subf %518, %537 : vector<112x112xf32>
      %577 = arith.mulf %576, %565 : vector<112x112xf32>
      %c2_321 = arith.constant 2 : index
      %c0_322 = arith.constant 0 : index
      %c0_323 = arith.constant 0 : index
      %578 = vector.load %arg27[%c2_321, %c0_322, %c0_323] : memref<8x112x112xf32, #tpu.memory_space<vmem>>, vector<1x112x112xf32>
      %579 = vector.shape_cast %578 : vector<1x112x112xf32> to vector<112x112xf32>
      %580 = vector.shape_cast %577 : vector<112x112xf32> to vector<1x112x112xf32>
      tpu.vector_store %arg27[%c2_321, %c0_322, %c0_323], %580 {strides = array<i32>} : memref<8x112x112xf32, #tpu.memory_space<vmem>>, vector<1x112x112xf32>,
      %581 = arith.subf %520, %537 : vector<112x112xf32>
      %582 = arith.mulf %581, %565 : vector<112x112xf32>
      %c3_324 = arith.constant 3 : index
      %c0_325 = arith.constant 0 : index
      %c0_326 = arith.constant 0 : index
      %583 = vector.load %arg27[%c3_324, %c0_325, %c0_326] : memref<8x112x112xf32, #tpu.memory_space<vmem>>, vector<1x112x112xf32>
      %584 = vector.shape_cast %583 : vector<1x112x112xf32> to vector<112x112xf32>
      %585 = vector.shape_cast %582 : vector<112x112xf32> to vector<1x112x112xf32>
      tpu.vector_store %arg27[%c3_324, %c0_325, %c0_326], %585 {strides = array<i32>} : memref<8x112x112xf32, #tpu.memory_space<vmem>>, vector<1x112x112xf32>,
      %586 = arith.subf %522, %537 : vector<112x112xf32>
      %587 = arith.mulf %586, %565 : vector<112x112xf32>
      %c4_327 = arith.constant 4 : index
      %c0_328 = arith.constant 0 : index
      %c0_329 = arith.constant 0 : index
      %588 = vector.load %arg27[%c4_327, %c0_328, %c0_329] : memref<8x112x112xf32, #tpu.memory_space<vmem>>, vector<1x112x112xf32>
      %589 = vector.shape_cast %588 : vector<1x112x112xf32> to vector<112x112xf32>
      %590 = vector.shape_cast %587 : vector<112x112xf32> to vector<1x112x112xf32>
      tpu.vector_store %arg27[%c4_327, %c0_328, %c0_329], %590 {strides = array<i32>} : memref<8x112x112xf32, #tpu.memory_space<vmem>>, vector<1x112x112xf32>,
      %591 = arith.subf %524, %537 : vector<112x112xf32>
      %592 = arith.mulf %591, %565 : vector<112x112xf32>
      %c5_330 = arith.constant 5 : index
      %c0_331 = arith.constant 0 : index
      %c0_332 = arith.constant 0 : index
      %593 = vector.load %arg27[%c5_330, %c0_331, %c0_332] : memref<8x112x112xf32, #tpu.memory_space<vmem>>, vector<1x112x112xf32>
      %594 = vector.shape_cast %593 : vector<1x112x112xf32> to vector<112x112xf32>
      %595 = vector.shape_cast %592 : vector<112x112xf32> to vector<1x112x112xf32>
      tpu.vector_store %arg27[%c5_330, %c0_331, %c0_332], %595 {strides = array<i32>} : memref<8x112x112xf32, #tpu.memory_space<vmem>>, vector<1x112x112xf32>,
      %596 = arith.subf %526, %537 : vector<112x112xf32>
      %597 = arith.mulf %596, %565 : vector<112x112xf32>
      %c6_333 = arith.constant 6 : index
      %c0_334 = arith.constant 0 : index
      %c0_335 = arith.constant 0 : index
      %598 = vector.load %arg27[%c6_333, %c0_334, %c0_335] : memref<8x112x112xf32, #tpu.memory_space<vmem>>, vector<1x112x112xf32>
      %599 = vector.shape_cast %598 : vector<1x112x112xf32> to vector<112x112xf32>
      %600 = vector.shape_cast %597 : vector<112x112xf32> to vector<1x112x112xf32>
      tpu.vector_store %arg27[%c6_333, %c0_334, %c0_335], %600 {strides = array<i32>} : memref<8x112x112xf32, #tpu.memory_space<vmem>>, vector<1x112x112xf32>,
      %601 = arith.subf %528, %537 : vector<112x112xf32>
      %602 = arith.mulf %601, %565 : vector<112x112xf32>
      %c7_336 = arith.constant 7 : index
      %c0_337 = arith.constant 0 : index
      %c0_338 = arith.constant 0 : index
      %603 = vector.load %arg27[%c7_336, %c0_337, %c0_338] : memref<8x112x112xf32, #tpu.memory_space<vmem>>, vector<1x112x112xf32>
      %604 = vector.shape_cast %603 : vector<1x112x112xf32> to vector<112x112xf32>
      %605 = vector.shape_cast %602 : vector<112x112xf32> to vector<1x112x112xf32>
      tpu.vector_store %arg27[%c7_336, %c0_337, %c0_338], %605 {strides = array<i32>} : memref<8x112x112xf32, #tpu.memory_space<vmem>>, vector<1x112x112xf32>,
    } else {
    }
    %c0 = arith.constant 0 : index
    %c0_1 = arith.constant 0 : index
    %3 = vector.load %arg25[%c0, %c0_1] : memref<112x32xf32, #tpu.memory_space<vmem>>, vector<112x32xf32>
    %c0_2 = arith.constant 0 : index
    %c0_3 = arith.constant 0 : index
    %4 = vector.load %arg26[%c0_2, %c0_3] : memref<112x32xf32, #tpu.memory_space<vmem>>, vector<112x32xf32>
    %c0_4 = arith.constant 0 : index
    %c0_5 = arith.constant 0 : index
    %c0_6 = arith.constant 0 : index
    %5 = vector.load %arg3[%c0_4, %c0_5, %c0_6] : memref<1x112x32xf32, #tpu.memory_space<vmem>>, vector<1x112x32xf32>
    %6 = vector.shape_cast %5 : vector<1x112x32xf32> to vector<112x32xf32>
    %c0_7 = arith.constant 0 : index
    %c0_8 = arith.constant 0 : index
    %7 = vector.load %arg5[%c0_7, %c0_8] : memref<112x112xf32, #tpu.memory_space<vmem>>, vector<112x112xf32>
    %cst = arith.constant dense<0.000000e+00> : vector<112xf32>
    %8 = vector.multi_reduction <add>, %3, %cst [1] : vector<112x32xf32> to vector<112xf32>
    %9 = vector.shape_cast %8 : vector<112xf32> to vector<112x1xf32>
    %cst_9 = arith.constant 3.200000e+01 : f32
    %10 = vector.broadcast %cst_9 : f32 to vector<112x1xf32>
    %11 = arith.divf %9, %10 : vector<112x1xf32>
    %12 = vector.broadcast %11 : vector<112x1xf32> to vector<112x32xf32>
    %13 = arith.subf %3, %12 : vector<112x32xf32>
    %14 = arith.mulf %13, %13 : vector<112x32xf32>
    %cst_10 = arith.constant dense<0.000000e+00> : vector<112xf32>
    %15 = vector.multi_reduction <add>, %14, %cst_10 [1] : vector<112x32xf32> to vector<112xf32>
    %16 = vector.shape_cast %15 : vector<112xf32> to vector<112x1xf32>
    %cst_11 = arith.constant 3.200000e+01 : f32
    %17 = vector.broadcast %cst_11 : f32 to vector<112x1xf32>
    %18 = arith.divf %16, %17 : vector<112x1xf32>
    %19 = vector.broadcast %11 : vector<112x1xf32> to vector<112x32xf32>
    %20 = arith.subf %3, %19 : vector<112x32xf32>
    %cst_12 = arith.constant 9.99999974E-6 : f32
    %21 = vector.broadcast %cst_12 : f32 to vector<112x1xf32>
    %22 = arith.addf %18, %21 : vector<112x1xf32>
    %23 = math.rsqrt %22 : vector<112x1xf32>
    %24 = vector.broadcast %23 : vector<112x1xf32> to vector<112x32xf32>
    %25 = arith.mulf %20, %24 : vector<112x32xf32>
    %c0_13 = arith.constant 0 : index
    %c0_14 = arith.constant 0 : index
    %c0_15 = arith.constant 0 : index
    %26 = vector.load %arg14[%c0_13, %c0_14, %c0_15] : memref<1x32x64xf32, #tpu.memory_space<vmem>>, vector<1x32x64xf32>
    %27 = vector.shape_cast %26 : vector<1x32x64xf32> to vector<32x64xf32>
    %cst_16 = arith.constant dense<0.000000e+00> : vector<112x64xf32>
    %28 = tpu.matmul %6, %27, %cst_16 {dimension_numbers = #tpu.dot_dimension_numbers<[1], [0], [0], [1], [0, 0, 1, 1], [], []>} : vector<112x32xf32>, vector<32x64xf32>, vector<112x64xf32> -> vector<112x64xf32>
    %c0_17 = arith.constant 0 : index
    %c0_18 = arith.constant 0 : index
    %c0_19 = arith.constant 0 : index
    %29 = vector.load %arg15[%c0_17, %c0_18, %c0_19] : memref<1x1x64xf32, #tpu.memory_space<vmem>>, vector<1x1x64xf32>
    %30 = vector.shape_cast %29 : vector<1x1x64xf32> to vector<1x64xf32>
    %31 = vector.broadcast %30 : vector<1x64xf32> to vector<112x64xf32>
    %32 = arith.addf %28, %31 : vector<112x64xf32>
    %33 = arith.negf %32 : vector<112x64xf32>
    %34 = math.exp %33 : vector<112x64xf32>
    %cst_20 = arith.constant 1.000000e+00 : f32
    %35 = vector.broadcast %cst_20 : f32 to vector<112x64xf32>
    %36 = arith.addf %35, %34 : vector<112x64xf32>
    %37 = arith.divf %35, %36 : vector<112x64xf32>
    %38 = vector.extract_strided_slice %37 {offsets = [0, 0], sizes = [112, 32], strides = [1, 1]} : vector<112x64xf32> to vector<112x32xf32>
    %39 = vector.extract_strided_slice %37 {offsets = [0, 32], sizes = [112, 32], strides = [1, 1]} : vector<112x64xf32> to vector<112x32xf32>
    %c0_21 = arith.constant 0 : index
    %c0_22 = arith.constant 0 : index
    %c0_23 = arith.constant 0 : index
    %40 = vector.load %arg8[%c0_21, %c0_22, %c0_23] : memref<1x1x32xf32, #tpu.memory_space<vmem>>, vector<1x1x32xf32>
    %41 = vector.shape_cast %40 : vector<1x1x32xf32> to vector<1x32xf32>
    %42 = vector.broadcast %41 : vector<1x32xf32> to vector<112x32xf32>
    %43 = arith.mulf %4, %42 : vector<112x32xf32>
    %c0_24 = arith.constant 0 : index
    %c0_25 = arith.constant 0 : index
    %c0_26 = arith.constant 0 : index
    %44 = vector.load %arg9[%c0_24, %c0_25, %c0_26] : memref<1x32x64xf32, #tpu.memory_space<vmem>>, vector<1x32x64xf32>
    %45 = vector.shape_cast %44 : vector<1x32x64xf32> to vector<32x64xf32>
    %cst_27 = arith.constant dense<0.000000e+00> : vector<112x64xf32>
    %46 = tpu.matmul %43, %45, %cst_27 {dimension_numbers = #tpu.dot_dimension_numbers<[1], [0], [0], [1], [0, 0, 1, 1], [], []>} : vector<112x32xf32>, vector<32x64xf32>, vector<112x64xf32> -> vector<112x64xf32>
    %c0_28 = arith.constant 0 : index
    %c0_29 = arith.constant 0 : index
    %c0_30 = arith.constant 0 : index
    %47 = vector.load %arg10[%c0_28, %c0_29, %c0_30] : memref<1x1x64xf32, #tpu.memory_space<vmem>>, vector<1x1x64xf32>
    %48 = vector.shape_cast %47 : vector<1x1x64xf32> to vector<1x64xf32>
    %49 = vector.broadcast %48 : vector<1x64xf32> to vector<112x64xf32>
    %50 = arith.addf %46, %49 : vector<112x64xf32>
    %51 = vector.extract_strided_slice %50 {offsets = [0, 0], sizes = [112, 32], strides = [1, 1]} : vector<112x64xf32> to vector<112x32xf32>
    %52 = arith.negf %51 : vector<112x32xf32>
    %53 = math.exp %52 : vector<112x32xf32>
    %cst_31 = arith.constant 1.000000e+00 : f32
    %54 = vector.broadcast %cst_31 : f32 to vector<112x32xf32>
    %55 = arith.addf %54, %53 : vector<112x32xf32>
    %56 = arith.divf %54, %55 : vector<112x32xf32>
    %57 = arith.mulf %56, %25 : vector<112x32xf32>
    %58 = vector.extract_strided_slice %50 {offsets = [0, 32], sizes = [112, 32], strides = [1, 1]} : vector<112x64xf32> to vector<112x32xf32>
    %59 = arith.addf %57, %58 : vector<112x32xf32>
    %c0_32 = arith.constant 0 : index
    %c0_33 = arith.constant 0 : index
    %c0_34 = arith.constant 0 : index
    %60 = vector.load %arg11[%c0_32, %c0_33, %c0_34] : memref<1x32x128xf32, #tpu.memory_space<vmem>>, vector<1x32x128xf32>
    %61 = vector.shape_cast %60 : vector<1x32x128xf32> to vector<32x128xf32>
    %cst_35 = arith.constant dense<0.000000e+00> : vector<112x128xf32>
    %62 = tpu.matmul %59, %61, %cst_35 {dimension_numbers = #tpu.dot_dimension_numbers<[1], [0], [0], [1], [0, 0, 1, 1], [], []>} : vector<112x32xf32>, vector<32x128xf32>, vector<112x128xf32> -> vector<112x128xf32>
    %c0_36 = arith.constant 0 : index
    %c0_37 = arith.constant 0 : index
    %c0_38 = arith.constant 0 : index
    %63 = vector.load %arg12[%c0_36, %c0_37, %c0_38] : memref<1x1x128xf32, #tpu.memory_space<vmem>>, vector<1x1x128xf32>
    %64 = vector.shape_cast %63 : vector<1x1x128xf32> to vector<1x128xf32>
    %65 = vector.broadcast %64 : vector<1x128xf32> to vector<112x128xf32>
    %66 = arith.addf %62, %65 : vector<112x128xf32>
    %67 = vector.extract_strided_slice %66 {offsets = [0, 0], sizes = [112, 8], strides = [1, 1]} : vector<112x128xf32> to vector<112x8xf32>
    %68 = vector.extract_strided_slice %66 {offsets = [0, 32], sizes = [112, 8], strides = [1, 1]} : vector<112x128xf32> to vector<112x8xf32>
    %69 = vector.extract_strided_slice %66 {offsets = [0, 64], sizes = [112, 8], strides = [1, 1]} : vector<112x128xf32> to vector<112x8xf32>
    %70 = arith.index_cast %arg1 : i32 to index
    %c0_39 = arith.constant 0 : index
    %71 = memref.load %arg7[%70, %c0_39] : memref<2x4xf32, #tpu.memory_space<smem>>
    %72 = vector.broadcast %71 : f32 to vector<112x112xf32>
    %73 = arith.addf %7, %72 : vector<112x112xf32>
    %c0_40 = arith.constant 0 : index
    %c0_41 = arith.constant 0 : index
    %c0_42 = arith.constant 0 : index
    %74 = vector.load %arg27[%c0_40, %c0_41, %c0_42] : memref<8x112x112xf32, #tpu.memory_space<vmem>>, vector<1x112x112xf32>
    %75 = vector.shape_cast %74 : vector<1x112x112xf32> to vector<112x112xf32>
    %c8_i32 = arith.constant 8 : i32
    %76 = arith.muli %arg1, %c8_i32 : i32
    %c0_i32_43 = arith.constant 0 : i32
    %77 = arith.addi %76, %c0_i32_43 : i32
    %78 = arith.index_cast %77 : i32 to index
    %c0_44 = arith.constant 0 : index
    %79 = memref.load %arg6[%78, %c0_44] : memref<16x4xf32, #tpu.memory_space<smem>>
    %80 = vector.broadcast %79 : f32 to vector<112x112xf32>
    %81 = arith.mulf %75, %80 : vector<112x112xf32>
    %82 = arith.addf %73, %81 : vector<112x112xf32>
    %c1 = arith.constant 1 : index
    %c0_45 = arith.constant 0 : index
    %c0_46 = arith.constant 0 : index
    %83 = vector.load %arg27[%c1, %c0_45, %c0_46] : memref<8x112x112xf32, #tpu.memory_space<vmem>>, vector<1x112x112xf32>
    %84 = vector.shape_cast %83 : vector<1x112x112xf32> to vector<112x112xf32>
    %c8_i32_47 = arith.constant 8 : i32
    %85 = arith.muli %arg1, %c8_i32_47 : i32
    %c1_i32 = arith.constant 1 : i32
    %86 = arith.addi %85, %c1_i32 : i32
    %87 = arith.index_cast %86 : i32 to index
    %c0_48 = arith.constant 0 : index
    %88 = memref.load %arg6[%87, %c0_48] : memref<16x4xf32, #tpu.memory_space<smem>>
    %89 = vector.broadcast %88 : f32 to vector<112x112xf32>
    %90 = arith.mulf %84, %89 : vector<112x112xf32>
    %91 = arith.addf %82, %90 : vector<112x112xf32>
    %c2 = arith.constant 2 : index
    %c0_49 = arith.constant 0 : index
    %c0_50 = arith.constant 0 : index
    %92 = vector.load %arg27[%c2, %c0_49, %c0_50] : memref<8x112x112xf32, #tpu.memory_space<vmem>>, vector<1x112x112xf32>
    %93 = vector.shape_cast %92 : vector<1x112x112xf32> to vector<112x112xf32>
    %c8_i32_51 = arith.constant 8 : i32
    %94 = arith.muli %arg1, %c8_i32_51 : i32
    %c2_i32 = arith.constant 2 : i32
    %95 = arith.addi %94, %c2_i32 : i32
    %96 = arith.index_cast %95 : i32 to index
    %c0_52 = arith.constant 0 : index
    %97 = memref.load %arg6[%96, %c0_52] : memref<16x4xf32, #tpu.memory_space<smem>>
    %98 = vector.broadcast %97 : f32 to vector<112x112xf32>
    %99 = arith.mulf %93, %98 : vector<112x112xf32>
    %100 = arith.addf %91, %99 : vector<112x112xf32>
    %c3 = arith.constant 3 : index
    %c0_53 = arith.constant 0 : index
    %c0_54 = arith.constant 0 : index
    %101 = vector.load %arg27[%c3, %c0_53, %c0_54] : memref<8x112x112xf32, #tpu.memory_space<vmem>>, vector<1x112x112xf32>
    %102 = vector.shape_cast %101 : vector<1x112x112xf32> to vector<112x112xf32>
    %c8_i32_55 = arith.constant 8 : i32
    %103 = arith.muli %arg1, %c8_i32_55 : i32
    %c3_i32 = arith.constant 3 : i32
    %104 = arith.addi %103, %c3_i32 : i32
    %105 = arith.index_cast %104 : i32 to index
    %c0_56 = arith.constant 0 : index
    %106 = memref.load %arg6[%105, %c0_56] : memref<16x4xf32, #tpu.memory_space<smem>>
    %107 = vector.broadcast %106 : f32 to vector<112x112xf32>
    %108 = arith.mulf %102, %107 : vector<112x112xf32>
    %109 = arith.addf %100, %108 : vector<112x112xf32>
    %c4 = arith.constant 4 : index
    %c0_57 = arith.constant 0 : index
    %c0_58 = arith.constant 0 : index
    %110 = vector.load %arg27[%c4, %c0_57, %c0_58] : memref<8x112x112xf32, #tpu.memory_space<vmem>>, vector<1x112x112xf32>
    %111 = vector.shape_cast %110 : vector<1x112x112xf32> to vector<112x112xf32>
    %c8_i32_59 = arith.constant 8 : i32
    %112 = arith.muli %arg1, %c8_i32_59 : i32
    %c4_i32 = arith.constant 4 : i32
    %113 = arith.addi %112, %c4_i32 : i32
    %114 = arith.index_cast %113 : i32 to index
    %c0_60 = arith.constant 0 : index
    %115 = memref.load %arg6[%114, %c0_60] : memref<16x4xf32, #tpu.memory_space<smem>>
    %116 = vector.broadcast %115 : f32 to vector<112x112xf32>
    %117 = arith.mulf %111, %116 : vector<112x112xf32>
    %118 = arith.addf %109, %117 : vector<112x112xf32>
    %c5 = arith.constant 5 : index
    %c0_61 = arith.constant 0 : index
    %c0_62 = arith.constant 0 : index
    %119 = vector.load %arg27[%c5, %c0_61, %c0_62] : memref<8x112x112xf32, #tpu.memory_space<vmem>>, vector<1x112x112xf32>
    %120 = vector.shape_cast %119 : vector<1x112x112xf32> to vector<112x112xf32>
    %c8_i32_63 = arith.constant 8 : i32
    %121 = arith.muli %arg1, %c8_i32_63 : i32
    %c5_i32 = arith.constant 5 : i32
    %122 = arith.addi %121, %c5_i32 : i32
    %123 = arith.index_cast %122 : i32 to index
    %c0_64 = arith.constant 0 : index
    %124 = memref.load %arg6[%123, %c0_64] : memref<16x4xf32, #tpu.memory_space<smem>>
    %125 = vector.broadcast %124 : f32 to vector<112x112xf32>
    %126 = arith.mulf %120, %125 : vector<112x112xf32>
    %127 = arith.addf %118, %126 : vector<112x112xf32>
    %c6 = arith.constant 6 : index
    %c0_65 = arith.constant 0 : index
    %c0_66 = arith.constant 0 : index
    %128 = vector.load %arg27[%c6, %c0_65, %c0_66] : memref<8x112x112xf32, #tpu.memory_space<vmem>>, vector<1x112x112xf32>
    %129 = vector.shape_cast %128 : vector<1x112x112xf32> to vector<112x112xf32>
    %c8_i32_67 = arith.constant 8 : i32
    %130 = arith.muli %arg1, %c8_i32_67 : i32
    %c6_i32 = arith.constant 6 : i32
    %131 = arith.addi %130, %c6_i32 : i32
    %132 = arith.index_cast %131 : i32 to index
    %c0_68 = arith.constant 0 : index
    %133 = memref.load %arg6[%132, %c0_68] : memref<16x4xf32, #tpu.memory_space<smem>>
    %134 = vector.broadcast %133 : f32 to vector<112x112xf32>
    %135 = arith.mulf %129, %134 : vector<112x112xf32>
    %136 = arith.addf %127, %135 : vector<112x112xf32>
    %c7 = arith.constant 7 : index
    %c0_69 = arith.constant 0 : index
    %c0_70 = arith.constant 0 : index
    %137 = vector.load %arg27[%c7, %c0_69, %c0_70] : memref<8x112x112xf32, #tpu.memory_space<vmem>>, vector<1x112x112xf32>
    %138 = vector.shape_cast %137 : vector<1x112x112xf32> to vector<112x112xf32>
    %c8_i32_71 = arith.constant 8 : i32
    %139 = arith.muli %arg1, %c8_i32_71 : i32
    %c7_i32 = arith.constant 7 : i32
    %140 = arith.addi %139, %c7_i32 : i32
    %141 = arith.index_cast %140 : i32 to index
    %c0_72 = arith.constant 0 : index
    %142 = memref.load %arg6[%141, %c0_72] : memref<16x4xf32, #tpu.memory_space<smem>>
    %143 = vector.broadcast %142 : f32 to vector<112x112xf32>
    %144 = arith.mulf %138, %143 : vector<112x112xf32>
    %145 = arith.addf %136, %144 : vector<112x112xf32>
    %cst_73 = arith.constant dense<0.000000e+00> : vector<112x112xf32>
    %146 = tpu.matmul %67, %68, %cst_73 {dimension_numbers = #tpu.dot_dimension_numbers<[1], [1], [0], [0], [0, 0, 1, 0], [], []>} : vector<112x8xf32>, vector<112x8xf32>, vector<112x112xf32> -> vector<112x112xf32>
    %147 = arith.addf %146, %145 : vector<112x112xf32>
    %cst_74 = arith.constant dense<0xFF800000> : vector<112xf32>
    %148 = vector.multi_reduction <maximumf>, %147, %cst_74 [1] : vector<112x112xf32> to vector<112xf32>
    %149 = vector.shape_cast %148 : vector<112xf32> to vector<112x1xf32>
    %150 = vector.broadcast %149 : vector<112x1xf32> to vector<112x112xf32>
    %151 = arith.subf %147, %150 : vector<112x112xf32>
    %152 = math.exp %151 : vector<112x112xf32>
    %cst_75 = arith.constant dense<0.000000e+00> : vector<112xf32>
    %153 = vector.multi_reduction <add>, %152, %cst_75 [1] : vector<112x112xf32> to vector<112xf32>
    %154 = vector.shape_cast %153 : vector<112xf32> to vector<112x1xf32>
    %155 = tpu.reciprocal %154 {approx = true} : vector<112x1xf32> -> vector<112x1xf32>
    %156 = vector.broadcast %155 : vector<112x1xf32> to vector<112x112xf32>
    %157 = arith.mulf %152, %156 : vector<112x112xf32>
    %cst_76 = arith.constant dense<0.000000e+00> : vector<112x8xf32>
    %158 = tpu.matmul %157, %69, %cst_76 {dimension_numbers = #tpu.dot_dimension_numbers<[1], [0], [0], [1], [0, 0, 1, 1], [], []>} : vector<112x112xf32>, vector<112x8xf32>, vector<112x8xf32> -> vector<112x8xf32>
    %159 = vector.extract_strided_slice %66 {offsets = [0, 8], sizes = [112, 8], strides = [1, 1]} : vector<112x128xf32> to vector<112x8xf32>
    %160 = vector.extract_strided_slice %66 {offsets = [0, 40], sizes = [112, 8], strides = [1, 1]} : vector<112x128xf32> to vector<112x8xf32>
    %161 = vector.extract_strided_slice %66 {offsets = [0, 72], sizes = [112, 8], strides = [1, 1]} : vector<112x128xf32> to vector<112x8xf32>
    %162 = arith.index_cast %arg1 : i32 to index
    %c1_77 = arith.constant 1 : index
    %163 = memref.load %arg7[%162, %c1_77] : memref<2x4xf32, #tpu.memory_space<smem>>
    %164 = vector.broadcast %163 : f32 to vector<112x112xf32>
    %165 = arith.addf %7, %164 : vector<112x112xf32>
    %c0_78 = arith.constant 0 : index
    %c0_79 = arith.constant 0 : index
    %c0_80 = arith.constant 0 : index
    %166 = vector.load %arg27[%c0_78, %c0_79, %c0_80] : memref<8x112x112xf32, #tpu.memory_space<vmem>>, vector<1x112x112xf32>
    %167 = vector.shape_cast %166 : vector<1x112x112xf32> to vector<112x112xf32>
    %c8_i32_81 = arith.constant 8 : i32
    %168 = arith.muli %arg1, %c8_i32_81 : i32
    %c0_i32_82 = arith.constant 0 : i32
    %169 = arith.addi %168, %c0_i32_82 : i32
    %170 = arith.index_cast %169 : i32 to index
    %c1_83 = arith.constant 1 : index
    %171 = memref.load %arg6[%170, %c1_83] : memref<16x4xf32, #tpu.memory_space<smem>>
    %172 = vector.broadcast %171 : f32 to vector<112x112xf32>
    %173 = arith.mulf %167, %172 : vector<112x112xf32>
    %174 = arith.addf %165, %173 : vector<112x112xf32>
    %c1_84 = arith.constant 1 : index
    %c0_85 = arith.constant 0 : index
    %c0_86 = arith.constant 0 : index
    %175 = vector.load %arg27[%c1_84, %c0_85, %c0_86] : memref<8x112x112xf32, #tpu.memory_space<vmem>>, vector<1x112x112xf32>
    %176 = vector.shape_cast %175 : vector<1x112x112xf32> to vector<112x112xf32>
    %c8_i32_87 = arith.constant 8 : i32
    %177 = arith.muli %arg1, %c8_i32_87 : i32
    %c1_i32_88 = arith.constant 1 : i32
    %178 = arith.addi %177, %c1_i32_88 : i32
    %179 = arith.index_cast %178 : i32 to index
    %c1_89 = arith.constant 1 : index
    %180 = memref.load %arg6[%179, %c1_89] : memref<16x4xf32, #tpu.memory_space<smem>>
    %181 = vector.broadcast %180 : f32 to vector<112x112xf32>
    %182 = arith.mulf %176, %181 : vector<112x112xf32>
    %183 = arith.addf %174, %182 : vector<112x112xf32>
    %c2_90 = arith.constant 2 : index
    %c0_91 = arith.constant 0 : index
    %c0_92 = arith.constant 0 : index
    %184 = vector.load %arg27[%c2_90, %c0_91, %c0_92] : memref<8x112x112xf32, #tpu.memory_space<vmem>>, vector<1x112x112xf32>
    %185 = vector.shape_cast %184 : vector<1x112x112xf32> to vector<112x112xf32>
    %c8_i32_93 = arith.constant 8 : i32
    %186 = arith.muli %arg1, %c8_i32_93 : i32
    %c2_i32_94 = arith.constant 2 : i32
    %187 = arith.addi %186, %c2_i32_94 : i32
    %188 = arith.index_cast %187 : i32 to index
    %c1_95 = arith.constant 1 : index
    %189 = memref.load %arg6[%188, %c1_95] : memref<16x4xf32, #tpu.memory_space<smem>>
    %190 = vector.broadcast %189 : f32 to vector<112x112xf32>
    %191 = arith.mulf %185, %190 : vector<112x112xf32>
    %192 = arith.addf %183, %191 : vector<112x112xf32>
    %c3_96 = arith.constant 3 : index
    %c0_97 = arith.constant 0 : index
    %c0_98 = arith.constant 0 : index
    %193 = vector.load %arg27[%c3_96, %c0_97, %c0_98] : memref<8x112x112xf32, #tpu.memory_space<vmem>>, vector<1x112x112xf32>
    %194 = vector.shape_cast %193 : vector<1x112x112xf32> to vector<112x112xf32>
    %c8_i32_99 = arith.constant 8 : i32
    %195 = arith.muli %arg1, %c8_i32_99 : i32
    %c3_i32_100 = arith.constant 3 : i32
    %196 = arith.addi %195, %c3_i32_100 : i32
    %197 = arith.index_cast %196 : i32 to index
    %c1_101 = arith.constant 1 : index
    %198 = memref.load %arg6[%197, %c1_101] : memref<16x4xf32, #tpu.memory_space<smem>>
    %199 = vector.broadcast %198 : f32 to vector<112x112xf32>
    %200 = arith.mulf %194, %199 : vector<112x112xf32>
    %201 = arith.addf %192, %200 : vector<112x112xf32>
    %c4_102 = arith.constant 4 : index
    %c0_103 = arith.constant 0 : index
    %c0_104 = arith.constant 0 : index
    %202 = vector.load %arg27[%c4_102, %c0_103, %c0_104] : memref<8x112x112xf32, #tpu.memory_space<vmem>>, vector<1x112x112xf32>
    %203 = vector.shape_cast %202 : vector<1x112x112xf32> to vector<112x112xf32>
    %c8_i32_105 = arith.constant 8 : i32
    %204 = arith.muli %arg1, %c8_i32_105 : i32
    %c4_i32_106 = arith.constant 4 : i32
    %205 = arith.addi %204, %c4_i32_106 : i32
    %206 = arith.index_cast %205 : i32 to index
    %c1_107 = arith.constant 1 : index
    %207 = memref.load %arg6[%206, %c1_107] : memref<16x4xf32, #tpu.memory_space<smem>>
    %208 = vector.broadcast %207 : f32 to vector<112x112xf32>
    %209 = arith.mulf %203, %208 : vector<112x112xf32>
    %210 = arith.addf %201, %209 : vector<112x112xf32>
    %c5_108 = arith.constant 5 : index
    %c0_109 = arith.constant 0 : index
    %c0_110 = arith.constant 0 : index
    %211 = vector.load %arg27[%c5_108, %c0_109, %c0_110] : memref<8x112x112xf32, #tpu.memory_space<vmem>>, vector<1x112x112xf32>
    %212 = vector.shape_cast %211 : vector<1x112x112xf32> to vector<112x112xf32>
    %c8_i32_111 = arith.constant 8 : i32
    %213 = arith.muli %arg1, %c8_i32_111 : i32
    %c5_i32_112 = arith.constant 5 : i32
    %214 = arith.addi %213, %c5_i32_112 : i32
    %215 = arith.index_cast %214 : i32 to index
    %c1_113 = arith.constant 1 : index
    %216 = memref.load %arg6[%215, %c1_113] : memref<16x4xf32, #tpu.memory_space<smem>>
    %217 = vector.broadcast %216 : f32 to vector<112x112xf32>
    %218 = arith.mulf %212, %217 : vector<112x112xf32>
    %219 = arith.addf %210, %218 : vector<112x112xf32>
    %c6_114 = arith.constant 6 : index
    %c0_115 = arith.constant 0 : index
    %c0_116 = arith.constant 0 : index
    %220 = vector.load %arg27[%c6_114, %c0_115, %c0_116] : memref<8x112x112xf32, #tpu.memory_space<vmem>>, vector<1x112x112xf32>
    %221 = vector.shape_cast %220 : vector<1x112x112xf32> to vector<112x112xf32>
    %c8_i32_117 = arith.constant 8 : i32
    %222 = arith.muli %arg1, %c8_i32_117 : i32
    %c6_i32_118 = arith.constant 6 : i32
    %223 = arith.addi %222, %c6_i32_118 : i32
    %224 = arith.index_cast %223 : i32 to index
    %c1_119 = arith.constant 1 : index
    %225 = memref.load %arg6[%224, %c1_119] : memref<16x4xf32, #tpu.memory_space<smem>>
    %226 = vector.broadcast %225 : f32 to vector<112x112xf32>
    %227 = arith.mulf %221, %226 : vector<112x112xf32>
    %228 = arith.addf %219, %227 : vector<112x112xf32>
    %c7_120 = arith.constant 7 : index
    %c0_121 = arith.constant 0 : index
    %c0_122 = arith.constant 0 : index
    %229 = vector.load %arg27[%c7_120, %c0_121, %c0_122] : memref<8x112x112xf32, #tpu.memory_space<vmem>>, vector<1x112x112xf32>
    %230 = vector.shape_cast %229 : vector<1x112x112xf32> to vector<112x112xf32>
    %c8_i32_123 = arith.constant 8 : i32
    %231 = arith.muli %arg1, %c8_i32_123 : i32
    %c7_i32_124 = arith.constant 7 : i32
    %232 = arith.addi %231, %c7_i32_124 : i32
    %233 = arith.index_cast %232 : i32 to index
    %c1_125 = arith.constant 1 : index
    %234 = memref.load %arg6[%233, %c1_125] : memref<16x4xf32, #tpu.memory_space<smem>>
    %235 = vector.broadcast %234 : f32 to vector<112x112xf32>
    %236 = arith.mulf %230, %235 : vector<112x112xf32>
    %237 = arith.addf %228, %236 : vector<112x112xf32>
    %cst_126 = arith.constant dense<0.000000e+00> : vector<112x112xf32>
    %238 = tpu.matmul %159, %160, %cst_126 {dimension_numbers = #tpu.dot_dimension_numbers<[1], [1], [0], [0], [0, 0, 1, 0], [], []>} : vector<112x8xf32>, vector<112x8xf32>, vector<112x112xf32> -> vector<112x112xf32>
    %239 = arith.addf %238, %237 : vector<112x112xf32>
    %cst_127 = arith.constant dense<0xFF800000> : vector<112xf32>
    %240 = vector.multi_reduction <maximumf>, %239, %cst_127 [1] : vector<112x112xf32> to vector<112xf32>
    %241 = vector.shape_cast %240 : vector<112xf32> to vector<112x1xf32>
    %242 = vector.broadcast %241 : vector<112x1xf32> to vector<112x112xf32>
    %243 = arith.subf %239, %242 : vector<112x112xf32>
    %244 = math.exp %243 : vector<112x112xf32>
    %cst_128 = arith.constant dense<0.000000e+00> : vector<112xf32>
    %245 = vector.multi_reduction <add>, %244, %cst_128 [1] : vector<112x112xf32> to vector<112xf32>
    %246 = vector.shape_cast %245 : vector<112xf32> to vector<112x1xf32>
    %247 = tpu.reciprocal %246 {approx = true} : vector<112x1xf32> -> vector<112x1xf32>
    %248 = vector.broadcast %247 : vector<112x1xf32> to vector<112x112xf32>
    %249 = arith.mulf %244, %248 : vector<112x112xf32>
    %cst_129 = arith.constant dense<0.000000e+00> : vector<112x8xf32>
    %250 = tpu.matmul %249, %161, %cst_129 {dimension_numbers = #tpu.dot_dimension_numbers<[1], [0], [0], [1], [0, 0, 1, 1], [], []>} : vector<112x112xf32>, vector<112x8xf32>, vector<112x8xf32> -> vector<112x8xf32>
    %251 = vector.extract_strided_slice %66 {offsets = [0, 16], sizes = [112, 8], strides = [1, 1]} : vector<112x128xf32> to vector<112x8xf32>
    %252 = vector.extract_strided_slice %66 {offsets = [0, 48], sizes = [112, 8], strides = [1, 1]} : vector<112x128xf32> to vector<112x8xf32>
    %253 = vector.extract_strided_slice %66 {offsets = [0, 80], sizes = [112, 8], strides = [1, 1]} : vector<112x128xf32> to vector<112x8xf32>
    %254 = arith.index_cast %arg1 : i32 to index
    %c2_130 = arith.constant 2 : index
    %255 = memref.load %arg7[%254, %c2_130] : memref<2x4xf32, #tpu.memory_space<smem>>
    %256 = vector.broadcast %255 : f32 to vector<112x112xf32>
    %257 = arith.addf %7, %256 : vector<112x112xf32>
    %c0_131 = arith.constant 0 : index
    %c0_132 = arith.constant 0 : index
    %c0_133 = arith.constant 0 : index
    %258 = vector.load %arg27[%c0_131, %c0_132, %c0_133] : memref<8x112x112xf32, #tpu.memory_space<vmem>>, vector<1x112x112xf32>
    %259 = vector.shape_cast %258 : vector<1x112x112xf32> to vector<112x112xf32>
    %c8_i32_134 = arith.constant 8 : i32
    %260 = arith.muli %arg1, %c8_i32_134 : i32
    %c0_i32_135 = arith.constant 0 : i32
    %261 = arith.addi %260, %c0_i32_135 : i32
    %262 = arith.index_cast %261 : i32 to index
    %c2_136 = arith.constant 2 : index
    %263 = memref.load %arg6[%262, %c2_136] : memref<16x4xf32, #tpu.memory_space<smem>>
    %264 = vector.broadcast %263 : f32 to vector<112x112xf32>
    %265 = arith.mulf %259, %264 : vector<112x112xf32>
    %266 = arith.addf %257, %265 : vector<112x112xf32>
    %c1_137 = arith.constant 1 : index
    %c0_138 = arith.constant 0 : index
    %c0_139 = arith.constant 0 : index
    %267 = vector.load %arg27[%c1_137, %c0_138, %c0_139] : memref<8x112x112xf32, #tpu.memory_space<vmem>>, vector<1x112x112xf32>
    %268 = vector.shape_cast %267 : vector<1x112x112xf32> to vector<112x112xf32>
    %c8_i32_140 = arith.constant 8 : i32
    %269 = arith.muli %arg1, %c8_i32_140 : i32
    %c1_i32_141 = arith.constant 1 : i32
    %270 = arith.addi %269, %c1_i32_141 : i32
    %271 = arith.index_cast %270 : i32 to index
    %c2_142 = arith.constant 2 : index
    %272 = memref.load %arg6[%271, %c2_142] : memref<16x4xf32, #tpu.memory_space<smem>>
    %273 = vector.broadcast %272 : f32 to vector<112x112xf32>
    %274 = arith.mulf %268, %273 : vector<112x112xf32>
    %275 = arith.addf %266, %274 : vector<112x112xf32>
    %c2_143 = arith.constant 2 : index
    %c0_144 = arith.constant 0 : index
    %c0_145 = arith.constant 0 : index
    %276 = vector.load %arg27[%c2_143, %c0_144, %c0_145] : memref<8x112x112xf32, #tpu.memory_space<vmem>>, vector<1x112x112xf32>
    %277 = vector.shape_cast %276 : vector<1x112x112xf32> to vector<112x112xf32>
    %c8_i32_146 = arith.constant 8 : i32
    %278 = arith.muli %arg1, %c8_i32_146 : i32
    %c2_i32_147 = arith.constant 2 : i32
    %279 = arith.addi %278, %c2_i32_147 : i32
    %280 = arith.index_cast %279 : i32 to index
    %c2_148 = arith.constant 2 : index
    %281 = memref.load %arg6[%280, %c2_148] : memref<16x4xf32, #tpu.memory_space<smem>>
    %282 = vector.broadcast %281 : f32 to vector<112x112xf32>
    %283 = arith.mulf %277, %282 : vector<112x112xf32>
    %284 = arith.addf %275, %283 : vector<112x112xf32>
    %c3_149 = arith.constant 3 : index
    %c0_150 = arith.constant 0 : index
    %c0_151 = arith.constant 0 : index
    %285 = vector.load %arg27[%c3_149, %c0_150, %c0_151] : memref<8x112x112xf32, #tpu.memory_space<vmem>>, vector<1x112x112xf32>
    %286 = vector.shape_cast %285 : vector<1x112x112xf32> to vector<112x112xf32>
    %c8_i32_152 = arith.constant 8 : i32
    %287 = arith.muli %arg1, %c8_i32_152 : i32
    %c3_i32_153 = arith.constant 3 : i32
    %288 = arith.addi %287, %c3_i32_153 : i32
    %289 = arith.index_cast %288 : i32 to index
    %c2_154 = arith.constant 2 : index
    %290 = memref.load %arg6[%289, %c2_154] : memref<16x4xf32, #tpu.memory_space<smem>>
    %291 = vector.broadcast %290 : f32 to vector<112x112xf32>
    %292 = arith.mulf %286, %291 : vector<112x112xf32>
    %293 = arith.addf %284, %292 : vector<112x112xf32>
    %c4_155 = arith.constant 4 : index
    %c0_156 = arith.constant 0 : index
    %c0_157 = arith.constant 0 : index
    %294 = vector.load %arg27[%c4_155, %c0_156, %c0_157] : memref<8x112x112xf32, #tpu.memory_space<vmem>>, vector<1x112x112xf32>
    %295 = vector.shape_cast %294 : vector<1x112x112xf32> to vector<112x112xf32>
    %c8_i32_158 = arith.constant 8 : i32
    %296 = arith.muli %arg1, %c8_i32_158 : i32
    %c4_i32_159 = arith.constant 4 : i32
    %297 = arith.addi %296, %c4_i32_159 : i32
    %298 = arith.index_cast %297 : i32 to index
    %c2_160 = arith.constant 2 : index
    %299 = memref.load %arg6[%298, %c2_160] : memref<16x4xf32, #tpu.memory_space<smem>>
    %300 = vector.broadcast %299 : f32 to vector<112x112xf32>
    %301 = arith.mulf %295, %300 : vector<112x112xf32>
    %302 = arith.addf %293, %301 : vector<112x112xf32>
    %c5_161 = arith.constant 5 : index
    %c0_162 = arith.constant 0 : index
    %c0_163 = arith.constant 0 : index
    %303 = vector.load %arg27[%c5_161, %c0_162, %c0_163] : memref<8x112x112xf32, #tpu.memory_space<vmem>>, vector<1x112x112xf32>
    %304 = vector.shape_cast %303 : vector<1x112x112xf32> to vector<112x112xf32>
    %c8_i32_164 = arith.constant 8 : i32
    %305 = arith.muli %arg1, %c8_i32_164 : i32
    %c5_i32_165 = arith.constant 5 : i32
    %306 = arith.addi %305, %c5_i32_165 : i32
    %307 = arith.index_cast %306 : i32 to index
    %c2_166 = arith.constant 2 : index
    %308 = memref.load %arg6[%307, %c2_166] : memref<16x4xf32, #tpu.memory_space<smem>>
    %309 = vector.broadcast %308 : f32 to vector<112x112xf32>
    %310 = arith.mulf %304, %309 : vector<112x112xf32>
    %311 = arith.addf %302, %310 : vector<112x112xf32>
    %c6_167 = arith.constant 6 : index
    %c0_168 = arith.constant 0 : index
    %c0_169 = arith.constant 0 : index
    %312 = vector.load %arg27[%c6_167, %c0_168, %c0_169] : memref<8x112x112xf32, #tpu.memory_space<vmem>>, vector<1x112x112xf32>
    %313 = vector.shape_cast %312 : vector<1x112x112xf32> to vector<112x112xf32>
    %c8_i32_170 = arith.constant 8 : i32
    %314 = arith.muli %arg1, %c8_i32_170 : i32
    %c6_i32_171 = arith.constant 6 : i32
    %315 = arith.addi %314, %c6_i32_171 : i32
    %316 = arith.index_cast %315 : i32 to index
    %c2_172 = arith.constant 2 : index
    %317 = memref.load %arg6[%316, %c2_172] : memref<16x4xf32, #tpu.memory_space<smem>>
    %318 = vector.broadcast %317 : f32 to vector<112x112xf32>
    %319 = arith.mulf %313, %318 : vector<112x112xf32>
    %320 = arith.addf %311, %319 : vector<112x112xf32>
    %c7_173 = arith.constant 7 : index
    %c0_174 = arith.constant 0 : index
    %c0_175 = arith.constant 0 : index
    %321 = vector.load %arg27[%c7_173, %c0_174, %c0_175] : memref<8x112x112xf32, #tpu.memory_space<vmem>>, vector<1x112x112xf32>
    %322 = vector.shape_cast %321 : vector<1x112x112xf32> to vector<112x112xf32>
    %c8_i32_176 = arith.constant 8 : i32
    %323 = arith.muli %arg1, %c8_i32_176 : i32
    %c7_i32_177 = arith.constant 7 : i32
    %324 = arith.addi %323, %c7_i32_177 : i32
    %325 = arith.index_cast %324 : i32 to index
    %c2_178 = arith.constant 2 : index
    %326 = memref.load %arg6[%325, %c2_178] : memref<16x4xf32, #tpu.memory_space<smem>>
    %327 = vector.broadcast %326 : f32 to vector<112x112xf32>
    %328 = arith.mulf %322, %327 : vector<112x112xf32>
    %329 = arith.addf %320, %328 : vector<112x112xf32>
    %cst_179 = arith.constant dense<0.000000e+00> : vector<112x112xf32>
    %330 = tpu.matmul %251, %252, %cst_179 {dimension_numbers = #tpu.dot_dimension_numbers<[1], [1], [0], [0], [0, 0, 1, 0], [], []>} : vector<112x8xf32>, vector<112x8xf32>, vector<112x112xf32> -> vector<112x112xf32>
    %331 = arith.addf %330, %329 : vector<112x112xf32>
    %cst_180 = arith.constant dense<0xFF800000> : vector<112xf32>
    %332 = vector.multi_reduction <maximumf>, %331, %cst_180 [1] : vector<112x112xf32> to vector<112xf32>
    %333 = vector.shape_cast %332 : vector<112xf32> to vector<112x1xf32>
    %334 = vector.broadcast %333 : vector<112x1xf32> to vector<112x112xf32>
    %335 = arith.subf %331, %334 : vector<112x112xf32>
    %336 = math.exp %335 : vector<112x112xf32>
    %cst_181 = arith.constant dense<0.000000e+00> : vector<112xf32>
    %337 = vector.multi_reduction <add>, %336, %cst_181 [1] : vector<112x112xf32> to vector<112xf32>
    %338 = vector.shape_cast %337 : vector<112xf32> to vector<112x1xf32>
    %339 = tpu.reciprocal %338 {approx = true} : vector<112x1xf32> -> vector<112x1xf32>
    %340 = vector.broadcast %339 : vector<112x1xf32> to vector<112x112xf32>
    %341 = arith.mulf %336, %340 : vector<112x112xf32>
    %cst_182 = arith.constant dense<0.000000e+00> : vector<112x8xf32>
    %342 = tpu.matmul %341, %253, %cst_182 {dimension_numbers = #tpu.dot_dimension_numbers<[1], [0], [0], [1], [0, 0, 1, 1], [], []>} : vector<112x112xf32>, vector<112x8xf32>, vector<112x8xf32> -> vector<112x8xf32>
    %343 = vector.extract_strided_slice %66 {offsets = [0, 24], sizes = [112, 8], strides = [1, 1]} : vector<112x128xf32> to vector<112x8xf32>
    %344 = vector.extract_strided_slice %66 {offsets = [0, 56], sizes = [112, 8], strides = [1, 1]} : vector<112x128xf32> to vector<112x8xf32>
    %345 = vector.extract_strided_slice %66 {offsets = [0, 88], sizes = [112, 8], strides = [1, 1]} : vector<112x128xf32> to vector<112x8xf32>
    %346 = arith.index_cast %arg1 : i32 to index
    %c3_183 = arith.constant 3 : index
    %347 = memref.load %arg7[%346, %c3_183] : memref<2x4xf32, #tpu.memory_space<smem>>
    %348 = vector.broadcast %347 : f32 to vector<112x112xf32>
    %349 = arith.addf %7, %348 : vector<112x112xf32>
    %c0_184 = arith.constant 0 : index
    %c0_185 = arith.constant 0 : index
    %c0_186 = arith.constant 0 : index
    %350 = vector.load %arg27[%c0_184, %c0_185, %c0_186] : memref<8x112x112xf32, #tpu.memory_space<vmem>>, vector<1x112x112xf32>
    %351 = vector.shape_cast %350 : vector<1x112x112xf32> to vector<112x112xf32>
    %c8_i32_187 = arith.constant 8 : i32
    %352 = arith.muli %arg1, %c8_i32_187 : i32
    %c0_i32_188 = arith.constant 0 : i32
    %353 = arith.addi %352, %c0_i32_188 : i32
    %354 = arith.index_cast %353 : i32 to index
    %c3_189 = arith.constant 3 : index
    %355 = memref.load %arg6[%354, %c3_189] : memref<16x4xf32, #tpu.memory_space<smem>>
    %356 = vector.broadcast %355 : f32 to vector<112x112xf32>
    %357 = arith.mulf %351, %356 : vector<112x112xf32>
    %358 = arith.addf %349, %357 : vector<112x112xf32>
    %c1_190 = arith.constant 1 : index
    %c0_191 = arith.constant 0 : index
    %c0_192 = arith.constant 0 : index
    %359 = vector.load %arg27[%c1_190, %c0_191, %c0_192] : memref<8x112x112xf32, #tpu.memory_space<vmem>>, vector<1x112x112xf32>
    %360 = vector.shape_cast %359 : vector<1x112x112xf32> to vector<112x112xf32>
    %c8_i32_193 = arith.constant 8 : i32
    %361 = arith.muli %arg1, %c8_i32_193 : i32
    %c1_i32_194 = arith.constant 1 : i32
    %362 = arith.addi %361, %c1_i32_194 : i32
    %363 = arith.index_cast %362 : i32 to index
    %c3_195 = arith.constant 3 : index
    %364 = memref.load %arg6[%363, %c3_195] : memref<16x4xf32, #tpu.memory_space<smem>>
    %365 = vector.broadcast %364 : f32 to vector<112x112xf32>
    %366 = arith.mulf %360, %365 : vector<112x112xf32>
    %367 = arith.addf %358, %366 : vector<112x112xf32>
    %c2_196 = arith.constant 2 : index
    %c0_197 = arith.constant 0 : index
    %c0_198 = arith.constant 0 : index
    %368 = vector.load %arg27[%c2_196, %c0_197, %c0_198] : memref<8x112x112xf32, #tpu.memory_space<vmem>>, vector<1x112x112xf32>
    %369 = vector.shape_cast %368 : vector<1x112x112xf32> to vector<112x112xf32>
    %c8_i32_199 = arith.constant 8 : i32
    %370 = arith.muli %arg1, %c8_i32_199 : i32
    %c2_i32_200 = arith.constant 2 : i32
    %371 = arith.addi %370, %c2_i32_200 : i32
    %372 = arith.index_cast %371 : i32 to index
    %c3_201 = arith.constant 3 : index
    %373 = memref.load %arg6[%372, %c3_201] : memref<16x4xf32, #tpu.memory_space<smem>>
    %374 = vector.broadcast %373 : f32 to vector<112x112xf32>
    %375 = arith.mulf %369, %374 : vector<112x112xf32>
    %376 = arith.addf %367, %375 : vector<112x112xf32>
    %c3_202 = arith.constant 3 : index
    %c0_203 = arith.constant 0 : index
    %c0_204 = arith.constant 0 : index
    %377 = vector.load %arg27[%c3_202, %c0_203, %c0_204] : memref<8x112x112xf32, #tpu.memory_space<vmem>>, vector<1x112x112xf32>
    %378 = vector.shape_cast %377 : vector<1x112x112xf32> to vector<112x112xf32>
    %c8_i32_205 = arith.constant 8 : i32
    %379 = arith.muli %arg1, %c8_i32_205 : i32
    %c3_i32_206 = arith.constant 3 : i32
    %380 = arith.addi %379, %c3_i32_206 : i32
    %381 = arith.index_cast %380 : i32 to index
    %c3_207 = arith.constant 3 : index
    %382 = memref.load %arg6[%381, %c3_207] : memref<16x4xf32, #tpu.memory_space<smem>>
    %383 = vector.broadcast %382 : f32 to vector<112x112xf32>
    %384 = arith.mulf %378, %383 : vector<112x112xf32>
    %385 = arith.addf %376, %384 : vector<112x112xf32>
    %c4_208 = arith.constant 4 : index
    %c0_209 = arith.constant 0 : index
    %c0_210 = arith.constant 0 : index
    %386 = vector.load %arg27[%c4_208, %c0_209, %c0_210] : memref<8x112x112xf32, #tpu.memory_space<vmem>>, vector<1x112x112xf32>
    %387 = vector.shape_cast %386 : vector<1x112x112xf32> to vector<112x112xf32>
    %c8_i32_211 = arith.constant 8 : i32
    %388 = arith.muli %arg1, %c8_i32_211 : i32
    %c4_i32_212 = arith.constant 4 : i32
    %389 = arith.addi %388, %c4_i32_212 : i32
    %390 = arith.index_cast %389 : i32 to index
    %c3_213 = arith.constant 3 : index
    %391 = memref.load %arg6[%390, %c3_213] : memref<16x4xf32, #tpu.memory_space<smem>>
    %392 = vector.broadcast %391 : f32 to vector<112x112xf32>
    %393 = arith.mulf %387, %392 : vector<112x112xf32>
    %394 = arith.addf %385, %393 : vector<112x112xf32>
    %c5_214 = arith.constant 5 : index
    %c0_215 = arith.constant 0 : index
    %c0_216 = arith.constant 0 : index
    %395 = vector.load %arg27[%c5_214, %c0_215, %c0_216] : memref<8x112x112xf32, #tpu.memory_space<vmem>>, vector<1x112x112xf32>
    %396 = vector.shape_cast %395 : vector<1x112x112xf32> to vector<112x112xf32>
    %c8_i32_217 = arith.constant 8 : i32
    %397 = arith.muli %arg1, %c8_i32_217 : i32
    %c5_i32_218 = arith.constant 5 : i32
    %398 = arith.addi %397, %c5_i32_218 : i32
    %399 = arith.index_cast %398 : i32 to index
    %c3_219 = arith.constant 3 : index
    %400 = memref.load %arg6[%399, %c3_219] : memref<16x4xf32, #tpu.memory_space<smem>>
    %401 = vector.broadcast %400 : f32 to vector<112x112xf32>
    %402 = arith.mulf %396, %401 : vector<112x112xf32>
    %403 = arith.addf %394, %402 : vector<112x112xf32>
    %c6_220 = arith.constant 6 : index
    %c0_221 = arith.constant 0 : index
    %c0_222 = arith.constant 0 : index
    %404 = vector.load %arg27[%c6_220, %c0_221, %c0_222] : memref<8x112x112xf32, #tpu.memory_space<vmem>>, vector<1x112x112xf32>
    %405 = vector.shape_cast %404 : vector<1x112x112xf32> to vector<112x112xf32>
    %c8_i32_223 = arith.constant 8 : i32
    %406 = arith.muli %arg1, %c8_i32_223 : i32
    %c6_i32_224 = arith.constant 6 : i32
    %407 = arith.addi %406, %c6_i32_224 : i32
    %408 = arith.index_cast %407 : i32 to index
    %c3_225 = arith.constant 3 : index
    %409 = memref.load %arg6[%408, %c3_225] : memref<16x4xf32, #tpu.memory_space<smem>>
    %410 = vector.broadcast %409 : f32 to vector<112x112xf32>
    %411 = arith.mulf %405, %410 : vector<112x112xf32>
    %412 = arith.addf %403, %411 : vector<112x112xf32>
    %c7_226 = arith.constant 7 : index
    %c0_227 = arith.constant 0 : index
    %c0_228 = arith.constant 0 : index
    %413 = vector.load %arg27[%c7_226, %c0_227, %c0_228] : memref<8x112x112xf32, #tpu.memory_space<vmem>>, vector<1x112x112xf32>
    %414 = vector.shape_cast %413 : vector<1x112x112xf32> to vector<112x112xf32>
    %c8_i32_229 = arith.constant 8 : i32
    %415 = arith.muli %arg1, %c8_i32_229 : i32
    %c7_i32_230 = arith.constant 7 : i32
    %416 = arith.addi %415, %c7_i32_230 : i32
    %417 = arith.index_cast %416 : i32 to index
    %c3_231 = arith.constant 3 : index
    %418 = memref.load %arg6[%417, %c3_231] : memref<16x4xf32, #tpu.memory_space<smem>>
    %419 = vector.broadcast %418 : f32 to vector<112x112xf32>
    %420 = arith.mulf %414, %419 : vector<112x112xf32>
    %421 = arith.addf %412, %420 : vector<112x112xf32>
    %cst_232 = arith.constant dense<0.000000e+00> : vector<112x112xf32>
    %422 = tpu.matmul %343, %344, %cst_232 {dimension_numbers = #tpu.dot_dimension_numbers<[1], [1], [0], [0], [0, 0, 1, 0], [], []>} : vector<112x8xf32>, vector<112x8xf32>, vector<112x112xf32> -> vector<112x112xf32>
    %423 = arith.addf %422, %421 : vector<112x112xf32>
    %cst_233 = arith.constant dense<0xFF800000> : vector<112xf32>
    %424 = vector.multi_reduction <maximumf>, %423, %cst_233 [1] : vector<112x112xf32> to vector<112xf32>
    %425 = vector.shape_cast %424 : vector<112xf32> to vector<112x1xf32>
    %426 = vector.broadcast %425 : vector<112x1xf32> to vector<112x112xf32>
    %427 = arith.subf %423, %426 : vector<112x112xf32>
    %428 = math.exp %427 : vector<112x112xf32>
    %cst_234 = arith.constant dense<0.000000e+00> : vector<112xf32>
    %429 = vector.multi_reduction <add>, %428, %cst_234 [1] : vector<112x112xf32> to vector<112xf32>
    %430 = vector.shape_cast %429 : vector<112xf32> to vector<112x1xf32>
    %431 = tpu.reciprocal %430 {approx = true} : vector<112x1xf32> -> vector<112x1xf32>
    %432 = vector.broadcast %431 : vector<112x1xf32> to vector<112x112xf32>
    %433 = arith.mulf %428, %432 : vector<112x112xf32>
    %cst_235 = arith.constant dense<0.000000e+00> : vector<112x8xf32>
    %434 = tpu.matmul %433, %345, %cst_235 {dimension_numbers = #tpu.dot_dimension_numbers<[1], [0], [0], [1], [0, 0, 1, 1], [], []>} : vector<112x112xf32>, vector<112x8xf32>, vector<112x8xf32> -> vector<112x8xf32>
    %435 = tpu.concatenate %158, %250, %342, %434 in 1 : vector<112x8xf32>, vector<112x8xf32>, vector<112x8xf32>, vector<112x8xf32> -> vector<112x32xf32>
    %436 = vector.extract_strided_slice %66 {offsets = [0, 96], sizes = [112, 32], strides = [1, 1]} : vector<112x128xf32> to vector<112x32xf32>
    %437 = arith.negf %436 : vector<112x32xf32>
    %438 = math.exp %437 : vector<112x32xf32>
    %cst_236 = arith.constant 1.000000e+00 : f32
    %439 = vector.broadcast %cst_236 : f32 to vector<112x32xf32>
    %440 = arith.addf %439, %438 : vector<112x32xf32>
    %441 = arith.divf %439, %440 : vector<112x32xf32>
    %442 = arith.mulf %435, %441 : vector<112x32xf32>
    %c0_237 = arith.constant 0 : index
    %c0_238 = arith.constant 0 : index
    %c0_239 = arith.constant 0 : index
    %443 = vector.load %arg13[%c0_237, %c0_238, %c0_239] : memref<1x32x32xf32, #tpu.memory_space<vmem>>, vector<1x32x32xf32>
    %444 = vector.shape_cast %443 : vector<1x32x32xf32> to vector<32x32xf32>
    %cst_240 = arith.constant dense<0.000000e+00> : vector<112x32xf32>
    %445 = tpu.matmul %442, %444, %cst_240 {dimension_numbers = #tpu.dot_dimension_numbers<[1], [0], [0], [1], [0, 0, 1, 1], [], []>} : vector<112x32xf32>, vector<32x32xf32>, vector<112x32xf32> -> vector<112x32xf32>
    %446 = arith.mulf %38, %445 : vector<112x32xf32>
    %c0_241 = arith.constant 0 : index
    %c0_242 = arith.constant 0 : index
    %c0_243 = arith.constant 0 : index
    %447 = vector.load %arg16[%c0_241, %c0_242, %c0_243] : memref<1x1x32xf32, #tpu.memory_space<vmem>>, vector<1x1x32xf32>
    %448 = vector.shape_cast %447 : vector<1x1x32xf32> to vector<1x32xf32>
    %449 = vector.broadcast %448 : vector<1x32xf32> to vector<112x32xf32>
    %450 = arith.mulf %4, %449 : vector<112x32xf32>
    %c0_244 = arith.constant 0 : index
    %c0_245 = arith.constant 0 : index
    %c0_246 = arith.constant 0 : index
    %451 = vector.load %arg17[%c0_244, %c0_245, %c0_246] : memref<1x32x64xf32, #tpu.memory_space<vmem>>, vector<1x32x64xf32>
    %452 = vector.shape_cast %451 : vector<1x32x64xf32> to vector<32x64xf32>
    %cst_247 = arith.constant dense<0.000000e+00> : vector<112x64xf32>
    %453 = tpu.matmul %450, %452, %cst_247 {dimension_numbers = #tpu.dot_dimension_numbers<[1], [0], [0], [1], [0, 0, 1, 1], [], []>} : vector<112x32xf32>, vector<32x64xf32>, vector<112x64xf32> -> vector<112x64xf32>
    %c0_248 = arith.constant 0 : index
    %c0_249 = arith.constant 0 : index
    %c0_250 = arith.constant 0 : index
    %454 = vector.load %arg18[%c0_248, %c0_249, %c0_250] : memref<1x1x64xf32, #tpu.memory_space<vmem>>, vector<1x1x64xf32>
    %455 = vector.shape_cast %454 : vector<1x1x64xf32> to vector<1x64xf32>
    %456 = vector.broadcast %455 : vector<1x64xf32> to vector<112x64xf32>
    %457 = arith.addf %453, %456 : vector<112x64xf32>
    %458 = vector.extract_strided_slice %457 {offsets = [0, 0], sizes = [112, 32], strides = [1, 1]} : vector<112x64xf32> to vector<112x32xf32>
    %459 = arith.negf %458 : vector<112x32xf32>
    %460 = math.exp %459 : vector<112x32xf32>
    %cst_251 = arith.constant 1.000000e+00 : f32
    %461 = vector.broadcast %cst_251 : f32 to vector<112x32xf32>
    %462 = arith.addf %461, %460 : vector<112x32xf32>
    %463 = arith.divf %461, %462 : vector<112x32xf32>
    %464 = arith.mulf %463, %25 : vector<112x32xf32>
    %465 = vector.extract_strided_slice %457 {offsets = [0, 32], sizes = [112, 32], strides = [1, 1]} : vector<112x64xf32> to vector<112x32xf32>
    %466 = arith.addf %464, %465 : vector<112x32xf32>
    %c0_252 = arith.constant 0 : index
    %c0_253 = arith.constant 0 : index
    %c0_254 = arith.constant 0 : index
    %467 = vector.load %arg19[%c0_252, %c0_253, %c0_254] : memref<1x32x128xf32, #tpu.memory_space<vmem>>, vector<1x32x128xf32>
    %468 = vector.shape_cast %467 : vector<1x32x128xf32> to vector<32x128xf32>
    %cst_255 = arith.constant dense<0.000000e+00> : vector<112x128xf32>
    %469 = tpu.matmul %466, %468, %cst_255 {dimension_numbers = #tpu.dot_dimension_numbers<[1], [0], [0], [1], [0, 0, 1, 1], [], []>} : vector<112x32xf32>, vector<32x128xf32>, vector<112x128xf32> -> vector<112x128xf32>
    %470 = vector.extract_strided_slice %469 {offsets = [0, 0], sizes = [112, 64], strides = [1, 1]} : vector<112x128xf32> to vector<112x64xf32>
    %471 = vector.extract_strided_slice %469 {offsets = [0, 64], sizes = [112, 64], strides = [1, 1]} : vector<112x128xf32> to vector<112x64xf32>
    %472 = arith.negf %470 : vector<112x64xf32>
    %473 = math.exp %472 : vector<112x64xf32>
    %cst_256 = arith.constant 1.000000e+00 : f32
    %474 = vector.broadcast %cst_256 : f32 to vector<112x64xf32>
    %475 = arith.addf %474, %473 : vector<112x64xf32>
    %476 = arith.divf %474, %475 : vector<112x64xf32>
    %477 = arith.mulf %470, %476 : vector<112x64xf32>
    %478 = arith.mulf %477, %471 : vector<112x64xf32>
    %479 = arith.mulf %39, %466 : vector<112x32xf32>
    %c0_257 = arith.constant 0 : index
    %c0_258 = arith.constant 0 : index
    %c0_259 = arith.constant 0 : index
    %480 = vector.load %arg20[%c0_257, %c0_258, %c0_259] : memref<1x64x32xf32, #tpu.memory_space<vmem>>, vector<1x64x32xf32>
    %481 = vector.shape_cast %480 : vector<1x64x32xf32> to vector<64x32xf32>
    %cst_260 = arith.constant dense<0.000000e+00> : vector<112x32xf32>
    %482 = tpu.matmul %478, %481, %cst_260 {dimension_numbers = #tpu.dot_dimension_numbers<[1], [0], [0], [1], [0, 0, 1, 1], [], []>} : vector<112x64xf32>, vector<64x32xf32>, vector<112x32xf32> -> vector<112x32xf32>
    %483 = arith.mulf %479, %482 : vector<112x32xf32>
    %484 = arith.addf %446, %483 : vector<112x32xf32>
    %c0_261 = arith.constant 0 : index
    %c0_262 = arith.constant 0 : index
    %485 = vector.load %arg25[%c0_261, %c0_262] : memref<112x32xf32, #tpu.memory_space<vmem>>, vector<112x32xf32>
    tpu.vector_store %arg25[%c0_261, %c0_262], %484 {strides = array<i32>} : memref<112x32xf32, #tpu.memory_space<vmem>>, vector<112x32xf32>,
    %c1_i32_263 = arith.constant 1 : i32
    %486 = arith.cmpi eq, %arg1, %c1_i32_263 : i32
    %487 = arith.extui %486 : i1 to i32
    %c0_i32_264 = arith.constant 0 : i32
    %488 = arith.cmpi ne, %487, %c0_i32_264 : i32
    scf.if %488 {
      %cst_265 = arith.constant dense<0.000000e+00> : vector<112xf32>
      %489 = vector.multi_reduction <add>, %484, %cst_265 [1] : vector<112x32xf32> to vector<112xf32>
      %490 = vector.shape_cast %489 : vector<112xf32> to vector<112x1xf32>
      %cst_266 = arith.constant 3.200000e+01 : f32
      %491 = vector.broadcast %cst_266 : f32 to vector<112x1xf32>
      %492 = arith.divf %490, %491 : vector<112x1xf32>
      %493 = vector.broadcast %492 : vector<112x1xf32> to vector<112x32xf32>
      %494 = arith.subf %484, %493 : vector<112x32xf32>
      %495 = arith.mulf %494, %494 : vector<112x32xf32>
      %cst_267 = arith.constant dense<0.000000e+00> : vector<112xf32>
      %496 = vector.multi_reduction <add>, %495, %cst_267 [1] : vector<112x32xf32> to vector<112xf32>
      %497 = vector.shape_cast %496 : vector<112xf32> to vector<112x1xf32>
      %cst_268 = arith.constant 3.200000e+01 : f32
      %498 = vector.broadcast %cst_268 : f32 to vector<112x1xf32>
      %499 = arith.divf %497, %498 : vector<112x1xf32>
      %500 = vector.broadcast %492 : vector<112x1xf32> to vector<112x32xf32>
      %501 = arith.subf %484, %500 : vector<112x32xf32>
      %cst_269 = arith.constant 9.99999974E-6 : f32
      %502 = vector.broadcast %cst_269 : f32 to vector<112x1xf32>
      %503 = arith.addf %499, %502 : vector<112x1xf32>
      %504 = math.rsqrt %503 : vector<112x1xf32>
      %505 = vector.broadcast %504 : vector<112x1xf32> to vector<112x32xf32>
      %506 = arith.mulf %501, %505 : vector<112x32xf32>
      %c0_270 = arith.constant 0 : index
      %c0_271 = arith.constant 0 : index
      %507 = vector.load %arg21[%c0_270, %c0_271] : memref<1x32xf32, #tpu.memory_space<vmem>>, vector<1x32xf32>
      %508 = vector.broadcast %507 : vector<1x32xf32> to vector<112x32xf32>
      %509 = arith.mulf %506, %508 : vector<112x32xf32>
      %c0_272 = arith.constant 0 : index
      %c0_273 = arith.constant 0 : index
      %510 = vector.load %arg22[%c0_272, %c0_273] : memref<1x32xf32, #tpu.memory_space<vmem>>, vector<1x32xf32>
      %511 = vector.broadcast %510 : vector<1x32xf32> to vector<112x32xf32>
      %512 = arith.addf %509, %511 : vector<112x32xf32>
      %c0_274 = arith.constant 0 : index
      %c0_275 = arith.constant 0 : index
      %513 = vector.load %arg23[%c0_274, %c0_275] : memref<32x3xf32, #tpu.memory_space<vmem>>, vector<32x3xf32>
      %cst_276 = arith.constant dense<0.000000e+00> : vector<112x3xf32>
      %514 = tpu.matmul %512, %513, %cst_276 {dimension_numbers = #tpu.dot_dimension_numbers<[1], [0], [0], [1], [0, 0, 1, 1], [], []>} : vector<112x32xf32>, vector<32x3xf32>, vector<112x3xf32> -> vector<112x3xf32>
      %c0_277 = arith.constant 0 : index
      %c0_278 = arith.constant 0 : index
      %c0_279 = arith.constant 0 : index
      %515 = vector.load %arg24[%c0_277, %c0_278, %c0_279] : memref<1x112x3xf32, #tpu.memory_space<vmem>>, vector<1x112x3xf32>
      %516 = vector.shape_cast %515 : vector<1x112x3xf32> to vector<112x3xf32>
      %517 = vector.shape_cast %514 : vector<112x3xf32> to vector<1x112x3xf32>
      tpu.vector_store %arg24[%c0_277, %c0_278, %c0_279], %517 {strides = array<i32>} : memref<1x112x3xf32, #tpu.memory_space<vmem>>, vector<1x112x3xf32>,
    } else {
    }
    return
  }
  func.func @transform_0(%arg0: i32, %arg1: i32) -> (i32, i32, i32) {
    %c0_i32 = arith.constant 0 : i32
    %c0_i32_0 = arith.constant 0 : i32
    %c0_i32_1 = arith.constant 0 : i32
    return %arg0, %c0_i32, %c0_i32_0 : i32, i32, i32
  }
  func.func @transform_1(%arg0: i32, %arg1: i32) -> (i32, i32, i32) {
    %c0_i32 = arith.constant 0 : i32
    %c0_i32_0 = arith.constant 0 : i32
    %c0_i32_1 = arith.constant 0 : i32
    return %arg0, %c0_i32, %c0_i32_0 : i32, i32, i32
  }
  func.func @transform_2(%arg0: i32, %arg1: i32) -> (i32, i32, i32, i32) {
    %c0_i32 = arith.constant 0 : i32
    %c0_i32_0 = arith.constant 0 : i32
    %c0_i32_1 = arith.constant 0 : i32
    %c0_i32_2 = arith.constant 0 : i32
    return %arg0, %c0_i32, %c0_i32_0, %c0_i32_1 : i32, i32, i32, i32
  }
  func.func @transform_3(%arg0: i32, %arg1: i32) -> (i32, i32) {
    %c0_i32 = arith.constant 0 : i32
    %c0_i32_0 = arith.constant 0 : i32
    %c0_i32_1 = arith.constant 0 : i32
    return %c0_i32, %c0_i32_0 : i32, i32
  }
  func.func @transform_4(%arg0: i32, %arg1: i32) -> (i32, i32) {
    %c0_i32 = arith.constant 0 : i32
    %c0_i32_0 = arith.constant 0 : i32
    %c0_i32_1 = arith.constant 0 : i32
    return %c0_i32, %c0_i32_0 : i32, i32
  }
  func.func @transform_5(%arg0: i32, %arg1: i32) -> (i32, i32) {
    %c0_i32 = arith.constant 0 : i32
    %c0_i32_0 = arith.constant 0 : i32
    %c0_i32_1 = arith.constant 0 : i32
    return %c0_i32, %c0_i32_0 : i32, i32
  }
  func.func @transform_6(%arg0: i32, %arg1: i32) -> (i32, i32, i32) {
    %c0_i32 = arith.constant 0 : i32
    %c0_i32_0 = arith.constant 0 : i32
    %c0_i32_1 = arith.constant 0 : i32
    return %arg1, %c0_i32, %c0_i32_0 : i32, i32, i32
  }
  func.func @transform_7(%arg0: i32, %arg1: i32) -> (i32, i32, i32) {
    %c0_i32 = arith.constant 0 : i32
    %c0_i32_0 = arith.constant 0 : i32
    %c0_i32_1 = arith.constant 0 : i32
    return %arg1, %c0_i32, %c0_i32_0 : i32, i32, i32
  }
  func.func @transform_8(%arg0: i32, %arg1: i32) -> (i32, i32, i32) {
    %c0_i32 = arith.constant 0 : i32
    %c0_i32_0 = arith.constant 0 : i32
    %c0_i32_1 = arith.constant 0 : i32
    return %arg1, %c0_i32, %c0_i32_0 : i32, i32, i32
  }
  func.func @transform_9(%arg0: i32, %arg1: i32) -> (i32, i32, i32) {
    %c0_i32 = arith.constant 0 : i32
    %c0_i32_0 = arith.constant 0 : i32
    %c0_i32_1 = arith.constant 0 : i32
    return %arg1, %c0_i32, %c0_i32_0 : i32, i32, i32
  }
  func.func @transform_10(%arg0: i32, %arg1: i32) -> (i32, i32, i32) {
    %c0_i32 = arith.constant 0 : i32
    %c0_i32_0 = arith.constant 0 : i32
    %c0_i32_1 = arith.constant 0 : i32
    return %arg1, %c0_i32, %c0_i32_0 : i32, i32, i32
  }
  func.func @transform_11(%arg0: i32, %arg1: i32) -> (i32, i32, i32) {
    %c0_i32 = arith.constant 0 : i32
    %c0_i32_0 = arith.constant 0 : i32
    %c0_i32_1 = arith.constant 0 : i32
    return %arg1, %c0_i32, %c0_i32_0 : i32, i32, i32
  }
  func.func @transform_12(%arg0: i32, %arg1: i32) -> (i32, i32, i32) {
    %c0_i32 = arith.constant 0 : i32
    %c0_i32_0 = arith.constant 0 : i32
    %c0_i32_1 = arith.constant 0 : i32
    return %arg1, %c0_i32, %c0_i32_0 : i32, i32, i32
  }
  func.func @transform_13(%arg0: i32, %arg1: i32) -> (i32, i32, i32) {
    %c0_i32 = arith.constant 0 : i32
    %c0_i32_0 = arith.constant 0 : i32
    %c0_i32_1 = arith.constant 0 : i32
    return %arg1, %c0_i32, %c0_i32_0 : i32, i32, i32
  }
  func.func @transform_14(%arg0: i32, %arg1: i32) -> (i32, i32, i32) {
    %c0_i32 = arith.constant 0 : i32
    %c0_i32_0 = arith.constant 0 : i32
    %c0_i32_1 = arith.constant 0 : i32
    return %arg1, %c0_i32, %c0_i32_0 : i32, i32, i32
  }
  func.func @transform_15(%arg0: i32, %arg1: i32) -> (i32, i32, i32) {
    %c0_i32 = arith.constant 0 : i32
    %c0_i32_0 = arith.constant 0 : i32
    %c0_i32_1 = arith.constant 0 : i32
    return %arg1, %c0_i32, %c0_i32_0 : i32, i32, i32
  }
  func.func @transform_16(%arg0: i32, %arg1: i32) -> (i32, i32, i32) {
    %c0_i32 = arith.constant 0 : i32
    %c0_i32_0 = arith.constant 0 : i32
    %c0_i32_1 = arith.constant 0 : i32
    return %arg1, %c0_i32, %c0_i32_0 : i32, i32, i32
  }
  func.func @transform_17(%arg0: i32, %arg1: i32) -> (i32, i32, i32) {
    %c0_i32 = arith.constant 0 : i32
    %c0_i32_0 = arith.constant 0 : i32
    %c0_i32_1 = arith.constant 0 : i32
    return %arg1, %c0_i32, %c0_i32_0 : i32, i32, i32
  }
  func.func @transform_18(%arg0: i32, %arg1: i32) -> (i32, i32, i32) {
    %c0_i32 = arith.constant 0 : i32
    %c0_i32_0 = arith.constant 0 : i32
    %c0_i32_1 = arith.constant 0 : i32
    return %arg1, %c0_i32, %c0_i32_0 : i32, i32, i32
  }
  func.func @transform_19(%arg0: i32, %arg1: i32) -> (i32, i32) {
    %c0_i32 = arith.constant 0 : i32
    %c0_i32_0 = arith.constant 0 : i32
    %c0_i32_1 = arith.constant 0 : i32
    return %c0_i32, %c0_i32_0 : i32, i32
  }
  func.func @transform_20(%arg0: i32, %arg1: i32) -> (i32, i32) {
    %c0_i32 = arith.constant 0 : i32
    %c0_i32_0 = arith.constant 0 : i32
    %c0_i32_1 = arith.constant 0 : i32
    return %c0_i32, %c0_i32_0 : i32, i32
  }
  func.func @transform_21(%arg0: i32, %arg1: i32) -> (i32, i32) {
    %c0_i32 = arith.constant 0 : i32
    %c0_i32_0 = arith.constant 0 : i32
    %c0_i32_1 = arith.constant 0 : i32
    return %c0_i32, %c0_i32_0 : i32, i32
  }
  func.func @transform_22(%arg0: i32, %arg1: i32) -> (i32, i32, i32) {
    %c0_i32 = arith.constant 0 : i32
    %c0_i32_0 = arith.constant 0 : i32
    %c0_i32_1 = arith.constant 0 : i32
    return %arg0, %c0_i32, %c0_i32_0 : i32, i32, i32
  }
}

</mosaic_0001>

<llo_original>
// kernel: atom_attention_decoder.2
$region0: #{atom_attention_decoder.2}
  #allocation0 [shape = 'u32[]', space=smem, size = 0x4, offset = 0x4, fixed_abs, tag = 'smem constant byte address 0x4 - core index']
  #allocation1 [shape = 'u32[144,128]{1,0:T(1,128)}', space=vmem, size = 0x12000, scoped, tag = 'internal scratch']
  %s0 = inlined_call_operand.vmem [shape: f32[16,48], index: 0, kind: input, shape index: {}]
  %s1 = inlined_call_operand.vmem [shape: f32[48,32], index: 1, kind: input, shape index: {}]
  %s2 = inlined_call_operand.vmem [shape: f32[16,32], index: 2, kind: output, shape index: {}]
  %s3 = sld [smem:[#allocation0]]
  $region18: #{atom_attention_decoder.2} parent=0
    _
  %s5 = ssub.s32 1, %s3
  %s6 = scalar_select 0, %s5, %s3
  // Predicated region
  $region2: #{atom_attention_decoder.2} parent=0 // pred_check
    _
  $region3: #{atom_attention_decoder.2} parent=0 // pred_check_branch
    %8 = sbr.rel (0) target = $region5
  $region4: #{atom_attention_decoder.2} parent=0 // pred_region
    _
  $region5: #{atom_attention_decoder.2} parent=0 // pred_fallthru
    _
  // Predicated region
  $region6: #{atom_attention_decoder.2} parent=0 // pred_check
    _
  $region7: #{atom_attention_decoder.2} parent=0 // pred_check_branch
    %10 = sbr.rel (0) target = $region9
  $region8: #{atom_attention_decoder.2} parent=0 // pred_region
    _
  $region9: #{atom_attention_decoder.2} parent=0 // pred_fallthru
    _
  %v11 = vld [vmem:[%s0] sm:$0xff]
  %v12 = vld [vmem:[%s0 + $0x8] sm:$0xff]
  %v13 = vld [vmem:[%s1] sm:$0xff]
  %v14 = vld [vmem:[%s1 + $0x8] sm:$0xff]
  %v15 = vld [vmem:[%s1 + $0x10] sm:$0xff]
  %v16 = vld [vmem:[%s1 + $0x18] sm:$0xff]
  %v17 = vld [vmem:[%s1 + $0x20] sm:$0xff]
  %v18 = vld [vmem:[%s1 + $0x28] sm:$0xff]
  %vm19 = vcmask 392192
  %v21 = vsel %vm19, %v11, 0
  %v24 = vsel %vm19, %v12, 0
  %26 = vmatprep.subr.mxu0 0.0
  %27 = vmatpush1.msra.mxu0 %v13
  %28 = vmatprep.subr.mxu0 0.0
  %29 = vmatpush1.msra.mxu0 %v14
  %30 = vmatprep.subr.mxu0 0.0
  %31 = vmatpush1.msra.mxu0 %v15
  %32 = vmatprep.subr.mxu0 0.0
  %33 = vmatpush1.msra.mxu0 %v16
  %34 = vmatprep.subr.mxu0 0.0
  %35 = vmatpush1.msra.mxu0 %v17
  %36 = vmatprep.subr.mxu0 0.0
  %37 = vmatpush1.msra.mxu0 %v18
  %38 = vmatprep.subr.mxu0 0.0
  %39 = vmatpush1.msra.mxu0 0.0
  %40 = vmatprep.subr.mxu0 0.0
  %41 = vmatpush1.msra.mxu0 0.0
  %42 = vmatprep.subr.mxu0 0.0
  %43 = vmatpush1.msra.mxu0 0.0
  %44 = vmatprep.subr.mxu0 0.0
  %45 = vmatpush1.msra.mxu0 0.0
  %46 = vmatprep.subr.mxu0 0.0
  %47 = vmatpush1.msra.mxu0 0.0
  %48 = vmatprep.subr.mxu0 0.0
  %49 = vmatpush1.msra.mxu0 0.0
  %50 = vmatprep.subr.mxu0 0.0
  %51 = vmatpush1.msra.mxu0 0.0
  %52 = vmatprep.subr.mxu0 0.0
  %53 = vmatpush1.msra.mxu0 0.0
  %54 = vmatprep.subr.mxu0 0.0
  %55 = vmatpush1.msra.mxu0 0.0
  %56 = vmatprep.subr.mxu0 0.0
  %57 = vmatpush1.msra.mxu0 0.0
  %58 = vmatprep.subr.mxu0 0.0
  %59 = vmatpush1.msra.mxu0 0.0
  %60 = vmatprep.subr.mxu0 0.0
  %61 = vmatpush1.msra.mxu0 0.0
  %62 = vmatprep.subr.mxu0 0.0
  %63 = vmatpush1.msra.mxu0 0.0
  %64 = vmatprep.subr.mxu0 0.0
  %65 = vmatpush1.msra.mxu0 0.0
  %66 = vmatprep.subr.mxu0 0.0
  %67 = vmatpush1.msra.mxu0 0.0
  %68 = vmatprep.subr.mxu0 0.0
  %69 = vmatpush1.msra.mxu0 0.0
  %70 = vmatprep.subr.mxu0 0.0
  %71 = vmatpush1.msra.mxu0 0.0
  %72 = vmatprep.subr.mxu0 0.0
  %73 = vmatpush1.msra.mxu0 0.0
  %74 = vmatprep.subr.mxu0 0.0
  %75 = vmatpush1.msra.mxu0 0.0
  %76 = vmatprep.subr.mxu0 0.0
  %77 = vmatpush1.msra.mxu0 0.0
  %78 = vmatprep.subr.mxu0 0.0
  %79 = vmatpush1.msra.mxu0 0.0
  %80 = vmatprep.subr.mxu0 0.0
  %81 = vmatpush1.msra.mxu0 0.0
  %82 = vmatprep.subr.mxu0 0.0
  %83 = vmatpush1.msra.mxu0 0.0
  %84 = vmatprep.subr.mxu0 0.0
  %85 = vmatpush1.msra.mxu0 0.0
  %86 = vmatprep.subr.mxu0 0.0
  %87 = vmatpush1.msra.mxu0 0.0
  %88 = vmatprep.subr.mxu0 0.0
  %89 = vmatpush1.msra.mxu0 0.0
  %90 = vmatprep.mubr.f32.mxu0 0.0
  %91 = vmatmul.mubr.f32.gmra.mrb[0].mxu0 %v21
  %v92 = vpop.f32.mrb[0].mxu0
  %v93 = vadd.f32 0.0, %v92
  %v94 = vpop.f32.mrb[0].mxu0
  %95 = vmatprep.mubr.f32.mxu0 0.0
  %96 = vmatmul.mubr.f32.gmra.mrb[0].mxu0 %v24
  %v97 = vpop.f32.mrb[0].mxu0
  %v98 = vadd.f32 0.0, %v97
  %v99 = vpop.f32.mrb[0].mxu0
  %100 = vdwg.mxu0
  %vm101 = vcmask 261120
  %102 = vst.msk [vmem:[%s2] sm:$0xff] %vm101, %v93
  %103 = vst.msk [vmem:[%s2 + $0x8] sm:$0xff] %vm101, %v98
  // Predicated region
  $region10: #{atom_attention_decoder.2} parent=0 // pred_check
    _
  $region11: #{atom_attention_decoder.2} parent=0 // pred_check_branch
    %105 = sbr.rel (0) target = $region13
  $region12: #{atom_attention_decoder.2} parent=0 // pred_region
    _
  $region13: #{atom_attention_decoder.2} parent=0 // pred_fallthru
    _
  // Predicated region
  $region14: #{atom_attention_decoder.2} parent=0 // pred_check
    _
  $region15: #{atom_attention_decoder.2} parent=0 // pred_check_branch
    %107 = sbr.rel (0) target = $region17
  $region16: #{atom_attention_decoder.2} parent=0 // pred_region
    _
  $region17: #{atom_attention_decoder.2} parent=0 // pred_fallthru
    _

// kernel: atom_attention_decoder.3
$region0: #{atom_attention_decoder.3}
  #allocation0 [shape = 'u32[]', space=smem, size = 0x4, offset = 0x4, fixed_abs, tag = 'smem constant byte address 0x4 - core index']
  #allocation1 [shape = 'u32[144,128]{1,0:T(1,128)}', space=vmem, size = 0x12000, scoped, tag = 'internal scratch']
  #allocation2 [shape = 'f32[112,32]{1,0:T(8,128)}', space=vmem, size = 0xe000, scoped, tag = 'scratch operand']
  #allocation3 [shape = 'f32[112,32]{1,0:T(8,128)}', space=vmem, size = 0xe000, scoped, tag = 'scratch operand']
  #allocation4 [shape = 'f32[8,112,112]{2,1,0:T(8,128)}', space=vmem, size = 0x70000, scoped, tag = 'scratch operand']
  %s0 = inlined_call_operand.vmem [shape: f32[2,112,32], index: 0, kind: input, shape index: {}]
  %s1 = inlined_call_operand.vmem [shape: f32[2,112,32], index: 1, kind: input, shape index: {}]
  %s2 = inlined_call_operand.vmem [shape: f32[2,8,112,112], index: 2, kind: input, shape index: {}]
  %s3 = inlined_call_operand.vmem [shape: f32[112,112], index: 3, kind: input, shape index: {}]
  %s4 = inlined_call_operand.vmem [shape: f32[16,4], index: 4, kind: input, shape index: {}]
  %s5 = inlined_call_operand.vmem [shape: f32[2,4], index: 5, kind: input, shape index: {}]
  %s6 = inlined_call_operand.vmem [shape: f32[2,1,32], index: 6, kind: input, shape index: {}]
  %s7 = inlined_call_operand.vmem [shape: f32[2,32,64], index: 7, kind: input, shape index: {}]
  %s8 = inlined_call_operand.vmem [shape: f32[2,1,64], index: 8, kind: input, shape index: {}]
  %s9 = inlined_call_operand.vmem [shape: f32[2,32,128], index: 9, kind: input, shape index: {}]
  %s10 = inlined_call_operand.vmem [shape: f32[2,1,128], index: 10, kind: input, shape index: {}]
  %s11 = inlined_call_operand.vmem [shape: f32[2,32,32], index: 11, kind: input, shape index: {}]
  %s12 = inlined_call_operand.vmem [shape: f32[2,32,64], index: 12, kind: input, shape index: {}]
  %s13 = inlined_call_operand.vmem [shape: f32[2,1,64], index: 13, kind: input, shape index: {}]
  %s14 = inlined_call_operand.vmem [shape: f32[2,1,32], index: 14, kind: input, shape index: {}]
  %s15 = inlined_call_operand.vmem [shape: f32[2,32,64], index: 15, kind: input, shape index: {}]
  %s16 = inlined_call_operand.vmem [shape: f32[2,1,64], index: 16, kind: input, shape index: {}]
  %s17 = inlined_call_operand.vmem [shape: f32[2,32,128], index: 17, kind: input, shape index: {}]
  %s18 = inlined_call_operand.vmem [shape: f32[2,64,32], index: 18, kind: input, shape index: {}]
  %s19 = inlined_call_operand.vmem [shape: f32[1,32], index: 19, kind: input, shape index: {}]
  %s20 = inlined_call_operand.vmem [shape: f32[1,32], index: 20, kind: input, shape index: {}]
  %s21 = inlined_call_operand.vmem [shape: f32[32,3], index: 21, kind: input, shape index: {}]
  %s22 = inlined_call_operand.vmem [shape: f32[2,112,3], index: 22, kind: output, shape index: {}]
  %s23 = sld [smem:[#allocation0]]
  $region137: #{atom_attention_decoder.3} parent=0
    _
  %s25 = ssub.s32 1, %s23
  %s26 = scalar_select 0, %s25, %s23
  $region1: #{atom_attention_decoder.3} parent=0
    #allocation5 [shape = 'u8[8192]{0}', space=smem, size = 0x2000, scoped, tag = 'input window, operand 4, single buffered']
    #allocation6 [shape = 's32[2]{0}', space=sflag, size = 0x8, scoped, tag = 'scoped memory for atom_attention_decoder.3']
    #allocation7 [shape = 'u8[1024]{0}', space=smem, size = 0x400, scoped, tag = 'input window, operand 5, single buffered']
    #allocation8 [shape = 's32[1]{0}', space=sflag, size = 0x4, scoped, tag = 'scoped memory for atom_attention_decoder.3']
    %27 = vsyncpa [#allocation6], 0
    %28 = vsyncpa [#allocation8], 0
    loop: start=0, step=1, limit=6
    $region2: #{atom_attention_decoder.3} parent=1 // loop_pre_header
      _
    $region3: #{atom_attention_decoder.3} parent=1 // loop_header
      %s30 = sphi 0, %s34
      %p31 = scmp.ge.s32.totalorder %s30, 6
      %s37 = sphi 0, %s49
      %s38 = sphi 0, %s45
      %s39 = sphi 0, %s37
      %s40 = sphi 0, %s38
      %s41 = sphi 0, %s39
      %s42 = sphi 0, %s40
      %s52 = sphi 0, %s54
      %s55 = sphi 0, %s52
      %s56 = sphi 0, %s55
      %s72 = sphi 0, %s56
      %s78 = sphi 0, %s80
      %s81 = sphi 0, %s78
      %s82 = sphi 0, %s81
      %s98 = sphi 0, %s82
      %s104 = sphi 0, %s106
      %s107 = sphi 0, %s104
      %s108 = sphi 0, %s107
      %s124 = sphi 0, %s108
      %s128 = sphi 0, %s128
      %s130 = sphi 0, %s128
      %s131 = sphi 0, %s130
      %s145 = sphi 0, %s131
      %s149 = sphi 0, %s149
      %s151 = sphi 0, %s149
      %s152 = sphi 0, %s151
      %s166 = sphi 0, %s152
      %s170 = sphi 0, %s170
      %s172 = sphi 0, %s170
      %s173 = sphi 0, %s172
      %s187 = sphi 0, %s173
      %s193 = sphi 0, %s195
      %s196 = sphi 0, %s193
      %s197 = sphi 0, %s196
      %s213 = sphi 0, %s197
      %s219 = sphi 0, %s221
      %s222 = sphi 0, %s219
      %s223 = sphi 0, %s222
      %s239 = sphi 0, %s223
      %s245 = sphi 0, %s247
      %s248 = sphi 0, %s245
      %s249 = sphi 0, %s248
      %s265 = sphi 0, %s249
      %s271 = sphi 0, %s273
      %s274 = sphi 0, %s271
      %s275 = sphi 0, %s274
      %s291 = sphi 0, %s275
      %s297 = sphi 0, %s299
      %s300 = sphi 0, %s297
      %s301 = sphi 0, %s300
      %s317 = sphi 0, %s301
      %s323 = sphi 0, %s325
      %s326 = sphi 0, %s323
      %s327 = sphi 0, %s326
      %s343 = sphi 0, %s327
      %s349 = sphi 0, %s351
      %s352 = sphi 0, %s349
      %s353 = sphi 0, %s352
      %s369 = sphi 0, %s353
      %s375 = sphi 0, %s377
      %s378 = sphi 0, %s375
      %s379 = sphi 0, %s378
      %s395 = sphi 0, %s379
      %s401 = sphi 0, %s403
      %s404 = sphi 0, %s401
      %s405 = sphi 0, %s404
      %s421 = sphi 0, %s405
      %s427 = sphi 0, %s429
      %s430 = sphi 0, %s427
      %s431 = sphi 0, %s430
      %s447 = sphi 0, %s431
      %s453 = sphi 0, %s455
      %s456 = sphi 0, %s453
      %s457 = sphi 0, %s456
      %s473 = sphi 0, %s457
      %s479 = sphi 0, %s481
      %s482 = sphi 0, %s479
      %s483 = sphi 0, %s482
      %s499 = sphi 0, %s483
      %s505 = sphi 0, %s507
      %s508 = sphi 0, %s505
      %s509 = sphi 0, %s508
      %s525 = sphi 0, %s509
      %s529 = sphi 0, %s529
      %s531 = sphi 0, %s529
      %s532 = sphi 0, %s531
      %s546 = sphi 0, %s532
      %s550 = sphi 0, %s550
      %s552 = sphi 0, %s550
      %s553 = sphi 0, %s552
      %s567 = sphi 0, %s553
      %s571 = sphi 0, %s571
      %s573 = sphi 0, %s571
      %s574 = sphi 0, %s573
      %s588 = sphi 0, %s574
      %s594 = sphi 0, %s596
      %s597 = sphi 0, %s594
      %s598 = sphi 0, %s597
      %s614 = sphi 0, %s598
    $region4: #{atom_attention_decoder.3} parent=1 // loop_header_branch
      %33 = sbr.rel (%p31) target = $region8
    $region5: #{atom_attention_decoder.3} parent=1 // loop_body
      %s35 = ssub.s32 %s30, 1
      %s36 = ssub.s32 %s30, 2
      %s43 = sadd.s32 1, %s38
      %p44 = scmp.ge.s32.totalorder %s43, 2
      %s45 = scalar_select %p44, 0, %s43
      %s46 = sadd.s32 1, %s37
      %s47 = scalar_select %p44, %s46, %s37
      %p48 = scmp.ge.s32.totalorder %s47, 2
      %s49 = scalar_select %p48, 0, %s47
      %s50 = ssub.s32 %s37, %s49
      %p51 = scmp.eq.s32.totalorder %s50, 0
      %s53 = sadd.s32 %s52, 1
      %s54 = scalar_select %p51, %s52, %s53
      %p57 = pneg %p51
      %p58 = scmp.eq.s32.totalorder %s30, 3
      %p59 = por %p57, %p58
      %p60 = scmp.ne.s32.totalorder %s52, %s55
      %p61 = scmp.eq.s32.totalorder %s30, 0
      %p62 = por %p60, %p61
      %p63 = scmp.ne.s32.totalorder %s52, %s55
      %p64 = scmp.eq.s32.totalorder %s35, 3
      %p65 = por %p63, %p64
      %p66 = scmp.ne.s32.totalorder %s55, %s56
      %p67 = scmp.eq.s32.totalorder %s35, 0
      %p68 = por %p66, %p67
      %p69 = scmp.ne.s32.totalorder %s55, %s56
      %p70 = scmp.eq.s32.totalorder %s36, 3
      %p71 = por %p69, %p70
      %p73 = scmp.ne.s32.totalorder %s56, %s72
      %p74 = scmp.eq.s32.totalorder %s36, 0
      %p75 = por %p73, %p74
      %s76 = ssub.s32 %s37, %s49
      %p77 = scmp.eq.s32.totalorder %s76, 0
      %s79 = sadd.s32 %s78, 1
      %s80 = scalar_select %p77, %s78, %s79
      %p83 = pneg %p77
      %p84 = scmp.eq.s32.totalorder %s30, 3
      %p85 = por %p83, %p84
      %p86 = scmp.ne.s32.totalorder %s78, %s81
      %p87 = scmp.eq.s32.totalorder %s30, 0
      %p88 = por %p86, %p87
      %p89 = scmp.ne.s32.totalorder %s78, %s81
      %p90 = scmp.eq.s32.totalorder %s35, 3
      %p91 = por %p89, %p90
      %p92 = scmp.ne.s32.totalorder %s81, %s82
      %p93 = scmp.eq.s32.totalorder %s35, 0
      %p94 = por %p92, %p93
      %p95 = scmp.ne.s32.totalorder %s81, %s82
      %p96 = scmp.eq.s32.totalorder %s36, 3
      %p97 = por %p95, %p96
      %p99 = scmp.ne.s32.totalorder %s82, %s98
      %p100 = scmp.eq.s32.totalorder %s36, 0
      %p101 = por %p99, %p100
      %s102 = ssub.s32 %s37, %s49
      %p103 = scmp.eq.s32.totalorder %s102, 0
      %s105 = sadd.s32 %s104, 1
      %s106 = scalar_select %p103, %s104, %s105
      %p109 = pneg %p103
      %p110 = scmp.eq.s32.totalorder %s30, 3
      %p111 = por %p109, %p110
      %p112 = scmp.ne.s32.totalorder %s104, %s107
      %p113 = scmp.eq.s32.totalorder %s30, 0
      %p114 = por %p112, %p113
      %p115 = scmp.ne.s32.totalorder %s104, %s107
      %p116 = scmp.eq.s32.totalorder %s35, 3
      %p117 = por %p115, %p116
      %p118 = scmp.ne.s32.totalorder %s107, %s108
      %p119 = scmp.eq.s32.totalorder %s35, 0
      %p120 = por %p118, %p119
      %p121 = scmp.ne.s32.totalorder %s107, %s108
      %p122 = scmp.eq.s32.totalorder %s36, 3
      %p123 = por %p121, %p122
      %p125 = scmp.ne.s32.totalorder %s108, %s124
      %p126 = scmp.eq.s32.totalorder %s36, 0
      %p127 = por %p125, %p126
      %s129 = sadd.s32 %s128, 1
      %p132 = scmp.eq.s32.totalorder %s30, 3
      %p133 = scmp.ne.s32.totalorder %s128, %s130
      %p134 = scmp.eq.s32.totalorder %s30, 0
      %p135 = por %p133, %p134
      %p136 = scmp.ne.s32.totalorder %s128, %s130
      %p137 = scmp.eq.s32.totalorder %s35, 3
      %p138 = por %p136, %p137
      %p139 = scmp.ne.s32.totalorder %s130, %s131
      %p140 = scmp.eq.s32.totalorder %s35, 0
      %p141 = por %p139, %p140
      %p142 = scmp.ne.s32.totalorder %s130, %s131
      %p143 = scmp.eq.s32.totalorder %s36, 3
      %p144 = por %p142, %p143
      %p146 = scmp.ne.s32.totalorder %s131, %s145
      %p147 = scmp.eq.s32.totalorder %s36, 0
      %p148 = por %p146, %p147
      %s150 = sadd.s32 %s149, 1
      %p153 = scmp.eq.s32.totalorder %s30, 3
      %p154 = scmp.ne.s32.totalorder %s149, %s151
      %p155 = scmp.eq.s32.totalorder %s30, 0
      %p156 = por %p154, %p155
      %p157 = scmp.ne.s32.totalorder %s149, %s151
      %p158 = scmp.eq.s32.totalorder %s35, 3
      %p159 = por %p157, %p158
      %p160 = scmp.ne.s32.totalorder %s151, %s152
      %p161 = scmp.eq.s32.totalorder %s35, 0
      %p162 = por %p160, %p161
      %p163 = scmp.ne.s32.totalorder %s151, %s152
      %p164 = scmp.eq.s32.totalorder %s36, 3
      %p165 = por %p163, %p164
      %p167 = scmp.ne.s32.totalorder %s152, %s166
      %p168 = scmp.eq.s32.totalorder %s36, 0
      %p169 = por %p167, %p168
      %s171 = sadd.s32 %s170, 1
      %p174 = scmp.eq.s32.totalorder %s30, 3
      %p175 = scmp.ne.s32.totalorder %s170, %s172
      %p176 = scmp.eq.s32.totalorder %s30, 0
      %p177 = por %p175, %p176
      %p178 = scmp.ne.s32.totalorder %s170, %s172
      %p179 = scmp.eq.s32.totalorder %s35, 3
      %p180 = por %p178, %p179
      %p181 = scmp.ne.s32.totalorder %s172, %s173
      %p182 = scmp.eq.s32.totalorder %s35, 0
      %p183 = por %p181, %p182
      %p184 = scmp.ne.s32.totalorder %s172, %s173
      %p185 = scmp.eq.s32.totalorder %s36, 3
      %p186 = por %p184, %p185
      %p188 = scmp.ne.s32.totalorder %s173, %s187
      %p189 = scmp.eq.s32.totalorder %s36, 0
      %p190 = por %p188, %p189
      %s191 = ssub.s32 %s38, %s45
      %p192 = scmp.eq.s32.totalorder %s191, 0
      %s194 = sadd.s32 %s193, 1
      %s195 = scalar_select %p192, %s193, %s194
      %p198 = pneg %p192
      %p199 = scmp.eq.s32.totalorder %s30, 3
      %p200 = por %p198, %p199
      %p201 = scmp.ne.s32.totalorder %s193, %s196
      %p202 = scmp.eq.s32.totalorder %s30, 0
      %p203 = por %p201, %p202
      %p204 = scmp.ne.s32.totalorder %s193, %s196
      %p205 = scmp.eq.s32.totalorder %s35, 3
      %p206 = por %p204, %p205
      %p207 = scmp.ne.s32.totalorder %s196, %s197
      %p208 = scmp.eq.s32.totalorder %s35, 0
      %p209 = por %p207, %p208
      %p210 = scmp.ne.s32.totalorder %s196, %s197
      %p211 = scmp.eq.s32.totalorder %s36, 3
      %p212 = por %p210, %p211
      %p214 = scmp.ne.s32.totalorder %s197, %s213
      %p215 = scmp.eq.s32.totalorder %s36, 0
      %p216 = por %p214, %p215
      %s217 = ssub.s32 %s38, %s45
      %p218 = scmp.eq.s32.totalorder %s217, 0
      %s220 = sadd.s32 %s219, 1
      %s221 = scalar_select %p218, %s219, %s220
      %p224 = pneg %p218
      %p225 = scmp.eq.s32.totalorder %s30, 3
      %p226 = por %p224, %p225
      %p227 = scmp.ne.s32.totalorder %s219, %s222
      %p228 = scmp.eq.s32.totalorder %s30, 0
      %p229 = por %p227, %p228
      %p230 = scmp.ne.s32.totalorder %s219, %s222
      %p231 = scmp.eq.s32.totalorder %s35, 3
      %p232 = por %p230, %p231
      %p233 = scmp.ne.s32.totalorder %s222, %s223
      %p234 = scmp.eq.s32.totalorder %s35, 0
      %p235 = por %p233, %p234
      %p236 = scmp.ne.s32.totalorder %s222, %s223
      %p237 = scmp.eq.s32.totalorder %s36, 3
      %p238 = por %p236, %p237
      %p240 = scmp.ne.s32.totalorder %s223, %s239
      %p241 = scmp.eq.s32.totalorder %s36, 0
      %p242 = por %p240, %p241
      %s243 = ssub.s32 %s38, %s45
      %p244 = scmp.eq.s32.totalorder %s243, 0
      %s246 = sadd.s32 %s245, 1
      %s247 = scalar_select %p244, %s245, %s246
      %p250 = pneg %p244
      %p251 = scmp.eq.s32.totalorder %s30, 3
      %p252 = por %p250, %p251
      %p253 = scmp.ne.s32.totalorder %s245, %s248
      %p254 = scmp.eq.s32.totalorder %s30, 0
      %p255 = por %p253, %p254
      %p256 = scmp.ne.s32.totalorder %s245, %s248
      %p257 = scmp.eq.s32.totalorder %s35, 3
      %p258 = por %p256, %p257
      %p259 = scmp.ne.s32.totalorder %s248, %s249
      %p260 = scmp.eq.s32.totalorder %s35, 0
      %p261 = por %p259, %p260
      %p262 = scmp.ne.s32.totalorder %s248, %s249
      %p263 = scmp.eq.s32.totalorder %s36, 3
      %p264 = por %p262, %p263
      %p266 = scmp.ne.s32.totalorder %s249, %s265
      %p267 = scmp.eq.s32.totalorder %s36, 0
      %p268 = por %p266, %p267
      %s269 = ssub.s32 %s38, %s45
      %p270 = scmp.eq.s32.totalorder %s269, 0
      %s272 = sadd.s32 %s271, 1
      %s273 = scalar_select %p270, %s271, %s272
      %p276 = pneg %p270
      %p277 = scmp.eq.s32.totalorder %s30, 3
      %p278 = por %p276, %p277
      %p279 = scmp.ne.s32.totalorder %s271, %s274
      %p280 = scmp.eq.s32.totalorder %s30, 0
      %p281 = por %p279, %p280
      %p282 = scmp.ne.s32.totalorder %s271, %s274
      %p283 = scmp.eq.s32.totalorder %s35, 3
      %p284 = por %p282, %p283
      %p285 = scmp.ne.s32.totalorder %s274, %s275
      %p286 = scmp.eq.s32.totalorder %s35, 0
      %p287 = por %p285, %p286
      %p288 = scmp.ne.s32.totalorder %s274, %s275
      %p289 = scmp.eq.s32.totalorder %s36, 3
      %p290 = por %p288, %p289
      %p292 = scmp.ne.s32.totalorder %s275, %s291
      %p293 = scmp.eq.s32.totalorder %s36, 0
      %p294 = por %p292, %p293
      %s295 = ssub.s32 %s38, %s45
      %p296 = scmp.eq.s32.totalorder %s295, 0
      %s298 = sadd.s32 %s297, 1
      %s299 = scalar_select %p296, %s297, %s298
      %p302 = pneg %p296
      %p303 = scmp.eq.s32.totalorder %s30, 3
      %p304 = por %p302, %p303
      %p305 = scmp.ne.s32.totalorder %s297, %s300
      %p306 = scmp.eq.s32.totalorder %s30, 0
      %p307 = por %p305, %p306
      %p308 = scmp.ne.s32.totalorder %s297, %s300
      %p309 = scmp.eq.s32.totalorder %s35, 3
      %p310 = por %p308, %p309
      %p311 = scmp.ne.s32.totalorder %s300, %s301
      %p312 = scmp.eq.s32.totalorder %s35, 0
      %p313 = por %p311, %p312
      %p314 = scmp.ne.s32.totalorder %s300, %s301
      %p315 = scmp.eq.s32.totalorder %s36, 3
      %p316 = por %p314, %p315
      %p318 = scmp.ne.s32.totalorder %s301, %s317
      %p319 = scmp.eq.s32.totalorder %s36, 0
      %p320 = por %p318, %p319
      %s321 = ssub.s32 %s38, %s45
      %p322 = scmp.eq.s32.totalorder %s321, 0
      %s324 = sadd.s32 %s323, 1
      %s325 = scalar_select %p322, %s323, %s324
      %p328 = pneg %p322
      %p329 = scmp.eq.s32.totalorder %s30, 3
      %p330 = por %p328, %p329
      %p331 = scmp.ne.s32.totalorder %s323, %s326
      %p332 = scmp.eq.s32.totalorder %s30, 0
      %p333 = por %p331, %p332
      %p334 = scmp.ne.s32.totalorder %s323, %s326
      %p335 = scmp.eq.s32.totalorder %s35, 3
      %p336 = por %p334, %p335
      %p337 = scmp.ne.s32.totalorder %s326, %s327
      %p338 = scmp.eq.s32.totalorder %s35, 0
      %p339 = por %p337, %p338
      %p340 = scmp.ne.s32.totalorder %s326, %s327
      %p341 = scmp.eq.s32.totalorder %s36, 3
      %p342 = por %p340, %p341
      %p344 = scmp.ne.s32.totalorder %s327, %s343
      %p345 = scmp.eq.s32.totalorder %s36, 0
      %p346 = por %p344, %p345
      %s347 = ssub.s32 %s38, %s45
      %p348 = scmp.eq.s32.totalorder %s347, 0
      %s350 = sadd.s32 %s349, 1
      %s351 = scalar_select %p348, %s349, %s350
      %p354 = pneg %p348
      %p355 = scmp.eq.s32.totalorder %s30, 3
      %p356 = por %p354, %p355
      %p357 = scmp.ne.s32.totalorder %s349, %s352
      %p358 = scmp.eq.s32.totalorder %s30, 0
      %p359 = por %p357, %p358
      %p360 = scmp.ne.s32.totalorder %s349, %s352
      %p361 = scmp.eq.s32.totalorder %s35, 3
      %p362 = por %p360, %p361
      %p363 = scmp.ne.s32.totalorder %s352, %s353
      %p364 = scmp.eq.s32.totalorder %s35, 0
      %p365 = por %p363, %p364
      %p366 = scmp.ne.s32.totalorder %s352, %s353
      %p367 = scmp.eq.s32.totalorder %s36, 3
      %p368 = por %p366, %p367
      %p370 = scmp.ne.s32.totalorder %s353, %s369
      %p371 = scmp.eq.s32.totalorder %s36, 0
      %p372 = por %p370, %p371
      %s373 = ssub.s32 %s38, %s45
      %p374 = scmp.eq.s32.totalorder %s373, 0
      %s376 = sadd.s32 %s375, 1
      %s377 = scalar_select %p374, %s375, %s376
      %p380 = pneg %p374
      %p381 = scmp.eq.s32.totalorder %s30, 3
      %p382 = por %p380, %p381
      %p383 = scmp.ne.s32.totalorder %s375, %s378
      %p384 = scmp.eq.s32.totalorder %s30, 0
      %p385 = por %p383, %p384
      %p386 = scmp.ne.s32.totalorder %s375, %s378
      %p387 = scmp.eq.s32.totalorder %s35, 3
      %p388 = por %p386, %p387
      %p389 = scmp.ne.s32.totalorder %s378, %s379
      %p390 = scmp.eq.s32.totalorder %s35, 0
      %p391 = por %p389, %p390
      %p392 = scmp.ne.s32.totalorder %s378, %s379
      %p393 = scmp.eq.s32.totalorder %s36, 3
      %p394 = por %p392, %p393
      %p396 = scmp.ne.s32.totalorder %s379, %s395
      %p397 = scmp.eq.s32.totalorder %s36, 0
      %p398 = por %p396, %p397
      %s399 = ssub.s32 %s38, %s45
      %p400 = scmp.eq.s32.totalorder %s399, 0
      %s402 = sadd.s32 %s401, 1
      %s403 = scalar_select %p400, %s401, %s402
      %p406 = pneg %p400
      %p407 = scmp.eq.s32.totalorder %s30, 3
      %p408 = por %p406, %p407
      %p409 = scmp.ne.s32.totalorder %s401, %s404
      %p410 = scmp.eq.s32.totalorder %s30, 0
      %p411 = por %p409, %p410
      %p412 = scmp.ne.s32.totalorder %s401, %s404
      %p413 = scmp.eq.s32.totalorder %s35, 3
      %p414 = por %p412, %p413
      %p415 = scmp.ne.s32.totalorder %s404, %s405
      %p416 = scmp.eq.s32.totalorder %s35, 0
      %p417 = por %p415, %p416
      %p418 = scmp.ne.s32.totalorder %s404, %s405
      %p419 = scmp.eq.s32.totalorder %s36, 3
      %p420 = por %p418, %p419
      %p422 = scmp.ne.s32.totalorder %s405, %s421
      %p423 = scmp.eq.s32.totalorder %s36, 0
      %p424 = por %p422, %p423
      %s425 = ssub.s32 %s38, %s45
      %p426 = scmp.eq.s32.totalorder %s425, 0
      %s428 = sadd.s32 %s427, 1
      %s429 = scalar_select %p426, %s427, %s428
      %p432 = pneg %p426
      %p433 = scmp.eq.s32.totalorder %s30, 3
      %p434 = por %p432, %p433
      %p435 = scmp.ne.s32.totalorder %s427, %s430
      %p436 = scmp.eq.s32.totalorder %s30, 0
      %p437 = por %p435, %p436
      %p438 = scmp.ne.s32.totalorder %s427, %s430
      %p439 = scmp.eq.s32.totalorder %s35, 3
      %p440 = por %p438, %p439
      %p441 = scmp.ne.s32.totalorder %s430, %s431
      %p442 = scmp.eq.s32.totalorder %s35, 0
      %p443 = por %p441, %p442
      %p444 = scmp.ne.s32.totalorder %s430, %s431
      %p445 = scmp.eq.s32.totalorder %s36, 3
      %p446 = por %p444, %p445
      %p448 = scmp.ne.s32.totalorder %s431, %s447
      %p449 = scmp.eq.s32.totalorder %s36, 0
      %p450 = por %p448, %p449
      %s451 = ssub.s32 %s38, %s45
      %p452 = scmp.eq.s32.totalorder %s451, 0
      %s454 = sadd.s32 %s453, 1
      %s455 = scalar_select %p452, %s453, %s454
      %p458 = pneg %p452
      %p459 = scmp.eq.s32.totalorder %s30, 3
      %p460 = por %p458, %p459
      %p461 = scmp.ne.s32.totalorder %s453, %s456
      %p462 = scmp.eq.s32.totalorder %s30, 0
      %p463 = por %p461, %p462
      %p464 = scmp.ne.s32.totalorder %s453, %s456
      %p465 = scmp.eq.s32.totalorder %s35, 3
      %p466 = por %p464, %p465
      %p467 = scmp.ne.s32.totalorder %s456, %s457
      %p468 = scmp.eq.s32.totalorder %s35, 0
      %p469 = por %p467, %p468
      %p470 = scmp.ne.s32.totalorder %s456, %s457
      %p471 = scmp.eq.s32.totalorder %s36, 3
      %p472 = por %p470, %p471
      %p474 = scmp.ne.s32.totalorder %s457, %s473
      %p475 = scmp.eq.s32.totalorder %s36, 0
      %p476 = por %p474, %p475
      %s477 = ssub.s32 %s38, %s45
      %p478 = scmp.eq.s32.totalorder %s477, 0
      %s480 = sadd.s32 %s479, 1
      %s481 = scalar_select %p478, %s479, %s480
      %p484 = pneg %p478
      %p485 = scmp.eq.s32.totalorder %s30, 3
      %p486 = por %p484, %p485
      %p487 = scmp.ne.s32.totalorder %s479, %s482
      %p488 = scmp.eq.s32.totalorder %s30, 0
      %p489 = por %p487, %p488
      %p490 = scmp.ne.s32.totalorder %s479, %s482
      %p491 = scmp.eq.s32.totalorder %s35, 3
      %p492 = por %p490, %p491
      %p493 = scmp.ne.s32.totalorder %s482, %s483
      %p494 = scmp.eq.s32.totalorder %s35, 0
      %p495 = por %p493, %p494
      %p496 = scmp.ne.s32.totalorder %s482, %s483
      %p497 = scmp.eq.s32.totalorder %s36, 3
      %p498 = por %p496, %p497
      %p500 = scmp.ne.s32.totalorder %s483, %s499
      %p501 = scmp.eq.s32.totalorder %s36, 0
      %p502 = por %p500, %p501
      %s503 = ssub.s32 %s38, %s45
      %p504 = scmp.eq.s32.totalorder %s503, 0
      %s506 = sadd.s32 %s505, 1
      %s507 = scalar_select %p504, %s505, %s506
      %p510 = pneg %p504
      %p511 = scmp.eq.s32.totalorder %s30, 3
      %p512 = por %p510, %p511
      %p513 = scmp.ne.s32.totalorder %s505, %s508
      %p514 = scmp.eq.s32.totalorder %s30, 0
      %p515 = por %p513, %p514
      %p516 = scmp.ne.s32.totalorder %s505, %s508
      %p517 = scmp.eq.s32.totalorder %s35, 3
      %p518 = por %p516, %p517
      %p519 = scmp.ne.s32.totalorder %s508, %s509
      %p520 = scmp.eq.s32.totalorder %s35, 0
      %p521 = por %p519, %p520
      %p522 = scmp.ne.s32.totalorder %s508, %s509
      %p523 = scmp.eq.s32.totalorder %s36, 3
      %p524 = por %p522, %p523
      %p526 = scmp.ne.s32.totalorder %s509, %s525
      %p527 = scmp.eq.s32.totalorder %s36, 0
      %p528 = por %p526, %p527
      %s530 = sadd.s32 %s529, 1
      %p533 = scmp.eq.s32.totalorder %s30, 3
      %p534 = scmp.ne.s32.totalorder %s529, %s531
      %p535 = scmp.eq.s32.totalorder %s30, 0
      %p536 = por %p534, %p535
      %p537 = scmp.ne.s32.totalorder %s529, %s531
      %p538 = scmp.eq.s32.totalorder %s35, 3
      %p539 = por %p537, %p538
      %p540 = scmp.ne.s32.totalorder %s531, %s532
      %p541 = scmp.eq.s32.totalorder %s35, 0
      %p542 = por %p540, %p541
      %p543 = scmp.ne.s32.totalorder %s531, %s532
      %p544 = scmp.eq.s32.totalorder %s36, 3
      %p545 = por %p543, %p544
      %p547 = scmp.ne.s32.totalorder %s532, %s546
      %p548 = scmp.eq.s32.totalorder %s36, 0
      %p549 = por %p547, %p548
      %s551 = sadd.s32 %s550, 1
      %p554 = scmp.eq.s32.totalorder %s30, 3
      %p555 = scmp.ne.s32.totalorder %s550, %s552
      %p556 = scmp.eq.s32.totalorder %s30, 0
      %p557 = por %p555, %p556
      %p558 = scmp.ne.s32.totalorder %s550, %s552
      %p559 = scmp.eq.s32.totalorder %s35, 3
      %p560 = por %p558, %p559
      %p561 = scmp.ne.s32.totalorder %s552, %s553
      %p562 = scmp.eq.s32.totalorder %s35, 0
      %p563 = por %p561, %p562
      %p564 = scmp.ne.s32.totalorder %s552, %s553
      %p565 = scmp.eq.s32.totalorder %s36, 3
      %p566 = por %p564, %p565
      %p568 = scmp.ne.s32.totalorder %s553, %s567
      %p569 = scmp.eq.s32.totalorder %s36, 0
      %p570 = por %p568, %p569
      %s572 = sadd.s32 %s571, 1
      %p575 = scmp.eq.s32.totalorder %s30, 3
      %p576 = scmp.ne.s32.totalorder %s571, %s573
      %p577 = scmp.eq.s32.totalorder %s30, 0
      %p578 = por %p576, %p577
      %p579 = scmp.ne.s32.totalorder %s571, %s573
      %p580 = scmp.eq.s32.totalorder %s35, 3
      %p581 = por %p579, %p580
      %p582 = scmp.ne.s32.totalorder %s573, %s574
      %p583 = scmp.eq.s32.totalorder %s35, 0
      %p584 = por %p582, %p583
      %p585 = scmp.ne.s32.totalorder %s573, %s574
      %p586 = scmp.eq.s32.totalorder %s36, 3
      %p587 = por %p585, %p586
      %p589 = scmp.ne.s32.totalorder %s574, %s588
      %p590 = scmp.eq.s32.totalorder %s36, 0
      %p591 = por %p589, %p590
      %s592 = ssub.s32 %s37, %s49
      %p593 = scmp.eq.s32.totalorder %s592, 0
      %s595 = sadd.s32 %s594, 1
      %s596 = scalar_select %p593, %s594, %s595
      %p599 = pneg %p593
      %p600 = scmp.eq.s32.totalorder %s30, 3
      %p601 = por %p599, %p600
      %p602 = scmp.ne.s32.totalorder %s594, %s597
      %p603 = scmp.eq.s32.totalorder %s30, 0
      %p604 = por %p602, %p603
      %p605 = scmp.ne.s32.totalorder %s594, %s597
      %p606 = scmp.eq.s32.totalorder %s35, 3
      %p607 = por %p605, %p606
      %p608 = scmp.ne.s32.totalorder %s597, %s598
      %p609 = scmp.eq.s32.totalorder %s35, 0
      %p610 = por %p608, %p609
      %p611 = scmp.ne.s32.totalorder %s597, %s598
      %p612 = scmp.eq.s32.totalorder %s36, 3
      %p613 = por %p611, %p612
      %p615 = scmp.ne.s32.totalorder %s598, %s614
      %p616 = scmp.eq.s32.totalorder %s36, 0
      %p617 = por %p615, %p616
      %p618 = scmp.le.s32.totalorder 1, %s30
      %p619 = scmp.lt.s32.totalorder %s30, 5
      %p620 = pnand %p618, %p619
      %p621 = pneg %p620
      // Predicated region
      $region9: #{atom_attention_decoder.3} parent=5 // pred_check
        _
      $region10: #{atom_attention_decoder.3} parent=5 // pred_check_branch
        %623 = sbr.rel (%p620) target = $region12
      $region11: #{atom_attention_decoder.3} parent=5 // pred_region
        %s624 = ssub.s32 %s30, 1
        // Predicated region
        $region13: #{atom_attention_decoder.3} parent=11 // pred_check
          %p625 = pneg %p141
        $region14: #{atom_attention_decoder.3} parent=11 // pred_check_branch
          %627 = sbr.rel (%p625) target = $region16
        $region15: #{atom_attention_decoder.3} parent=11 // pred_region
          _
        $region16: #{atom_attention_decoder.3} parent=11 // pred_fallthru
          _
        // Predicated region
        $region17: #{atom_attention_decoder.3} parent=11 // pred_check
          %p628 = pneg %p162
        $region18: #{atom_attention_decoder.3} parent=11 // pred_check_branch
          %630 = sbr.rel (%p628) target = $region20
        $region19: #{atom_attention_decoder.3} parent=11 // pred_region
          %s632 = ssub.s32 256, 256
          %633 = vsyncadd [#allocation6], %s632
          %s634 = sshll.u32 %s4, 4
          %s635 = int_to_ptr.vmem [resolvable:$true] %s634
          %640 = dma.vmem_to_smem %s635, 256, [#allocation5], [#allocation6], 128, 128, 8
        $region20: #{atom_attention_decoder.3} parent=11 // pred_fallthru
          _
        // Predicated region
        $region21: #{atom_attention_decoder.3} parent=11 // pred_check
          %p641 = pneg %p183
        $region22: #{atom_attention_decoder.3} parent=11 // pred_check_branch
          %643 = sbr.rel (%p641) target = $region24
        $region23: #{atom_attention_decoder.3} parent=11 // pred_region
          %s645 = ssub.s32 32, 32
          %646 = vsyncadd [#allocation8], %s645
          %s648 = sshll.u32 %s5, 4
          %s649 = int_to_ptr.vmem [resolvable:$true] %s648
          %651 = dma.vmem_to_smem %s649, 32, [#allocation7], [#allocation8]
        $region24: #{atom_attention_decoder.3} parent=11 // pred_fallthru
          _
        // Predicated region
        $region25: #{atom_attention_decoder.3} parent=11 // pred_check
          %p652 = pneg %p542
        $region26: #{atom_attention_decoder.3} parent=11 // pred_check_branch
          %654 = sbr.rel (%p652) target = $region28
        $region27: #{atom_attention_decoder.3} parent=11 // pred_region
          _
        $region28: #{atom_attention_decoder.3} parent=11 // pred_fallthru
          _
        // Predicated region
        $region29: #{atom_attention_decoder.3} parent=11 // pred_check
          %p655 = pneg %p563
        $region30: #{atom_attention_decoder.3} parent=11 // pred_check_branch
          %657 = sbr.rel (%p655) target = $region32
        $region31: #{atom_attention_decoder.3} parent=11 // pred_region
          _
        $region32: #{atom_attention_decoder.3} parent=11 // pred_fallthru
          _
        // Predicated region
        $region33: #{atom_attention_decoder.3} parent=11 // pred_check
          %p658 = pneg %p584
        $region34: #{atom_attention_decoder.3} parent=11 // pred_check_branch
          %660 = sbr.rel (%p658) target = $region36
        $region35: #{atom_attention_decoder.3} parent=11 // pred_region
          _
        $region36: #{atom_attention_decoder.3} parent=11 // pred_fallthru
          _
      $region12: #{atom_attention_decoder.3} parent=5 // pred_fallthru
        _
      %p661 = scmp.lt.s32.totalorder %s30, 4
      // Predicated region
      $region37: #{atom_attention_decoder.3} parent=5 // pred_check
        %p662 = pneg %p661
      $region38: #{atom_attention_decoder.3} parent=5 // pred_check_branch
        %664 = sbr.rel (%p662) target = $region40
      $region39: #{atom_attention_decoder.3} parent=5 // pred_region
        // Predicated region
        $region41: #{atom_attention_decoder.3} parent=39 // pred_check
          %p665 = pneg %p62
        $region42: #{atom_attention_decoder.3} parent=39 // pred_check_branch
          %667 = sbr.rel (%p665) target = $region44
        $region43: #{atom_attention_decoder.3} parent=39 // pred_region
          %p668 = scmp.lt.s32.totalorder %s37, 1
          %s669 = scalar_select %p668, %s37, 1
          %s670 = smul.addr %s669, 14
          %s671 = smul.addr %s670, 8
          %s672 = scalar_lea.vmem %s0, %s671
        $region44: #{atom_attention_decoder.3} parent=39 // pred_fallthru
          _
        // Predicated region
        $region45: #{atom_attention_decoder.3} parent=39 // pred_check
          %p673 = pneg %p88
        $region46: #{atom_attention_decoder.3} parent=39 // pred_check_branch
          %675 = sbr.rel (%p673) target = $region48
        $region47: #{atom_attention_decoder.3} parent=39 // pred_region
          %p676 = scmp.lt.s32.totalorder %s37, 1
          %s677 = scalar_select %p676, %s37, 1
          %s678 = smul.addr %s677, 14
          %s679 = smul.addr %s678, 8
          %s680 = scalar_lea.vmem %s1, %s679
        $region48: #{atom_attention_decoder.3} parent=39 // pred_fallthru
          _
        // Predicated region
        $region49: #{atom_attention_decoder.3} parent=39 // pred_check
          %p681 = pneg %p114
        $region50: #{atom_attention_decoder.3} parent=39 // pred_check_branch
          %683 = sbr.rel (%p681) target = $region52
        $region51: #{atom_attention_decoder.3} parent=39 // pred_region
          %p684 = scmp.lt.s32.totalorder %s37, 1
          %s685 = scalar_select %p684, %s37, 1
          %s686 = smul.addr %s685, 112
          %s687 = smul.addr %s686, 8
          %s688 = scalar_lea.vmem %s2, %s687
        $region52: #{atom_attention_decoder.3} parent=39 // pred_fallthru
          _
        // Predicated region
        $region53: #{atom_attention_decoder.3} parent=39 // pred_check
          %p689 = pneg %p203
        $region54: #{atom_attention_decoder.3} parent=39 // pred_check_branch
          %691 = sbr.rel (%p689) target = $region56
        $region55: #{atom_attention_decoder.3} parent=39 // pred_region
          %p692 = scmp.lt.s32.totalorder %s38, 1
          %s693 = scalar_select %p692, %s38, 1
          %s694 = scalar_lea.vmem %s6, %s693
        $region56: #{atom_attention_decoder.3} parent=39 // pred_fallthru
          _
        // Predicated region
        $region57: #{atom_attention_decoder.3} parent=39 // pred_check
          %p695 = pneg %p229
        $region58: #{atom_attention_decoder.3} parent=39 // pred_check_branch
          %697 = sbr.rel (%p695) target = $region60
        $region59: #{atom_attention_decoder.3} parent=39 // pred_region
          %p698 = scmp.lt.s32.totalorder %s38, 1
          %s699 = scalar_select %p698, %s38, 1
          %s700 = smul.addr %s699, 4
          %s701 = smul.addr %s700, 8
          %s702 = scalar_lea.vmem %s7, %s701
        $region60: #{atom_attention_decoder.3} parent=39 // pred_fallthru
          _
        // Predicated region
        $region61: #{atom_attention_decoder.3} parent=39 // pred_check
          %p703 = pneg %p255
        $region62: #{atom_attention_decoder.3} parent=39 // pred_check_branch
          %705 = sbr.rel (%p703) target = $region64
        $region63: #{atom_attention_decoder.3} parent=39 // pred_region
          %p706 = scmp.lt.s32.totalorder %s38, 1
          %s707 = scalar_select %p706, %s38, 1
          %s708 = scalar_lea.vmem %s8, %s707
        $region64: #{atom_attention_decoder.3} parent=39 // pred_fallthru
          _
        // Predicated region
        $region65: #{atom_attention_decoder.3} parent=39 // pred_check
          %p709 = pneg %p281
        $region66: #{atom_attention_decoder.3} parent=39 // pred_check_branch
          %711 = sbr.rel (%p709) target = $region68
        $region67: #{atom_attention_decoder.3} parent=39 // pred_region
          %p712 = scmp.lt.s32.totalorder %s38, 1
          %s713 = scalar_select %p712, %s38, 1
          %s714 = smul.addr %s713, 4
          %s715 = smul.addr %s714, 8
          %s716 = scalar_lea.vmem %s9, %s715
        $region68: #{atom_attention_decoder.3} parent=39 // pred_fallthru
          _
        // Predicated region
        $region69: #{atom_attention_decoder.3} parent=39 // pred_check
          %p717 = pneg %p307
        $region70: #{atom_attention_decoder.3} parent=39 // pred_check_branch
          %719 = sbr.rel (%p717) target = $region72
        $region71: #{atom_attention_decoder.3} parent=39 // pred_region
          %p720 = scmp.lt.s32.totalorder %s38, 1
          %s721 = scalar_select %p720, %s38, 1
          %s722 = scalar_lea.vmem %s10, %s721
        $region72: #{atom_attention_decoder.3} parent=39 // pred_fallthru
          _
        // Predicated region
        $region73: #{atom_attention_decoder.3} parent=39 // pred_check
          %p723 = pneg %p333
        $region74: #{atom_attention_decoder.3} parent=39 // pred_check_branch
          %725 = sbr.rel (%p723) target = $region76
        $region75: #{atom_attention_decoder.3} parent=39 // pred_region
          %p726 = scmp.lt.s32.totalorder %s38, 1
          %s727 = scalar_select %p726, %s38, 1
          %s728 = smul.addr %s727, 4
          %s729 = smul.addr %s728, 8
          %s730 = scalar_lea.vmem %s11, %s729
        $region76: #{atom_attention_decoder.3} parent=39 // pred_fallthru
          _
        // Predicated region
        $region77: #{atom_attention_decoder.3} parent=39 // pred_check
          %p731 = pneg %p359
        $region78: #{atom_attention_decoder.3} parent=39 // pred_check_branch
          %733 = sbr.rel (%p731) target = $region80
        $region79: #{atom_attention_decoder.3} parent=39 // pred_region
          %p734 = scmp.lt.s32.totalorder %s38, 1
          %s735 = scalar_select %p734, %s38, 1
          %s736 = smul.addr %s735, 4
          %s737 = smul.addr %s736, 8
          %s738 = scalar_lea.vmem %s12, %s737
        $region80: #{atom_attention_decoder.3} parent=39 // pred_fallthru
          _
        // Predicated region
        $region81: #{atom_attention_decoder.3} parent=39 // pred_check
          %p739 = pneg %p385
        $region82: #{atom_attention_decoder.3} parent=39 // pred_check_branch
          %741 = sbr.rel (%p739) target = $region84
        $region83: #{atom_attention_decoder.3} parent=39 // pred_region
          %p742 = scmp.lt.s32.totalorder %s38, 1
          %s743 = scalar_select %p742, %s38, 1
          %s744 = scalar_lea.vmem %s13, %s743
        $region84: #{atom_attention_decoder.3} parent=39 // pred_fallthru
          _
        // Predicated region
        $region85: #{atom_attention_decoder.3} parent=39 // pred_check
          %p745 = pneg %p411
        $region86: #{atom_attention_decoder.3} parent=39 // pred_check_branch
          %747 = sbr.rel (%p745) target = $region88
        $region87: #{atom_attention_decoder.3} parent=39 // pred_region
          %p748 = scmp.lt.s32.totalorder %s38, 1
          %s749 = scalar_select %p748, %s38, 1
          %s750 = scalar_lea.vmem %s14, %s749
        $region88: #{atom_attention_decoder.3} parent=39 // pred_fallthru
          _
        // Predicated region
        $region89: #{atom_attention_decoder.3} parent=39 // pred_check
          %p751 = pneg %p437
        $region90: #{atom_attention_decoder.3} parent=39 // pred_check_branch
          %753 = sbr.rel (%p751) target = $region92
        $region91: #{atom_attention_decoder.3} parent=39 // pred_region
          %p754 = scmp.lt.s32.totalorder %s38, 1
          %s755 = scalar_select %p754, %s38, 1
          %s756 = smul.addr %s755, 4
          %s757 = smul.addr %s756, 8
          %s758 = scalar_lea.vmem %s15, %s757
        $region92: #{atom_attention_decoder.3} parent=39 // pred_fallthru
          _
        // Predicated region
        $region93: #{atom_attention_decoder.3} parent=39 // pred_check
          %p759 = pneg %p463
        $region94: #{atom_attention_decoder.3} parent=39 // pred_check_branch
          %761 = sbr.rel (%p759) target = $region96
        $region95: #{atom_attention_decoder.3} parent=39 // pred_region
          %p762 = scmp.lt.s32.totalorder %s38, 1
          %s763 = scalar_select %p762, %s38, 1
          %s764 = scalar_lea.vmem %s16, %s763
        $region96: #{atom_attention_decoder.3} parent=39 // pred_fallthru
          _
        // Predicated region
        $region97: #{atom_attention_decoder.3} parent=39 // pred_check
          %p765 = pneg %p489
        $region98: #{atom_attention_decoder.3} parent=39 // pred_check_branch
          %767 = sbr.rel (%p765) target = $region100
        $region99: #{atom_attention_decoder.3} parent=39 // pred_region
          %p768 = scmp.lt.s32.totalorder %s38, 1
          %s769 = scalar_select %p768, %s38, 1
          %s770 = smul.addr %s769, 4
          %s771 = smul.addr %s770, 8
          %s772 = scalar_lea.vmem %s17, %s771
        $region100: #{atom_attention_decoder.3} parent=39 // pred_fallthru
          _
        // Predicated region
        $region101: #{atom_attention_decoder.3} parent=39 // pred_check
          %p773 = pneg %p515
        $region102: #{atom_attention_decoder.3} parent=39 // pred_check_branch
          %775 = sbr.rel (%p773) target = $region104
        $region103: #{atom_attention_decoder.3} parent=39 // pred_region
          %p776 = scmp.lt.s32.totalorder %s38, 1
          %s777 = scalar_select %p776, %s38, 1
          %s778 = smul.addr %s777, 8
          %s779 = smul.addr %s778, 8
          %s780 = scalar_lea.vmem %s18, %s779
        $region104: #{atom_attention_decoder.3} parent=39 // pred_fallthru
          _
      $region40: #{atom_attention_decoder.3} parent=5 // pred_fallthru
        _
      %p781 = scmp.le.s32.totalorder 1, %s30
      %p782 = scmp.lt.s32.totalorder %s30, 5
      %p783 = pnand %p781, %p782
      %p784 = pneg %p783
      // Predicated region
      $region105: #{atom_attention_decoder.3} parent=5 // pred_check
        _
      $region106: #{atom_attention_decoder.3} parent=5 // pred_check_branch
        %786 = sbr.rel (%p783) target = $region108
      $region107: #{atom_attention_decoder.3} parent=5 // pred_region
        %s787 = ssub.s32 %s30, 1
        // Predicated region
        $region109: #{atom_attention_decoder.3} parent=107 // pred_check
          %p788 = pneg %p162
        $region110: #{atom_attention_decoder.3} parent=107 // pred_check_branch
          %790 = sbr.rel (%p788) target = $region112
        $region111: #{atom_attention_decoder.3} parent=107 // pred_region
          %791 = dma.done [#allocation6], 256
        $region112: #{atom_attention_decoder.3} parent=107 // pred_fallthru
          _
        // Predicated region
        $region113: #{atom_attention_decoder.3} parent=107 // pred_check
          %p792 = pneg %p183
        $region114: #{atom_attention_decoder.3} parent=107 // pred_check_branch
          %794 = sbr.rel (%p792) target = $region116
        $region115: #{atom_attention_decoder.3} parent=107 // pred_region
          %795 = dma.done [#allocation8], 32
        $region116: #{atom_attention_decoder.3} parent=107 // pred_fallthru
          _
        %796 = sfence
        %p797 = scmp.lt.s32.totalorder %s39, 1
        %s798 = scalar_select %p797, %s39, 1
        %s799 = smul.addr %s798, 14
        %s800 = smul.addr %s799, 8
        %s801 = scalar_lea.vmem %s0, %s800
        %p802 = pneg %p68
        %p803 = pneg %p65
        %p804 = scmp.lt.s32.totalorder %s39, 1
        %s805 = scalar_select %p804, %s39, 1
        %s806 = smul.addr %s805, 14
        %s807 = smul.addr %s806, 8
        %s808 = scalar_lea.vmem %s1, %s807
        %p809 = pneg %p94
        %p810 = pneg %p91
        %p811 = scmp.lt.s32.totalorder %s39, 1
        %s812 = scalar_select %p811, %s39, 1
        %s813 = smul.addr %s812, 112
        %s814 = smul.addr %s813, 8
        %s815 = scalar_lea.vmem %s2, %s814
        %p816 = pneg %p120
        %p817 = pneg %p117
        %p818 = pneg %p141
        %p819 = pneg %p138
        %p820 = pneg %p162
        %p821 = pneg %p159
        %p822 = pneg %p183
        %p823 = pneg %p180
        %p824 = scmp.lt.s32.totalorder %s40, 1
        %s825 = scalar_select %p824, %s40, 1
        %s826 = scalar_lea.vmem %s6, %s825
        %p827 = pneg %p209
        %p828 = pneg %p206
        %p829 = scmp.lt.s32.totalorder %s40, 1
        %s830 = scalar_select %p829, %s40, 1
        %s831 = smul.addr %s830, 4
        %s832 = smul.addr %s831, 8
        %s833 = scalar_lea.vmem %s7, %s832
        %p834 = pneg %p235
        %p835 = pneg %p232
        %p836 = scmp.lt.s32.totalorder %s40, 1
        %s837 = scalar_select %p836, %s40, 1
        %s838 = scalar_lea.vmem %s8, %s837
        %p839 = pneg %p261
        %p840 = pneg %p258
        %p841 = scmp.lt.s32.totalorder %s40, 1
        %s842 = scalar_select %p841, %s40, 1
        %s843 = smul.addr %s842, 4
        %s844 = smul.addr %s843, 8
        %s845 = scalar_lea.vmem %s9, %s844
        %p846 = pneg %p287
        %p847 = pneg %p284
        %p848 = scmp.lt.s32.totalorder %s40, 1
        %s849 = scalar_select %p848, %s40, 1
        %s850 = scalar_lea.vmem %s10, %s849
        %p851 = pneg %p313
        %p852 = pneg %p310
        %p853 = scmp.lt.s32.totalorder %s40, 1
        %s854 = scalar_select %p853, %s40, 1
        %s855 = smul.addr %s854, 4
        %s856 = smul.addr %s855, 8
        %s857 = scalar_lea.vmem %s11, %s856
        %p858 = pneg %p339
        %p859 = pneg %p336
        %p860 = scmp.lt.s32.totalorder %s40, 1
        %s861 = scalar_select %p860, %s40, 1
        %s862 = smul.addr %s861, 4
        %s863 = smul.addr %s862, 8
        %s864 = scalar_lea.vmem %s12, %s863
        %p865 = pneg %p365
        %p866 = pneg %p362
        %p867 = scmp.lt.s32.totalorder %s40, 1
        %s868 = scalar_select %p867, %s40, 1
        %s869 = scalar_lea.vmem %s13, %s868
        %p870 = pneg %p391
        %p871 = pneg %p388
        %p872 = scmp.lt.s32.totalorder %s40, 1
        %s873 = scalar_select %p872, %s40, 1
        %s874 = scalar_lea.vmem %s14, %s873
        %p875 = pneg %p417
        %p876 = pneg %p414
        %p877 = scmp.lt.s32.totalorder %s40, 1
        %s878 = scalar_select %p877, %s40, 1
        %s879 = smul.addr %s878, 4
        %s880 = smul.addr %s879, 8
        %s881 = scalar_lea.vmem %s15, %s880
        %p882 = pneg %p443
        %p883 = pneg %p440
        %p884 = scmp.lt.s32.totalorder %s40, 1
        %s885 = scalar_select %p884, %s40, 1
        %s886 = scalar_lea.vmem %s16, %s885
        %p887 = pneg %p469
        %p888 = pneg %p466
        %p889 = scmp.lt.s32.totalorder %s40, 1
        %s890 = scalar_select %p889, %s40, 1
        %s891 = smul.addr %s890, 4
        %s892 = smul.addr %s891, 8
        %s893 = scalar_lea.vmem %s17, %s892
        %p894 = pneg %p495
        %p895 = pneg %p492
        %p896 = scmp.lt.s32.totalorder %s40, 1
        %s897 = scalar_select %p896, %s40, 1
        %s898 = smul.addr %s897, 8
        %s899 = smul.addr %s898, 8
        %s900 = scalar_lea.vmem %s18, %s899
        %p901 = pneg %p521
        %p902 = pneg %p518
        %p903 = pneg %p542
        %p904 = pneg %p539
        %p905 = pneg %p563
        %p906 = pneg %p560
        %p907 = pneg %p584
        %p908 = pneg %p581
        %p909 = pneg %p610
        %p910 = pneg %p607
        %p911 = scmp.lt.s32.totalorder %s39, 1
        %s912 = scalar_select %p911, %s39, 1
        %s913 = smul.addr %s912, 14
        %s914 = smul.addr %s913, 8
        %s915 = scalar_lea.vmem %s22, %s914
        %p916 = scmp.lt.s32.totalorder %s39, 1
        %s917 = scalar_select %p916, %s39, 1
        %s918 = smul.addr %s917, 14
        %s919 = smul.addr %s918, 8
        %s920 = scalar_lea.vmem %s0, %s919
        %p921 = scmp.lt.s32.totalorder %s39, 1
        %s922 = scalar_select %p921, %s39, 1
        %s923 = smul.addr %s922, 14
        %s924 = smul.addr %s923, 8
        %s925 = scalar_lea.vmem %s1, %s924
        %p926 = scmp.lt.s32.totalorder %s39, 1
        %s927 = scalar_select %p926, %s39, 1
        %s928 = smul.addr %s927, 112
        %s929 = smul.addr %s928, 8
        %s930 = scalar_lea.vmem %s2, %s929
        %p931 = scmp.lt.s32.totalorder %s40, 1
        %s932 = scalar_select %p931, %s40, 1
        %s933 = scalar_lea.vmem %s6, %s932
        %p934 = scmp.lt.s32.totalorder %s40, 1
        %s935 = scalar_select %p934, %s40, 1
        %s936 = smul.addr %s935, 4
        %s937 = smul.addr %s936, 8
        %s938 = scalar_lea.vmem %s7, %s937
        %p939 = scmp.lt.s32.totalorder %s40, 1
        %s940 = scalar_select %p939, %s40, 1
        %s941 = scalar_lea.vmem %s8, %s940
        %p942 = scmp.lt.s32.totalorder %s40, 1
        %s943 = scalar_select %p942, %s40, 1
        %s944 = smul.addr %s943, 4
        %s945 = smul.addr %s944, 8
        %s946 = scalar_lea.vmem %s9, %s945
        %p947 = scmp.lt.s32.totalorder %s40, 1
        %s948 = scalar_select %p947, %s40, 1
        %s949 = scalar_lea.vmem %s10, %s948
        %p950 = scmp.lt.s32.totalorder %s40, 1
        %s951 = scalar_select %p950, %s40, 1
        %s952 = smul.addr %s951, 4
        %s953 = smul.addr %s952, 8
        %s954 = scalar_lea.vmem %s11, %s953
        %p955 = scmp.lt.s32.totalorder %s40, 1
        %s956 = scalar_select %p955, %s40, 1
        %s957 = smul.addr %s956, 4
        %s958 = smul.addr %s957, 8
        %s959 = scalar_lea.vmem %s12, %s958
        %p960 = scmp.lt.s32.totalorder %s40, 1
        %s961 = scalar_select %p960, %s40, 1
        %s962 = scalar_lea.vmem %s13, %s961
        %p963 = scmp.lt.s32.totalorder %s40, 1
        %s964 = scalar_select %p963, %s40, 1
        %s965 = scalar_lea.vmem %s14, %s964
        %p966 = scmp.lt.s32.totalorder %s40, 1
        %s967 = scalar_select %p966, %s40, 1
        %s968 = smul.addr %s967, 4
        %s969 = smul.addr %s968, 8
        %s970 = scalar_lea.vmem %s15, %s969
        %p971 = scmp.lt.s32.totalorder %s40, 1
        %s972 = scalar_select %p971, %s40, 1
        %s973 = scalar_lea.vmem %s16, %s972
        %p974 = scmp.lt.s32.totalorder %s40, 1
        %s975 = scalar_select %p974, %s40, 1
        %s976 = smul.addr %s975, 4
        %s977 = smul.addr %s976, 8
        %s978 = scalar_lea.vmem %s17, %s977
        %p979 = scmp.lt.s32.totalorder %s40, 1
        %s980 = scalar_select %p979, %s40, 1
        %s981 = smul.addr %s980, 8
        %s982 = smul.addr %s981, 8
        %s983 = scalar_lea.vmem %s18, %s982
        %p984 = scmp.lt.s32.totalorder %s39, 1
        %s985 = scalar_select %p984, %s39, 1
        %s986 = smul.addr %s985, 14
        %s987 = smul.addr %s986, 8
        %s988 = scalar_lea.vmem %s22, %s987
        %p989 = scmp.eq.s32.totalorder %s40, 0
        // Predicated region
        $region117: #{atom_attention_decoder.3} parent=107 // pred_check
          %p990 = pneg %p989
        $region118: #{atom_attention_decoder.3} parent=107 // pred_check_branch
          %992 = sbr.rel (%p990) target = $region120
        $region119: #{atom_attention_decoder.3} parent=107 // pred_region
          %v993 = vld [vmem:[%s920] sm:$0xff]
          %v994 = vld [vmem:[%s920 + $0x8] sm:$0xff]
          %v995 = vld [vmem:[%s920 + $0x10] sm:$0xff]
          %v996 = vld [vmem:[%s920 + $0x18] sm:$0xff]
          %v997 = vld [vmem:[%s920 + $0x20] sm:$0xff]
          %v998 = vld [vmem:[%s920 + $0x28] sm:$0xff]
          %v999 = vld [vmem:[%s920 + $0x30] sm:$0xff]
          %v1000 = vld [vmem:[%s920 + $0x38] sm:$0xff]
          %v1001 = vld [vmem:[%s920 + $0x40] sm:$0xff]
          %v1002 = vld [vmem:[%s920 + $0x48] sm:$0xff]
          %v1003 = vld [vmem:[%s920 + $0x50] sm:$0xff]
          %v1004 = vld [vmem:[%s920 + $0x58] sm:$0xff]
          %v1005 = vld [vmem:[%s920 + $0x60] sm:$0xff]
          %v1006 = vld [vmem:[%s920 + $0x68] sm:$0xff]
          %vm1007 = vcmask 261120
          %1008 = vst.msk [vmem:[#allocation2] sm:$0xff] %vm1007, %v993
          %1009 = vst.msk [vmem:[#allocation2 + $0x8] sm:$0xff] %vm1007, %v994
          %1010 = vst.msk [vmem:[#allocation2 + $0x10] sm:$0xff] %vm1007, %v995
          %1011 = vst.msk [vmem:[#allocation2 + $0x18] sm:$0xff] %vm1007, %v996
          %1012 = vst.msk [vmem:[#allocation2 + $0x20] sm:$0xff] %vm1007, %v997
          %1013 = vst.msk [vmem:[#allocation2 + $0x28] sm:$0xff] %vm1007, %v998
          %1014 = vst.msk [vmem:[#allocation2 + $0x30] sm:$0xff] %vm1007, %v999
          %1015 = vst.msk [vmem:[#allocation2 + $0x38] sm:$0xff] %vm1007, %v1000
          %1016 = vst.msk [vmem:[#allocation2 + $0x40] sm:$0xff] %vm1007, %v1001
          %1017 = vst.msk [vmem:[#allocation2 + $0x48] sm:$0xff] %vm1007, %v1002
          %1018 = vst.msk [vmem:[#allocation2 + $0x50] sm:$0xff] %vm1007, %v1003
          %1019 = vst.msk [vmem:[#allocation2 + $0x58] sm:$0xff] %vm1007, %v1004
          %1020 = vst.msk [vmem:[#allocation2 + $0x60] sm:$0xff] %vm1007, %v1005
          %1021 = vst.msk [vmem:[#allocation2 + $0x68] sm:$0xff] %vm1007, %v1006
          %v1022 = vld [vmem:[%s925] sm:$0xff]
          %v1023 = vld [vmem:[%s925 + $0x8] sm:$0xff]
          %v1024 = vld [vmem:[%s925 + $0x10] sm:$0xff]
          %v1025 = vld [vmem:[%s925 + $0x18] sm:$0xff]
          %v1026 = vld [vmem:[%s925 + $0x20] sm:$0xff]
          %v1027 = vld [vmem:[%s925 + $0x28] sm:$0xff]
          %v1028 = vld [vmem:[%s925 + $0x30] sm:$0xff]
          %v1029 = vld [vmem:[%s925 + $0x38] sm:$0xff]
          %v1030 = vld [vmem:[%s925 + $0x40] sm:$0xff]
          %v1031 = vld [vmem:[%s925 + $0x48] sm:$0xff]
          %v1032 = vld [vmem:[%s925 + $0x50] sm:$0xff]
          %v1033 = vld [vmem:[%s925 + $0x58] sm:$0xff]
          %v1034 = vld [vmem:[%s925 + $0x60] sm:$0xff]
          %v1035 = vld [vmem:[%s925 + $0x68] sm:$0xff]
          %v1036 = vsel %vm1007, %v1022, 0.0
          %1037 = vadd.xlane.f32.xlu0 %v1036
          %v1038 = vpop.xlane.xlu0 %1037
          %v1039 = vsel %vm1007, %v1023, 0.0
          %1040 = vadd.xlane.f32.xlu0 %v1039
          %v1041 = vpop.xlane.xlu0 %1040
          %v1042 = vsel %vm1007, %v1024, 0.0
          %1043 = vadd.xlane.f32.xlu0 %v1042
          %v1044 = vpop.xlane.xlu0 %1043
          %v1045 = vsel %vm1007, %v1025, 0.0
          %1046 = vadd.xlane.f32.xlu0 %v1045
          %v1047 = vpop.xlane.xlu0 %1046
          %v1048 = vsel %vm1007, %v1026, 0.0
          %1049 = vadd.xlane.f32.xlu0 %v1048
          %v1050 = vpop.xlane.xlu0 %1049
          %v1051 = vsel %vm1007, %v1027, 0.0
          %1052 = vadd.xlane.f32.xlu0 %v1051
          %v1053 = vpop.xlane.xlu0 %1052
          %v1054 = vsel %vm1007, %v1028, 0.0
          %1055 = vadd.xlane.f32.xlu0 %v1054
          %v1056 = vpop.xlane.xlu0 %1055
          %v1057 = vsel %vm1007, %v1029, 0.0
          %1058 = vadd.xlane.f32.xlu0 %v1057
          %v1059 = vpop.xlane.xlu0 %1058
          %v1060 = vsel %vm1007, %v1030, 0.0
          %1061 = vadd.xlane.f32.xlu0 %v1060
          %v1062 = vpop.xlane.xlu0 %1061
          %v1063 = vsel %vm1007, %v1031, 0.0
          %1064 = vadd.xlane.f32.xlu0 %v1063
          %v1065 = vpop.xlane.xlu0 %1064
          %v1066 = vsel %vm1007, %v1032, 0.0
          %1067 = vadd.xlane.f32.xlu0 %v1066
          %v1068 = vpop.xlane.xlu0 %1067
          %v1069 = vsel %vm1007, %v1033, 0.0
          %1070 = vadd.xlane.f32.xlu0 %v1069
          %v1071 = vpop.xlane.xlu0 %1070
          %v1072 = vsel %vm1007, %v1034, 0.0
          %1073 = vadd.xlane.f32.xlu0 %v1072
          %v1074 = vpop.xlane.xlu0 %1073
          %v1075 = vsel %vm1007, %v1035, 0.0
          %1076 = vadd.xlane.f32.xlu0 %v1075
          %v1077 = vpop.xlane.xlu0 %1076
          %v1078 = vrcp.pop 32.0
          %v1079 = vmul.f32 %v1038, %v1078
          %v1080 = vmul.f32 %v1041, %v1078
          %v1081 = vmul.f32 %v1044, %v1078
          %v1082 = vmul.f32 %v1047, %v1078
          %v1083 = vmul.f32 %v1050, %v1078
          %v1084 = vmul.f32 %v1053, %v1078
          %v1085 = vmul.f32 %v1056, %v1078
          %v1086 = vmul.f32 %v1059, %v1078
          %v1087 = vmul.f32 %v1062, %v1078
          %v1088 = vmul.f32 %v1065, %v1078
          %v1089 = vmul.f32 %v1068, %v1078
          %v1090 = vmul.f32 %v1071, %v1078
          %v1091 = vmul.f32 %v1074, %v1078
          %v1092 = vmul.f32 %v1077, %v1078
          %v1093 = vsub.f32 %v1022, %v1079
          %v1094 = vsub.f32 %v1023, %v1080
          %v1095 = vsub.f32 %v1024, %v1081
          %v1096 = vsub.f32 %v1025, %v1082
          %v1097 = vsub.f32 %v1026, %v1083
          %v1098 = vsub.f32 %v1027, %v1084
          %v1099 = vsub.f32 %v1028, %v1085
          %v1100 = vsub.f32 %v1029, %v1086
          %v1101 = vsub.f32 %v1030, %v1087
          %v1102 = vsub.f32 %v1031, %v1088
          %v1103 = vsub.f32 %v1032, %v1089
          %v1104 = vsub.f32 %v1033, %v1090
          %v1105 = vsub.f32 %v1034, %v1091
          %v1106 = vsub.f32 %v1035, %v1092
          %v1107 = vmul.f32 %v1093, %v1093
          %v1108 = vmul.f32 %v1094, %v1094
          %v1109 = vmul.f32 %v1095, %v1095
          %v1110 = vmul.f32 %v1096, %v1096
          %v1111 = vmul.f32 %v1097, %v1097
          %v1112 = vmul.f32 %v1098, %v1098
          %v1113 = vmul.f32 %v1099, %v1099
          %v1114 = vmul.f32 %v1100, %v1100
          %v1115 = vmul.f32 %v1101, %v1101
          %v1116 = vmul.f32 %v1102, %v1102
          %v1117 = vmul.f32 %v1103, %v1103
          %v1118 = vmul.f32 %v1104, %v1104
          %v1119 = vmul.f32 %v1105, %v1105
          %v1120 = vmul.f32 %v1106, %v1106
          %v1121 = vsel %vm1007, %v1107, 0.0
          %1122 = vadd.xlane.f32.xlu0 %v1121
          %v1123 = vpop.xlane.xlu0 %1122
          %v1124 = vsel %vm1007, %v1108, 0.0
          %1125 = vadd.xlane.f32.xlu0 %v1124
          %v1126 = vpop.xlane.xlu0 %1125
          %v1127 = vsel %vm1007, %v1109, 0.0
          %1128 = vadd.xlane.f32.xlu0 %v1127
          %v1129 = vpop.xlane.xlu0 %1128
          %v1130 = vsel %vm1007, %v1110, 0.0
          %1131 = vadd.xlane.f32.xlu0 %v1130
          %v1132 = vpop.xlane.xlu0 %1131
          %v1133 = vsel %vm1007, %v1111, 0.0
          %1134 = vadd.xlane.f32.xlu0 %v1133
          %v1135 = vpop.xlane.xlu0 %1134
          %v1136 = vsel %vm1007, %v1112, 0.0
          %1137 = vadd.xlane.f32.xlu0 %v1136
          %v1138 = vpop.xlane.xlu0 %1137
          %v1139 = vsel %vm1007, %v1113, 0.0
          %1140 = vadd.xlane.f32.xlu0 %v1139
          %v1141 = vpop.xlane.xlu0 %1140
          %v1142 = vsel %vm1007, %v1114, 0.0
          %1143 = vadd.xlane.f32.xlu0 %v1142
          %v1144 = vpop.xlane.xlu0 %1143
          %v1145 = vsel %vm1007, %v1115, 0.0
          %1146 = vadd.xlane.f32.xlu0 %v1145
          %v1147 = vpop.xlane.xlu0 %1146
          %v1148 = vsel %vm1007, %v1116, 0.0
          %1149 = vadd.xlane.f32.xlu0 %v1148
          %v1150 = vpop.xlane.xlu0 %1149
          %v1151 = vsel %vm1007, %v1117, 0.0
          %1152 = vadd.xlane.f32.xlu0 %v1151
          %v1153 = vpop.xlane.xlu0 %1152
          %v1154 = vsel %vm1007, %v1118, 0.0
          %1155 = vadd.xlane.f32.xlu0 %v1154
          %v1156 = vpop.xlane.xlu0 %1155
          %v1157 = vsel %vm1007, %v1119, 0.0
          %1158 = vadd.xlane.f32.xlu0 %v1157
          %v1159 = vpop.xlane.xlu0 %1158
          %v1160 = vsel %vm1007, %v1120, 0.0
          %1161 = vadd.xlane.f32.xlu0 %v1160
          %v1162 = vpop.xlane.xlu0 %1161
          %v1163 = vmul.f32 %v1123, %v1078
          %v1164 = vmul.f32 %v1126, %v1078
          %v1165 = vmul.f32 %v1129, %v1078
          %v1166 = vmul.f32 %v1132, %v1078
          %v1167 = vmul.f32 %v1135, %v1078
          %v1168 = vmul.f32 %v1138, %v1078
          %v1169 = vmul.f32 %v1141, %v1078
          %v1170 = vmul.f32 %v1144, %v1078
          %v1171 = vmul.f32 %v1147, %v1078
          %v1172 = vmul.f32 %v1150, %v1078
          %v1173 = vmul.f32 %v1153, %v1078
          %v1174 = vmul.f32 %v1156, %v1078
          %v1175 = vmul.f32 %v1159, %v1078
          %v1176 = vmul.f32 %v1162, %v1078
          %v1177 = vadd.f32 %v1163, 1e-05
          %v1178 = vadd.f32 %v1164, 1e-05
          %v1179 = vadd.f32 %v1165, 1e-05
          %v1180 = vadd.f32 %v1166, 1e-05
          %v1181 = vadd.f32 %v1167, 1e-05
          %v1182 = vadd.f32 %v1168, 1e-05
          %v1183 = vadd.f32 %v1169, 1e-05
          %v1184 = vadd.f32 %v1170, 1e-05
          %v1185 = vadd.f32 %v1171, 1e-05
          %v1186 = vadd.f32 %v1172, 1e-05
          %v1187 = vadd.f32 %v1173, 1e-05
          %v1188 = vadd.f32 %v1174, 1e-05
          %v1189 = vadd.f32 %v1175, 1e-05
          %v1190 = vadd.f32 %v1176, 1e-05
          %v1191 = vrsqrt.pop %v1177
          %v1192 = vrsqrt.pop %v1178
          %v1193 = vrsqrt.pop %v1179
          %v1194 = vrsqrt.pop %v1180
          %v1195 = vrsqrt.pop %v1181
          %v1196 = vrsqrt.pop %v1182
          %v1197 = vrsqrt.pop %v1183
          %v1198 = vrsqrt.pop %v1184
          %v1199 = vrsqrt.pop %v1185
          %v1200 = vrsqrt.pop %v1186
          %v1201 = vrsqrt.pop %v1187
          %v1202 = vrsqrt.pop %v1188
          %v1203 = vrsqrt.pop %v1189
          %v1204 = vrsqrt.pop %v1190
          %v1205 = vmul.f32 %v1093, %v1191
          %v1206 = vmul.f32 %v1094, %v1192
          %v1207 = vmul.f32 %v1095, %v1193
          %v1208 = vmul.f32 %v1096, %v1194
          %v1209 = vmul.f32 %v1097, %v1195
          %v1210 = vmul.f32 %v1098, %v1196
          %v1211 = vmul.f32 %v1099, %v1197
          %v1212 = vmul.f32 %v1100, %v1198
          %v1213 = vmul.f32 %v1101, %v1199
          %v1214 = vmul.f32 %v1102, %v1200
          %v1215 = vmul.f32 %v1103, %v1201
          %v1216 = vmul.f32 %v1104, %v1202
          %v1217 = vmul.f32 %v1105, %v1203
          %v1218 = vmul.f32 %v1106, %v1204
          %1219 = vst.msk [vmem:[#allocation3] sm:$0xff] %vm1007, %v1205
          %1220 = vst.msk [vmem:[#allocation3 + $0x8] sm:$0xff] %vm1007, %v1206
          %1221 = vst.msk [vmem:[#allocation3 + $0x10] sm:$0xff] %vm1007, %v1207
          %1222 = vst.msk [vmem:[#allocation3 + $0x18] sm:$0xff] %vm1007, %v1208
          %1223 = vst.msk [vmem:[#allocation3 + $0x20] sm:$0xff] %vm1007, %v1209
          %1224 = vst.msk [vmem:[#allocation3 + $0x28] sm:$0xff] %vm1007, %v1210
          %1225 = vst.msk [vmem:[#allocation3 + $0x30] sm:$0xff] %vm1007, %v1211
          %1226 = vst.msk [vmem:[#allocation3 + $0x38] sm:$0xff] %vm1007, %v1212
          %1227 = vst.msk [vmem:[#allocation3 + $0x40] sm:$0xff] %vm1007, %v1213
          %1228 = vst.msk [vmem:[#allocation3 + $0x48] sm:$0xff] %vm1007, %v1214
          %1229 = vst.msk [vmem:[#allocation3 + $0x50] sm:$0xff] %vm1007, %v1215
          %1230 = vst.msk [vmem:[#allocation3 + $0x58] sm:$0xff] %vm1007, %v1216
          %1231 = vst.msk [vmem:[#allocation3 + $0x60] sm:$0xff] %vm1007, %v1217
          %1232 = vst.msk [vmem:[#allocation3 + $0x68] sm:$0xff] %vm1007, %v1218
          %v1233 = vld [vmem:[%s930] sm:$0xff]
          %v1234 = vld [vmem:[%s930 + $0x8] sm:$0xff]
          %v1235 = vld [vmem:[%s930 + $0x10] sm:$0xff]
          %v1236 = vld [vmem:[%s930 + $0x18] sm:$0xff]
          %v1237 = vld [vmem:[%s930 + $0x20] sm:$0xff]
          %v1238 = vld [vmem:[%s930 + $0x28] sm:$0xff]
          %v1239 = vld [vmem:[%s930 + $0x30] sm:$0xff]
          %v1240 = vld [vmem:[%s930 + $0x38] sm:$0xff]
          %v1241 = vld [vmem:[%s930 + $0x40] sm:$0xff]
          %v1242 = vld [vmem:[%s930 + $0x48] sm:$0xff]
          %v1243 = vld [vmem:[%s930 + $0x50] sm:$0xff]
          %v1244 = vld [vmem:[%s930 + $0x58] sm:$0xff]
          %v1245 = vld [vmem:[%s930 + $0x60] sm:$0xff]
          %v1246 = vld [vmem:[%s930 + $0x68] sm:$0xff]
          %s1247 = scalar_lea.vmem %s930, 112
          %v1248 = vld [vmem:[%s1247] sm:$0xff]
          %v1249 = vld [vmem:[%s1247 + $0x8] sm:$0xff]
          %v1250 = vld [vmem:[%s1247 + $0x10] sm:$0xff]
          %v1251 = vld [vmem:[%s1247 + $0x18] sm:$0xff]
          %v1252 = vld [vmem:[%s1247 + $0x20] sm:$0xff]
          %v1253 = vld [vmem:[%s1247 + $0x28] sm:$0xff]
          %v1254 = vld [vmem:[%s1247 + $0x30] sm:$0xff]
          %v1255 = vld [vmem:[%s1247 + $0x38] sm:$0xff]
          %v1256 = vld [vmem:[%s1247 + $0x40] sm:$0xff]
          %v1257 = vld [vmem:[%s1247 + $0x48] sm:$0xff]
          %v1258 = vld [vmem:[%s1247 + $0x50] sm:$0xff]
          %v1259 = vld [vmem:[%s1247 + $0x58] sm:$0xff]
          %v1260 = vld [vmem:[%s1247 + $0x60] sm:$0xff]
          %v1261 = vld [vmem:[%s1247 + $0x68] sm:$0xff]
          %s1262 = scalar_lea.vmem %s930, 224
          %v1263 = vld [vmem:[%s1262] sm:$0xff]
          %v1264 = vld [vmem:[%s1262 + $0x8] sm:$0xff]
          %v1265 = vld [vmem:[%s1262 + $0x10] sm:$0xff]
          %v1266 = vld [vmem:[%s1262 + $0x18] sm:$0xff]
          %v1267 = vld [vmem:[%s1262 + $0x20] sm:$0xff]
          %v1268 = vld [vmem:[%s1262 + $0x28] sm:$0xff]
          %v1269 = vld [vmem:[%s1262 + $0x30] sm:$0xff]
          %v1270 = vld [vmem:[%s1262 + $0x38] sm:$0xff]
          %v1271 = vld [vmem:[%s1262 + $0x40] sm:$0xff]
          %v1272 = vld [vmem:[%s1262 + $0x48] sm:$0xff]
          %v1273 = vld [vmem:[%s1262 + $0x50] sm:$0xff]
          %v1274 = vld [vmem:[%s1262 + $0x58] sm:$0xff]
          %v1275 = vld [vmem:[%s1262 + $0x60] sm:$0xff]
          %v1276 = vld [vmem:[%s1262 + $0x68] sm:$0xff]
          %s1277 = scalar_lea.vmem %s930, 336
          %v1278 = vld [vmem:[%s1277] sm:$0xff]
          %v1279 = vld [vmem:[%s1277 + $0x8] sm:$0xff]
          %v1280 = vld [vmem:[%s1277 + $0x10] sm:$0xff]
          %v1281 = vld [vmem:[%s1277 + $0x18] sm:$0xff]
          %v1282 = vld [vmem:[%s1277 + $0x20] sm:$0xff]
          %v1283 = vld [vmem:[%s1277 + $0x28] sm:$0xff]
          %v1284 = vld [vmem:[%s1277 + $0x30] sm:$0xff]
          %v1285 = vld [vmem:[%s1277 + $0x38] sm:$0xff]
          %v1286 = vld [vmem:[%s1277 + $0x40] sm:$0xff]
          %v1287 = vld [vmem:[%s1277 + $0x48] sm:$0xff]
          %v1288 = vld [vmem:[%s1277 + $0x50] sm:$0xff]
          %v1289 = vld [vmem:[%s1277 + $0x58] sm:$0xff]
          %v1290 = vld [vmem:[%s1277 + $0x60] sm:$0xff]
          %v1291 = vld [vmem:[%s1277 + $0x68] sm:$0xff]
          %s1292 = scalar_lea.vmem %s930, 448
          %v1293 = vld [vmem:[%s1292] sm:$0xff]
          %v1294 = vld [vmem:[%s1292 + $0x8] sm:$0xff]
          %v1295 = vld [vmem:[%s1292 + $0x10] sm:$0xff]
          %v1296 = vld [vmem:[%s1292 + $0x18] sm:$0xff]
          %v1297 = vld [vmem:[%s1292 + $0x20] sm:$0xff]
          %v1298 = vld [vmem:[%s1292 + $0x28] sm:$0xff]
          %v1299 = vld [vmem:[%s1292 + $0x30] sm:$0xff]
          %v1300 = vld [vmem:[%s1292 + $0x38] sm:$0xff]
          %v1301 = vld [vmem:[%s1292 + $0x40] sm:$0xff]
          %v1302 = vld [vmem:[%s1292 + $0x48] sm:$0xff]
          %v1303 = vld [vmem:[%s1292 + $0x50] sm:$0xff]
          %v1304 = vld [vmem:[%s1292 + $0x58] sm:$0xff]
          %v1305 = vld [vmem:[%s1292 + $0x60] sm:$0xff]
          %v1306 = vld [vmem:[%s1292 + $0x68] sm:$0xff]
          %s1307 = scalar_lea.vmem %s930, 560
          %v1308 = vld [vmem:[%s1307] sm:$0xff]
          %v1309 = vld [vmem:[%s1307 + $0x8] sm:$0xff]
          %v1310 = vld [vmem:[%s1307 + $0x10] sm:$0xff]
          %v1311 = vld [vmem:[%s1307 + $0x18] sm:$0xff]
          %v1312 = vld [vmem:[%s1307 + $0x20] sm:$0xff]
          %v1313 = vld [vmem:[%s1307 + $0x28] sm:$0xff]
          %v1314 = vld [vmem:[%s1307 + $0x30] sm:$0xff]
          %v1315 = vld [vmem:[%s1307 + $0x38] sm:$0xff]
          %v1316 = vld [vmem:[%s1307 + $0x40] sm:$0xff]
          %v1317 = vld [vmem:[%s1307 + $0x48] sm:$0xff]
          %v1318 = vld [vmem:[%s1307 + $0x50] sm:$0xff]
          %v1319 = vld [vmem:[%s1307 + $0x58] sm:$0xff]
          %v1320 = vld [vmem:[%s1307 + $0x60] sm:$0xff]
          %v1321 = vld [vmem:[%s1307 + $0x68] sm:$0xff]
          %s1322 = scalar_lea.vmem %s930, 672
          %v1323 = vld [vmem:[%s1322] sm:$0xff]
          %v1324 = vld [vmem:[%s1322 + $0x8] sm:$0xff]
          %v1325 = vld [vmem:[%s1322 + $0x10] sm:$0xff]
          %v1326 = vld [vmem:[%s1322 + $0x18] sm:$0xff]
          %v1327 = vld [vmem:[%s1322 + $0x20] sm:$0xff]
          %v1328 = vld [vmem:[%s1322 + $0x28] sm:$0xff]
          %v1329 = vld [vmem:[%s1322 + $0x30] sm:$0xff]
          %v1330 = vld [vmem:[%s1322 + $0x38] sm:$0xff]
          %v1331 = vld [vmem:[%s1322 + $0x40] sm:$0xff]
          %v1332 = vld [vmem:[%s1322 + $0x48] sm:$0xff]
          %v1333 = vld [vmem:[%s1322 + $0x50] sm:$0xff]
          %v1334 = vld [vmem:[%s1322 + $0x58] sm:$0xff]
          %v1335 = vld [vmem:[%s1322 + $0x60] sm:$0xff]
          %v1336 = vld [vmem:[%s1322 + $0x68] sm:$0xff]
          %s1337 = scalar_lea.vmem %s930, 784
          %v1338 = vld [vmem:[%s1337] sm:$0xff]
          %v1339 = vld [vmem:[%s1337 + $0x8] sm:$0xff]
          %v1340 = vld [vmem:[%s1337 + $0x10] sm:$0xff]
          %v1341 = vld [vmem:[%s1337 + $0x18] sm:$0xff]
          %v1342 = vld [vmem:[%s1337 + $0x20] sm:$0xff]
          %v1343 = vld [vmem:[%s1337 + $0x28] sm:$0xff]
          %v1344 = vld [vmem:[%s1337 + $0x30] sm:$0xff]
          %v1345 = vld [vmem:[%s1337 + $0x38] sm:$0xff]
          %v1346 = vld [vmem:[%s1337 + $0x40] sm:$0xff]
          %v1347 = vld [vmem:[%s1337 + $0x48] sm:$0xff]
          %v1348 = vld [vmem:[%s1337 + $0x50] sm:$0xff]
          %v1349 = vld [vmem:[%s1337 + $0x58] sm:$0xff]
          %v1350 = vld [vmem:[%s1337 + $0x60] sm:$0xff]
          %v1351 = vld [vmem:[%s1337 + $0x68] sm:$0xff]
          %v1352 = vadd.f32 %v1233, %v1248
          %v1353 = vadd.f32 %v1234, %v1249
          %v1354 = vadd.f32 %v1235, %v1250
          %v1355 = vadd.f32 %v1236, %v1251
          %v1356 = vadd.f32 %v1237, %v1252
          %v1357 = vadd.f32 %v1238, %v1253
          %v1358 = vadd.f32 %v1239, %v1254
          %v1359 = vadd.f32 %v1240, %v1255
          %v1360 = vadd.f32 %v1241, %v1256
          %v1361 = vadd.f32 %v1242, %v1257
          %v1362 = vadd.f32 %v1243, %v1258
          %v1363 = vadd.f32 %v1244, %v1259
          %v1364 = vadd.f32 %v1245, %v1260
          %v1365 = vadd.f32 %v1246, %v1261
          %v1366 = vadd.f32 %v1352, %v1263
          %v1367 = vadd.f32 %v1353, %v1264
          %v1368 = vadd.f32 %v1354, %v1265
          %v1369 = vadd.f32 %v1355, %v1266
          %v1370 = vadd.f32 %v1356, %v1267
          %v1371 = vadd.f32 %v1357, %v1268
          %v1372 = vadd.f32 %v1358, %v1269
          %v1373 = vadd.f32 %v1359, %v1270
          %v1374 = vadd.f32 %v1360, %v1271
          %v1375 = vadd.f32 %v1361, %v1272
          %v1376 = vadd.f32 %v1362, %v1273
          %v1377 = vadd.f32 %v1363, %v1274
          %v1378 = vadd.f32 %v1364, %v1275
          %v1379 = vadd.f32 %v1365, %v1276
          %v1380 = vadd.f32 %v1366, %v1278
          %v1381 = vadd.f32 %v1367, %v1279
          %v1382 = vadd.f32 %v1368, %v1280
          %v1383 = vadd.f32 %v1369, %v1281
          %v1384 = vadd.f32 %v1370, %v1282
          %v1385 = vadd.f32 %v1371, %v1283
          %v1386 = vadd.f32 %v1372, %v1284
          %v1387 = vadd.f32 %v1373, %v1285
          %v1388 = vadd.f32 %v1374, %v1286
          %v1389 = vadd.f32 %v1375, %v1287
          %v1390 = vadd.f32 %v1376, %v1288
          %v1391 = vadd.f32 %v1377, %v1289
          %v1392 = vadd.f32 %v1378, %v1290
          %v1393 = vadd.f32 %v1379, %v1291
          %v1394 = vadd.f32 %v1380, %v1293
          %v1395 = vadd.f32 %v1381, %v1294
          %v1396 = vadd.f32 %v1382, %v1295
          %v1397 = vadd.f32 %v1383, %v1296
          %v1398 = vadd.f32 %v1384, %v1297
          %v1399 = vadd.f32 %v1385, %v1298
          %v1400 = vadd.f32 %v1386, %v1299
          %v1401 = vadd.f32 %v1387, %v1300
          %v1402 = vadd.f32 %v1388, %v1301
          %v1403 = vadd.f32 %v1389, %v1302
          %v1404 = vadd.f32 %v1390, %v1303
          %v1405 = vadd.f32 %v1391, %v1304
          %v1406 = vadd.f32 %v1392, %v1305
          %v1407 = vadd.f32 %v1393, %v1306
          %v1408 = vadd.f32 %v1394, %v1308
          %v1409 = vadd.f32 %v1395, %v1309
          %v1410 = vadd.f32 %v1396, %v1310
          %v1411 = vadd.f32 %v1397, %v1311
          %v1412 = vadd.f32 %v1398, %v1312
          %v1413 = vadd.f32 %v1399, %v1313
          %v1414 = vadd.f32 %v1400, %v1314
          %v1415 = vadd.f32 %v1401, %v1315
          %v1416 = vadd.f32 %v1402, %v1316
          %v1417 = vadd.f32 %v1403, %v1317
          %v1418 = vadd.f32 %v1404, %v1318
          %v1419 = vadd.f32 %v1405, %v1319
          %v1420 = vadd.f32 %v1406, %v1320
          %v1421 = vadd.f32 %v1407, %v1321
          %v1422 = vadd.f32 %v1408, %v1323
          %v1423 = vadd.f32 %v1409, %v1324
          %v1424 = vadd.f32 %v1410, %v1325
          %v1425 = vadd.f32 %v1411, %v1326
          %v1426 = vadd.f32 %v1412, %v1327
          %v1427 = vadd.f32 %v1413, %v1328
          %v1428 = vadd.f32 %v1414, %v1329
          %v1429 = vadd.f32 %v1415, %v1330
          %v1430 = vadd.f32 %v1416, %v1331
          %v1431 = vadd.f32 %v1417, %v1332
          %v1432 = vadd.f32 %v1418, %v1333
          %v1433 = vadd.f32 %v1419, %v1334
          %v1434 = vadd.f32 %v1420, %v1335
          %v1435 = vadd.f32 %v1421, %v1336
          %v1436 = vadd.f32 %v1422, %v1338
          %v1437 = vadd.f32 %v1423, %v1339
          %v1438 = vadd.f32 %v1424, %v1340
          %v1439 = vadd.f32 %v1425, %v1341
          %v1440 = vadd.f32 %v1426, %v1342
          %v1441 = vadd.f32 %v1427, %v1343
          %v1442 = vadd.f32 %v1428, %v1344
          %v1443 = vadd.f32 %v1429, %v1345
          %v1444 = vadd.f32 %v1430, %v1346
          %v1445 = vadd.f32 %v1431, %v1347
          %v1446 = vadd.f32 %v1432, %v1348
          %v1447 = vadd.f32 %v1433, %v1349
          %v1448 = vadd.f32 %v1434, %v1350
          %v1449 = vadd.f32 %v1435, %v1351
          %v1450 = vmul.f32 %v1436, 0.125
          %v1451 = vmul.f32 %v1437, 0.125
          %v1452 = vmul.f32 %v1438, 0.125
          %v1453 = vmul.f32 %v1439, 0.125
          %v1454 = vmul.f32 %v1440, 0.125
          %v1455 = vmul.f32 %v1441, 0.125
          %v1456 = vmul.f32 %v1442, 0.125
          %v1457 = vmul.f32 %v1443, 0.125
          %v1458 = vmul.f32 %v1444, 0.125
          %v1459 = vmul.f32 %v1445, 0.125
          %v1460 = vmul.f32 %v1446, 0.125
          %v1461 = vmul.f32 %v1447, 0.125
          %v1462 = vmul.f32 %v1448, 0.125
          %v1463 = vmul.f32 %v1449, 0.125
          %v1464 = vsub.f32 %v1233, %v1450
          %v1465 = vsub.f32 %v1234, %v1451
          %v1466 = vsub.f32 %v1235, %v1452
          %v1467 = vsub.f32 %v1236, %v1453
          %v1468 = vsub.f32 %v1237, %v1454
          %v1469 = vsub.f32 %v1238, %v1455
          %v1470 = vsub.f32 %v1239, %v1456
          %v1471 = vsub.f32 %v1240, %v1457
          %v1472 = vsub.f32 %v1241, %v1458
          %v1473 = vsub.f32 %v1242, %v1459
          %v1474 = vsub.f32 %v1243, %v1460
          %v1475 = vsub.f32 %v1244, %v1461
          %v1476 = vsub.f32 %v1245, %v1462
          %v1477 = vsub.f32 %v1246, %v1463
          %v1478 = vmul.f32 %v1464, %v1464
          %v1479 = vmul.f32 %v1465, %v1465
          %v1480 = vmul.f32 %v1466, %v1466
          %v1481 = vmul.f32 %v1467, %v1467
          %v1482 = vmul.f32 %v1468, %v1468
          %v1483 = vmul.f32 %v1469, %v1469
          %v1484 = vmul.f32 %v1470, %v1470
          %v1485 = vmul.f32 %v1471, %v1471
          %v1486 = vmul.f32 %v1472, %v1472
          %v1487 = vmul.f32 %v1473, %v1473
          %v1488 = vmul.f32 %v1474, %v1474
          %v1489 = vmul.f32 %v1475, %v1475
          %v1490 = vmul.f32 %v1476, %v1476
          %v1491 = vmul.f32 %v1477, %v1477
          %v1492 = vsub.f32 %v1248, %v1450
          %v1493 = vsub.f32 %v1249, %v1451
          %v1494 = vsub.f32 %v1250, %v1452
          %v1495 = vsub.f32 %v1251, %v1453
          %v1496 = vsub.f32 %v1252, %v1454
          %v1497 = vsub.f32 %v1253, %v1455
          %v1498 = vsub.f32 %v1254, %v1456
          %v1499 = vsub.f32 %v1255, %v1457
          %v1500 = vsub.f32 %v1256, %v1458
          %v1501 = vsub.f32 %v1257, %v1459
          %v1502 = vsub.f32 %v1258, %v1460
          %v1503 = vsub.f32 %v1259, %v1461
          %v1504 = vsub.f32 %v1260, %v1462
          %v1505 = vsub.f32 %v1261, %v1463
          %v1506 = vmul.f32 %v1492, %v1492
          %v1507 = vmul.f32 %v1493, %v1493
          %v1508 = vmul.f32 %v1494, %v1494
          %v1509 = vmul.f32 %v1495, %v1495
          %v1510 = vmul.f32 %v1496, %v1496
          %v1511 = vmul.f32 %v1497, %v1497
          %v1512 = vmul.f32 %v1498, %v1498
          %v1513 = vmul.f32 %v1499, %v1499
          %v1514 = vmul.f32 %v1500, %v1500
          %v1515 = vmul.f32 %v1501, %v1501
          %v1516 = vmul.f32 %v1502, %v1502
          %v1517 = vmul.f32 %v1503, %v1503
          %v1518 = vmul.f32 %v1504, %v1504
          %v1519 = vmul.f32 %v1505, %v1505
          %v1520 = vadd.f32 %v1478, %v1506
          %v1521 = vadd.f32 %v1479, %v1507
          %v1522 = vadd.f32 %v1480, %v1508
          %v1523 = vadd.f32 %v1481, %v1509
          %v1524 = vadd.f32 %v1482, %v1510
          %v1525 = vadd.f32 %v1483, %v1511
          %v1526 = vadd.f32 %v1484, %v1512
          %v1527 = vadd.f32 %v1485, %v1513
          %v1528 = vadd.f32 %v1486, %v1514
          %v1529 = vadd.f32 %v1487, %v1515
          %v1530 = vadd.f32 %v1488, %v1516
          %v1531 = vadd.f32 %v1489, %v1517
          %v1532 = vadd.f32 %v1490, %v1518
          %v1533 = vadd.f32 %v1491, %v1519
          %v1534 = vsub.f32 %v1263, %v1450
          %v1535 = vsub.f32 %v1264, %v1451
          %v1536 = vsub.f32 %v1265, %v1452
          %v1537 = vsub.f32 %v1266, %v1453
          %v1538 = vsub.f32 %v1267, %v1454
          %v1539 = vsub.f32 %v1268, %v1455
          %v1540 = vsub.f32 %v1269, %v1456
          %v1541 = vsub.f32 %v1270, %v1457
          %v1542 = vsub.f32 %v1271, %v1458
          %v1543 = vsub.f32 %v1272, %v1459
          %v1544 = vsub.f32 %v1273, %v1460
          %v1545 = vsub.f32 %v1274, %v1461
          %v1546 = vsub.f32 %v1275, %v1462
          %v1547 = vsub.f32 %v1276, %v1463
          %v1548 = vmul.f32 %v1534, %v1534
          %v1549 = vmul.f32 %v1535, %v1535
          %v1550 = vmul.f32 %v1536, %v1536
          %v1551 = vmul.f32 %v1537, %v1537
          %v1552 = vmul.f32 %v1538, %v1538
          %v1553 = vmul.f32 %v1539, %v1539
          %v1554 = vmul.f32 %v1540, %v1540
          %v1555 = vmul.f32 %v1541, %v1541
          %v1556 = vmul.f32 %v1542, %v1542
          %v1557 = vmul.f32 %v1543, %v1543
          %v1558 = vmul.f32 %v1544, %v1544
          %v1559 = vmul.f32 %v1545, %v1545
          %v1560 = vmul.f32 %v1546, %v1546
          %v1561 = vmul.f32 %v1547, %v1547
          %v1562 = vadd.f32 %v1520, %v1548
          %v1563 = vadd.f32 %v1521, %v1549
          %v1564 = vadd.f32 %v1522, %v1550
          %v1565 = vadd.f32 %v1523, %v1551
          %v1566 = vadd.f32 %v1524, %v1552
          %v1567 = vadd.f32 %v1525, %v1553
          %v1568 = vadd.f32 %v1526, %v1554
          %v1569 = vadd.f32 %v1527, %v1555
          %v1570 = vadd.f32 %v1528, %v1556
          %v1571 = vadd.f32 %v1529, %v1557
          %v1572 = vadd.f32 %v1530, %v1558
          %v1573 = vadd.f32 %v1531, %v1559
          %v1574 = vadd.f32 %v1532, %v1560
          %v1575 = vadd.f32 %v1533, %v1561
          %v1576 = vsub.f32 %v1278, %v1450
          %v1577 = vsub.f32 %v1279, %v1451
          %v1578 = vsub.f32 %v1280, %v1452
          %v1579 = vsub.f32 %v1281, %v1453
          %v1580 = vsub.f32 %v1282, %v1454
          %v1581 = vsub.f32 %v1283, %v1455
          %v1582 = vsub.f32 %v1284, %v1456
          %v1583 = vsub.f32 %v1285, %v1457
          %v1584 = vsub.f32 %v1286, %v1458
          %v1585 = vsub.f32 %v1287, %v1459
          %v1586 = vsub.f32 %v1288, %v1460
          %v1587 = vsub.f32 %v1289, %v1461
          %v1588 = vsub.f32 %v1290, %v1462
          %v1589 = vsub.f32 %v1291, %v1463
          %v1590 = vmul.f32 %v1576, %v1576
          %v1591 = vmul.f32 %v1577, %v1577
          %v1592 = vmul.f32 %v1578, %v1578
          %v1593 = vmul.f32 %v1579, %v1579
          %v1594 = vmul.f32 %v1580, %v1580
          %v1595 = vmul.f32 %v1581, %v1581
          %v1596 = vmul.f32 %v1582, %v1582
          %v1597 = vmul.f32 %v1583, %v1583
          %v1598 = vmul.f32 %v1584, %v1584
          %v1599 = vmul.f32 %v1585, %v1585
          %v1600 = vmul.f32 %v1586, %v1586
          %v1601 = vmul.f32 %v1587, %v1587
          %v1602 = vmul.f32 %v1588, %v1588
          %v1603 = vmul.f32 %v1589, %v1589
          %v1604 = vadd.f32 %v1562, %v1590
          %v1605 = vadd.f32 %v1563, %v1591
          %v1606 = vadd.f32 %v1564, %v1592
          %v1607 = vadd.f32 %v1565, %v1593
          %v1608 = vadd.f32 %v1566, %v1594
          %v1609 = vadd.f32 %v1567, %v1595
          %v1610 = vadd.f32 %v1568, %v1596
          %v1611 = vadd.f32 %v1569, %v1597
          %v1612 = vadd.f32 %v1570, %v1598
          %v1613 = vadd.f32 %v1571, %v1599
          %v1614 = vadd.f32 %v1572, %v1600
          %v1615 = vadd.f32 %v1573, %v1601
          %v1616 = vadd.f32 %v1574, %v1602
          %v1617 = vadd.f32 %v1575, %v1603
          %v1618 = vsub.f32 %v1293, %v1450
          %v1619 = vsub.f32 %v1294, %v1451
          %v1620 = vsub.f32 %v1295, %v1452
          %v1621 = vsub.f32 %v1296, %v1453
          %v1622 = vsub.f32 %v1297, %v1454
          %v1623 = vsub.f32 %v1298, %v1455
          %v1624 = vsub.f32 %v1299, %v1456
          %v1625 = vsub.f32 %v1300, %v1457
          %v1626 = vsub.f32 %v1301, %v1458
          %v1627 = vsub.f32 %v1302, %v1459
          %v1628 = vsub.f32 %v1303, %v1460
          %v1629 = vsub.f32 %v1304, %v1461
          %v1630 = vsub.f32 %v1305, %v1462
          %v1631 = vsub.f32 %v1306, %v1463
          %v1632 = vmul.f32 %v1618, %v1618
          %v1633 = vmul.f32 %v1619, %v1619
          %v1634 = vmul.f32 %v1620, %v1620
          %v1635 = vmul.f32 %v1621, %v1621
          %v1636 = vmul.f32 %v1622, %v1622
          %v1637 = vmul.f32 %v1623, %v1623
          %v1638 = vmul.f32 %v1624, %v1624
          %v1639 = vmul.f32 %v1625, %v1625
          %v1640 = vmul.f32 %v1626, %v1626
          %v1641 = vmul.f32 %v1627, %v1627
          %v1642 = vmul.f32 %v1628, %v1628
          %v1643 = vmul.f32 %v1629, %v1629
          %v1644 = vmul.f32 %v1630, %v1630
          %v1645 = vmul.f32 %v1631, %v1631
          %v1646 = vadd.f32 %v1604, %v1632
          %v1647 = vadd.f32 %v1605, %v1633
          %v1648 = vadd.f32 %v1606, %v1634
          %v1649 = vadd.f32 %v1607, %v1635
          %v1650 = vadd.f32 %v1608, %v1636
          %v1651 = vadd.f32 %v1609, %v1637
          %v1652 = vadd.f32 %v1610, %v1638
          %v1653 = vadd.f32 %v1611, %v1639
          %v1654 = vadd.f32 %v1612, %v1640
          %v1655 = vadd.f32 %v1613, %v1641
          %v1656 = vadd.f32 %v1614, %v1642
          %v1657 = vadd.f32 %v1615, %v1643
          %v1658 = vadd.f32 %v1616, %v1644
          %v1659 = vadd.f32 %v1617, %v1645
          %v1660 = vsub.f32 %v1308, %v1450
          %v1661 = vsub.f32 %v1309, %v1451
          %v1662 = vsub.f32 %v1310, %v1452
          %v1663 = vsub.f32 %v1311, %v1453
          %v1664 = vsub.f32 %v1312, %v1454
          %v1665 = vsub.f32 %v1313, %v1455
          %v1666 = vsub.f32 %v1314, %v1456
          %v1667 = vsub.f32 %v1315, %v1457
          %v1668 = vsub.f32 %v1316, %v1458
          %v1669 = vsub.f32 %v1317, %v1459
          %v1670 = vsub.f32 %v1318, %v1460
          %v1671 = vsub.f32 %v1319, %v1461
          %v1672 = vsub.f32 %v1320, %v1462
          %v1673 = vsub.f32 %v1321, %v1463
          %v1674 = vmul.f32 %v1660, %v1660
          %v1675 = vmul.f32 %v1661, %v1661
          %v1676 = vmul.f32 %v1662, %v1662
          %v1677 = vmul.f32 %v1663, %v1663
          %v1678 = vmul.f32 %v1664, %v1664
          %v1679 = vmul.f32 %v1665, %v1665
          %v1680 = vmul.f32 %v1666, %v1666
          %v1681 = vmul.f32 %v1667, %v1667
          %v1682 = vmul.f32 %v1668, %v1668
          %v1683 = vmul.f32 %v1669, %v1669
          %v1684 = vmul.f32 %v1670, %v1670
          %v1685 = vmul.f32 %v1671, %v1671
          %v1686 = vmul.f32 %v1672, %v1672
          %v1687 = vmul.f32 %v1673, %v1673
          %v1688 = vadd.f32 %v1646, %v1674
          %v1689 = vadd.f32 %v1647, %v1675
          %v1690 = vadd.f32 %v1648, %v1676
          %v1691 = vadd.f32 %v1649, %v1677
          %v1692 = vadd.f32 %v1650, %v1678
          %v1693 = vadd.f32 %v1651, %v1679
          %v1694 = vadd.f32 %v1652, %v1680
          %v1695 = vadd.f32 %v1653, %v1681
          %v1696 = vadd.f32 %v1654, %v1682
          %v1697 = vadd.f32 %v1655, %v1683
          %v1698 = vadd.f32 %v1656, %v1684
          %v1699 = vadd.f32 %v1657, %v1685
          %v1700 = vadd.f32 %v1658, %v1686
          %v1701 = vadd.f32 %v1659, %v1687
          %v1702 = vsub.f32 %v1323, %v1450
          %v1703 = vsub.f32 %v1324, %v1451
          %v1704 = vsub.f32 %v1325, %v1452
          %v1705 = vsub.f32 %v1326, %v1453
          %v1706 = vsub.f32 %v1327, %v1454
          %v1707 = vsub.f32 %v1328, %v1455
          %v1708 = vsub.f32 %v1329, %v1456
          %v1709 = vsub.f32 %v1330, %v1457
          %v1710 = vsub.f32 %v1331, %v1458
          %v1711 = vsub.f32 %v1332, %v1459
          %v1712 = vsub.f32 %v1333, %v1460
          %v1713 = vsub.f32 %v1334, %v1461
          %v1714 = vsub.f32 %v1335, %v1462
          %v1715 = vsub.f32 %v1336, %v1463
          %v1716 = vmul.f32 %v1702, %v1702
          %v1717 = vmul.f32 %v1703, %v1703
          %v1718 = vmul.f32 %v1704, %v1704
          %v1719 = vmul.f32 %v1705, %v1705
          %v1720 = vmul.f32 %v1706, %v1706
          %v1721 = vmul.f32 %v1707, %v1707
          %v1722 = vmul.f32 %v1708, %v1708
          %v1723 = vmul.f32 %v1709, %v1709
          %v1724 = vmul.f32 %v1710, %v1710
          %v1725 = vmul.f32 %v1711, %v1711
          %v1726 = vmul.f32 %v1712, %v1712
          %v1727 = vmul.f32 %v1713, %v1713
          %v1728 = vmul.f32 %v1714, %v1714
          %v1729 = vmul.f32 %v1715, %v1715
          %v1730 = vadd.f32 %v1688, %v1716
          %v1731 = vadd.f32 %v1689, %v1717
          %v1732 = vadd.f32 %v1690, %v1718
          %v1733 = vadd.f32 %v1691, %v1719
          %v1734 = vadd.f32 %v1692, %v1720
          %v1735 = vadd.f32 %v1693, %v1721
          %v1736 = vadd.f32 %v1694, %v1722
          %v1737 = vadd.f32 %v1695, %v1723
          %v1738 = vadd.f32 %v1696, %v1724
          %v1739 = vadd.f32 %v1697, %v1725
          %v1740 = vadd.f32 %v1698, %v1726
          %v1741 = vadd.f32 %v1699, %v1727
          %v1742 = vadd.f32 %v1700, %v1728
          %v1743 = vadd.f32 %v1701, %v1729
          %v1744 = vsub.f32 %v1338, %v1450
          %v1745 = vsub.f32 %v1339, %v1451
          %v1746 = vsub.f32 %v1340, %v1452
          %v1747 = vsub.f32 %v1341, %v1453
          %v1748 = vsub.f32 %v1342, %v1454
          %v1749 = vsub.f32 %v1343, %v1455
          %v1750 = vsub.f32 %v1344, %v1456
          %v1751 = vsub.f32 %v1345, %v1457
          %v1752 = vsub.f32 %v1346, %v1458
          %v1753 = vsub.f32 %v1347, %v1459
          %v1754 = vsub.f32 %v1348, %v1460
          %v1755 = vsub.f32 %v1349, %v1461
          %v1756 = vsub.f32 %v1350, %v1462
          %v1757 = vsub.f32 %v1351, %v1463
          %v1758 = vmul.f32 %v1744, %v1744
          %v1759 = vmul.f32 %v1745, %v1745
          %v1760 = vmul.f32 %v1746, %v1746
          %v1761 = vmul.f32 %v1747, %v1747
          %v1762 = vmul.f32 %v1748, %v1748
          %v1763 = vmul.f32 %v1749, %v1749
          %v1764 = vmul.f32 %v1750, %v1750
          %v1765 = vmul.f32 %v1751, %v1751
          %v1766 = vmul.f32 %v1752, %v1752
          %v1767 = vmul.f32 %v1753, %v1753
          %v1768 = vmul.f32 %v1754, %v1754
          %v1769 = vmul.f32 %v1755, %v1755
          %v1770 = vmul.f32 %v1756, %v1756
          %v1771 = vmul.f32 %v1757, %v1757
          %v1772 = vadd.f32 %v1730, %v1758
          %v1773 = vadd.f32 %v1731, %v1759
          %v1774 = vadd.f32 %v1732, %v1760
          %v1775 = vadd.f32 %v1733, %v1761
          %v1776 = vadd.f32 %v1734, %v1762
          %v1777 = vadd.f32 %v1735, %v1763
          %v1778 = vadd.f32 %v1736, %v1764
          %v1779 = vadd.f32 %v1737, %v1765
          %v1780 = vadd.f32 %v1738, %v1766
          %v1781 = vadd.f32 %v1739, %v1767
          %v1782 = vadd.f32 %v1740, %v1768
          %v1783 = vadd.f32 %v1741, %v1769
          %v1784 = vadd.f32 %v1742, %v1770
          %v1785 = vadd.f32 %v1743, %v1771
          %v1786 = vmul.f32 %v1772, 0.125
          %v1787 = vmul.f32 %v1773, 0.125
          %v1788 = vmul.f32 %v1774, 0.125
          %v1789 = vmul.f32 %v1775, 0.125
          %v1790 = vmul.f32 %v1776, 0.125
          %v1791 = vmul.f32 %v1777, 0.125
          %v1792 = vmul.f32 %v1778, 0.125
          %v1793 = vmul.f32 %v1779, 0.125
          %v1794 = vmul.f32 %v1780, 0.125
          %v1795 = vmul.f32 %v1781, 0.125
          %v1796 = vmul.f32 %v1782, 0.125
          %v1797 = vmul.f32 %v1783, 0.125
          %v1798 = vmul.f32 %v1784, 0.125
          %v1799 = vmul.f32 %v1785, 0.125
          %v1800 = vadd.f32 %v1786, 1e-05
          %v1801 = vadd.f32 %v1787, 1e-05
          %v1802 = vadd.f32 %v1788, 1e-05
          %v1803 = vadd.f32 %v1789, 1e-05
          %v1804 = vadd.f32 %v1790, 1e-05
          %v1805 = vadd.f32 %v1791, 1e-05
          %v1806 = vadd.f32 %v1792, 1e-05
          %v1807 = vadd.f32 %v1793, 1e-05
          %v1808 = vadd.f32 %v1794, 1e-05
          %v1809 = vadd.f32 %v1795, 1e-05
          %v1810 = vadd.f32 %v1796, 1e-05
          %v1811 = vadd.f32 %v1797, 1e-05
          %v1812 = vadd.f32 %v1798, 1e-05
          %v1813 = vadd.f32 %v1799, 1e-05
          %v1814 = vrsqrt.pop %v1800
          %v1815 = vrsqrt.pop %v1801
          %v1816 = vrsqrt.pop %v1802
          %v1817 = vrsqrt.pop %v1803
          %v1818 = vrsqrt.pop %v1804
          %v1819 = vrsqrt.pop %v1805
          %v1820 = vrsqrt.pop %v1806
          %v1821 = vrsqrt.pop %v1807
          %v1822 = vrsqrt.pop %v1808
          %v1823 = vrsqrt.pop %v1809
          %v1824 = vrsqrt.pop %v1810
          %v1825 = vrsqrt.pop %v1811
          %v1826 = vrsqrt.pop %v1812
          %v1827 = vrsqrt.pop %v1813
          %v1828 = vmul.f32 %v1464, %v1814
          %v1829 = vmul.f32 %v1465, %v1815
          %v1830 = vmul.f32 %v1466, %v1816
          %v1831 = vmul.f32 %v1467, %v1817
          %v1832 = vmul.f32 %v1468, %v1818
          %v1833 = vmul.f32 %v1469, %v1819
          %v1834 = vmul.f32 %v1470, %v1820
          %v1835 = vmul.f32 %v1471, %v1821
          %v1836 = vmul.f32 %v1472, %v1822
          %v1837 = vmul.f32 %v1473, %v1823
          %v1838 = vmul.f32 %v1474, %v1824
          %v1839 = vmul.f32 %v1475, %v1825
          %v1840 = vmul.f32 %v1476, %v1826
          %v1841 = vmul.f32 %v1477, %v1827
          %vm1842 = vcmask 916480
          %1843 = vst.msk [vmem:[#allocation4] sm:$0xff] %vm1842, %v1828
          %1844 = vst.msk [vmem:[#allocation4 + $0x8] sm:$0xff] %vm1842, %v1829
          %1845 = vst.msk [vmem:[#allocation4 + $0x10] sm:$0xff] %vm1842, %v1830
          %1846 = vst.msk [vmem:[#allocation4 + $0x18] sm:$0xff] %vm1842, %v1831
          %1847 = vst.msk [vmem:[#allocation4 + $0x20] sm:$0xff] %vm1842, %v1832
          %1848 = vst.msk [vmem:[#allocation4 + $0x28] sm:$0xff] %vm1842, %v1833
          %1849 = vst.msk [vmem:[#allocation4 + $0x30] sm:$0xff] %vm1842, %v1834
          %1850 = vst.msk [vmem:[#allocation4 + $0x38] sm:$0xff] %vm1842, %v1835
          %1851 = vst.msk [vmem:[#allocation4 + $0x40] sm:$0xff] %vm1842, %v1836
          %1852 = vst.msk [vmem:[#allocation4 + $0x48] sm:$0xff] %vm1842, %v1837
          %1853 = vst.msk [vmem:[#allocation4 + $0x50] sm:$0xff] %vm1842, %v1838
          %1854 = vst.msk [vmem:[#allocation4 + $0x58] sm:$0xff] %vm1842, %v1839
          %1855 = vst.msk [vmem:[#allocation4 + $0x60] sm:$0xff] %vm1842, %v1840
          %1856 = vst.msk [vmem:[#allocation4 + $0x68] sm:$0xff] %vm1842, %v1841
          %v1857 = vmul.f32 %v1492, %v1814
          %v1858 = vmul.f32 %v1493, %v1815
          %v1859 = vmul.f32 %v1494, %v1816
          %v1860 = vmul.f32 %v1495, %v1817
          %v1861 = vmul.f32 %v1496, %v1818
          %v1862 = vmul.f32 %v1497, %v1819
          %v1863 = vmul.f32 %v1498, %v1820
          %v1864 = vmul.f32 %v1499, %v1821
          %v1865 = vmul.f32 %v1500, %v1822
          %v1866 = vmul.f32 %v1501, %v1823
          %v1867 = vmul.f32 %v1502, %v1824
          %v1868 = vmul.f32 %v1503, %v1825
          %v1869 = vmul.f32 %v1504, %v1826
          %v1870 = vmul.f32 %v1505, %v1827
          %s1871 = scalar_lea.vmem [#allocation4], 112
          %1872 = vst.msk [vmem:[%s1871] sm:$0xff] %vm1842, %v1857
          %1873 = vst.msk [vmem:[%s1871 + $0x8] sm:$0xff] %vm1842, %v1858
          %1874 = vst.msk [vmem:[%s1871 + $0x10] sm:$0xff] %vm1842, %v1859
          %1875 = vst.msk [vmem:[%s1871 + $0x18] sm:$0xff] %vm1842, %v1860
          %1876 = vst.msk [vmem:[%s1871 + $0x20] sm:$0xff] %vm1842, %v1861
          %1877 = vst.msk [vmem:[%s1871 + $0x28] sm:$0xff] %vm1842, %v1862
          %1878 = vst.msk [vmem:[%s1871 + $0x30] sm:$0xff] %vm1842, %v1863
          %1879 = vst.msk [vmem:[%s1871 + $0x38] sm:$0xff] %vm1842, %v1864
          %1880 = vst.msk [vmem:[%s1871 + $0x40] sm:$0xff] %vm1842, %v1865
          %1881 = vst.msk [vmem:[%s1871 + $0x48] sm:$0xff] %vm1842, %v1866
          %1882 = vst.msk [vmem:[%s1871 + $0x50] sm:$0xff] %vm1842, %v1867
          %1883 = vst.msk [vmem:[%s1871 + $0x58] sm:$0xff] %vm1842, %v1868
          %1884 = vst.msk [vmem:[%s1871 + $0x60] sm:$0xff] %vm1842, %v1869
          %1885 = vst.msk [vmem:[%s1871 + $0x68] sm:$0xff] %vm1842, %v1870
          %v1886 = vmul.f32 %v1534, %v1814
          %v1887 = vmul.f32 %v1535, %v1815
          %v1888 = vmul.f32 %v1536, %v1816
          %v1889 = vmul.f32 %v1537, %v1817
          %v1890 = vmul.f32 %v1538, %v1818
          %v1891 = vmul.f32 %v1539, %v1819
          %v1892 = vmul.f32 %v1540, %v1820
          %v1893 = vmul.f32 %v1541, %v1821
          %v1894 = vmul.f32 %v1542, %v1822
          %v1895 = vmul.f32 %v1543, %v1823
          %v1896 = vmul.f32 %v1544, %v1824
          %v1897 = vmul.f32 %v1545, %v1825
          %v1898 = vmul.f32 %v1546, %v1826
          %v1899 = vmul.f32 %v1547, %v1827
          %s1900 = scalar_lea.vmem [#allocation4], 224
          %1901 = vst.msk [vmem:[%s1900] sm:$0xff] %vm1842, %v1886
          %1902 = vst.msk [vmem:[%s1900 + $0x8] sm:$0xff] %vm1842, %v1887
          %1903 = vst.msk [vmem:[%s1900 + $0x10] sm:$0xff] %vm1842, %v1888
          %1904 = vst.msk [vmem:[%s1900 + $0x18] sm:$0xff] %vm1842, %v1889
          %1905 = vst.msk [vmem:[%s1900 + $0x20] sm:$0xff] %vm1842, %v1890
          %1906 = vst.msk [vmem:[%s1900 + $0x28] sm:$0xff] %vm1842, %v1891
          %1907 = vst.msk [vmem:[%s1900 + $0x30] sm:$0xff] %vm1842, %v1892
          %1908 = vst.msk [vmem:[%s1900 + $0x38] sm:$0xff] %vm1842, %v1893
          %1909 = vst.msk [vmem:[%s1900 + $0x40] sm:$0xff] %vm1842, %v1894
          %1910 = vst.msk [vmem:[%s1900 + $0x48] sm:$0xff] %vm1842, %v1895
          %1911 = vst.msk [vmem:[%s1900 + $0x50] sm:$0xff] %vm1842, %v1896
          %1912 = vst.msk [vmem:[%s1900 + $0x58] sm:$0xff] %vm1842, %v1897
          %1913 = vst.msk [vmem:[%s1900 + $0x60] sm:$0xff] %vm1842, %v1898
          %1914 = vst.msk [vmem:[%s1900 + $0x68] sm:$0xff] %vm1842, %v1899
          %v1915 = vmul.f32 %v1576, %v1814
          %v1916 = vmul.f32 %v1577, %v1815
          %v1917 = vmul.f32 %v1578, %v1816
          %v1918 = vmul.f32 %v1579, %v1817
          %v1919 = vmul.f32 %v1580, %v1818
          %v1920 = vmul.f32 %v1581, %v1819
          %v1921 = vmul.f32 %v1582, %v1820
          %v1922 = vmul.f32 %v1583, %v1821
          %v1923 = vmul.f32 %v1584, %v1822
          %v1924 = vmul.f32 %v1585, %v1823
          %v1925 = vmul.f32 %v1586, %v1824
          %v1926 = vmul.f32 %v1587, %v1825
          %v1927 = vmul.f32 %v1588, %v1826
          %v1928 = vmul.f32 %v1589, %v1827
          %s1929 = scalar_lea.vmem [#allocation4], 336
          %1930 = vst.msk [vmem:[%s1929] sm:$0xff] %vm1842, %v1915
          %1931 = vst.msk [vmem:[%s1929 + $0x8] sm:$0xff] %vm1842, %v1916
          %1932 = vst.msk [vmem:[%s1929 + $0x10] sm:$0xff] %vm1842, %v1917
          %1933 = vst.msk [vmem:[%s1929 + $0x18] sm:$0xff] %vm1842, %v1918
          %1934 = vst.msk [vmem:[%s1929 + $0x20] sm:$0xff] %vm1842, %v1919
          %1935 = vst.msk [vmem:[%s1929 + $0x28] sm:$0xff] %vm1842, %v1920
          %1936 = vst.msk [vmem:[%s1929 + $0x30] sm:$0xff] %vm1842, %v1921
          %1937 = vst.msk [vmem:[%s1929 + $0x38] sm:$0xff] %vm1842, %v1922
          %1938 = vst.msk [vmem:[%s1929 + $0x40] sm:$0xff] %vm1842, %v1923
          %1939 = vst.msk [vmem:[%s1929 + $0x48] sm:$0xff] %vm1842, %v1924
          %1940 = vst.msk [vmem:[%s1929 + $0x50] sm:$0xff] %vm1842, %v1925
          %1941 = vst.msk [vmem:[%s1929 + $0x58] sm:$0xff] %vm1842, %v1926
          %1942 = vst.msk [vmem:[%s1929 + $0x60] sm:$0xff] %vm1842, %v1927
          %1943 = vst.msk [vmem:[%s1929 + $0x68] sm:$0xff] %vm1842, %v1928
          %v1944 = vmul.f32 %v1618, %v1814
          %v1945 = vmul.f32 %v1619, %v1815
          %v1946 = vmul.f32 %v1620, %v1816
          %v1947 = vmul.f32 %v1621, %v1817
          %v1948 = vmul.f32 %v1622, %v1818
          %v1949 = vmul.f32 %v1623, %v1819
          %v1950 = vmul.f32 %v1624, %v1820
          %v1951 = vmul.f32 %v1625, %v1821
          %v1952 = vmul.f32 %v1626, %v1822
          %v1953 = vmul.f32 %v1627, %v1823
          %v1954 = vmul.f32 %v1628, %v1824
          %v1955 = vmul.f32 %v1629, %v1825
          %v1956 = vmul.f32 %v1630, %v1826
          %v1957 = vmul.f32 %v1631, %v1827
          %s1958 = scalar_lea.vmem [#allocation4], 448
          %1959 = vst.msk [vmem:[%s1958] sm:$0xff] %vm1842, %v1944
          %1960 = vst.msk [vmem:[%s1958 + $0x8] sm:$0xff] %vm1842, %v1945
          %1961 = vst.msk [vmem:[%s1958 + $0x10] sm:$0xff] %vm1842, %v1946
          %1962 = vst.msk [vmem:[%s1958 + $0x18] sm:$0xff] %vm1842, %v1947
          %1963 = vst.msk [vmem:[%s1958 + $0x20] sm:$0xff] %vm1842, %v1948
          %1964 = vst.msk [vmem:[%s1958 + $0x28] sm:$0xff] %vm1842, %v1949
          %1965 = vst.msk [vmem:[%s1958 + $0x30] sm:$0xff] %vm1842, %v1950
          %1966 = vst.msk [vmem:[%s1958 + $0x38] sm:$0xff] %vm1842, %v1951
          %1967 = vst.msk [vmem:[%s1958 + $0x40] sm:$0xff] %vm1842, %v1952
          %1968 = vst.msk [vmem:[%s1958 + $0x48] sm:$0xff] %vm1842, %v1953
          %1969 = vst.msk [vmem:[%s1958 + $0x50] sm:$0xff] %vm1842, %v1954
          %1970 = vst.msk [vmem:[%s1958 + $0x58] sm:$0xff] %vm1842, %v1955
          %1971 = vst.msk [vmem:[%s1958 + $0x60] sm:$0xff] %vm1842, %v1956
          %1972 = vst.msk [vmem:[%s1958 + $0x68] sm:$0xff] %vm1842, %v1957
          %v1973 = vmul.f32 %v1660, %v1814
          %v1974 = vmul.f32 %v1661, %v1815
          %v1975 = vmul.f32 %v1662, %v1816
          %v1976 = vmul.f32 %v1663, %v1817
          %v1977 = vmul.f32 %v1664, %v1818
          %v1978 = vmul.f32 %v1665, %v1819
          %v1979 = vmul.f32 %v1666, %v1820
          %v1980 = vmul.f32 %v1667, %v1821
          %v1981 = vmul.f32 %v1668, %v1822
          %v1982 = vmul.f32 %v1669, %v1823
          %v1983 = vmul.f32 %v1670, %v1824
          %v1984 = vmul.f32 %v1671, %v1825
          %v1985 = vmul.f32 %v1672, %v1826
          %v1986 = vmul.f32 %v1673, %v1827
          %s1987 = scalar_lea.vmem [#allocation4], 560
          %1988 = vst.msk [vmem:[%s1987] sm:$0xff] %vm1842, %v1973
          %1989 = vst.msk [vmem:[%s1987 + $0x8] sm:$0xff] %vm1842, %v1974
          %1990 = vst.msk [vmem:[%s1987 + $0x10] sm:$0xff] %vm1842, %v1975
          %1991 = vst.msk [vmem:[%s1987 + $0x18] sm:$0xff] %vm1842, %v1976
          %1992 = vst.msk [vmem:[%s1987 + $0x20] sm:$0xff] %vm1842, %v1977
          %1993 = vst.msk [vmem:[%s1987 + $0x28] sm:$0xff] %vm1842, %v1978
          %1994 = vst.msk [vmem:[%s1987 + $0x30] sm:$0xff] %vm1842, %v1979
          %1995 = vst.msk [vmem:[%s1987 + $0x38] sm:$0xff] %vm1842, %v1980
          %1996 = vst.msk [vmem:[%s1987 + $0x40] sm:$0xff] %vm1842, %v1981
          %1997 = vst.msk [vmem:[%s1987 + $0x48] sm:$0xff] %vm1842, %v1982
          %1998 = vst.msk [vmem:[%s1987 + $0x50] sm:$0xff] %vm1842, %v1983
          %1999 = vst.msk [vmem:[%s1987 + $0x58] sm:$0xff] %vm1842, %v1984
          %2000 = vst.msk [vmem:[%s1987 + $0x60] sm:$0xff] %vm1842, %v1985
          %2001 = vst.msk [vmem:[%s1987 + $0x68] sm:$0xff] %vm1842, %v1986
          %v2002 = vmul.f32 %v1702, %v1814
          %v2003 = vmul.f32 %v1703, %v1815
          %v2004 = vmul.f32 %v1704, %v1816
          %v2005 = vmul.f32 %v1705, %v1817
          %v2006 = vmul.f32 %v1706, %v1818
          %v2007 = vmul.f32 %v1707, %v1819
          %v2008 = vmul.f32 %v1708, %v1820
          %v2009 = vmul.f32 %v1709, %v1821
          %v2010 = vmul.f32 %v1710, %v1822
          %v2011 = vmul.f32 %v1711, %v1823
          %v2012 = vmul.f32 %v1712, %v1824
          %v2013 = vmul.f32 %v1713, %v1825
          %v2014 = vmul.f32 %v1714, %v1826
          %v2015 = vmul.f32 %v1715, %v1827
          %s2016 = scalar_lea.vmem [#allocation4], 672
          %2017 = vst.msk [vmem:[%s2016] sm:$0xff] %vm1842, %v2002
          %2018 = vst.msk [vmem:[%s2016 + $0x8] sm:$0xff] %vm1842, %v2003
          %2019 = vst.msk [vmem:[%s2016 + $0x10] sm:$0xff] %vm1842, %v2004
          %2020 = vst.msk [vmem:[%s2016 + $0x18] sm:$0xff] %vm1842, %v2005
          %2021 = vst.msk [vmem:[%s2016 + $0x20] sm:$0xff] %vm1842, %v2006
          %2022 = vst.msk [vmem:[%s2016 + $0x28] sm:$0xff] %vm1842, %v2007
          %2023 = vst.msk [vmem:[%s2016 + $0x30] sm:$0xff] %vm1842, %v2008
          %2024 = vst.msk [vmem:[%s2016 + $0x38] sm:$0xff] %vm1842, %v2009
          %2025 = vst.msk [vmem:[%s2016 + $0x40] sm:$0xff] %vm1842, %v2010
          %2026 = vst.msk [vmem:[%s2016 + $0x48] sm:$0xff] %vm1842, %v2011
          %2027 = vst.msk [vmem:[%s2016 + $0x50] sm:$0xff] %vm1842, %v2012
          %2028 = vst.msk [vmem:[%s2016 + $0x58] sm:$0xff] %vm1842, %v2013
          %2029 = vst.msk [vmem:[%s2016 + $0x60] sm:$0xff] %vm1842, %v2014
          %2030 = vst.msk [vmem:[%s2016 + $0x68] sm:$0xff] %vm1842, %v2015
          %v2031 = vmul.f32 %v1744, %v1814
          %v2032 = vmul.f32 %v1745, %v1815
          %v2033 = vmul.f32 %v1746, %v1816
          %v2034 = vmul.f32 %v1747, %v1817
          %v2035 = vmul.f32 %v1748, %v1818
          %v2036 = vmul.f32 %v1749, %v1819
          %v2037 = vmul.f32 %v1750, %v1820
          %v2038 = vmul.f32 %v1751, %v1821
          %v2039 = vmul.f32 %v1752, %v1822
          %v2040 = vmul.f32 %v1753, %v1823
          %v2041 = vmul.f32 %v1754, %v1824
          %v2042 = vmul.f32 %v1755, %v1825
          %v2043 = vmul.f32 %v1756, %v1826
          %v2044 = vmul.f32 %v1757, %v1827
          %s2045 = scalar_lea.vmem [#allocation4], 784
          %2046 = vst.msk [vmem:[%s2045] sm:$0xff] %vm1842, %v2031
          %2047 = vst.msk [vmem:[%s2045 + $0x8] sm:$0xff] %vm1842, %v2032
          %2048 = vst.msk [vmem:[%s2045 + $0x10] sm:$0xff] %vm1842, %v2033
          %2049 = vst.msk [vmem:[%s2045 + $0x18] sm:$0xff] %vm1842, %v2034
          %2050 = vst.msk [vmem:[%s2045 + $0x20] sm:$0xff] %vm1842, %v2035
          %2051 = vst.msk [vmem:[%s2045 + $0x28] sm:$0xff] %vm1842, %v2036
          %2052 = vst.msk [vmem:[%s2045 + $0x30] sm:$0xff] %vm1842, %v2037
          %2053 = vst.msk [vmem:[%s2045 + $0x38] sm:$0xff] %vm1842, %v2038
          %2054 = vst.msk [vmem:[%s2045 + $0x40] sm:$0xff] %vm1842, %v2039
          %2055 = vst.msk [vmem:[%s2045 + $0x48] sm:$0xff] %vm1842, %v2040
          %2056 = vst.msk [vmem:[%s2045 + $0x50] sm:$0xff] %vm1842, %v2041
          %2057 = vst.msk [vmem:[%s2045 + $0x58] sm:$0xff] %vm1842, %v2042
          %2058 = vst.msk [vmem:[%s2045 + $0x60] sm:$0xff] %vm1842, %v2043
          %2059 = vst.msk [vmem:[%s2045 + $0x68] sm:$0xff] %vm1842, %v2044
        $region120: #{atom_attention_decoder.3} parent=107 // pred_fallthru
          _
        %v2060 = vld [vmem:[#allocation2] sm:$0xff]
        %v2061 = vld [vmem:[#allocation2 + $0x8] sm:$0xff]
        %v2062 = vld [vmem:[#allocation2 + $0x10] sm:$0xff]
        %v2063 = vld [vmem:[#allocation2 + $0x18] sm:$0xff]
        %v2064 = vld [vmem:[#allocation2 + $0x20] sm:$0xff]
        %v2065 = vld [vmem:[#allocation2 + $0x28] sm:$0xff]
        %v2066 = vld [vmem:[#allocation2 + $0x30] sm:$0xff]
        %v2067 = vld [vmem:[#allocation2 + $0x38] sm:$0xff]
        %v2068 = vld [vmem:[#allocation2 + $0x40] sm:$0xff]
        %v2069 = vld [vmem:[#allocation2 + $0x48] sm:$0xff]
        %v2070 = vld [vmem:[#allocation2 + $0x50] sm:$0xff]
        %v2071 = vld [vmem:[#allocation2 + $0x58] sm:$0xff]
        %v2072 = vld [vmem:[#allocation2 + $0x60] sm:$0xff]
        %v2073 = vld [vmem:[#allocation2 + $0x68] sm:$0xff]
        %v2074 = vld [vmem:[#allocation3] sm:$0xff]
        %v2075 = vld [vmem:[#allocation3 + $0x8] sm:$0xff]
        %v2076 = vld [vmem:[#allocation3 + $0x10] sm:$0xff]
        %v2077 = vld [vmem:[#allocation3 + $0x18] sm:$0xff]
        %v2078 = vld [vmem:[#allocation3 + $0x20] sm:$0xff]
        %v2079 = vld [vmem:[#allocation3 + $0x28] sm:$0xff]
        %v2080 = vld [vmem:[#allocation3 + $0x30] sm:$0xff]
        %v2081 = vld [vmem:[#allocation3 + $0x38] sm:$0xff]
        %v2082 = vld [vmem:[#allocation3 + $0x40] sm:$0xff]
        %v2083 = vld [vmem:[#allocation3 + $0x48] sm:$0xff]
        %v2084 = vld [vmem:[#allocation3 + $0x50] sm:$0xff]
        %v2085 = vld [vmem:[#allocation3 + $0x58] sm:$0xff]
        %v2086 = vld [vmem:[#allocation3 + $0x60] sm:$0xff]
        %v2087 = vld [vmem:[#allocation3 + $0x68] sm:$0xff]
        %v2088 = vld [vmem:[%s925] sm:$0xff]
        %v2089 = vld [vmem:[%s925 + $0x8] sm:$0xff]
        %v2090 = vld [vmem:[%s925 + $0x10] sm:$0xff]
        %v2091 = vld [vmem:[%s925 + $0x18] sm:$0xff]
        %v2092 = vld [vmem:[%s925 + $0x20] sm:$0xff]
        %v2093 = vld [vmem:[%s925 + $0x28] sm:$0xff]
        %v2094 = vld [vmem:[%s925 + $0x30] sm:$0xff]
        %v2095 = vld [vmem:[%s925 + $0x38] sm:$0xff]
        %v2096 = vld [vmem:[%s925 + $0x40] sm:$0xff]
        %v2097 = vld [vmem:[%s925 + $0x48] sm:$0xff]
        %v2098 = vld [vmem:[%s925 + $0x50] sm:$0xff]
        %v2099 = vld [vmem:[%s925 + $0x58] sm:$0xff]
        %v2100 = vld [vmem:[%s925 + $0x60] sm:$0xff]
        %v2101 = vld [vmem:[%s925 + $0x68] sm:$0xff]
        %v2102 = vld [vmem:[%s3] sm:$0xff]
        %v2103 = vld [vmem:[%s3 + $0x8] sm:$0xff]
        %v2104 = vld [vmem:[%s3 + $0x10] sm:$0xff]
        %v2105 = vld [vmem:[%s3 + $0x18] sm:$0xff]
        %v2106 = vld [vmem:[%s3 + $0x20] sm:$0xff]
        %v2107 = vld [vmem:[%s3 + $0x28] sm:$0xff]
        %v2108 = vld [vmem:[%s3 + $0x30] sm:$0xff]
        %v2109 = vld [vmem:[%s3 + $0x38] sm:$0xff]
        %v2110 = vld [vmem:[%s3 + $0x40] sm:$0xff]
        %v2111 = vld [vmem:[%s3 + $0x48] sm:$0xff]
        %v2112 = vld [vmem:[%s3 + $0x50] sm:$0xff]
        %v2113 = vld [vmem:[%s3 + $0x58] sm:$0xff]
        %v2114 = vld [vmem:[%s3 + $0x60] sm:$0xff]
        %v2115 = vld [vmem:[%s3 + $0x68] sm:$0xff]
        %vm2116 = vcmask 261120
        %v2117 = vsel %vm2116, %v2060, 0.0
        %2118 = vadd.xlane.f32.xlu0 %v2117
        %v2119 = vpop.xlane.xlu0 %2118
        %v2120 = vsel %vm2116, %v2061, 0.0
        %2121 = vadd.xlane.f32.xlu0 %v2120
        %v2122 = vpop.xlane.xlu0 %2121
        %v2123 = vsel %vm2116, %v2062, 0.0
        %2124 = vadd.xlane.f32.xlu0 %v2123
        %v2125 = vpop.xlane.xlu0 %2124
        %v2126 = vsel %vm2116, %v2063, 0.0
        %2127 = vadd.xlane.f32.xlu0 %v2126
        %v2128 = vpop.xlane.xlu0 %2127
        %v2129 = vsel %vm2116, %v2064, 0.0
        %2130 = vadd.xlane.f32.xlu0 %v2129
        %v2131 = vpop.xlane.xlu0 %2130
        %v2132 = vsel %vm2116, %v2065, 0.0
        %2133 = vadd.xlane.f32.xlu0 %v2132
        %v2134 = vpop.xlane.xlu0 %2133
        %v2135 = vsel %vm2116, %v2066, 0.0
        %2136 = vadd.xlane.f32.xlu0 %v2135
        %v2137 = vpop.xlane.xlu0 %2136
        %v2138 = vsel %vm2116, %v2067, 0.0
        %2139 = vadd.xlane.f32.xlu0 %v2138
        %v2140 = vpop.xlane.xlu0 %2139
        %v2141 = vsel %vm2116, %v2068, 0.0
        %2142 = vadd.xlane.f32.xlu0 %v2141
        %v2143 = vpop.xlane.xlu0 %2142
        %v2144 = vsel %vm2116, %v2069, 0.0
        %2145 = vadd.xlane.f32.xlu0 %v2144
        %v2146 = vpop.xlane.xlu0 %2145
        %v2147 = vsel %vm2116, %v2070, 0.0
        %2148 = vadd.xlane.f32.xlu0 %v2147
        %v2149 = vpop.xlane.xlu0 %2148
        %v2150 = vsel %vm2116, %v2071, 0.0
        %2151 = vadd.xlane.f32.xlu0 %v2150
        %v2152 = vpop.xlane.xlu0 %2151
        %v2153 = vsel %vm2116, %v2072, 0.0
        %2154 = vadd.xlane.f32.xlu0 %v2153
        %v2155 = vpop.xlane.xlu0 %2154
        %v2156 = vsel %vm2116, %v2073, 0.0
        %2157 = vadd.xlane.f32.xlu0 %v2156
        %v2158 = vpop.xlane.xlu0 %2157
        %v2159 = vrcp.pop 32.0
        %v2160 = vmul.f32 %v2119, %v2159
        %v2161 = vmul.f32 %v2122, %v2159
        %v2162 = vmul.f32 %v2125, %v2159
        %v2163 = vmul.f32 %v2128, %v2159
        %v2164 = vmul.f32 %v2131, %v2159
        %v2165 = vmul.f32 %v2134, %v2159
        %v2166 = vmul.f32 %v2137, %v2159
        %v2167 = vmul.f32 %v2140, %v2159
        %v2168 = vmul.f32 %v2143, %v2159
        %v2169 = vmul.f32 %v2146, %v2159
        %v2170 = vmul.f32 %v2149, %v2159
        %v2171 = vmul.f32 %v2152, %v2159
        %v2172 = vmul.f32 %v2155, %v2159
        %v2173 = vmul.f32 %v2158, %v2159
        %v2174 = vsub.f32 %v2060, %v2160
        %v2175 = vsub.f32 %v2061, %v2161
        %v2176 = vsub.f32 %v2062, %v2162
        %v2177 = vsub.f32 %v2063, %v2163
        %v2178 = vsub.f32 %v2064, %v2164
        %v2179 = vsub.f32 %v2065, %v2165
        %v2180 = vsub.f32 %v2066, %v2166
        %v2181 = vsub.f32 %v2067, %v2167
        %v2182 = vsub.f32 %v2068, %v2168
        %v2183 = vsub.f32 %v2069, %v2169
        %v2184 = vsub.f32 %v2070, %v2170
        %v2185 = vsub.f32 %v2071, %v2171
        %v2186 = vsub.f32 %v2072, %v2172
        %v2187 = vsub.f32 %v2073, %v2173
        %v2188 = vmul.f32 %v2174, %v2174
        %v2189 = vmul.f32 %v2175, %v2175
        %v2190 = vmul.f32 %v2176, %v2176
        %v2191 = vmul.f32 %v2177, %v2177
        %v2192 = vmul.f32 %v2178, %v2178
        %v2193 = vmul.f32 %v2179, %v2179
        %v2194 = vmul.f32 %v2180, %v2180
        %v2195 = vmul.f32 %v2181, %v2181
        %v2196 = vmul.f32 %v2182, %v2182
        %v2197 = vmul.f32 %v2183, %v2183
        %v2198 = vmul.f32 %v2184, %v2184
        %v2199 = vmul.f32 %v2185, %v2185
        %v2200 = vmul.f32 %v2186, %v2186
        %v2201 = vmul.f32 %v2187, %v2187
        %v2202 = vsel %vm2116, %v2188, 0.0
        %2203 = vadd.xlane.f32.xlu0 %v2202
        %v2204 = vpop.xlane.xlu0 %2203
        %v2205 = vsel %vm2116, %v2189, 0.0
        %2206 = vadd.xlane.f32.xlu0 %v2205
        %v2207 = vpop.xlane.xlu0 %2206
        %v2208 = vsel %vm2116, %v2190, 0.0
        %2209 = vadd.xlane.f32.xlu0 %v2208
        %v2210 = vpop.xlane.xlu0 %2209
        %v2211 = vsel %vm2116, %v2191, 0.0
        %2212 = vadd.xlane.f32.xlu0 %v2211
        %v2213 = vpop.xlane.xlu0 %2212
        %v2214 = vsel %vm2116, %v2192, 0.0
        %2215 = vadd.xlane.f32.xlu0 %v2214
        %v2216 = vpop.xlane.xlu0 %2215
        %v2217 = vsel %vm2116, %v2193, 0.0
        %2218 = vadd.xlane.f32.xlu0 %v2217
        %v2219 = vpop.xlane.xlu0 %2218
        %v2220 = vsel %vm2116, %v2194, 0.0
        %2221 = vadd.xlane.f32.xlu0 %v2220
        %v2222 = vpop.xlane.xlu0 %2221
        %v2223 = vsel %vm2116, %v2195, 0.0
        %2224 = vadd.xlane.f32.xlu0 %v2223
        %v2225 = vpop.xlane.xlu0 %2224
        %v2226 = vsel %vm2116, %v2196, 0.0
        %2227 = vadd.xlane.f32.xlu0 %v2226
        %v2228 = vpop.xlane.xlu0 %2227
        %v2229 = vsel %vm2116, %v2197, 0.0
        %2230 = vadd.xlane.f32.xlu0 %v2229
        %v2231 = vpop.xlane.xlu0 %2230
        %v2232 = vsel %vm2116, %v2198, 0.0
        %2233 = vadd.xlane.f32.xlu0 %v2232
        %v2234 = vpop.xlane.xlu0 %2233
        %v2235 = vsel %vm2116, %v2199, 0.0
        %2236 = vadd.xlane.f32.xlu0 %v2235
        %v2237 = vpop.xlane.xlu0 %2236
        %v2238 = vsel %vm2116, %v2200, 0.0
        %2239 = vadd.xlane.f32.xlu0 %v2238
        %v2240 = vpop.xlane.xlu0 %2239
        %v2241 = vsel %vm2116, %v2201, 0.0
        %2242 = vadd.xlane.f32.xlu0 %v2241
        %v2243 = vpop.xlane.xlu0 %2242
        %v2244 = vmul.f32 %v2204, %v2159
        %v2245 = vmul.f32 %v2207, %v2159
        %v2246 = vmul.f32 %v2210, %v2159
        %v2247 = vmul.f32 %v2213, %v2159
        %v2248 = vmul.f32 %v2216, %v2159
        %v2249 = vmul.f32 %v2219, %v2159
        %v2250 = vmul.f32 %v2222, %v2159
        %v2251 = vmul.f32 %v2225, %v2159
        %v2252 = vmul.f32 %v2228, %v2159
        %v2253 = vmul.f32 %v2231, %v2159
        %v2254 = vmul.f32 %v2234, %v2159
        %v2255 = vmul.f32 %v2237, %v2159
        %v2256 = vmul.f32 %v2240, %v2159
        %v2257 = vmul.f32 %v2243, %v2159
        %v2258 = vadd.f32 %v2244, 1e-05
        %v2259 = vadd.f32 %v2245, 1e-05
        %v2260 = vadd.f32 %v2246, 1e-05
        %v2261 = vadd.f32 %v2247, 1e-05
        %v2262 = vadd.f32 %v2248, 1e-05
        %v2263 = vadd.f32 %v2249, 1e-05
        %v2264 = vadd.f32 %v2250, 1e-05
        %v2265 = vadd.f32 %v2251, 1e-05
        %v2266 = vadd.f32 %v2252, 1e-05
        %v2267 = vadd.f32 %v2253, 1e-05
        %v2268 = vadd.f32 %v2254, 1e-05
        %v2269 = vadd.f32 %v2255, 1e-05
        %v2270 = vadd.f32 %v2256, 1e-05
        %v2271 = vadd.f32 %v2257, 1e-05
        %v2272 = vrsqrt.pop %v2258
        %v2273 = vrsqrt.pop %v2259
        %v2274 = vrsqrt.pop %v2260
        %v2275 = vrsqrt.pop %v2261
        %v2276 = vrsqrt.pop %v2262
        %v2277 = vrsqrt.pop %v2263
        %v2278 = vrsqrt.pop %v2264
        %v2279 = vrsqrt.pop %v2265
        %v2280 = vrsqrt.pop %v2266
        %v2281 = vrsqrt.pop %v2267
        %v2282 = vrsqrt.pop %v2268
        %v2283 = vrsqrt.pop %v2269
        %v2284 = vrsqrt.pop %v2270
        %v2285 = vrsqrt.pop %v2271
        %v2286 = vmul.f32 %v2174, %v2272
        %v2287 = vmul.f32 %v2175, %v2273
        %v2288 = vmul.f32 %v2176, %v2274
        %v2289 = vmul.f32 %v2177, %v2275
        %v2290 = vmul.f32 %v2178, %v2276
        %v2291 = vmul.f32 %v2179, %v2277
        %v2292 = vmul.f32 %v2180, %v2278
        %v2293 = vmul.f32 %v2181, %v2279
        %v2294 = vmul.f32 %v2182, %v2280
        %v2295 = vmul.f32 %v2183, %v2281
        %v2296 = vmul.f32 %v2184, %v2282
        %v2297 = vmul.f32 %v2185, %v2283
        %v2298 = vmul.f32 %v2186, %v2284
        %v2299 = vmul.f32 %v2187, %v2285
        %v2300 = vld [vmem:[%s959] sm:$0xff]
        %v2301 = vld [vmem:[%s959 + $0x8] sm:$0xff]
        %v2302 = vld [vmem:[%s959 + $0x10] sm:$0xff]
        %v2303 = vld [vmem:[%s959 + $0x18] sm:$0xff]
        %v2304 = vld [vmem:[%s962] sm:$0x1]
        %v2306 = vlaneseq
        %v2307 = vshrl.u32 %v2306, 7
        %v2308 = vsub.s32 0, %v2307
        %v2309 = vrot.slane %v2304, %v2308
        %v2312 = vsel %vm2116, %v2088, 0
        %v2315 = vsel %vm2116, %v2089, 0
        %v2318 = vsel %vm2116, %v2090, 0
        %v2321 = vsel %vm2116, %v2091, 0
        %v2324 = vsel %vm2116, %v2092, 0
        %v2327 = vsel %vm2116, %v2093, 0
        %v2330 = vsel %vm2116, %v2094, 0
        %v2333 = vsel %vm2116, %v2095, 0
        %v2336 = vsel %vm2116, %v2096, 0
        %v2339 = vsel %vm2116, %v2097, 0
        %v2342 = vsel %vm2116, %v2098, 0
        %v2345 = vsel %vm2116, %v2099, 0
        %v2348 = vsel %vm2116, %v2100, 0
        %v2351 = vsel %vm2116, %v2101, 0
        %2353 = vmatprep.subr.mxu0 0.0
        %2354 = vmatpush1.msra.mxu0 %v2300
        %2355 = vmatprep.subr.mxu0 0.0
        %2356 = vmatpush1.msra.mxu0 %v2301
        %2357 = vmatprep.subr.mxu0 0.0
        %2358 = vmatpush1.msra.mxu0 %v2302
        %2359 = vmatprep.subr.mxu0 0.0
        %2360 = vmatpush1.msra.mxu0 %v2303
        %2361 = vmatprep.subr.mxu0 0.0
        %2362 = vmatpush1.msra.mxu0 0.0
        %2363 = vmatprep.subr.mxu0 0.0
        %2364 = vmatpush1.msra.mxu0 0.0
        %2365 = vmatprep.subr.mxu0 0.0
        %2366 = vmatpush1.msra.mxu0 0.0
        %2367 = vmatprep.subr.mxu0 0.0
        %2368 = vmatpush1.msra.mxu0 0.0
        %2369 = vmatprep.subr.mxu0 0.0
        %2370 = vmatpush1.msra.mxu0 0.0
        %2371 = vmatprep.subr.mxu0 0.0
        %2372 = vmatpush1.msra.mxu0 0.0
        %2373 = vmatprep.subr.mxu0 0.0
        %2374 = vmatpush1.msra.mxu0 0.0
        %2375 = vmatprep.subr.mxu0 0.0
        %2376 = vmatpush1.msra.mxu0 0.0
        %2377 = vmatprep.subr.mxu0 0.0
        %2378 = vmatpush1.msra.mxu0 0.0
        %2379 = vmatprep.subr.mxu0 0.0
        %2380 = vmatpush1.msra.mxu0 0.0
        %2381 = vmatprep.subr.mxu0 0.0
        %2382 = vmatpush1.msra.mxu0 0.0
        %2383 = vmatprep.subr.mxu0 0.0
        %2384 = vmatpush1.msra.mxu0 0.0
        %2385 = vmatprep.subr.mxu0 0.0
        %2386 = vmatpush1.msra.mxu0 0.0
        %2387 = vmatprep.subr.mxu0 0.0
        %2388 = vmatpush1.msra.mxu0 0.0
        %2389 = vmatprep.subr.mxu0 0.0
        %2390 = vmatpush1.msra.mxu0 0.0
        %2391 = vmatprep.subr.mxu0 0.0
        %2392 = vmatpush1.msra.mxu0 0.0
        %2393 = vmatprep.subr.mxu0 0.0
        %2394 = vmatpush1.msra.mxu0 0.0
        %2395 = vmatprep.subr.mxu0 0.0
        %2396 = vmatpush1.msra.mxu0 0.0
        %2397 = vmatprep.subr.mxu0 0.0
        %2398 = vmatpush1.msra.mxu0 0.0
        %2399 = vmatprep.subr.mxu0 0.0
        %2400 = vmatpush1.msra.mxu0 0.0
        %2401 = vmatprep.subr.mxu0 0.0
        %2402 = vmatpush1.msra.mxu0 0.0
        %2403 = vmatprep.subr.mxu0 0.0
        %2404 = vmatpush1.msra.mxu0 0.0
        %2405 = vmatprep.subr.mxu0 0.0
        %2406 = vmatpush1.msra.mxu0 0.0
        %2407 = vmatprep.subr.mxu0 0.0
        %2408 = vmatpush1.msra.mxu0 0.0
        %2409 = vmatprep.subr.mxu0 0.0
        %2410 = vmatpush1.msra.mxu0 0.0
        %2411 = vmatprep.subr.mxu0 0.0
        %2412 = vmatpush1.msra.mxu0 0.0
        %2413 = vmatprep.subr.mxu0 0.0
        %2414 = vmatpush1.msra.mxu0 0.0
        %2415 = vmatprep.subr.mxu0 0.0
        %2416 = vmatpush1.msra.mxu0 0.0
        %2417 = vmatprep.mubr.f32.mxu0 0.0
        %2418 = vmatmul.mubr.f32.gmra.mrb[0].mxu0 %v2312
        %v2419 = vpop.f32.mrb[0].mxu0
        %v2420 = vadd.f32 %v2309, %v2419
        %v2421 = vpop.f32.mrb[0].mxu0
        %2422 = vmatprep.mubr.f32.mxu0 0.0
        %2423 = vmatmul.mubr.f32.gmra.mrb[0].mxu0 %v2315
        %v2424 = vpop.f32.mrb[0].mxu0
        %v2425 = vadd.f32 %v2309, %v2424
        %v2426 = vpop.f32.mrb[0].mxu0
        %2427 = vmatprep.mubr.f32.mxu0 0.0
        %2428 = vmatmul.mubr.f32.gmra.mrb[0].mxu0 %v2318
        %v2429 = vpop.f32.mrb[0].mxu0
        %v2430 = vadd.f32 %v2309, %v2429
        %v2431 = vpop.f32.mrb[0].mxu0
        %2432 = vmatprep.mubr.f32.mxu0 0.0
        %2433 = vmatmul.mubr.f32.gmra.mrb[0].mxu0 %v2321
        %v2434 = vpop.f32.mrb[0].mxu0
        %v2435 = vadd.f32 %v2309, %v2434
        %v2436 = vpop.f32.mrb[0].mxu0
        %2437 = vmatprep.mubr.f32.mxu0 0.0
        %2438 = vmatmul.mubr.f32.gmra.mrb[0].mxu0 %v2324
        %v2439 = vpop.f32.mrb[0].mxu0
        %v2440 = vadd.f32 %v2309, %v2439
        %v2441 = vpop.f32.mrb[0].mxu0
        %2442 = vmatprep.mubr.f32.mxu0 0.0
        %2443 = vmatmul.mubr.f32.gmra.mrb[0].mxu0 %v2327
        %v2444 = vpop.f32.mrb[0].mxu0
        %v2445 = vadd.f32 %v2309, %v2444
        %v2446 = vpop.f32.mrb[0].mxu0
        %2447 = vmatprep.mubr.f32.mxu0 0.0
        %2448 = vmatmul.mubr.f32.gmra.mrb[0].mxu0 %v2330
        %v2449 = vpop.f32.mrb[0].mxu0
        %v2450 = vadd.f32 %v2309, %v2449
        %v2451 = vpop.f32.mrb[0].mxu0
        %2452 = vmatprep.mubr.f32.mxu0 0.0
        %2453 = vmatmul.mubr.f32.gmra.mrb[0].mxu0 %v2333
        %v2454 = vpop.f32.mrb[0].mxu0
        %v2455 = vadd.f32 %v2309, %v2454
        %v2456 = vpop.f32.mrb[0].mxu0
        %2457 = vmatprep.mubr.f32.mxu0 0.0
        %2458 = vmatmul.mubr.f32.gmra.mrb[0].mxu0 %v2336
        %v2459 = vpop.f32.mrb[0].mxu0
        %v2460 = vadd.f32 %v2309, %v2459
        %v2461 = vpop.f32.mrb[0].mxu0
        %2462 = vmatprep.mubr.f32.mxu0 0.0
        %2463 = vmatmul.mubr.f32.gmra.mrb[0].mxu0 %v2339
        %v2464 = vpop.f32.mrb[0].mxu0
        %v2465 = vadd.f32 %v2309, %v2464
        %v2466 = vpop.f32.mrb[0].mxu0
        %2467 = vmatprep.mubr.f32.mxu0 0.0
        %2468 = vmatmul.mubr.f32.gmra.mrb[0].mxu0 %v2342
        %v2469 = vpop.f32.mrb[0].mxu0
        %v2470 = vadd.f32 %v2309, %v2469
        %v2471 = vpop.f32.mrb[0].mxu0
        %2472 = vmatprep.mubr.f32.mxu0 0.0
        %2473 = vmatmul.mubr.f32.gmra.mrb[0].mxu0 %v2345
        %v2474 = vpop.f32.mrb[0].mxu0
        %v2475 = vadd.f32 %v2309, %v2474
        %v2476 = vpop.f32.mrb[0].mxu0
        %2477 = vmatprep.mubr.f32.mxu0 0.0
        %2478 = vmatmul.mubr.f32.gmra.mrb[0].mxu0 %v2348
        %v2479 = vpop.f32.mrb[0].mxu0
        %v2480 = vadd.f32 %v2309, %v2479
        %v2481 = vpop.f32.mrb[0].mxu0
        %2482 = vmatprep.mubr.f32.mxu0 0.0
        %2483 = vmatmul.mubr.f32.gmra.mrb[0].mxu0 %v2351
        %v2484 = vpop.f32.mrb[0].mxu0
        %v2485 = vadd.f32 %v2309, %v2484
        %v2486 = vpop.f32.mrb[0].mxu0
        %2487 = vdwg.mxu0
        %v2488 = vxor.u32 %v2420, 2147483648
        %v2489 = vxor.u32 %v2425, 2147483648
        %v2490 = vxor.u32 %v2430, 2147483648
        %v2491 = vxor.u32 %v2435, 2147483648
        %v2492 = vxor.u32 %v2440, 2147483648
        %v2493 = vxor.u32 %v2445, 2147483648
        %v2494 = vxor.u32 %v2450, 2147483648
        %v2495 = vxor.u32 %v2455, 2147483648
        %v2496 = vxor.u32 %v2460, 2147483648
        %v2497 = vxor.u32 %v2465, 2147483648
        %v2498 = vxor.u32 %v2470, 2147483648
        %v2499 = vxor.u32 %v2475, 2147483648
        %v2500 = vxor.u32 %v2480, 2147483648
        %v2501 = vxor.u32 %v2485, 2147483648
        %v2502 = vmul.f32 %v2488, 1.442695
        %v2503 = vpow.pop %v2502
        %v2504 = vmul.f32 %v2489, 1.442695
        %v2505 = vpow.pop %v2504
        %v2506 = vmul.f32 %v2490, 1.442695
        %v2507 = vpow.pop %v2506
        %v2508 = vmul.f32 %v2491, 1.442695
        %v2509 = vpow.pop %v2508
        %v2510 = vmul.f32 %v2492, 1.442695
        %v2511 = vpow.pop %v2510
        %v2512 = vmul.f32 %v2493, 1.442695
        %v2513 = vpow.pop %v2512
        %v2514 = vmul.f32 %v2494, 1.442695
        %v2515 = vpow.pop %v2514
        %v2516 = vmul.f32 %v2495, 1.442695
        %v2517 = vpow.pop %v2516
        %v2518 = vmul.f32 %v2496, 1.442695
        %v2519 = vpow.pop %v2518
        %v2520 = vmul.f32 %v2497, 1.442695
        %v2521 = vpow.pop %v2520
        %v2522 = vmul.f32 %v2498, 1.442695
        %v2523 = vpow.pop %v2522
        %v2524 = vmul.f32 %v2499, 1.442695
        %v2525 = vpow.pop %v2524
        %v2526 = vmul.f32 %v2500, 1.442695
        %v2527 = vpow.pop %v2526
        %v2528 = vmul.f32 %v2501, 1.442695
        %v2529 = vpow.pop %v2528
        %v2530 = vadd.f32 %v2503, 1.0
        %v2531 = vadd.f32 %v2505, 1.0
        %v2532 = vadd.f32 %v2507, 1.0
        %v2533 = vadd.f32 %v2509, 1.0
        %v2534 = vadd.f32 %v2511, 1.0
        %v2535 = vadd.f32 %v2513, 1.0
        %v2536 = vadd.f32 %v2515, 1.0
        %v2537 = vadd.f32 %v2517, 1.0
        %v2538 = vadd.f32 %v2519, 1.0
        %v2539 = vadd.f32 %v2521, 1.0
        %v2540 = vadd.f32 %v2523, 1.0
        %v2541 = vadd.f32 %v2525, 1.0
        %v2542 = vadd.f32 %v2527, 1.0
        %v2543 = vadd.f32 %v2529, 1.0
        %v2544 = vrcp.pop %v2530
        %v2545 = vmul.f32 1.0, %v2544
        %v2546 = vrcp.pop %v2531
        %v2547 = vmul.f32 1.0, %v2546
        %v2548 = vrcp.pop %v2532
        %v2549 = vmul.f32 1.0, %v2548
        %v2550 = vrcp.pop %v2533
        %v2551 = vmul.f32 1.0, %v2550
        %v2552 = vrcp.pop %v2534
        %v2553 = vmul.f32 1.0, %v2552
        %v2554 = vrcp.pop %v2535
        %v2555 = vmul.f32 1.0, %v2554
        %v2556 = vrcp.pop %v2536
        %v2557 = vmul.f32 1.0, %v2556
        %v2558 = vrcp.pop %v2537
        %v2559 = vmul.f32 1.0, %v2558
        %v2560 = vrcp.pop %v2538
        %v2561 = vmul.f32 1.0, %v2560
        %v2562 = vrcp.pop %v2539
        %v2563 = vmul.f32 1.0, %v2562
        %v2564 = vrcp.pop %v2540
        %v2565 = vmul.f32 1.0, %v2564
        %v2566 = vrcp.pop %v2541
        %v2567 = vmul.f32 1.0, %v2566
        %v2568 = vrcp.pop %v2542
        %v2569 = vmul.f32 1.0, %v2568
        %v2570 = vrcp.pop %v2543
        %v2571 = vmul.f32 1.0, %v2570
        %v2572 = vld [vmem:[%s933] sm:$0x1]
        %v2574 = vlaneseq
        %v2575 = vshrl.u32 %v2574, 7
        %v2576 = vsub.s32 0, %v2575
        %v2577 = vrot.slane %v2572, %v2576
        %v2579 = vmul.f32 %v2074, %v2577
        %v2580 = vmul.f32 %v2075, %v2577
        %v2581 = vmul.f32 %v2076, %v2577
        %v2582 = vmul.f32 %v2077, %v2577
        %v2583 = vmul.f32 %v2078, %v2577
        %v2584 = vmul.f32 %v2079, %v2577
        %v2585 = vmul.f32 %v2080, %v2577
        %v2586 = vmul.f32 %v2081, %v2577
        %v2587 = vmul.f32 %v2082, %v2577
        %v2588 = vmul.f32 %v2083, %v2577
        %v2589 = vmul.f32 %v2084, %v2577
        %v2590 = vmul.f32 %v2085, %v2577
        %v2591 = vmul.f32 %v2086, %v2577
        %v2592 = vmul.f32 %v2087, %v2577
        %v2593 = vld [vmem:[%s938] sm:$0xff]
        %v2594 = vld [vmem:[%s938 + $0x8] sm:$0xff]
        %v2595 = vld [vmem:[%s938 + $0x10] sm:$0xff]
        %v2596 = vld [vmem:[%s938 + $0x18] sm:$0xff]
        %v2597 = vld [vmem:[%s941] sm:$0x1]
        %v2599 = vlaneseq
        %v2600 = vshrl.u32 %v2599, 7
        %v2601 = vsub.s32 0, %v2600
        %v2602 = vrot.slane %v2597, %v2601
        %v2605 = vsel %vm2116, %v2579, 0
        %v2608 = vsel %vm2116, %v2580, 0
        %v2611 = vsel %vm2116, %v2581, 0
        %v2614 = vsel %vm2116, %v2582, 0
        %v2617 = vsel %vm2116, %v2583, 0
        %v2620 = vsel %vm2116, %v2584, 0
        %v2623 = vsel %vm2116, %v2585, 0
        %v2626 = vsel %vm2116, %v2586, 0
        %v2629 = vsel %vm2116, %v2587, 0
        %v2632 = vsel %vm2116, %v2588, 0
        %v2635 = vsel %vm2116, %v2589, 0
        %v2638 = vsel %vm2116, %v2590, 0
        %v2641 = vsel %vm2116, %v2591, 0
        %v2644 = vsel %vm2116, %v2592, 0
        %2646 = vmatprep.subr.mxu0 0.0
        %2647 = vmatpush1.msra.mxu0 %v2593
        %2648 = vmatprep.subr.mxu0 0.0
        %2649 = vmatpush1.msra.mxu0 %v2594
        %2650 = vmatprep.subr.mxu0 0.0
        %2651 = vmatpush1.msra.mxu0 %v2595
        %2652 = vmatprep.subr.mxu0 0.0
        %2653 = vmatpush1.msra.mxu0 %v2596
        %2654 = vmatprep.subr.mxu0 0.0
        %2655 = vmatpush1.msra.mxu0 0.0
        %2656 = vmatprep.subr.mxu0 0.0
        %2657 = vmatpush1.msra.mxu0 0.0
        %2658 = vmatprep.subr.mxu0 0.0
        %2659 = vmatpush1.msra.mxu0 0.0
        %2660 = vmatprep.subr.mxu0 0.0
        %2661 = vmatpush1.msra.mxu0 0.0
        %2662 = vmatprep.subr.mxu0 0.0
        %2663 = vmatpush1.msra.mxu0 0.0
        %2664 = vmatprep.subr.mxu0 0.0
        %2665 = vmatpush1.msra.mxu0 0.0
        %2666 = vmatprep.subr.mxu0 0.0
        %2667 = vmatpush1.msra.mxu0 0.0
        %2668 = vmatprep.subr.mxu0 0.0
        %2669 = vmatpush1.msra.mxu0 0.0
        %2670 = vmatprep.subr.mxu0 0.0
        %2671 = vmatpush1.msra.mxu0 0.0
        %2672 = vmatprep.subr.mxu0 0.0
        %2673 = vmatpush1.msra.mxu0 0.0
        %2674 = vmatprep.subr.mxu0 0.0
        %2675 = vmatpush1.msra.mxu0 0.0
        %2676 = vmatprep.subr.mxu0 0.0
        %2677 = vmatpush1.msra.mxu0 0.0
        %2678 = vmatprep.subr.mxu0 0.0
        %2679 = vmatpush1.msra.mxu0 0.0
        %2680 = vmatprep.subr.mxu0 0.0
        %2681 = vmatpush1.msra.mxu0 0.0
        %2682 = vmatprep.subr.mxu0 0.0
        %2683 = vmatpush1.msra.mxu0 0.0
        %2684 = vmatprep.subr.mxu0 0.0
        %2685 = vmatpush1.msra.mxu0 0.0
        %2686 = vmatprep.subr.mxu0 0.0
        %2687 = vmatpush1.msra.mxu0 0.0
        %2688 = vmatprep.subr.mxu0 0.0
        %2689 = vmatpush1.msra.mxu0 0.0
        %2690 = vmatprep.subr.mxu0 0.0
        %2691 = vmatpush1.msra.mxu0 0.0
        %2692 = vmatprep.subr.mxu0 0.0
        %2693 = vmatpush1.msra.mxu0 0.0
        %2694 = vmatprep.subr.mxu0 0.0
        %2695 = vmatpush1.msra.mxu0 0.0
        %2696 = vmatprep.subr.mxu0 0.0
        %2697 = vmatpush1.msra.mxu0 0.0
        %2698 = vmatprep.subr.mxu0 0.0
        %2699 = vmatpush1.msra.mxu0 0.0
        %2700 = vmatprep.subr.mxu0 0.0
        %2701 = vmatpush1.msra.mxu0 0.0
        %2702 = vmatprep.subr.mxu0 0.0
        %2703 = vmatpush1.msra.mxu0 0.0
        %2704 = vmatprep.subr.mxu0 0.0
        %2705 = vmatpush1.msra.mxu0 0.0
        %2706 = vmatprep.subr.mxu0 0.0
        %2707 = vmatpush1.msra.mxu0 0.0
        %2708 = vmatprep.subr.mxu0 0.0
        %2709 = vmatpush1.msra.mxu0 0.0
        %2710 = vmatprep.mubr.f32.mxu0 0.0
        %2711 = vmatmul.mubr.f32.gmra.mrb[0].mxu0 %v2605
        %v2712 = vpop.f32.mrb[0].mxu0
        %v2713 = vadd.f32 %v2602, %v2712
        %v2714 = vpop.f32.mrb[0].mxu0
        %2715 = vmatprep.mubr.f32.mxu0 0.0
        %2716 = vmatmul.mubr.f32.gmra.mrb[0].mxu0 %v2608
        %v2717 = vpop.f32.mrb[0].mxu0
        %v2718 = vadd.f32 %v2602, %v2717
        %v2719 = vpop.f32.mrb[0].mxu0
        %2720 = vmatprep.mubr.f32.mxu0 0.0
        %2721 = vmatmul.mubr.f32.gmra.mrb[0].mxu0 %v2611
        %v2722 = vpop.f32.mrb[0].mxu0
        %v2723 = vadd.f32 %v2602, %v2722
        %v2724 = vpop.f32.mrb[0].mxu0
        %2725 = vmatprep.mubr.f32.mxu0 0.0
        %2726 = vmatmul.mubr.f32.gmra.mrb[0].mxu0 %v2614
        %v2727 = vpop.f32.mrb[0].mxu0
        %v2728 = vadd.f32 %v2602, %v2727
        %v2729 = vpop.f32.mrb[0].mxu0
        %2730 = vmatprep.mubr.f32.mxu0 0.0
        %2731 = vmatmul.mubr.f32.gmra.mrb[0].mxu0 %v2617
        %v2732 = vpop.f32.mrb[0].mxu0
        %v2733 = vadd.f32 %v2602, %v2732
        %v2734 = vpop.f32.mrb[0].mxu0
        %2735 = vmatprep.mubr.f32.mxu0 0.0
        %2736 = vmatmul.mubr.f32.gmra.mrb[0].mxu0 %v2620
        %v2737 = vpop.f32.mrb[0].mxu0
        %v2738 = vadd.f32 %v2602, %v2737
        %v2739 = vpop.f32.mrb[0].mxu0
        %2740 = vmatprep.mubr.f32.mxu0 0.0
        %2741 = vmatmul.mubr.f32.gmra.mrb[0].mxu0 %v2623
        %v2742 = vpop.f32.mrb[0].mxu0
        %v2743 = vadd.f32 %v2602, %v2742
        %v2744 = vpop.f32.mrb[0].mxu0
        %2745 = vmatprep.mubr.f32.mxu0 0.0
        %2746 = vmatmul.mubr.f32.gmra.mrb[0].mxu0 %v2626
        %v2747 = vpop.f32.mrb[0].mxu0
        %v2748 = vadd.f32 %v2602, %v2747
        %v2749 = vpop.f32.mrb[0].mxu0
        %2750 = vmatprep.mubr.f32.mxu0 0.0
        %2751 = vmatmul.mubr.f32.gmra.mrb[0].mxu0 %v2629
        %v2752 = vpop.f32.mrb[0].mxu0
        %v2753 = vadd.f32 %v2602, %v2752
        %v2754 = vpop.f32.mrb[0].mxu0
        %2755 = vmatprep.mubr.f32.mxu0 0.0
        %2756 = vmatmul.mubr.f32.gmra.mrb[0].mxu0 %v2632
        %v2757 = vpop.f32.mrb[0].mxu0
        %v2758 = vadd.f32 %v2602, %v2757
        %v2759 = vpop.f32.mrb[0].mxu0
        %2760 = vmatprep.mubr.f32.mxu0 0.0
        %2761 = vmatmul.mubr.f32.gmra.mrb[0].mxu0 %v2635
        %v2762 = vpop.f32.mrb[0].mxu0
        %v2763 = vadd.f32 %v2602, %v2762
        %v2764 = vpop.f32.mrb[0].mxu0
        %2765 = vmatprep.mubr.f32.mxu0 0.0
        %2766 = vmatmul.mubr.f32.gmra.mrb[0].mxu0 %v2638
        %v2767 = vpop.f32.mrb[0].mxu0
        %v2768 = vadd.f32 %v2602, %v2767
        %v2769 = vpop.f32.mrb[0].mxu0
        %2770 = vmatprep.mubr.f32.mxu0 0.0
        %2771 = vmatmul.mubr.f32.gmra.mrb[0].mxu0 %v2641
        %v2772 = vpop.f32.mrb[0].mxu0
        %v2773 = vadd.f32 %v2602, %v2772
        %v2774 = vpop.f32.mrb[0].mxu0
        %2775 = vmatprep.mubr.f32.mxu0 0.0
        %2776 = vmatmul.mubr.f32.gmra.mrb[0].mxu0 %v2644
        %v2777 = vpop.f32.mrb[0].mxu0
        %v2778 = vadd.f32 %v2602, %v2777
        %v2779 = vpop.f32.mrb[0].mxu0
        %2780 = vdwg.mxu0
        %v2781 = vxor.u32 %v2713, 2147483648
        %v2782 = vxor.u32 %v2718, 2147483648
        %v2783 = vxor.u32 %v2723, 2147483648
        %v2784 = vxor.u32 %v2728, 2147483648
        %v2785 = vxor.u32 %v2733, 2147483648
        %v2786 = vxor.u32 %v2738, 2147483648
        %v2787 = vxor.u32 %v2743, 2147483648
        %v2788 = vxor.u32 %v2748, 2147483648
        %v2789 = vxor.u32 %v2753, 2147483648
        %v2790 = vxor.u32 %v2758, 2147483648
        %v2791 = vxor.u32 %v2763, 2147483648
        %v2792 = vxor.u32 %v2768, 2147483648
        %v2793 = vxor.u32 %v2773, 2147483648
        %v2794 = vxor.u32 %v2778, 2147483648
        %v2795 = vmul.f32 %v2781, 1.442695
        %v2796 = vpow.pop %v2795
        %v2797 = vmul.f32 %v2782, 1.442695
        %v2798 = vpow.pop %v2797
        %v2799 = vmul.f32 %v2783, 1.442695
        %v2800 = vpow.pop %v2799
        %v2801 = vmul.f32 %v2784, 1.442695
        %v2802 = vpow.pop %v2801
        %v2803 = vmul.f32 %v2785, 1.442695
        %v2804 = vpow.pop %v2803
        %v2805 = vmul.f32 %v2786, 1.442695
        %v2806 = vpow.pop %v2805
        %v2807 = vmul.f32 %v2787, 1.442695
        %v2808 = vpow.pop %v2807
        %v2809 = vmul.f32 %v2788, 1.442695
        %v2810 = vpow.pop %v2809
        %v2811 = vmul.f32 %v2789, 1.442695
        %v2812 = vpow.pop %v2811
        %v2813 = vmul.f32 %v2790, 1.442695
        %v2814 = vpow.pop %v2813
        %v2815 = vmul.f32 %v2791, 1.442695
        %v2816 = vpow.pop %v2815
        %v2817 = vmul.f32 %v2792, 1.442695
        %v2818 = vpow.pop %v2817
        %v2819 = vmul.f32 %v2793, 1.442695
        %v2820 = vpow.pop %v2819
        %v2821 = vmul.f32 %v2794, 1.442695
        %v2822 = vpow.pop %v2821
        %v2823 = vadd.f32 %v2796, 1.0
        %v2824 = vadd.f32 %v2798, 1.0
        %v2825 = vadd.f32 %v2800, 1.0
        %v2826 = vadd.f32 %v2802, 1.0
        %v2827 = vadd.f32 %v2804, 1.0
        %v2828 = vadd.f32 %v2806, 1.0
        %v2829 = vadd.f32 %v2808, 1.0
        %v2830 = vadd.f32 %v2810, 1.0
        %v2831 = vadd.f32 %v2812, 1.0
        %v2832 = vadd.f32 %v2814, 1.0
        %v2833 = vadd.f32 %v2816, 1.0
        %v2834 = vadd.f32 %v2818, 1.0
        %v2835 = vadd.f32 %v2820, 1.0
        %v2836 = vadd.f32 %v2822, 1.0
        %v2837 = vrcp.pop %v2823
        %v2838 = vmul.f32 1.0, %v2837
        %v2839 = vrcp.pop %v2824
        %v2840 = vmul.f32 1.0, %v2839
        %v2841 = vrcp.pop %v2825
        %v2842 = vmul.f32 1.0, %v2841
        %v2843 = vrcp.pop %v2826
        %v2844 = vmul.f32 1.0, %v2843
        %v2845 = vrcp.pop %v2827
        %v2846 = vmul.f32 1.0, %v2845
        %v2847 = vrcp.pop %v2828
        %v2848 = vmul.f32 1.0, %v2847
        %v2849 = vrcp.pop %v2829
        %v2850 = vmul.f32 1.0, %v2849
        %v2851 = vrcp.pop %v2830
        %v2852 = vmul.f32 1.0, %v2851
        %v2853 = vrcp.pop %v2831
        %v2854 = vmul.f32 1.0, %v2853
        %v2855 = vrcp.pop %v2832
        %v2856 = vmul.f32 1.0, %v2855
        %v2857 = vrcp.pop %v2833
        %v2858 = vmul.f32 1.0, %v2857
        %v2859 = vrcp.pop %v2834
        %v2860 = vmul.f32 1.0, %v2859
        %v2861 = vrcp.pop %v2835
        %v2862 = vmul.f32 1.0, %v2861
        %v2863 = vrcp.pop %v2836
        %v2864 = vmul.f32 1.0, %v2863
        %v2865 = vmul.f32 %v2838, %v2286
        %v2866 = vmul.f32 %v2840, %v2287
        %v2867 = vmul.f32 %v2842, %v2288
        %v2868 = vmul.f32 %v2844, %v2289
        %v2869 = vmul.f32 %v2846, %v2290
        %v2870 = vmul.f32 %v2848, %v2291
        %v2871 = vmul.f32 %v2850, %v2292
        %v2872 = vmul.f32 %v2852, %v2293
        %v2873 = vmul.f32 %v2854, %v2294
        %v2874 = vmul.f32 %v2856, %v2295
        %v2875 = vmul.f32 %v2858, %v2296
        %v2876 = vmul.f32 %v2860, %v2297
        %v2877 = vmul.f32 %v2862, %v2298
        %v2878 = vmul.f32 %v2864, %v2299
        %2893 = vrot.lane.b32.xlu0 %v2713, 96
        %v2894 = vpop.permute.xlu0 %2893
        %2895 = vrot.lane.b32.xlu0 %v2718, 96
        %v2896 = vpop.permute.xlu0 %2895
        %2897 = vrot.lane.b32.xlu0 %v2723, 96
        %v2898 = vpop.permute.xlu0 %2897
        %2899 = vrot.lane.b32.xlu0 %v2728, 96
        %v2900 = vpop.permute.xlu0 %2899
        %2901 = vrot.lane.b32.xlu0 %v2733, 96
        %v2902 = vpop.permute.xlu0 %2901
        %2903 = vrot.lane.b32.xlu0 %v2738, 96
        %v2904 = vpop.permute.xlu0 %2903
        %2905 = vrot.lane.b32.xlu0 %v2743, 96
        %v2906 = vpop.permute.xlu0 %2905
        %2907 = vrot.lane.b32.xlu0 %v2748, 96
        %v2908 = vpop.permute.xlu0 %2907
        %2909 = vrot.lane.b32.xlu0 %v2753, 96
        %v2910 = vpop.permute.xlu0 %2909
        %2911 = vrot.lane.b32.xlu0 %v2758, 96
        %v2912 = vpop.permute.xlu0 %2911
        %2913 = vrot.lane.b32.xlu0 %v2763, 96
        %v2914 = vpop.permute.xlu0 %2913
        %2915 = vrot.lane.b32.xlu0 %v2768, 96
        %v2916 = vpop.permute.xlu0 %2915
        %2917 = vrot.lane.b32.xlu0 %v2773, 96
        %v2918 = vpop.permute.xlu0 %2917
        %2919 = vrot.lane.b32.xlu0 %v2778, 96
        %v2920 = vpop.permute.xlu0 %2919
        %v2935 = vadd.f32 %v2865, %v2894
        %v2936 = vadd.f32 %v2866, %v2896
        %v2937 = vadd.f32 %v2867, %v2898
        %v2938 = vadd.f32 %v2868, %v2900
        %v2939 = vadd.f32 %v2869, %v2902
        %v2940 = vadd.f32 %v2870, %v2904
        %v2941 = vadd.f32 %v2871, %v2906
        %v2942 = vadd.f32 %v2872, %v2908
        %v2943 = vadd.f32 %v2873, %v2910
        %v2944 = vadd.f32 %v2874, %v2912
        %v2945 = vadd.f32 %v2875, %v2914
        %v2946 = vadd.f32 %v2876, %v2916
        %v2947 = vadd.f32 %v2877, %v2918
        %v2948 = vadd.f32 %v2878, %v2920
        %v2949 = vld [vmem:[%s946] sm:$0xff]
        %v2950 = vld [vmem:[%s946 + $0x8] sm:$0xff]
        %v2951 = vld [vmem:[%s946 + $0x10] sm:$0xff]
        %v2952 = vld [vmem:[%s946 + $0x18] sm:$0xff]
        %v2953 = vld [vmem:[%s949] sm:$0x1]
        %v2955 = vlaneseq
        %v2956 = vshrl.u32 %v2955, 7
        %v2957 = vsub.s32 0, %v2956
        %v2958 = vrot.slane %v2953, %v2957
        %v2961 = vsel %vm2116, %v2935, 0
        %v2964 = vsel %vm2116, %v2936, 0
        %v2967 = vsel %vm2116, %v2937, 0
        %v2970 = vsel %vm2116, %v2938, 0
        %v2973 = vsel %vm2116, %v2939, 0
        %v2976 = vsel %vm2116, %v2940, 0
        %v2979 = vsel %vm2116, %v2941, 0
        %v2982 = vsel %vm2116, %v2942, 0
        %v2985 = vsel %vm2116, %v2943, 0
        %v2988 = vsel %vm2116, %v2944, 0
        %v2991 = vsel %vm2116, %v2945, 0
        %v2994 = vsel %vm2116, %v2946, 0
        %v2997 = vsel %vm2116, %v2947, 0
        %v3000 = vsel %vm2116, %v2948, 0
        %3002 = vmatprep.subr.mxu0 0.0
        %3003 = vmatpush1.msra.mxu0 %v2949
        %3004 = vmatprep.subr.mxu0 0.0
        %3005 = vmatpush1.msra.mxu0 %v2950
        %3006 = vmatprep.subr.mxu0 0.0
        %3007 = vmatpush1.msra.mxu0 %v2951
        %3008 = vmatprep.subr.mxu0 0.0
        %3009 = vmatpush1.msra.mxu0 %v2952
        %3010 = vmatprep.subr.mxu0 0.0
        %3011 = vmatpush1.msra.mxu0 0.0
        %3012 = vmatprep.subr.mxu0 0.0
        %3013 = vmatpush1.msra.mxu0 0.0
        %3014 = vmatprep.subr.mxu0 0.0
        %3015 = vmatpush1.msra.mxu0 0.0
        %3016 = vmatprep.subr.mxu0 0.0
        %3017 = vmatpush1.msra.mxu0 0.0
        %3018 = vmatprep.subr.mxu0 0.0
        %3019 = vmatpush1.msra.mxu0 0.0
        %3020 = vmatprep.subr.mxu0 0.0
        %3021 = vmatpush1.msra.mxu0 0.0
        %3022 = vmatprep.subr.mxu0 0.0
        %3023 = vmatpush1.msra.mxu0 0.0
        %3024 = vmatprep.subr.mxu0 0.0
        %3025 = vmatpush1.msra.mxu0 0.0
        %3026 = vmatprep.subr.mxu0 0.0
        %3027 = vmatpush1.msra.mxu0 0.0
        %3028 = vmatprep.subr.mxu0 0.0
        %3029 = vmatpush1.msra.mxu0 0.0
        %3030 = vmatprep.subr.mxu0 0.0
        %3031 = vmatpush1.msra.mxu0 0.0
        %3032 = vmatprep.subr.mxu0 0.0
        %3033 = vmatpush1.msra.mxu0 0.0
        %3034 = vmatprep.subr.mxu0 0.0
        %3035 = vmatpush1.msra.mxu0 0.0
        %3036 = vmatprep.subr.mxu0 0.0
        %3037 = vmatpush1.msra.mxu0 0.0
        %3038 = vmatprep.subr.mxu0 0.0
        %3039 = vmatpush1.msra.mxu0 0.0
        %3040 = vmatprep.subr.mxu0 0.0
        %3041 = vmatpush1.msra.mxu0 0.0
        %3042 = vmatprep.subr.mxu0 0.0
        %3043 = vmatpush1.msra.mxu0 0.0
        %3044 = vmatprep.subr.mxu0 0.0
        %3045 = vmatpush1.msra.mxu0 0.0
        %3046 = vmatprep.subr.mxu0 0.0
        %3047 = vmatpush1.msra.mxu0 0.0
        %3048 = vmatprep.subr.mxu0 0.0
        %3049 = vmatpush1.msra.mxu0 0.0
        %3050 = vmatprep.subr.mxu0 0.0
        %3051 = vmatpush1.msra.mxu0 0.0
        %3052 = vmatprep.subr.mxu0 0.0
        %3053 = vmatpush1.msra.mxu0 0.0
        %3054 = vmatprep.subr.mxu0 0.0
        %3055 = vmatpush1.msra.mxu0 0.0
        %3056 = vmatprep.subr.mxu0 0.0
        %3057 = vmatpush1.msra.mxu0 0.0
        %3058 = vmatprep.subr.mxu0 0.0
        %3059 = vmatpush1.msra.mxu0 0.0
        %3060 = vmatprep.subr.mxu0 0.0
        %3061 = vmatpush1.msra.mxu0 0.0
        %3062 = vmatprep.subr.mxu0 0.0
        %3063 = vmatpush1.msra.mxu0 0.0
        %3064 = vmatprep.subr.mxu0 0.0
        %3065 = vmatpush1.msra.mxu0 0.0
        %3066 = vmatprep.mubr.f32.mxu0 0.0
        %3067 = vmatmul.mubr.f32.gmra.mrb[0].mxu0 %v2961
        %v3068 = vpop.f32.mrb[0].mxu0
        %v3069 = vadd.f32 %v2958, %v3068
        %v3070 = vpop.f32.mrb[0].mxu0
        %3071 = vmatprep.mubr.f32.mxu0 0.0
        %3072 = vmatmul.mubr.f32.gmra.mrb[0].mxu0 %v2964
        %v3073 = vpop.f32.mrb[0].mxu0
        %v3074 = vadd.f32 %v2958, %v3073
        %v3075 = vpop.f32.mrb[0].mxu0
        %3076 = vmatprep.mubr.f32.mxu0 0.0
        %3077 = vmatmul.mubr.f32.gmra.mrb[0].mxu0 %v2967
        %v3078 = vpop.f32.mrb[0].mxu0
        %v3079 = vadd.f32 %v2958, %v3078
        %v3080 = vpop.f32.mrb[0].mxu0
        %3081 = vmatprep.mubr.f32.mxu0 0.0
        %3082 = vmatmul.mubr.f32.gmra.mrb[0].mxu0 %v2970
        %v3083 = vpop.f32.mrb[0].mxu0
        %v3084 = vadd.f32 %v2958, %v3083
        %v3085 = vpop.f32.mrb[0].mxu0
        %3086 = vmatprep.mubr.f32.mxu0 0.0
        %3087 = vmatmul.mubr.f32.gmra.mrb[0].mxu0 %v2973
        %v3088 = vpop.f32.mrb[0].mxu0
        %v3089 = vadd.f32 %v2958, %v3088
        %v3090 = vpop.f32.mrb[0].mxu0
        %3091 = vmatprep.mubr.f32.mxu0 0.0
        %3092 = vmatmul.mubr.f32.gmra.mrb[0].mxu0 %v2976
        %v3093 = vpop.f32.mrb[0].mxu0
        %v3094 = vadd.f32 %v2958, %v3093
        %v3095 = vpop.f32.mrb[0].mxu0
        %3096 = vmatprep.mubr.f32.mxu0 0.0
        %3097 = vmatmul.mubr.f32.gmra.mrb[0].mxu0 %v2979
        %v3098 = vpop.f32.mrb[0].mxu0
        %v3099 = vadd.f32 %v2958, %v3098
        %v3100 = vpop.f32.mrb[0].mxu0
        %3101 = vmatprep.mubr.f32.mxu0 0.0
        %3102 = vmatmul.mubr.f32.gmra.mrb[0].mxu0 %v2982
        %v3103 = vpop.f32.mrb[0].mxu0
        %v3104 = vadd.f32 %v2958, %v3103
        %v3105 = vpop.f32.mrb[0].mxu0
        %3106 = vmatprep.mubr.f32.mxu0 0.0
        %3107 = vmatmul.mubr.f32.gmra.mrb[0].mxu0 %v2985
        %v3108 = vpop.f32.mrb[0].mxu0
        %v3109 = vadd.f32 %v2958, %v3108
        %v3110 = vpop.f32.mrb[0].mxu0
        %3111 = vmatprep.mubr.f32.mxu0 0.0
        %3112 = vmatmul.mubr.f32.gmra.mrb[0].mxu0 %v2988
        %v3113 = vpop.f32.mrb[0].mxu0
        %v3114 = vadd.f32 %v2958, %v3113
        %v3115 = vpop.f32.mrb[0].mxu0
        %3116 = vmatprep.mubr.f32.mxu0 0.0
        %3117 = vmatmul.mubr.f32.gmra.mrb[0].mxu0 %v2991
        %v3118 = vpop.f32.mrb[0].mxu0
        %v3119 = vadd.f32 %v2958, %v3118
        %v3120 = vpop.f32.mrb[0].mxu0
        %3121 = vmatprep.mubr.f32.mxu0 0.0
        %3122 = vmatmul.mubr.f32.gmra.mrb[0].mxu0 %v2994
        %v3123 = vpop.f32.mrb[0].mxu0
        %v3124 = vadd.f32 %v2958, %v3123
        %v3125 = vpop.f32.mrb[0].mxu0
        %3126 = vmatprep.mubr.f32.mxu0 0.0
        %3127 = vmatmul.mubr.f32.gmra.mrb[0].mxu0 %v2997
        %v3128 = vpop.f32.mrb[0].mxu0
        %v3129 = vadd.f32 %v2958, %v3128
        %v3130 = vpop.f32.mrb[0].mxu0
        %3131 = vmatprep.mubr.f32.mxu0 0.0
        %3132 = vmatmul.mubr.f32.gmra.mrb[0].mxu0 %v3000
        %v3133 = vpop.f32.mrb[0].mxu0
        %v3134 = vadd.f32 %v2958, %v3133
        %v3135 = vpop.f32.mrb[0].mxu0
        %3136 = vdwg.mxu0
        %s3137 = smul.u32 %s40, 128
        %s3138 = sld [smem:[#allocation7 + %s3137]]
        %v3139 = vstv %s3138
        %v3140 = vadd.f32 %v2102, %v3139
        %v3141 = vadd.f32 %v2103, %v3139
        %v3142 = vadd.f32 %v2104, %v3139
        %v3143 = vadd.f32 %v2105, %v3139
        %v3144 = vadd.f32 %v2106, %v3139
        %v3145 = vadd.f32 %v2107, %v3139
        %v3146 = vadd.f32 %v2108, %v3139
        %v3147 = vadd.f32 %v2109, %v3139
        %v3148 = vadd.f32 %v2110, %v3139
        %v3149 = vadd.f32 %v2111, %v3139
        %v3150 = vadd.f32 %v2112, %v3139
        %v3151 = vadd.f32 %v2113, %v3139
        %v3152 = vadd.f32 %v2114, %v3139
        %v3153 = vadd.f32 %v2115, %v3139
        %v3154 = vld [vmem:[#allocation4] sm:$0xff]
        %v3155 = vld [vmem:[#allocation4 + $0x8] sm:$0xff]
        %v3156 = vld [vmem:[#allocation4 + $0x10] sm:$0xff]
        %v3157 = vld [vmem:[#allocation4 + $0x18] sm:$0xff]
        %v3158 = vld [vmem:[#allocation4 + $0x20] sm:$0xff]
        %v3159 = vld [vmem:[#allocation4 + $0x28] sm:$0xff]
        %v3160 = vld [vmem:[#allocation4 + $0x30] sm:$0xff]
        %v3161 = vld [vmem:[#allocation4 + $0x38] sm:$0xff]
        %v3162 = vld [vmem:[#allocation4 + $0x40] sm:$0xff]
        %v3163 = vld [vmem:[#allocation4 + $0x48] sm:$0xff]
        %v3164 = vld [vmem:[#allocation4 + $0x50] sm:$0xff]
        %v3165 = vld [vmem:[#allocation4 + $0x58] sm:$0xff]
        %v3166 = vld [vmem:[#allocation4 + $0x60] sm:$0xff]
        %v3167 = vld [vmem:[#allocation4 + $0x68] sm:$0xff]
        %s3168 = smul.u32 %s40, 8
        %s3169 = smul.u32 %s3168, 128
        %s3170 = sld [smem:[#allocation5 + %s3169]]
        %v3171 = vstv %s3170
        %v3172 = vmul.f32 %v3154, %v3171
        %v3173 = vmul.f32 %v3155, %v3171
        %v3174 = vmul.f32 %v3156, %v3171
        %v3175 = vmul.f32 %v3157, %v3171
        %v3176 = vmul.f32 %v3158, %v3171
        %v3177 = vmul.f32 %v3159, %v3171
        %v3178 = vmul.f32 %v3160, %v3171
        %v3179 = vmul.f32 %v3161, %v3171
        %v3180 = vmul.f32 %v3162, %v3171
        %v3181 = vmul.f32 %v3163, %v3171
        %v3182 = vmul.f32 %v3164, %v3171
        %v3183 = vmul.f32 %v3165, %v3171
        %v3184 = vmul.f32 %v3166, %v3171
        %v3185 = vmul.f32 %v3167, %v3171
        %v3186 = vadd.f32 %v3140, %v3172
        %v3187 = vadd.f32 %v3141, %v3173
        %v3188 = vadd.f32 %v3142, %v3174
        %v3189 = vadd.f32 %v3143, %v3175
        %v3190 = vadd.f32 %v3144, %v3176
        %v3191 = vadd.f32 %v3145, %v3177
        %v3192 = vadd.f32 %v3146, %v3178
        %v3193 = vadd.f32 %v3147, %v3179
        %v3194 = vadd.f32 %v3148, %v3180
        %v3195 = vadd.f32 %v3149, %v3181
        %v3196 = vadd.f32 %v3150, %v3182
        %v3197 = vadd.f32 %v3151, %v3183
        %v3198 = vadd.f32 %v3152, %v3184
        %v3199 = vadd.f32 %v3153, %v3185
        %s3200 = scalar_lea.vmem [#allocation4], 112
        %v3201 = vld [vmem:[%s3200] sm:$0xff]
        %v3202 = vld [vmem:[%s3200 + $0x8] sm:$0xff]
        %v3203 = vld [vmem:[%s3200 + $0x10] sm:$0xff]
        %v3204 = vld [vmem:[%s3200 + $0x18] sm:$0xff]
        %v3205 = vld [vmem:[%s3200 + $0x20] sm:$0xff]
        %v3206 = vld [vmem:[%s3200 + $0x28] sm:$0xff]
        %v3207 = vld [vmem:[%s3200 + $0x30] sm:$0xff]
        %v3208 = vld [vmem:[%s3200 + $0x38] sm:$0xff]
        %v3209 = vld [vmem:[%s3200 + $0x40] sm:$0xff]
        %v3210 = vld [vmem:[%s3200 + $0x48] sm:$0xff]
        %v3211 = vld [vmem:[%s3200 + $0x50] sm:$0xff]
        %v3212 = vld [vmem:[%s3200 + $0x58] sm:$0xff]
        %v3213 = vld [vmem:[%s3200 + $0x60] sm:$0xff]
        %v3214 = vld [vmem:[%s3200 + $0x68] sm:$0xff]
        %s3215 = sadd.s32 %s3168, 1
        %s3216 = smul.u32 %s3215, 128
        %s3217 = sld [smem:[#allocation5 + %s3216]]
        %v3218 = vstv %s3217
        %v3219 = vmul.f32 %v3201, %v3218
        %v3220 = vmul.f32 %v3202, %v3218
        %v3221 = vmul.f32 %v3203, %v3218
        %v3222 = vmul.f32 %v3204, %v3218
        %v3223 = vmul.f32 %v3205, %v3218
        %v3224 = vmul.f32 %v3206, %v3218
        %v3225 = vmul.f32 %v3207, %v3218
        %v3226 = vmul.f32 %v3208, %v3218
        %v3227 = vmul.f32 %v3209, %v3218
        %v3228 = vmul.f32 %v3210, %v3218
        %v3229 = vmul.f32 %v3211, %v3218
        %v3230 = vmul.f32 %v3212, %v3218
        %v3231 = vmul.f32 %v3213, %v3218
        %v3232 = vmul.f32 %v3214, %v3218
        %v3233 = vadd.f32 %v3186, %v3219
        %v3234 = vadd.f32 %v3187, %v3220
        %v3235 = vadd.f32 %v3188, %v3221
        %v3236 = vadd.f32 %v3189, %v3222
        %v3237 = vadd.f32 %v3190, %v3223
        %v3238 = vadd.f32 %v3191, %v3224
        %v3239 = vadd.f32 %v3192, %v3225
        %v3240 = vadd.f32 %v3193, %v3226
        %v3241 = vadd.f32 %v3194, %v3227
        %v3242 = vadd.f32 %v3195, %v3228
        %v3243 = vadd.f32 %v3196, %v3229
        %v3244 = vadd.f32 %v3197, %v3230
        %v3245 = vadd.f32 %v3198, %v3231
        %v3246 = vadd.f32 %v3199, %v3232
        %s3247 = scalar_lea.vmem [#allocation4], 224
        %v3248 = vld [vmem:[%s3247] sm:$0xff]
        %v3249 = vld [vmem:[%s3247 + $0x8] sm:$0xff]
        %v3250 = vld [vmem:[%s3247 + $0x10] sm:$0xff]
        %v3251 = vld [vmem:[%s3247 + $0x18] sm:$0xff]
        %v3252 = vld [vmem:[%s3247 + $0x20] sm:$0xff]
        %v3253 = vld [vmem:[%s3247 + $0x28] sm:$0xff]
        %v3254 = vld [vmem:[%s3247 + $0x30] sm:$0xff]
        %v3255 = vld [vmem:[%s3247 + $0x38] sm:$0xff]
        %v3256 = vld [vmem:[%s3247 + $0x40] sm:$0xff]
        %v3257 = vld [vmem:[%s3247 + $0x48] sm:$0xff]
        %v3258 = vld [vmem:[%s3247 + $0x50] sm:$0xff]
        %v3259 = vld [vmem:[%s3247 + $0x58] sm:$0xff]
        %v3260 = vld [vmem:[%s3247 + $0x60] sm:$0xff]
        %v3261 = vld [vmem:[%s3247 + $0x68] sm:$0xff]
        %s3262 = sadd.s32 %s3168, 2
        %s3263 = smul.u32 %s3262, 128
        %s3264 = sld [smem:[#allocation5 + %s3263]]
        %v3265 = vstv %s3264
        %v3266 = vmul.f32 %v3248, %v3265
        %v3267 = vmul.f32 %v3249, %v3265
        %v3268 = vmul.f32 %v3250, %v3265
        %v3269 = vmul.f32 %v3251, %v3265
        %v3270 = vmul.f32 %v3252, %v3265
        %v3271 = vmul.f32 %v3253, %v3265
        %v3272 = vmul.f32 %v3254, %v3265
        %v3273 = vmul.f32 %v3255, %v3265
        %v3274 = vmul.f32 %v3256, %v3265
        %v3275 = vmul.f32 %v3257, %v3265
        %v3276 = vmul.f32 %v3258, %v3265
        %v3277 = vmul.f32 %v3259, %v3265
        %v3278 = vmul.f32 %v3260, %v3265
        %v3279 = vmul.f32 %v3261, %v3265
        %v3280 = vadd.f32 %v3233, %v3266
        %v3281 = vadd.f32 %v3234, %v3267
        %v3282 = vadd.f32 %v3235, %v3268
        %v3283 = vadd.f32 %v3236, %v3269
        %v3284 = vadd.f32 %v3237, %v3270
        %v3285 = vadd.f32 %v3238, %v3271
        %v3286 = vadd.f32 %v3239, %v3272
        %v3287 = vadd.f32 %v3240, %v3273
        %v3288 = vadd.f32 %v3241, %v3274
        %v3289 = vadd.f32 %v3242, %v3275
        %v3290 = vadd.f32 %v3243, %v3276
        %v3291 = vadd.f32 %v3244, %v3277
        %v3292 = vadd.f32 %v3245, %v3278
        %v3293 = vadd.f32 %v3246, %v3279
        %s3294 = scalar_lea.vmem [#allocation4], 336
        %v3295 = vld [vmem:[%s3294] sm:$0xff]
        %v3296 = vld [vmem:[%s3294 + $0x8] sm:$0xff]
        %v3297 = vld [vmem:[%s3294 + $0x10] sm:$0xff]
        %v3298 = vld [vmem:[%s3294 + $0x18] sm:$0xff]
        %v3299 = vld [vmem:[%s3294 + $0x20] sm:$0xff]
        %v3300 = vld [vmem:[%s3294 + $0x28] sm:$0xff]
        %v3301 = vld [vmem:[%s3294 + $0x30] sm:$0xff]
        %v3302 = vld [vmem:[%s3294 + $0x38] sm:$0xff]
        %v3303 = vld [vmem:[%s3294 + $0x40] sm:$0xff]
        %v3304 = vld [vmem:[%s3294 + $0x48] sm:$0xff]
        %v3305 = vld [vmem:[%s3294 + $0x50] sm:$0xff]
        %v3306 = vld [vmem:[%s3294 + $0x58] sm:$0xff]
        %v3307 = vld [vmem:[%s3294 + $0x60] sm:$0xff]
        %v3308 = vld [vmem:[%s3294 + $0x68] sm:$0xff]
        %s3309 = sadd.s32 %s3168, 3
        %s3310 = smul.u32 %s3309, 128
        %s3311 = sld [smem:[#allocation5 + %s3310]]
        %v3312 = vstv %s3311
        %v3313 = vmul.f32 %v3295, %v3312
        %v3314 = vmul.f32 %v3296, %v3312
        %v3315 = vmul.f32 %v3297, %v3312
        %v3316 = vmul.f32 %v3298, %v3312
        %v3317 = vmul.f32 %v3299, %v3312
        %v3318 = vmul.f32 %v3300, %v3312
        %v3319 = vmul.f32 %v3301, %v3312
        %v3320 = vmul.f32 %v3302, %v3312
        %v3321 = vmul.f32 %v3303, %v3312
        %v3322 = vmul.f32 %v3304, %v3312
        %v3323 = vmul.f32 %v3305, %v3312
        %v3324 = vmul.f32 %v3306, %v3312
        %v3325 = vmul.f32 %v3307, %v3312
        %v3326 = vmul.f32 %v3308, %v3312
        %v3327 = vadd.f32 %v3280, %v3313
        %v3328 = vadd.f32 %v3281, %v3314
        %v3329 = vadd.f32 %v3282, %v3315
        %v3330 = vadd.f32 %v3283, %v3316
        %v3331 = vadd.f32 %v3284, %v3317
        %v3332 = vadd.f32 %v3285, %v3318
        %v3333 = vadd.f32 %v3286, %v3319
        %v3334 = vadd.f32 %v3287, %v3320
        %v3335 = vadd.f32 %v3288, %v3321
        %v3336 = vadd.f32 %v3289, %v3322
        %v3337 = vadd.f32 %v3290, %v3323
        %v3338 = vadd.f32 %v3291, %v3324
        %v3339 = vadd.f32 %v3292, %v3325
        %v3340 = vadd.f32 %v3293, %v3326
        %s3341 = scalar_lea.vmem [#allocation4], 448
        %v3342 = vld [vmem:[%s3341] sm:$0xff]
        %v3343 = vld [vmem:[%s3341 + $0x8] sm:$0xff]
        %v3344 = vld [vmem:[%s3341 + $0x10] sm:$0xff]
        %v3345 = vld [vmem:[%s3341 + $0x18] sm:$0xff]
        %v3346 = vld [vmem:[%s3341 + $0x20] sm:$0xff]
        %v3347 = vld [vmem:[%s3341 + $0x28] sm:$0xff]
        %v3348 = vld [vmem:[%s3341 + $0x30] sm:$0xff]
        %v3349 = vld [vmem:[%s3341 + $0x38] sm:$0xff]
        %v3350 = vld [vmem:[%s3341 + $0x40] sm:$0xff]
        %v3351 = vld [vmem:[%s3341 + $0x48] sm:$0xff]
        %v3352 = vld [vmem:[%s3341 + $0x50] sm:$0xff]
        %v3353 = vld [vmem:[%s3341 + $0x58] sm:$0xff]
        %v3354 = vld [vmem:[%s3341 + $0x60] sm:$0xff]
        %v3355 = vld [vmem:[%s3341 + $0x68] sm:$0xff]
        %s3356 = sadd.s32 %s3168, 4
        %s3357 = smul.u32 %s3356, 128
        %s3358 = sld [smem:[#allocation5 + %s3357]]
        %v3359 = vstv %s3358
        %v3360 = vmul.f32 %v3342, %v3359
        %v3361 = vmul.f32 %v3343, %v3359
        %v3362 = vmul.f32 %v3344, %v3359
        %v3363 = vmul.f32 %v3345, %v3359
        %v3364 = vmul.f32 %v3346, %v3359
        %v3365 = vmul.f32 %v3347, %v3359
        %v3366 = vmul.f32 %v3348, %v3359
        %v3367 = vmul.f32 %v3349, %v3359
        %v3368 = vmul.f32 %v3350, %v3359
        %v3369 = vmul.f32 %v3351, %v3359
        %v3370 = vmul.f32 %v3352, %v3359
        %v3371 = vmul.f32 %v3353, %v3359
        %v3372 = vmul.f32 %v3354, %v3359
        %v3373 = vmul.f32 %v3355, %v3359
        %v3374 = vadd.f32 %v3327, %v3360
        %v3375 = vadd.f32 %v3328, %v3361
        %v3376 = vadd.f32 %v3329, %v3362
        %v3377 = vadd.f32 %v3330, %v3363
        %v3378 = vadd.f32 %v3331, %v3364
        %v3379 = vadd.f32 %v3332, %v3365
        %v3380 = vadd.f32 %v3333, %v3366
        %v3381 = vadd.f32 %v3334, %v3367
        %v3382 = vadd.f32 %v3335, %v3368
        %v3383 = vadd.f32 %v3336, %v3369
        %v3384 = vadd.f32 %v3337, %v3370
        %v3385 = vadd.f32 %v3338, %v3371
        %v3386 = vadd.f32 %v3339, %v3372
        %v3387 = vadd.f32 %v3340, %v3373
        %s3388 = scalar_lea.vmem [#allocation4], 560
        %v3389 = vld [vmem:[%s3388] sm:$0xff]
        %v3390 = vld [vmem:[%s3388 + $0x8] sm:$0xff]
        %v3391 = vld [vmem:[%s3388 + $0x10] sm:$0xff]
        %v3392 = vld [vmem:[%s3388 + $0x18] sm:$0xff]
        %v3393 = vld [vmem:[%s3388 + $0x20] sm:$0xff]
        %v3394 = vld [vmem:[%s3388 + $0x28] sm:$0xff]
        %v3395 = vld [vmem:[%s3388 + $0x30] sm:$0xff]
        %v3396 = vld [vmem:[%s3388 + $0x38] sm:$0xff]
        %v3397 = vld [vmem:[%s3388 + $0x40] sm:$0xff]
        %v3398 = vld [vmem:[%s3388 + $0x48] sm:$0xff]
        %v3399 = vld [vmem:[%s3388 + $0x50] sm:$0xff]
        %v3400 = vld [vmem:[%s3388 + $0x58] sm:$0xff]
        %v3401 = vld [vmem:[%s3388 + $0x60] sm:$0xff]
        %v3402 = vld [vmem:[%s3388 + $0x68] sm:$0xff]
        %s3403 = sadd.s32 %s3168, 5
        %s3404 = smul.u32 %s3403, 128
        %s3405 = sld [smem:[#allocation5 + %s3404]]
        %v3406 = vstv %s3405
        %v3407 = vmul.f32 %v3389, %v3406
        %v3408 = vmul.f32 %v3390, %v3406
        %v3409 = vmul.f32 %v3391, %v3406
        %v3410 = vmul.f32 %v3392, %v3406
        %v3411 = vmul.f32 %v3393, %v3406
        %v3412 = vmul.f32 %v3394, %v3406
        %v3413 = vmul.f32 %v3395, %v3406
        %v3414 = vmul.f32 %v3396, %v3406
        %v3415 = vmul.f32 %v3397, %v3406
        %v3416 = vmul.f32 %v3398, %v3406
        %v3417 = vmul.f32 %v3399, %v3406
        %v3418 = vmul.f32 %v3400, %v3406
        %v3419 = vmul.f32 %v3401, %v3406
        %v3420 = vmul.f32 %v3402, %v3406
        %v3421 = vadd.f32 %v3374, %v3407
        %v3422 = vadd.f32 %v3375, %v3408
        %v3423 = vadd.f32 %v3376, %v3409
        %v3424 = vadd.f32 %v3377, %v3410
        %v3425 = vadd.f32 %v3378, %v3411
        %v3426 = vadd.f32 %v3379, %v3412
        %v3427 = vadd.f32 %v3380, %v3413
        %v3428 = vadd.f32 %v3381, %v3414
        %v3429 = vadd.f32 %v3382, %v3415
        %v3430 = vadd.f32 %v3383, %v3416
        %v3431 = vadd.f32 %v3384, %v3417
        %v3432 = vadd.f32 %v3385, %v3418
        %v3433 = vadd.f32 %v3386, %v3419
        %v3434 = vadd.f32 %v3387, %v3420
        %s3435 = scalar_lea.vmem [#allocation4], 672
        %v3436 = vld [vmem:[%s3435] sm:$0xff]
        %v3437 = vld [vmem:[%s3435 + $0x8] sm:$0xff]
        %v3438 = vld [vmem:[%s3435 + $0x10] sm:$0xff]
        %v3439 = vld [vmem:[%s3435 + $0x18] sm:$0xff]
        %v3440 = vld [vmem:[%s3435 + $0x20] sm:$0xff]
        %v3441 = vld [vmem:[%s3435 + $0x28] sm:$0xff]
        %v3442 = vld [vmem:[%s3435 + $0x30] sm:$0xff]
        %v3443 = vld [vmem:[%s3435 + $0x38] sm:$0xff]
        %v3444 = vld [vmem:[%s3435 + $0x40] sm:$0xff]
        %v3445 = vld [vmem:[%s3435 + $0x48] sm:$0xff]
        %v3446 = vld [vmem:[%s3435 + $0x50] sm:$0xff]
        %v3447 = vld [vmem:[%s3435 + $0x58] sm:$0xff]
        %v3448 = vld [vmem:[%s3435 + $0x60] sm:$0xff]
        %v3449 = vld [vmem:[%s3435 + $0x68] sm:$0xff]
        %s3450 = sadd.s32 %s3168, 6
        %s3451 = smul.u32 %s3450, 128
        %s3452 = sld [smem:[#allocation5 + %s3451]]
        %v3453 = vstv %s3452
        %v3454 = vmul.f32 %v3436, %v3453
        %v3455 = vmul.f32 %v3437, %v3453
        %v3456 = vmul.f32 %v3438, %v3453
        %v3457 = vmul.f32 %v3439, %v3453
        %v3458 = vmul.f32 %v3440, %v3453
        %v3459 = vmul.f32 %v3441, %v3453
        %v3460 = vmul.f32 %v3442, %v3453
        %v3461 = vmul.f32 %v3443, %v3453
        %v3462 = vmul.f32 %v3444, %v3453
        %v3463 = vmul.f32 %v3445, %v3453
        %v3464 = vmul.f32 %v3446, %v3453
        %v3465 = vmul.f32 %v3447, %v3453
        %v3466 = vmul.f32 %v3448, %v3453
        %v3467 = vmul.f32 %v3449, %v3453
        %v3468 = vadd.f32 %v3421, %v3454
        %v3469 = vadd.f32 %v3422, %v3455
        %v3470 = vadd.f32 %v3423, %v3456
        %v3471 = vadd.f32 %v3424, %v3457
        %v3472 = vadd.f32 %v3425, %v3458
        %v3473 = vadd.f32 %v3426, %v3459
        %v3474 = vadd.f32 %v3427, %v3460
        %v3475 = vadd.f32 %v3428, %v3461
        %v3476 = vadd.f32 %v3429, %v3462
        %v3477 = vadd.f32 %v3430, %v3463
        %v3478 = vadd.f32 %v3431, %v3464
        %v3479 = vadd.f32 %v3432, %v3465
        %v3480 = vadd.f32 %v3433, %v3466
        %v3481 = vadd.f32 %v3434, %v3467
        %s3482 = scalar_lea.vmem [#allocation4], 784
        %v3483 = vld [vmem:[%s3482] sm:$0xff]
        %v3484 = vld [vmem:[%s3482 + $0x8] sm:$0xff]
        %v3485 = vld [vmem:[%s3482 + $0x10] sm:$0xff]
        %v3486 = vld [vmem:[%s3482 + $0x18] sm:$0xff]
        %v3487 = vld [vmem:[%s3482 + $0x20] sm:$0xff]
        %v3488 = vld [vmem:[%s3482 + $0x28] sm:$0xff]
        %v3489 = vld [vmem:[%s3482 + $0x30] sm:$0xff]
        %v3490 = vld [vmem:[%s3482 + $0x38] sm:$0xff]
        %v3491 = vld [vmem:[%s3482 + $0x40] sm:$0xff]
        %v3492 = vld [vmem:[%s3482 + $0x48] sm:$0xff]
        %v3493 = vld [vmem:[%s3482 + $0x50] sm:$0xff]
        %v3494 = vld [vmem:[%s3482 + $0x58] sm:$0xff]
        %v3495 = vld [vmem:[%s3482 + $0x60] sm:$0xff]
        %v3496 = vld [vmem:[%s3482 + $0x68] sm:$0xff]
        %s3497 = sadd.s32 %s3168, 7
        %s3498 = smul.u32 %s3497, 128
        %s3499 = sld [smem:[#allocation5 + %s3498]]
        %v3500 = vstv %s3499
        %v3501 = vmul.f32 %v3483, %v3500
        %v3502 = vmul.f32 %v3484, %v3500
        %v3503 = vmul.f32 %v3485, %v3500
        %v3504 = vmul.f32 %v3486, %v3500
        %v3505 = vmul.f32 %v3487, %v3500
        %v3506 = vmul.f32 %v3488, %v3500
        %v3507 = vmul.f32 %v3489, %v3500
        %v3508 = vmul.f32 %v3490, %v3500
        %v3509 = vmul.f32 %v3491, %v3500
        %v3510 = vmul.f32 %v3492, %v3500
        %v3511 = vmul.f32 %v3493, %v3500
        %v3512 = vmul.f32 %v3494, %v3500
        %v3513 = vmul.f32 %v3495, %v3500
        %v3514 = vmul.f32 %v3496, %v3500
        %v3515 = vadd.f32 %v3468, %v3501
        %v3516 = vadd.f32 %v3469, %v3502
        %v3517 = vadd.f32 %v3470, %v3503
        %v3518 = vadd.f32 %v3471, %v3504
        %v3519 = vadd.f32 %v3472, %v3505
        %v3520 = vadd.f32 %v3473, %v3506
        %v3521 = vadd.f32 %v3474, %v3507
        %v3522 = vadd.f32 %v3475, %v3508
        %v3523 = vadd.f32 %v3476, %v3509
        %v3524 = vadd.f32 %v3477, %v3510
        %v3525 = vadd.f32 %v3478, %v3511
        %v3526 = vadd.f32 %v3479, %v3512
        %v3527 = vadd.f32 %v3480, %v3513
        %v3528 = vadd.f32 %v3481, %v3514
        %3543 = vrot.lane.b32.xlu0 %v3069, 96
        %v3544 = vpop.permute.xlu0 %3543
        %3545 = vrot.lane.b32.xlu0 %v3074, 96
        %v3546 = vpop.permute.xlu0 %3545
        %3547 = vrot.lane.b32.xlu0 %v3079, 96
        %v3548 = vpop.permute.xlu0 %3547
        %3549 = vrot.lane.b32.xlu0 %v3084, 96
        %v3550 = vpop.permute.xlu0 %3549
        %3551 = vrot.lane.b32.xlu0 %v3089, 96
        %v3552 = vpop.permute.xlu0 %3551
        %3553 = vrot.lane.b32.xlu0 %v3094, 96
        %v3554 = vpop.permute.xlu0 %3553
        %3555 = vrot.lane.b32.xlu0 %v3099, 96
        %v3556 = vpop.permute.xlu0 %3555
        %3557 = vrot.lane.b32.xlu0 %v3104, 96
        %v3558 = vpop.permute.xlu0 %3557
        %3559 = vrot.lane.b32.xlu0 %v3109, 96
        %v3560 = vpop.permute.xlu0 %3559
        %3561 = vrot.lane.b32.xlu0 %v3114, 96
        %v3562 = vpop.permute.xlu0 %3561
        %3563 = vrot.lane.b32.xlu0 %v3119, 96
        %v3564 = vpop.permute.xlu0 %3563
        %3565 = vrot.lane.b32.xlu0 %v3124, 96
        %v3566 = vpop.permute.xlu0 %3565
        %3567 = vrot.lane.b32.xlu0 %v3129, 96
        %v3568 = vpop.permute.xlu0 %3567
        %3569 = vrot.lane.b32.xlu0 %v3134, 96
        %v3570 = vpop.permute.xlu0 %3569
        %vm3571 = vcmask 64512
        %v3572 = vsel %vm3571, %v3069, 0
        %v3574 = vsel %vm3571, %v3074, 0
        %v3576 = vsel %vm3571, %v3079, 0
        %v3578 = vsel %vm3571, %v3084, 0
        %v3580 = vsel %vm3571, %v3089, 0
        %v3582 = vsel %vm3571, %v3094, 0
        %v3584 = vsel %vm3571, %v3099, 0
        %v3586 = vsel %vm3571, %v3104, 0
        %v3588 = vsel %vm3571, %v3109, 0
        %v3590 = vsel %vm3571, %v3114, 0
        %v3592 = vsel %vm3571, %v3119, 0
        %v3594 = vsel %vm3571, %v3124, 0
        %v3596 = vsel %vm3571, %v3129, 0
        %v3598 = vsel %vm3571, %v3134, 0
        %v3600 = vsel %vm3571, %v3544, 0
        %v3602 = vsel %vm3571, %v3546, 0
        %v3604 = vsel %vm3571, %v3548, 0
        %v3606 = vsel %vm3571, %v3550, 0
        %v3608 = vsel %vm3571, %v3552, 0
        %v3610 = vsel %vm3571, %v3554, 0
        %v3612 = vsel %vm3571, %v3556, 0
        %v3614 = vsel %vm3571, %v3558, 0
        %v3616 = vsel %vm3571, %v3560, 0
        %v3618 = vsel %vm3571, %v3562, 0
        %v3620 = vsel %vm3571, %v3564, 0
        %v3622 = vsel %vm3571, %v3566, 0
        %v3624 = vsel %vm3571, %v3568, 0
        %v3626 = vsel %vm3571, %v3570, 0
        %3628 = vmatprep.subr.mxu0 0.0
        %3629 = vmatpush1.xpose.msra.mxu0 %v3600
        %3630 = vmatprep.subr.mxu0 0.0
        %3631 = vmatpush1.xpose.msra.mxu0 %v3602
        %3632 = vmatprep.subr.mxu0 0.0
        %3633 = vmatpush1.xpose.msra.mxu0 %v3604
        %3634 = vmatprep.subr.mxu0 0.0
        %3635 = vmatpush1.xpose.msra.mxu0 %v3606
        %3636 = vmatprep.subr.mxu0 0.0
        %3637 = vmatpush1.xpose.msra.mxu0 %v3608
        %3638 = vmatprep.subr.mxu0 0.0
        %3639 = vmatpush1.xpose.msra.mxu0 %v3610
        %3640 = vmatprep.subr.mxu0 0.0
        %3641 = vmatpush1.xpose.msra.mxu0 %v3612
        %3642 = vmatprep.subr.mxu0 0.0
        %3643 = vmatpush1.xpose.msra.mxu0 %v3614
        %3644 = vmatprep.subr.mxu0 0.0
        %3645 = vmatpush1.xpose.msra.mxu0 %v3616
        %3646 = vmatprep.subr.mxu0 0.0
        %3647 = vmatpush1.xpose.msra.mxu0 %v3618
        %3648 = vmatprep.subr.mxu0 0.0
        %3649 = vmatpush1.xpose.msra.mxu0 %v3620
        %3650 = vmatprep.subr.mxu0 0.0
        %3651 = vmatpush1.xpose.msra.mxu0 %v3622
        %3652 = vmatprep.subr.mxu0 0.0
        %3653 = vmatpush1.xpose.msra.mxu0 %v3624
        %3654 = vmatprep.subr.mxu0 0.0
        %3655 = vmatpush1.xpose.msra.mxu0 %v3626
        %3656 = vmatprep.subr.mxu0 0.0
        %3657 = vmatpush1.xpose.msra.mxu0 0.0
        %3658 = vmatprep.subr.mxu0 0.0
        %3659 = vmatpush1.xpose.msra.mxu0 0.0
        %3660 = vmatprep.subr.mxu0 0.0
        %3661 = vmatpush1.xpose.msra.mxu0 0.0
        %3662 = vmatprep.subr.mxu0 0.0
        %3663 = vmatpush1.xpose.msra.mxu0 0.0
        %3664 = vmatprep.subr.mxu0 0.0
        %3665 = vmatpush1.xpose.msra.mxu0 0.0
        %3666 = vmatprep.subr.mxu0 0.0
        %3667 = vmatpush1.xpose.msra.mxu0 0.0
        %3668 = vmatprep.subr.mxu0 0.0
        %3669 = vmatpush1.xpose.msra.mxu0 0.0
        %3670 = vmatprep.subr.mxu0 0.0
        %3671 = vmatpush1.xpose.msra.mxu0 0.0
        %3672 = vmatprep.subr.mxu0 0.0
        %3673 = vmatpush1.xpose.msra.mxu0 0.0
        %3674 = vmatprep.subr.mxu0 0.0
        %3675 = vmatpush1.xpose.msra.mxu0 0.0
        %3676 = vmatprep.subr.mxu0 0.0
        %3677 = vmatpush1.xpose.msra.mxu0 0.0
        %3678 = vmatprep.subr.mxu0 0.0
        %3679 = vmatpush1.xpose.msra.mxu0 0.0
        %3680 = vmatprep.subr.mxu0 0.0
        %3681 = vmatpush1.xpose.msra.mxu0 0.0
        %3682 = vmatprep.subr.mxu0 0.0
        %3683 = vmatpush1.xpose.msra.mxu0 0.0
        %3684 = vmatprep.subr.mxu0 0.0
        %3685 = vmatpush1.xpose.msra.mxu0 0.0
        %3686 = vmatprep.subr.mxu0 0.0
        %3687 = vmatpush1.xpose.msra.mxu0 0.0
        %3688 = vmatprep.subr.mxu0 0.0
        %3689 = vmatpush1.xpose.msra.mxu0 0.0
        %3690 = vmatprep.subr.mxu0 0.0
        %3691 = vmatpush1.xpose.msra.mxu0 0.0
        %3692 = vmatprep.mubr.f32.mxu0 0.0
        %3693 = vmatmul.mubr.f32.gmra.mrb[0].mxu0 %v3572
        %v3694 = vpop.f32.mrb[0].mxu0
        %v3695 = vadd.f32 %v3515, %v3694
        %v3696 = vpop.f32.mrb[0].mxu0
        %3697 = vmatprep.mubr.f32.mxu0 0.0
        %3698 = vmatmul.mubr.f32.gmra.mrb[0].mxu0 %v3574
        %v3699 = vpop.f32.mrb[0].mxu0
        %v3700 = vadd.f32 %v3516, %v3699
        %v3701 = vpop.f32.mrb[0].mxu0
        %3702 = vmatprep.mubr.f32.mxu0 0.0
        %3703 = vmatmul.mubr.f32.gmra.mrb[0].mxu0 %v3576
        %v3704 = vpop.f32.mrb[0].mxu0
        %v3705 = vadd.f32 %v3517, %v3704
        %v3706 = vpop.f32.mrb[0].mxu0
        %3707 = vmatprep.mubr.f32.mxu0 0.0
        %3708 = vmatmul.mubr.f32.gmra.mrb[0].mxu0 %v3578
        %v3709 = vpop.f32.mrb[0].mxu0
        %v3710 = vadd.f32 %v3518, %v3709
        %v3711 = vpop.f32.mrb[0].mxu0
        %3712 = vmatprep.mubr.f32.mxu0 0.0
        %3713 = vmatmul.mubr.f32.gmra.mrb[0].mxu0 %v3580
        %v3714 = vpop.f32.mrb[0].mxu0
        %v3715 = vadd.f32 %v3519, %v3714
        %v3716 = vpop.f32.mrb[0].mxu0
        %3717 = vmatprep.mubr.f32.mxu0 0.0
        %3718 = vmatmul.mubr.f32.gmra.mrb[0].mxu0 %v3582
        %v3719 = vpop.f32.mrb[0].mxu0
        %v3720 = vadd.f32 %v3520, %v3719
        %v3721 = vpop.f32.mrb[0].mxu0
        %3722 = vmatprep.mubr.f32.mxu0 0.0
        %3723 = vmatmul.mubr.f32.gmra.mrb[0].mxu0 %v3584
        %v3724 = vpop.f32.mrb[0].mxu0
        %v3725 = vadd.f32 %v3521, %v3724
        %v3726 = vpop.f32.mrb[0].mxu0
        %3727 = vmatprep.mubr.f32.mxu0 0.0
        %3728 = vmatmul.mubr.f32.gmra.mrb[0].mxu0 %v3586
        %v3729 = vpop.f32.mrb[0].mxu0
        %v3730 = vadd.f32 %v3522, %v3729
        %v3731 = vpop.f32.mrb[0].mxu0
        %3732 = vmatprep.mubr.f32.mxu0 0.0
        %3733 = vmatmul.mubr.f32.gmra.mrb[0].mxu0 %v3588
        %v3734 = vpop.f32.mrb[0].mxu0
        %v3735 = vadd.f32 %v3523, %v3734
        %v3736 = vpop.f32.mrb[0].mxu0
        %3737 = vmatprep.mubr.f32.mxu0 0.0
        %3738 = vmatmul.mubr.f32.gmra.mrb[0].mxu0 %v3590
        %v3739 = vpop.f32.mrb[0].mxu0
        %v3740 = vadd.f32 %v3524, %v3739
        %v3741 = vpop.f32.mrb[0].mxu0
        %3742 = vmatprep.mubr.f32.mxu0 0.0
        %3743 = vmatmul.mubr.f32.gmra.mrb[0].mxu0 %v3592
        %v3744 = vpop.f32.mrb[0].mxu0
        %v3745 = vadd.f32 %v3525, %v3744
        %v3746 = vpop.f32.mrb[0].mxu0
        %3747 = vmatprep.mubr.f32.mxu0 0.0
        %3748 = vmatmul.mubr.f32.gmra.mrb[0].mxu0 %v3594
        %v3749 = vpop.f32.mrb[0].mxu0
        %v3750 = vadd.f32 %v3526, %v3749
        %v3751 = vpop.f32.mrb[0].mxu0
        %3752 = vmatprep.mubr.f32.mxu0 0.0
        %3753 = vmatmul.mubr.f32.gmra.mrb[0].mxu0 %v3596
        %v3754 = vpop.f32.mrb[0].mxu0
        %v3755 = vadd.f32 %v3527, %v3754
        %v3756 = vpop.f32.mrb[0].mxu0
        %3757 = vmatprep.mubr.f32.mxu0 0.0
        %3758 = vmatmul.mubr.f32.gmra.mrb[0].mxu0 %v3598
        %v3759 = vpop.f32.mrb[0].mxu0
        %v3760 = vadd.f32 %v3528, %v3759
        %v3761 = vpop.f32.mrb[0].mxu0
        %3762 = vdwg.mxu0
        %vm3763 = vcmask 916480
        %v3764 = vsel %vm3763, %v3695, -inf
        %3765 = vmax.xlane.f32.xlu0 %v3764
        %v3766 = vpop.xlane.xlu0 %3765
        %v3767 = vsel %vm3763, %v3700, -inf
        %3768 = vmax.xlane.f32.xlu0 %v3767
        %v3769 = vpop.xlane.xlu0 %3768
        %v3770 = vsel %vm3763, %v3705, -inf
        %3771 = vmax.xlane.f32.xlu0 %v3770
        %v3772 = vpop.xlane.xlu0 %3771
        %v3773 = vsel %vm3763, %v3710, -inf
        %3774 = vmax.xlane.f32.xlu0 %v3773
        %v3775 = vpop.xlane.xlu0 %3774
        %v3776 = vsel %vm3763, %v3715, -inf
        %3777 = vmax.xlane.f32.xlu0 %v3776
        %v3778 = vpop.xlane.xlu0 %3777
        %v3779 = vsel %vm3763, %v3720, -inf
        %3780 = vmax.xlane.f32.xlu0 %v3779
        %v3781 = vpop.xlane.xlu0 %3780
        %v3782 = vsel %vm3763, %v3725, -inf
        %3783 = vmax.xlane.f32.xlu0 %v3782
        %v3784 = vpop.xlane.xlu0 %3783
        %v3785 = vsel %vm3763, %v3730, -inf
        %3786 = vmax.xlane.f32.xlu0 %v3785
        %v3787 = vpop.xlane.xlu0 %3786
        %v3788 = vsel %vm3763, %v3735, -inf
        %3789 = vmax.xlane.f32.xlu0 %v3788
        %v3790 = vpop.xlane.xlu0 %3789
        %v3791 = vsel %vm3763, %v3740, -inf
        %3792 = vmax.xlane.f32.xlu0 %v3791
        %v3793 = vpop.xlane.xlu0 %3792
        %v3794 = vsel %vm3763, %v3745, -inf
        %3795 = vmax.xlane.f32.xlu0 %v3794
        %v3796 = vpop.xlane.xlu0 %3795
        %v3797 = vsel %vm3763, %v3750, -inf
        %3798 = vmax.xlane.f32.xlu0 %v3797
        %v3799 = vpop.xlane.xlu0 %3798
        %v3800 = vsel %vm3763, %v3755, -inf
        %3801 = vmax.xlane.f32.xlu0 %v3800
        %v3802 = vpop.xlane.xlu0 %3801
        %v3803 = vsel %vm3763, %v3760, -inf
        %3804 = vmax.xlane.f32.xlu0 %v3803
        %v3805 = vpop.xlane.xlu0 %3804
        %v3806 = vsub.f32 %v3695, %v3766
        %v3807 = vsub.f32 %v3700, %v3769
        %v3808 = vsub.f32 %v3705, %v3772
        %v3809 = vsub.f32 %v3710, %v3775
        %v3810 = vsub.f32 %v3715, %v3778
        %v3811 = vsub.f32 %v3720, %v3781
        %v3812 = vsub.f32 %v3725, %v3784
        %v3813 = vsub.f32 %v3730, %v3787
        %v3814 = vsub.f32 %v3735, %v3790
        %v3815 = vsub.f32 %v3740, %v3793
        %v3816 = vsub.f32 %v3745, %v3796
        %v3817 = vsub.f32 %v3750, %v3799
        %v3818 = vsub.f32 %v3755, %v3802
        %v3819 = vsub.f32 %v3760, %v3805
        %v3820 = vmul.f32 %v3806, 1.442695
        %v3821 = vpow.pop %v3820
        %v3822 = vmul.f32 %v3807, 1.442695
        %v3823 = vpow.pop %v3822
        %v3824 = vmul.f32 %v3808, 1.442695
        %v3825 = vpow.pop %v3824
        %v3826 = vmul.f32 %v3809, 1.442695
        %v3827 = vpow.pop %v3826
        %v3828 = vmul.f32 %v3810, 1.442695
        %v3829 = vpow.pop %v3828
        %v3830 = vmul.f32 %v3811, 1.442695
        %v3831 = vpow.pop %v3830
        %v3832 = vmul.f32 %v3812, 1.442695
        %v3833 = vpow.pop %v3832
        %v3834 = vmul.f32 %v3813, 1.442695
        %v3835 = vpow.pop %v3834
        %v3836 = vmul.f32 %v3814, 1.442695
        %v3837 = vpow.pop %v3836
        %v3838 = vmul.f32 %v3815, 1.442695
        %v3839 = vpow.pop %v3838
        %v3840 = vmul.f32 %v3816, 1.442695
        %v3841 = vpow.pop %v3840
        %v3842 = vmul.f32 %v3817, 1.442695
        %v3843 = vpow.pop %v3842
        %v3844 = vmul.f32 %v3818, 1.442695
        %v3845 = vpow.pop %v3844
        %v3846 = vmul.f32 %v3819, 1.442695
        %v3847 = vpow.pop %v3846
        %v3848 = vsel %vm3763, %v3821, 0.0
        %3849 = vadd.xlane.f32.xlu0 %v3848
        %v3850 = vpop.xlane.xlu0 %3849
        %v3851 = vsel %vm3763, %v3823, 0.0
        %3852 = vadd.xlane.f32.xlu0 %v3851
        %v3853 = vpop.xlane.xlu0 %3852
        %v3854 = vsel %vm3763, %v3825, 0.0
        %3855 = vadd.xlane.f32.xlu0 %v3854
        %v3856 = vpop.xlane.xlu0 %3855
        %v3857 = vsel %vm3763, %v3827, 0.0
        %3858 = vadd.xlane.f32.xlu0 %v3857
        %v3859 = vpop.xlane.xlu0 %3858
        %v3860 = vsel %vm3763, %v3829, 0.0
        %3861 = vadd.xlane.f32.xlu0 %v3860
        %v3862 = vpop.xlane.xlu0 %3861
        %v3863 = vsel %vm3763, %v3831, 0.0
        %3864 = vadd.xlane.f32.xlu0 %v3863
        %v3865 = vpop.xlane.xlu0 %3864
        %v3866 = vsel %vm3763, %v3833, 0.0
        %3867 = vadd.xlane.f32.xlu0 %v3866
        %v3868 = vpop.xlane.xlu0 %3867
        %v3869 = vsel %vm3763, %v3835, 0.0
        %3870 = vadd.xlane.f32.xlu0 %v3869
        %v3871 = vpop.xlane.xlu0 %3870
        %v3872 = vsel %vm3763, %v3837, 0.0
        %3873 = vadd.xlane.f32.xlu0 %v3872
        %v3874 = vpop.xlane.xlu0 %3873
        %v3875 = vsel %vm3763, %v3839, 0.0
        %3876 = vadd.xlane.f32.xlu0 %v3875
        %v3877 = vpop.xlane.xlu0 %3876
        %v3878 = vsel %vm3763, %v3841, 0.0
        %3879 = vadd.xlane.f32.xlu0 %v3878
        %v3880 = vpop.xlane.xlu0 %3879
        %v3881 = vsel %vm3763, %v3843, 0.0
        %3882 = vadd.xlane.f32.xlu0 %v3881
        %v3883 = vpop.xlane.xlu0 %3882
        %v3884 = vsel %vm3763, %v3845, 0.0
        %3885 = vadd.xlane.f32.xlu0 %v3884
        %v3886 = vpop.xlane.xlu0 %3885
        %v3887 = vsel %vm3763, %v3847, 0.0
        %3888 = vadd.xlane.f32.xlu0 %v3887
        %v3889 = vpop.xlane.xlu0 %3888
        %v3890 = vrcp.pop %v3850
        %v3891 = vrcp.pop %v3853
        %v3892 = vrcp.pop %v3856
        %v3893 = vrcp.pop %v3859
        %v3894 = vrcp.pop %v3862
        %v3895 = vrcp.pop %v3865
        %v3896 = vrcp.pop %v3868
        %v3897 = vrcp.pop %v3871
        %v3898 = vrcp.pop %v3874
        %v3899 = vrcp.pop %v3877
        %v3900 = vrcp.pop %v3880
        %v3901 = vrcp.pop %v3883
        %v3902 = vrcp.pop %v3886
        %v3903 = vrcp.pop %v3889
        %v3904 = vmul.f32 %v3821, %v3890
        %v3905 = vmul.f32 %v3823, %v3891
        %v3906 = vmul.f32 %v3825, %v3892
        %v3907 = vmul.f32 %v3827, %v3893
        %v3908 = vmul.f32 %v3829, %v3894
        %v3909 = vmul.f32 %v3831, %v3895
        %v3910 = vmul.f32 %v3833, %v3896
        %v3911 = vmul.f32 %v3835, %v3897
        %v3912 = vmul.f32 %v3837, %v3898
        %v3913 = vmul.f32 %v3839, %v3899
        %v3914 = vmul.f32 %v3841, %v3900
        %v3915 = vmul.f32 %v3843, %v3901
        %v3916 = vmul.f32 %v3845, %v3902
        %v3917 = vmul.f32 %v3847, %v3903
        %3918 = vrot.lane.b32.xlu0 %v3069, 64
        %v3919 = vpop.permute.xlu0 %3918
        %3920 = vrot.lane.b32.xlu0 %v3074, 64
        %v3921 = vpop.permute.xlu0 %3920
        %3922 = vrot.lane.b32.xlu0 %v3079, 64
        %v3923 = vpop.permute.xlu0 %3922
        %3924 = vrot.lane.b32.xlu0 %v3084, 64
        %v3925 = vpop.permute.xlu0 %3924
        %3926 = vrot.lane.b32.xlu0 %v3089, 64
        %v3927 = vpop.permute.xlu0 %3926
        %3928 = vrot.lane.b32.xlu0 %v3094, 64
        %v3929 = vpop.permute.xlu0 %3928
        %3930 = vrot.lane.b32.xlu0 %v3099, 64
        %v3931 = vpop.permute.xlu0 %3930
        %3932 = vrot.lane.b32.xlu0 %v3104, 64
        %v3933 = vpop.permute.xlu0 %3932
        %3934 = vrot.lane.b32.xlu0 %v3109, 64
        %v3935 = vpop.permute.xlu0 %3934
        %3936 = vrot.lane.b32.xlu0 %v3114, 64
        %v3937 = vpop.permute.xlu0 %3936
        %3938 = vrot.lane.b32.xlu0 %v3119, 64
        %v3939 = vpop.permute.xlu0 %3938
        %3940 = vrot.lane.b32.xlu0 %v3124, 64
        %v3941 = vpop.permute.xlu0 %3940
        %3942 = vrot.lane.b32.xlu0 %v3129, 64
        %v3943 = vpop.permute.xlu0 %3942
        %3944 = vrot.lane.b32.xlu0 %v3134, 64
        %v3945 = vpop.permute.xlu0 %3944
        %v3961 = vsel %vm3763, %v3904, 0
        %v3964 = vsel %vm3763, %v3905, 0
        %v3967 = vsel %vm3763, %v3906, 0
        %v3970 = vsel %vm3763, %v3907, 0
        %v3973 = vsel %vm3763, %v3908, 0
        %v3976 = vsel %vm3763, %v3909, 0
        %v3979 = vsel %vm3763, %v3910, 0
        %v3982 = vsel %vm3763, %v3911, 0
        %v3985 = vsel %vm3763, %v3912, 0
        %v3988 = vsel %vm3763, %v3913, 0
        %v3991 = vsel %vm3763, %v3914, 0
        %v3994 = vsel %vm3763, %v3915, 0
        %v3997 = vsel %vm3763, %v3916, 0
        %v4000 = vsel %vm3763, %v3917, 0
        %4002 = vmatprep.subr.mxu0 0.0
        %4003 = vmatpush1.msra.mxu0 %v3919
        %4004 = vmatprep.subr.mxu0 0.0
        %4005 = vmatpush1.msra.mxu0 %v3921
        %4006 = vmatprep.subr.mxu0 0.0
        %4007 = vmatpush1.msra.mxu0 %v3923
        %4008 = vmatprep.subr.mxu0 0.0
        %4009 = vmatpush1.msra.mxu0 %v3925
        %4010 = vmatprep.subr.mxu0 0.0
        %4011 = vmatpush1.msra.mxu0 %v3927
        %4012 = vmatprep.subr.mxu0 0.0
        %4013 = vmatpush1.msra.mxu0 %v3929
        %4014 = vmatprep.subr.mxu0 0.0
        %4015 = vmatpush1.msra.mxu0 %v3931
        %4016 = vmatprep.subr.mxu0 0.0
        %4017 = vmatpush1.msra.mxu0 %v3933
        %4018 = vmatprep.subr.mxu0 0.0
        %4019 = vmatpush1.msra.mxu0 %v3935
        %4020 = vmatprep.subr.mxu0 0.0
        %4021 = vmatpush1.msra.mxu0 %v3937
        %4022 = vmatprep.subr.mxu0 0.0
        %4023 = vmatpush1.msra.mxu0 %v3939
        %4024 = vmatprep.subr.mxu0 0.0
        %4025 = vmatpush1.msra.mxu0 %v3941
        %4026 = vmatprep.subr.mxu0 0.0
        %4027 = vmatpush1.msra.mxu0 %v3943
        %4028 = vmatprep.subr.mxu0 0.0
        %4029 = vmatpush1.msra.mxu0 %v3945
        %4030 = vmatprep.subr.mxu0 0.0
        %4031 = vmatpush1.msra.mxu0 0.0
        %4032 = vmatprep.subr.mxu0 0.0
        %4033 = vmatpush1.msra.mxu0 0.0
        %4034 = vmatprep.subr.mxu0 0.0
        %4035 = vmatpush1.msra.mxu0 0.0
        %4036 = vmatprep.subr.mxu0 0.0
        %4037 = vmatpush1.msra.mxu0 0.0
        %4038 = vmatprep.subr.mxu0 0.0
        %4039 = vmatpush1.msra.mxu0 0.0
        %4040 = vmatprep.subr.mxu0 0.0
        %4041 = vmatpush1.msra.mxu0 0.0
        %4042 = vmatprep.subr.mxu0 0.0
        %4043 = vmatpush1.msra.mxu0 0.0
        %4044 = vmatprep.subr.mxu0 0.0
        %4045 = vmatpush1.msra.mxu0 0.0
        %4046 = vmatprep.subr.mxu0 0.0
        %4047 = vmatpush1.msra.mxu0 0.0
        %4048 = vmatprep.subr.mxu0 0.0
        %4049 = vmatpush1.msra.mxu0 0.0
        %4050 = vmatprep.subr.mxu0 0.0
        %4051 = vmatpush1.msra.mxu0 0.0
        %4052 = vmatprep.subr.mxu0 0.0
        %4053 = vmatpush1.msra.mxu0 0.0
        %4054 = vmatprep.subr.mxu0 0.0
        %4055 = vmatpush1.msra.mxu0 0.0
        %4056 = vmatprep.subr.mxu0 0.0
        %4057 = vmatpush1.msra.mxu0 0.0
        %4058 = vmatprep.subr.mxu0 0.0
        %4059 = vmatpush1.msra.mxu0 0.0
        %4060 = vmatprep.subr.mxu0 0.0
        %4061 = vmatpush1.msra.mxu0 0.0
        %4062 = vmatprep.subr.mxu0 0.0
        %4063 = vmatpush1.msra.mxu0 0.0
        %4064 = vmatprep.subr.mxu0 0.0
        %4065 = vmatpush1.msra.mxu0 0.0
        %4066 = vmatprep.mubr.f32.mxu0 0.0
        %4067 = vmatmul.mubr.f32.gmra.mrb[0].mxu0 %v3961
        %v4068 = vpop.f32.mrb[0].mxu0
        %v4069 = vadd.f32 0.0, %v4068
        %v4070 = vpop.f32.mrb[0].mxu0
        %4071 = vmatprep.mubr.f32.mxu0 0.0
        %4072 = vmatmul.mubr.f32.gmra.mrb[0].mxu0 %v3964
        %v4073 = vpop.f32.mrb[0].mxu0
        %v4074 = vadd.f32 0.0, %v4073
        %v4075 = vpop.f32.mrb[0].mxu0
        %4076 = vmatprep.mubr.f32.mxu0 0.0
        %4077 = vmatmul.mubr.f32.gmra.mrb[0].mxu0 %v3967
        %v4078 = vpop.f32.mrb[0].mxu0
        %v4079 = vadd.f32 0.0, %v4078
        %v4080 = vpop.f32.mrb[0].mxu0
        %4081 = vmatprep.mubr.f32.mxu0 0.0
        %4082 = vmatmul.mubr.f32.gmra.mrb[0].mxu0 %v3970
        %v4083 = vpop.f32.mrb[0].mxu0
        %v4084 = vadd.f32 0.0, %v4083
        %v4085 = vpop.f32.mrb[0].mxu0
        %4086 = vmatprep.mubr.f32.mxu0 0.0
        %4087 = vmatmul.mubr.f32.gmra.mrb[0].mxu0 %v3973
        %v4088 = vpop.f32.mrb[0].mxu0
        %v4089 = vadd.f32 0.0, %v4088
        %v4090 = vpop.f32.mrb[0].mxu0
        %4091 = vmatprep.mubr.f32.mxu0 0.0
        %4092 = vmatmul.mubr.f32.gmra.mrb[0].mxu0 %v3976
        %v4093 = vpop.f32.mrb[0].mxu0
        %v4094 = vadd.f32 0.0, %v4093
        %v4095 = vpop.f32.mrb[0].mxu0
        %4096 = vmatprep.mubr.f32.mxu0 0.0
        %4097 = vmatmul.mubr.f32.gmra.mrb[0].mxu0 %v3979
        %v4098 = vpop.f32.mrb[0].mxu0
        %v4099 = vadd.f32 0.0, %v4098
        %v4100 = vpop.f32.mrb[0].mxu0
        %4101 = vmatprep.mubr.f32.mxu0 0.0
        %4102 = vmatmul.mubr.f32.gmra.mrb[0].mxu0 %v3982
        %v4103 = vpop.f32.mrb[0].mxu0
        %v4104 = vadd.f32 0.0, %v4103
        %v4105 = vpop.f32.mrb[0].mxu0
        %4106 = vmatprep.mubr.f32.mxu0 0.0
        %4107 = vmatmul.mubr.f32.gmra.mrb[0].mxu0 %v3985
        %v4108 = vpop.f32.mrb[0].mxu0
        %v4109 = vadd.f32 0.0, %v4108
        %v4110 = vpop.f32.mrb[0].mxu0
        %4111 = vmatprep.mubr.f32.mxu0 0.0
        %4112 = vmatmul.mubr.f32.gmra.mrb[0].mxu0 %v3988
        %v4113 = vpop.f32.mrb[0].mxu0
        %v4114 = vadd.f32 0.0, %v4113
        %v4115 = vpop.f32.mrb[0].mxu0
        %4116 = vmatprep.mubr.f32.mxu0 0.0
        %4117 = vmatmul.mubr.f32.gmra.mrb[0].mxu0 %v3991
        %v4118 = vpop.f32.mrb[0].mxu0
        %v4119 = vadd.f32 0.0, %v4118
        %v4120 = vpop.f32.mrb[0].mxu0
        %4121 = vmatprep.mubr.f32.mxu0 0.0
        %4122 = vmatmul.mubr.f32.gmra.mrb[0].mxu0 %v3994
        %v4123 = vpop.f32.mrb[0].mxu0
        %v4124 = vadd.f32 0.0, %v4123
        %v4125 = vpop.f32.mrb[0].mxu0
        %4126 = vmatprep.mubr.f32.mxu0 0.0
        %4127 = vmatmul.mubr.f32.gmra.mrb[0].mxu0 %v3997
        %v4128 = vpop.f32.mrb[0].mxu0
        %v4129 = vadd.f32 0.0, %v4128
        %v4130 = vpop.f32.mrb[0].mxu0
        %4131 = vmatprep.mubr.f32.mxu0 0.0
        %4132 = vmatmul.mubr.f32.gmra.mrb[0].mxu0 %v4000
        %v4133 = vpop.f32.mrb[0].mxu0
        %v4134 = vadd.f32 0.0, %v4133
        %v4135 = vpop.f32.mrb[0].mxu0
        %4136 = vdwg.mxu0
        %s4137 = sadd.s32 %s3137, 1
        %s4138 = sld [smem:[#allocation7 + %s4137]]
        %v4139 = vstv %s4138
        %v4140 = vadd.f32 %v2102, %v4139
        %v4141 = vadd.f32 %v2103, %v4139
        %v4142 = vadd.f32 %v2104, %v4139
        %v4143 = vadd.f32 %v2105, %v4139
        %v4144 = vadd.f32 %v2106, %v4139
        %v4145 = vadd.f32 %v2107, %v4139
        %v4146 = vadd.f32 %v2108, %v4139
        %v4147 = vadd.f32 %v2109, %v4139
        %v4148 = vadd.f32 %v2110, %v4139
        %v4149 = vadd.f32 %v2111, %v4139
        %v4150 = vadd.f32 %v2112, %v4139
        %v4151 = vadd.f32 %v2113, %v4139
        %v4152 = vadd.f32 %v2114, %v4139
        %v4153 = vadd.f32 %v2115, %v4139
        %s4154 = sadd.s32 %s3169, 1
        %s4155 = sld [smem:[#allocation5 + %s4154]]
        %v4156 = vstv %s4155
        %v4157 = vmul.f32 %v3154, %v4156
        %v4158 = vmul.f32 %v3155, %v4156
        %v4159 = vmul.f32 %v3156, %v4156
        %v4160 = vmul.f32 %v3157, %v4156
        %v4161 = vmul.f32 %v3158, %v4156
        %v4162 = vmul.f32 %v3159, %v4156
        %v4163 = vmul.f32 %v3160, %v4156
        %v4164 = vmul.f32 %v3161, %v4156
        %v4165 = vmul.f32 %v3162, %v4156
        %v4166 = vmul.f32 %v3163, %v4156
        %v4167 = vmul.f32 %v3164, %v4156
        %v4168 = vmul.f32 %v3165, %v4156
        %v4169 = vmul.f32 %v3166, %v4156
        %v4170 = vmul.f32 %v3167, %v4156
        %v4171 = vadd.f32 %v4140, %v4157
        %v4172 = vadd.f32 %v4141, %v4158
        %v4173 = vadd.f32 %v4142, %v4159
        %v4174 = vadd.f32 %v4143, %v4160
        %v4175 = vadd.f32 %v4144, %v4161
        %v4176 = vadd.f32 %v4145, %v4162
        %v4177 = vadd.f32 %v4146, %v4163
        %v4178 = vadd.f32 %v4147, %v4164
        %v4179 = vadd.f32 %v4148, %v4165
        %v4180 = vadd.f32 %v4149, %v4166
        %v4181 = vadd.f32 %v4150, %v4167
        %v4182 = vadd.f32 %v4151, %v4168
        %v4183 = vadd.f32 %v4152, %v4169
        %v4184 = vadd.f32 %v4153, %v4170
        %s4185 = sadd.s32 %s3216, 1
        %s4186 = sld [smem:[#allocation5 + %s4185]]
        %v4187 = vstv %s4186
        %v4188 = vmul.f32 %v3201, %v4187
        %v4189 = vmul.f32 %v3202, %v4187
        %v4190 = vmul.f32 %v3203, %v4187
        %v4191 = vmul.f32 %v3204, %v4187
        %v4192 = vmul.f32 %v3205, %v4187
        %v4193 = vmul.f32 %v3206, %v4187
        %v4194 = vmul.f32 %v3207, %v4187
        %v4195 = vmul.f32 %v3208, %v4187
        %v4196 = vmul.f32 %v3209, %v4187
        %v4197 = vmul.f32 %v3210, %v4187
        %v4198 = vmul.f32 %v3211, %v4187
        %v4199 = vmul.f32 %v3212, %v4187
        %v4200 = vmul.f32 %v3213, %v4187
        %v4201 = vmul.f32 %v3214, %v4187
        %v4202 = vadd.f32 %v4171, %v4188
        %v4203 = vadd.f32 %v4172, %v4189
        %v4204 = vadd.f32 %v4173, %v4190
        %v4205 = vadd.f32 %v4174, %v4191
        %v4206 = vadd.f32 %v4175, %v4192
        %v4207 = vadd.f32 %v4176, %v4193
        %v4208 = vadd.f32 %v4177, %v4194
        %v4209 = vadd.f32 %v4178, %v4195
        %v4210 = vadd.f32 %v4179, %v4196
        %v4211 = vadd.f32 %v4180, %v4197
        %v4212 = vadd.f32 %v4181, %v4198
        %v4213 = vadd.f32 %v4182, %v4199
        %v4214 = vadd.f32 %v4183, %v4200
        %v4215 = vadd.f32 %v4184, %v4201
        %s4216 = sadd.s32 %s3263, 1
        %s4217 = sld [smem:[#allocation5 + %s4216]]
        %v4218 = vstv %s4217
        %v4219 = vmul.f32 %v3248, %v4218
        %v4220 = vmul.f32 %v3249, %v4218
        %v4221 = vmul.f32 %v3250, %v4218
        %v4222 = vmul.f32 %v3251, %v4218
        %v4223 = vmul.f32 %v3252, %v4218
        %v4224 = vmul.f32 %v3253, %v4218
        %v4225 = vmul.f32 %v3254, %v4218
        %v4226 = vmul.f32 %v3255, %v4218
        %v4227 = vmul.f32 %v3256, %v4218
        %v4228 = vmul.f32 %v3257, %v4218
        %v4229 = vmul.f32 %v3258, %v4218
        %v4230 = vmul.f32 %v3259, %v4218
        %v4231 = vmul.f32 %v3260, %v4218
        %v4232 = vmul.f32 %v3261, %v4218
        %v4233 = vadd.f32 %v4202, %v4219
        %v4234 = vadd.f32 %v4203, %v4220
        %v4235 = vadd.f32 %v4204, %v4221
        %v4236 = vadd.f32 %v4205, %v4222
        %v4237 = vadd.f32 %v4206, %v4223
        %v4238 = vadd.f32 %v4207, %v4224
        %v4239 = vadd.f32 %v4208, %v4225
        %v4240 = vadd.f32 %v4209, %v4226
        %v4241 = vadd.f32 %v4210, %v4227
        %v4242 = vadd.f32 %v4211, %v4228
        %v4243 = vadd.f32 %v4212, %v4229
        %v4244 = vadd.f32 %v4213, %v4230
        %v4245 = vadd.f32 %v4214, %v4231
        %v4246 = vadd.f32 %v4215, %v4232
        %s4247 = sadd.s32 %s3310, 1
        %s4248 = sld [smem:[#allocation5 + %s4247]]
        %v4249 = vstv %s4248
        %v4250 = vmul.f32 %v3295, %v4249
        %v4251 = vmul.f32 %v3296, %v4249
        %v4252 = vmul.f32 %v3297, %v4249
        %v4253 = vmul.f32 %v3298, %v4249
        %v4254 = vmul.f32 %v3299, %v4249
        %v4255 = vmul.f32 %v3300, %v4249
        %v4256 = vmul.f32 %v3301, %v4249
        %v4257 = vmul.f32 %v3302, %v4249
        %v4258 = vmul.f32 %v3303, %v4249
        %v4259 = vmul.f32 %v3304, %v4249
        %v4260 = vmul.f32 %v3305, %v4249
        %v4261 = vmul.f32 %v3306, %v4249
        %v4262 = vmul.f32 %v3307, %v4249
        %v4263 = vmul.f32 %v3308, %v4249
        %v4264 = vadd.f32 %v4233, %v4250
        %v4265 = vadd.f32 %v4234, %v4251
        %v4266 = vadd.f32 %v4235, %v4252
        %v4267 = vadd.f32 %v4236, %v4253
        %v4268 = vadd.f32 %v4237, %v4254
        %v4269 = vadd.f32 %v4238, %v4255
        %v4270 = vadd.f32 %v4239, %v4256
        %v4271 = vadd.f32 %v4240, %v4257
        %v4272 = vadd.f32 %v4241, %v4258
        %v4273 = vadd.f32 %v4242, %v4259
        %v4274 = vadd.f32 %v4243, %v4260
        %v4275 = vadd.f32 %v4244, %v4261
        %v4276 = vadd.f32 %v4245, %v4262
        %v4277 = vadd.f32 %v4246, %v4263
        %s4278 = sadd.s32 %s3357, 1
        %s4279 = sld [smem:[#allocation5 + %s4278]]
        %v4280 = vstv %s4279
        %v4281 = vmul.f32 %v3342, %v4280
        %v4282 = vmul.f32 %v3343, %v4280
        %v4283 = vmul.f32 %v3344, %v4280
        %v4284 = vmul.f32 %v3345, %v4280
        %v4285 = vmul.f32 %v3346, %v4280
        %v4286 = vmul.f32 %v3347, %v4280
        %v4287 = vmul.f32 %v3348, %v4280
        %v4288 = vmul.f32 %v3349, %v4280
        %v4289 = vmul.f32 %v3350, %v4280
        %v4290 = vmul.f32 %v3351, %v4280
        %v4291 = vmul.f32 %v3352, %v4280
        %v4292 = vmul.f32 %v3353, %v4280
        %v4293 = vmul.f32 %v3354, %v4280
        %v4294 = vmul.f32 %v3355, %v4280
        %v4295 = vadd.f32 %v4264, %v4281
        %v4296 = vadd.f32 %v4265, %v4282
        %v4297 = vadd.f32 %v4266, %v4283
        %v4298 = vadd.f32 %v4267, %v4284
        %v4299 = vadd.f32 %v4268, %v4285
        %v4300 = vadd.f32 %v4269, %v4286
        %v4301 = vadd.f32 %v4270, %v4287
        %v4302 = vadd.f32 %v4271, %v4288
        %v4303 = vadd.f32 %v4272, %v4289
        %v4304 = vadd.f32 %v4273, %v4290
        %v4305 = vadd.f32 %v4274, %v4291
        %v4306 = vadd.f32 %v4275, %v4292
        %v4307 = vadd.f32 %v4276, %v4293
        %v4308 = vadd.f32 %v4277, %v4294
        %s4309 = sadd.s32 %s3404, 1
        %s4310 = sld [smem:[#allocation5 + %s4309]]
        %v4311 = vstv %s4310
        %v4312 = vmul.f32 %v3389, %v4311
        %v4313 = vmul.f32 %v3390, %v4311
        %v4314 = vmul.f32 %v3391, %v4311
        %v4315 = vmul.f32 %v3392, %v4311
        %v4316 = vmul.f32 %v3393, %v4311
        %v4317 = vmul.f32 %v3394, %v4311
        %v4318 = vmul.f32 %v3395, %v4311
        %v4319 = vmul.f32 %v3396, %v4311
        %v4320 = vmul.f32 %v3397, %v4311
        %v4321 = vmul.f32 %v3398, %v4311
        %v4322 = vmul.f32 %v3399, %v4311
        %v4323 = vmul.f32 %v3400, %v4311
        %v4324 = vmul.f32 %v3401, %v4311
        %v4325 = vmul.f32 %v3402, %v4311
        %v4326 = vadd.f32 %v4295, %v4312
        %v4327 = vadd.f32 %v4296, %v4313
        %v4328 = vadd.f32 %v4297, %v4314
        %v4329 = vadd.f32 %v4298, %v4315
        %v4330 = vadd.f32 %v4299, %v4316
        %v4331 = vadd.f32 %v4300, %v4317
        %v4332 = vadd.f32 %v4301, %v4318
        %v4333 = vadd.f32 %v4302, %v4319
        %v4334 = vadd.f32 %v4303, %v4320
        %v4335 = vadd.f32 %v4304, %v4321
        %v4336 = vadd.f32 %v4305, %v4322
        %v4337 = vadd.f32 %v4306, %v4323
        %v4338 = vadd.f32 %v4307, %v4324
        %v4339 = vadd.f32 %v4308, %v4325
        %s4340 = sadd.s32 %s3451, 1
        %s4341 = sld [smem:[#allocation5 + %s4340]]
        %v4342 = vstv %s4341
        %v4343 = vmul.f32 %v3436, %v4342
        %v4344 = vmul.f32 %v3437, %v4342
        %v4345 = vmul.f32 %v3438, %v4342
        %v4346 = vmul.f32 %v3439, %v4342
        %v4347 = vmul.f32 %v3440, %v4342
        %v4348 = vmul.f32 %v3441, %v4342
        %v4349 = vmul.f32 %v3442, %v4342
        %v4350 = vmul.f32 %v3443, %v4342
        %v4351 = vmul.f32 %v3444, %v4342
        %v4352 = vmul.f32 %v3445, %v4342
        %v4353 = vmul.f32 %v3446, %v4342
        %v4354 = vmul.f32 %v3447, %v4342
        %v4355 = vmul.f32 %v3448, %v4342
        %v4356 = vmul.f32 %v3449, %v4342
        %v4357 = vadd.f32 %v4326, %v4343
        %v4358 = vadd.f32 %v4327, %v4344
        %v4359 = vadd.f32 %v4328, %v4345
        %v4360 = vadd.f32 %v4329, %v4346
        %v4361 = vadd.f32 %v4330, %v4347
        %v4362 = vadd.f32 %v4331, %v4348
        %v4363 = vadd.f32 %v4332, %v4349
        %v4364 = vadd.f32 %v4333, %v4350
        %v4365 = vadd.f32 %v4334, %v4351
        %v4366 = vadd.f32 %v4335, %v4352
        %v4367 = vadd.f32 %v4336, %v4353
        %v4368 = vadd.f32 %v4337, %v4354
        %v4369 = vadd.f32 %v4338, %v4355
        %v4370 = vadd.f32 %v4339, %v4356
        %s4371 = sadd.s32 %s3498, 1
        %s4372 = sld [smem:[#allocation5 + %s4371]]
        %v4373 = vstv %s4372
        %v4374 = vmul.f32 %v3483, %v4373
        %v4375 = vmul.f32 %v3484, %v4373
        %v4376 = vmul.f32 %v3485, %v4373
        %v4377 = vmul.f32 %v3486, %v4373
        %v4378 = vmul.f32 %v3487, %v4373
        %v4379 = vmul.f32 %v3488, %v4373
        %v4380 = vmul.f32 %v3489, %v4373
        %v4381 = vmul.f32 %v3490, %v4373
        %v4382 = vmul.f32 %v3491, %v4373
        %v4383 = vmul.f32 %v3492, %v4373
        %v4384 = vmul.f32 %v3493, %v4373
        %v4385 = vmul.f32 %v3494, %v4373
        %v4386 = vmul.f32 %v3495, %v4373
        %v4387 = vmul.f32 %v3496, %v4373
        %v4388 = vadd.f32 %v4357, %v4374
        %v4389 = vadd.f32 %v4358, %v4375
        %v4390 = vadd.f32 %v4359, %v4376
        %v4391 = vadd.f32 %v4360, %v4377
        %v4392 = vadd.f32 %v4361, %v4378
        %v4393 = vadd.f32 %v4362, %v4379
        %v4394 = vadd.f32 %v4363, %v4380
        %v4395 = vadd.f32 %v4364, %v4381
        %v4396 = vadd.f32 %v4365, %v4382
        %v4397 = vadd.f32 %v4366, %v4383
        %v4398 = vadd.f32 %v4367, %v4384
        %v4399 = vadd.f32 %v4368, %v4385
        %v4400 = vadd.f32 %v4369, %v4386
        %v4401 = vadd.f32 %v4370, %v4387
        %4402 = vrot.lane.b32.xlu0 %v3069, 120
        %v4403 = vpop.permute.xlu0 %4402
        %4404 = vrot.lane.b32.xlu0 %v3074, 120
        %v4405 = vpop.permute.xlu0 %4404
        %4406 = vrot.lane.b32.xlu0 %v3079, 120
        %v4407 = vpop.permute.xlu0 %4406
        %4408 = vrot.lane.b32.xlu0 %v3084, 120
        %v4409 = vpop.permute.xlu0 %4408
        %4410 = vrot.lane.b32.xlu0 %v3089, 120
        %v4411 = vpop.permute.xlu0 %4410
        %4412 = vrot.lane.b32.xlu0 %v3094, 120
        %v4413 = vpop.permute.xlu0 %4412
        %4414 = vrot.lane.b32.xlu0 %v3099, 120
        %v4415 = vpop.permute.xlu0 %4414
        %4416 = vrot.lane.b32.xlu0 %v3104, 120
        %v4417 = vpop.permute.xlu0 %4416
        %4418 = vrot.lane.b32.xlu0 %v3109, 120
        %v4419 = vpop.permute.xlu0 %4418
        %4420 = vrot.lane.b32.xlu0 %v3114, 120
        %v4421 = vpop.permute.xlu0 %4420
        %4422 = vrot.lane.b32.xlu0 %v3119, 120
        %v4423 = vpop.permute.xlu0 %4422
        %4424 = vrot.lane.b32.xlu0 %v3124, 120
        %v4425 = vpop.permute.xlu0 %4424
        %4426 = vrot.lane.b32.xlu0 %v3129, 120
        %v4427 = vpop.permute.xlu0 %4426
        %4428 = vrot.lane.b32.xlu0 %v3134, 120
        %v4429 = vpop.permute.xlu0 %4428
        %4430 = vrot.lane.b32.xlu0 %v3069, 88
        %v4431 = vpop.permute.xlu0 %4430
        %4432 = vrot.lane.b32.xlu0 %v3074, 88
        %v4433 = vpop.permute.xlu0 %4432
        %4434 = vrot.lane.b32.xlu0 %v3079, 88
        %v4435 = vpop.permute.xlu0 %4434
        %4436 = vrot.lane.b32.xlu0 %v3084, 88
        %v4437 = vpop.permute.xlu0 %4436
        %4438 = vrot.lane.b32.xlu0 %v3089, 88
        %v4439 = vpop.permute.xlu0 %4438
        %4440 = vrot.lane.b32.xlu0 %v3094, 88
        %v4441 = vpop.permute.xlu0 %4440
        %4442 = vrot.lane.b32.xlu0 %v3099, 88
        %v4443 = vpop.permute.xlu0 %4442
        %4444 = vrot.lane.b32.xlu0 %v3104, 88
        %v4445 = vpop.permute.xlu0 %4444
        %4446 = vrot.lane.b32.xlu0 %v3109, 88
        %v4447 = vpop.permute.xlu0 %4446
        %4448 = vrot.lane.b32.xlu0 %v3114, 88
        %v4449 = vpop.permute.xlu0 %4448
        %4450 = vrot.lane.b32.xlu0 %v3119, 88
        %v4451 = vpop.permute.xlu0 %4450
        %4452 = vrot.lane.b32.xlu0 %v3124, 88
        %v4453 = vpop.permute.xlu0 %4452
        %4454 = vrot.lane.b32.xlu0 %v3129, 88
        %v4455 = vpop.permute.xlu0 %4454
        %4456 = vrot.lane.b32.xlu0 %v3134, 88
        %v4457 = vpop.permute.xlu0 %4456
        %v4458 = vsel %vm3571, %v4403, 0
        %v4460 = vsel %vm3571, %v4405, 0
        %v4462 = vsel %vm3571, %v4407, 0
        %v4464 = vsel %vm3571, %v4409, 0
        %v4466 = vsel %vm3571, %v4411, 0
        %v4468 = vsel %vm3571, %v4413, 0
        %v4470 = vsel %vm3571, %v4415, 0
        %v4472 = vsel %vm3571, %v4417, 0
        %v4474 = vsel %vm3571, %v4419, 0
        %v4476 = vsel %vm3571, %v4421, 0
        %v4478 = vsel %vm3571, %v4423, 0
        %v4480 = vsel %vm3571, %v4425, 0
        %v4482 = vsel %vm3571, %v4427, 0
        %v4484 = vsel %vm3571, %v4429, 0
        %v4486 = vsel %vm3571, %v4431, 0
        %v4488 = vsel %vm3571, %v4433, 0
        %v4490 = vsel %vm3571, %v4435, 0
        %v4492 = vsel %vm3571, %v4437, 0
        %v4494 = vsel %vm3571, %v4439, 0
        %v4496 = vsel %vm3571, %v4441, 0
        %v4498 = vsel %vm3571, %v4443, 0
        %v4500 = vsel %vm3571, %v4445, 0
        %v4502 = vsel %vm3571, %v4447, 0
        %v4504 = vsel %vm3571, %v4449, 0
        %v4506 = vsel %vm3571, %v4451, 0
        %v4508 = vsel %vm3571, %v4453, 0
        %v4510 = vsel %vm3571, %v4455, 0
        %v4512 = vsel %vm3571, %v4457, 0
        %4514 = vmatprep.subr.mxu0 0.0
        %4515 = vmatpush1.xpose.msra.mxu0 %v4486
        %4516 = vmatprep.subr.mxu0 0.0
        %4517 = vmatpush1.xpose.msra.mxu0 %v4488
        %4518 = vmatprep.subr.mxu0 0.0
        %4519 = vmatpush1.xpose.msra.mxu0 %v4490
        %4520 = vmatprep.subr.mxu0 0.0
        %4521 = vmatpush1.xpose.msra.mxu0 %v4492
        %4522 = vmatprep.subr.mxu0 0.0
        %4523 = vmatpush1.xpose.msra.mxu0 %v4494
        %4524 = vmatprep.subr.mxu0 0.0
        %4525 = vmatpush1.xpose.msra.mxu0 %v4496
        %4526 = vmatprep.subr.mxu0 0.0
        %4527 = vmatpush1.xpose.msra.mxu0 %v4498
        %4528 = vmatprep.subr.mxu0 0.0
        %4529 = vmatpush1.xpose.msra.mxu0 %v4500
        %4530 = vmatprep.subr.mxu0 0.0
        %4531 = vmatpush1.xpose.msra.mxu0 %v4502
        %4532 = vmatprep.subr.mxu0 0.0
        %4533 = vmatpush1.xpose.msra.mxu0 %v4504
        %4534 = vmatprep.subr.mxu0 0.0
        %4535 = vmatpush1.xpose.msra.mxu0 %v4506
        %4536 = vmatprep.subr.mxu0 0.0
        %4537 = vmatpush1.xpose.msra.mxu0 %v4508
        %4538 = vmatprep.subr.mxu0 0.0
        %4539 = vmatpush1.xpose.msra.mxu0 %v4510
        %4540 = vmatprep.subr.mxu0 0.0
        %4541 = vmatpush1.xpose.msra.mxu0 %v4512
        %4542 = vmatprep.subr.mxu0 0.0
        %4543 = vmatpush1.xpose.msra.mxu0 0.0
        %4544 = vmatprep.subr.mxu0 0.0
        %4545 = vmatpush1.xpose.msra.mxu0 0.0
        %4546 = vmatprep.subr.mxu0 0.0
        %4547 = vmatpush1.xpose.msra.mxu0 0.0
        %4548 = vmatprep.subr.mxu0 0.0
        %4549 = vmatpush1.xpose.msra.mxu0 0.0
        %4550 = vmatprep.subr.mxu0 0.0
        %4551 = vmatpush1.xpose.msra.mxu0 0.0
        %4552 = vmatprep.subr.mxu0 0.0
        %4553 = vmatpush1.xpose.msra.mxu0 0.0
        %4554 = vmatprep.subr.mxu0 0.0
        %4555 = vmatpush1.xpose.msra.mxu0 0.0
        %4556 = vmatprep.subr.mxu0 0.0
        %4557 = vmatpush1.xpose.msra.mxu0 0.0
        %4558 = vmatprep.subr.mxu0 0.0
        %4559 = vmatpush1.xpose.msra.mxu0 0.0
        %4560 = vmatprep.subr.mxu0 0.0
        %4561 = vmatpush1.xpose.msra.mxu0 0.0
        %4562 = vmatprep.subr.mxu0 0.0
        %4563 = vmatpush1.xpose.msra.mxu0 0.0
        %4564 = vmatprep.subr.mxu0 0.0
        %4565 = vmatpush1.xpose.msra.mxu0 0.0
        %4566 = vmatprep.subr.mxu0 0.0
        %4567 = vmatpush1.xpose.msra.mxu0 0.0
        %4568 = vmatprep.subr.mxu0 0.0
        %4569 = vmatpush1.xpose.msra.mxu0 0.0
        %4570 = vmatprep.subr.mxu0 0.0
        %4571 = vmatpush1.xpose.msra.mxu0 0.0
        %4572 = vmatprep.subr.mxu0 0.0
        %4573 = vmatpush1.xpose.msra.mxu0 0.0
        %4574 = vmatprep.subr.mxu0 0.0
        %4575 = vmatpush1.xpose.msra.mxu0 0.0
        %4576 = vmatprep.subr.mxu0 0.0
        %4577 = vmatpush1.xpose.msra.mxu0 0.0
        %4578 = vmatprep.mubr.f32.mxu0 0.0
        %4579 = vmatmul.mubr.f32.gmra.mrb[0].mxu0 %v4458
        %v4580 = vpop.f32.mrb[0].mxu0
        %v4581 = vadd.f32 %v4388, %v4580
        %v4582 = vpop.f32.mrb[0].mxu0
        %4583 = vmatprep.mubr.f32.mxu0 0.0
        %4584 = vmatmul.mubr.f32.gmra.mrb[0].mxu0 %v4460
        %v4585 = vpop.f32.mrb[0].mxu0
        %v4586 = vadd.f32 %v4389, %v4585
        %v4587 = vpop.f32.mrb[0].mxu0
        %4588 = vmatprep.mubr.f32.mxu0 0.0
        %4589 = vmatmul.mubr.f32.gmra.mrb[0].mxu0 %v4462
        %v4590 = vpop.f32.mrb[0].mxu0
        %v4591 = vadd.f32 %v4390, %v4590
        %v4592 = vpop.f32.mrb[0].mxu0
        %4593 = vmatprep.mubr.f32.mxu0 0.0
        %4594 = vmatmul.mubr.f32.gmra.mrb[0].mxu0 %v4464
        %v4595 = vpop.f32.mrb[0].mxu0
        %v4596 = vadd.f32 %v4391, %v4595
        %v4597 = vpop.f32.mrb[0].mxu0
        %4598 = vmatprep.mubr.f32.mxu0 0.0
        %4599 = vmatmul.mubr.f32.gmra.mrb[0].mxu0 %v4466
        %v4600 = vpop.f32.mrb[0].mxu0
        %v4601 = vadd.f32 %v4392, %v4600
        %v4602 = vpop.f32.mrb[0].mxu0
        %4603 = vmatprep.mubr.f32.mxu0 0.0
        %4604 = vmatmul.mubr.f32.gmra.mrb[0].mxu0 %v4468
        %v4605 = vpop.f32.mrb[0].mxu0
        %v4606 = vadd.f32 %v4393, %v4605
        %v4607 = vpop.f32.mrb[0].mxu0
        %4608 = vmatprep.mubr.f32.mxu0 0.0
        %4609 = vmatmul.mubr.f32.gmra.mrb[0].mxu0 %v4470
        %v4610 = vpop.f32.mrb[0].mxu0
        %v4611 = vadd.f32 %v4394, %v4610
        %v4612 = vpop.f32.mrb[0].mxu0
        %4613 = vmatprep.mubr.f32.mxu0 0.0
        %4614 = vmatmul.mubr.f32.gmra.mrb[0].mxu0 %v4472
        %v4615 = vpop.f32.mrb[0].mxu0
        %v4616 = vadd.f32 %v4395, %v4615
        %v4617 = vpop.f32.mrb[0].mxu0
        %4618 = vmatprep.mubr.f32.mxu0 0.0
        %4619 = vmatmul.mubr.f32.gmra.mrb[0].mxu0 %v4474
        %v4620 = vpop.f32.mrb[0].mxu0
        %v4621 = vadd.f32 %v4396, %v4620
        %v4622 = vpop.f32.mrb[0].mxu0
        %4623 = vmatprep.mubr.f32.mxu0 0.0
        %4624 = vmatmul.mubr.f32.gmra.mrb[0].mxu0 %v4476
        %v4625 = vpop.f32.mrb[0].mxu0
        %v4626 = vadd.f32 %v4397, %v4625
        %v4627 = vpop.f32.mrb[0].mxu0
        %4628 = vmatprep.mubr.f32.mxu0 0.0
        %4629 = vmatmul.mubr.f32.gmra.mrb[0].mxu0 %v4478
        %v4630 = vpop.f32.mrb[0].mxu0
        %v4631 = vadd.f32 %v4398, %v4630
        %v4632 = vpop.f32.mrb[0].mxu0
        %4633 = vmatprep.mubr.f32.mxu0 0.0
        %4634 = vmatmul.mubr.f32.gmra.mrb[0].mxu0 %v4480
        %v4635 = vpop.f32.mrb[0].mxu0
        %v4636 = vadd.f32 %v4399, %v4635
        %v4637 = vpop.f32.mrb[0].mxu0
        %4638 = vmatprep.mubr.f32.mxu0 0.0
        %4639 = vmatmul.mubr.f32.gmra.mrb[0].mxu0 %v4482
        %v4640 = vpop.f32.mrb[0].mxu0
        %v4641 = vadd.f32 %v4400, %v4640
        %v4642 = vpop.f32.mrb[0].mxu0
        %4643 = vmatprep.mubr.f32.mxu0 0.0
        %4644 = vmatmul.mubr.f32.gmra.mrb[0].mxu0 %v4484
        %v4645 = vpop.f32.mrb[0].mxu0
        %v4646 = vadd.f32 %v4401, %v4645
        %v4647 = vpop.f32.mrb[0].mxu0
        %4648 = vdwg.mxu0
        %v4649 = vsel %vm3763, %v4581, -inf
        %4650 = vmax.xlane.f32.xlu0 %v4649
        %v4651 = vpop.xlane.xlu0 %4650
        %v4652 = vsel %vm3763, %v4586, -inf
        %4653 = vmax.xlane.f32.xlu0 %v4652
        %v4654 = vpop.xlane.xlu0 %4653
        %v4655 = vsel %vm3763, %v4591, -inf
        %4656 = vmax.xlane.f32.xlu0 %v4655
        %v4657 = vpop.xlane.xlu0 %4656
        %v4658 = vsel %vm3763, %v4596, -inf
        %4659 = vmax.xlane.f32.xlu0 %v4658
        %v4660 = vpop.xlane.xlu0 %4659
        %v4661 = vsel %vm3763, %v4601, -inf
        %4662 = vmax.xlane.f32.xlu0 %v4661
        %v4663 = vpop.xlane.xlu0 %4662
        %v4664 = vsel %vm3763, %v4606, -inf
        %4665 = vmax.xlane.f32.xlu0 %v4664
        %v4666 = vpop.xlane.xlu0 %4665
        %v4667 = vsel %vm3763, %v4611, -inf
        %4668 = vmax.xlane.f32.xlu0 %v4667
        %v4669 = vpop.xlane.xlu0 %4668
        %v4670 = vsel %vm3763, %v4616, -inf
        %4671 = vmax.xlane.f32.xlu0 %v4670
        %v4672 = vpop.xlane.xlu0 %4671
        %v4673 = vsel %vm3763, %v4621, -inf
        %4674 = vmax.xlane.f32.xlu0 %v4673
        %v4675 = vpop.xlane.xlu0 %4674
        %v4676 = vsel %vm3763, %v4626, -inf
        %4677 = vmax.xlane.f32.xlu0 %v4676
        %v4678 = vpop.xlane.xlu0 %4677
        %v4679 = vsel %vm3763, %v4631, -inf
        %4680 = vmax.xlane.f32.xlu0 %v4679
        %v4681 = vpop.xlane.xlu0 %4680
        %v4682 = vsel %vm3763, %v4636, -inf
        %4683 = vmax.xlane.f32.xlu0 %v4682
        %v4684 = vpop.xlane.xlu0 %4683
        %v4685 = vsel %vm3763, %v4641, -inf
        %4686 = vmax.xlane.f32.xlu0 %v4685
        %v4687 = vpop.xlane.xlu0 %4686
        %v4688 = vsel %vm3763, %v4646, -inf
        %4689 = vmax.xlane.f32.xlu0 %v4688
        %v4690 = vpop.xlane.xlu0 %4689
        %v4691 = vsub.f32 %v4581, %v4651
        %v4692 = vsub.f32 %v4586, %v4654
        %v4693 = vsub.f32 %v4591, %v4657
        %v4694 = vsub.f32 %v4596, %v4660
        %v4695 = vsub.f32 %v4601, %v4663
        %v4696 = vsub.f32 %v4606, %v4666
        %v4697 = vsub.f32 %v4611, %v4669
        %v4698 = vsub.f32 %v4616, %v4672
        %v4699 = vsub.f32 %v4621, %v4675
        %v4700 = vsub.f32 %v4626, %v4678
        %v4701 = vsub.f32 %v4631, %v4681
        %v4702 = vsub.f32 %v4636, %v4684
        %v4703 = vsub.f32 %v4641, %v4687
        %v4704 = vsub.f32 %v4646, %v4690
        %v4705 = vmul.f32 %v4691, 1.442695
        %v4706 = vpow.pop %v4705
        %v4707 = vmul.f32 %v4692, 1.442695
        %v4708 = vpow.pop %v4707
        %v4709 = vmul.f32 %v4693, 1.442695
        %v4710 = vpow.pop %v4709
        %v4711 = vmul.f32 %v4694, 1.442695
        %v4712 = vpow.pop %v4711
        %v4713 = vmul.f32 %v4695, 1.442695
        %v4714 = vpow.pop %v4713
        %v4715 = vmul.f32 %v4696, 1.442695
        %v4716 = vpow.pop %v4715
        %v4717 = vmul.f32 %v4697, 1.442695
        %v4718 = vpow.pop %v4717
        %v4719 = vmul.f32 %v4698, 1.442695
        %v4720 = vpow.pop %v4719
        %v4721 = vmul.f32 %v4699, 1.442695
        %v4722 = vpow.pop %v4721
        %v4723 = vmul.f32 %v4700, 1.442695
        %v4724 = vpow.pop %v4723
        %v4725 = vmul.f32 %v4701, 1.442695
        %v4726 = vpow.pop %v4725
        %v4727 = vmul.f32 %v4702, 1.442695
        %v4728 = vpow.pop %v4727
        %v4729 = vmul.f32 %v4703, 1.442695
        %v4730 = vpow.pop %v4729
        %v4731 = vmul.f32 %v4704, 1.442695
        %v4732 = vpow.pop %v4731
        %v4733 = vsel %vm3763, %v4706, 0.0
        %4734 = vadd.xlane.f32.xlu0 %v4733
        %v4735 = vpop.xlane.xlu0 %4734
        %v4736 = vsel %vm3763, %v4708, 0.0
        %4737 = vadd.xlane.f32.xlu0 %v4736
        %v4738 = vpop.xlane.xlu0 %4737
        %v4739 = vsel %vm3763, %v4710, 0.0
        %4740 = vadd.xlane.f32.xlu0 %v4739
        %v4741 = vpop.xlane.xlu0 %4740
        %v4742 = vsel %vm3763, %v4712, 0.0
        %4743 = vadd.xlane.f32.xlu0 %v4742
        %v4744 = vpop.xlane.xlu0 %4743
        %v4745 = vsel %vm3763, %v4714, 0.0
        %4746 = vadd.xlane.f32.xlu0 %v4745
        %v4747 = vpop.xlane.xlu0 %4746
        %v4748 = vsel %vm3763, %v4716, 0.0
        %4749 = vadd.xlane.f32.xlu0 %v4748
        %v4750 = vpop.xlane.xlu0 %4749
        %v4751 = vsel %vm3763, %v4718, 0.0
        %4752 = vadd.xlane.f32.xlu0 %v4751
        %v4753 = vpop.xlane.xlu0 %4752
        %v4754 = vsel %vm3763, %v4720, 0.0
        %4755 = vadd.xlane.f32.xlu0 %v4754
        %v4756 = vpop.xlane.xlu0 %4755
        %v4757 = vsel %vm3763, %v4722, 0.0
        %4758 = vadd.xlane.f32.xlu0 %v4757
        %v4759 = vpop.xlane.xlu0 %4758
        %v4760 = vsel %vm3763, %v4724, 0.0
        %4761 = vadd.xlane.f32.xlu0 %v4760
        %v4762 = vpop.xlane.xlu0 %4761
        %v4763 = vsel %vm3763, %v4726, 0.0
        %4764 = vadd.xlane.f32.xlu0 %v4763
        %v4765 = vpop.xlane.xlu0 %4764
        %v4766 = vsel %vm3763, %v4728, 0.0
        %4767 = vadd.xlane.f32.xlu0 %v4766
        %v4768 = vpop.xlane.xlu0 %4767
        %v4769 = vsel %vm3763, %v4730, 0.0
        %4770 = vadd.xlane.f32.xlu0 %v4769
        %v4771 = vpop.xlane.xlu0 %4770
        %v4772 = vsel %vm3763, %v4732, 0.0
        %4773 = vadd.xlane.f32.xlu0 %v4772
        %v4774 = vpop.xlane.xlu0 %4773
        %v4775 = vrcp.pop %v4735
        %v4776 = vrcp.pop %v4738
        %v4777 = vrcp.pop %v4741
        %v4778 = vrcp.pop %v4744
        %v4779 = vrcp.pop %v4747
        %v4780 = vrcp.pop %v4750
        %v4781 = vrcp.pop %v4753
        %v4782 = vrcp.pop %v4756
        %v4783 = vrcp.pop %v4759
        %v4784 = vrcp.pop %v4762
        %v4785 = vrcp.pop %v4765
        %v4786 = vrcp.pop %v4768
        %v4787 = vrcp.pop %v4771
        %v4788 = vrcp.pop %v4774
        %v4789 = vmul.f32 %v4706, %v4775
        %v4790 = vmul.f32 %v4708, %v4776
        %v4791 = vmul.f32 %v4710, %v4777
        %v4792 = vmul.f32 %v4712, %v4778
        %v4793 = vmul.f32 %v4714, %v4779
        %v4794 = vmul.f32 %v4716, %v4780
        %v4795 = vmul.f32 %v4718, %v4781
        %v4796 = vmul.f32 %v4720, %v4782
        %v4797 = vmul.f32 %v4722, %v4783
        %v4798 = vmul.f32 %v4724, %v4784
        %v4799 = vmul.f32 %v4726, %v4785
        %v4800 = vmul.f32 %v4728, %v4786
        %v4801 = vmul.f32 %v4730, %v4787
        %v4802 = vmul.f32 %v4732, %v4788
        %4803 = vrot.lane.b32.xlu0 %v3069, 56
        %v4804 = vpop.permute.xlu0 %4803
        %4805 = vrot.lane.b32.xlu0 %v3074, 56
        %v4806 = vpop.permute.xlu0 %4805
        %4807 = vrot.lane.b32.xlu0 %v3079, 56
        %v4808 = vpop.permute.xlu0 %4807
        %4809 = vrot.lane.b32.xlu0 %v3084, 56
        %v4810 = vpop.permute.xlu0 %4809
        %4811 = vrot.lane.b32.xlu0 %v3089, 56
        %v4812 = vpop.permute.xlu0 %4811
        %4813 = vrot.lane.b32.xlu0 %v3094, 56
        %v4814 = vpop.permute.xlu0 %4813
        %4815 = vrot.lane.b32.xlu0 %v3099, 56
        %v4816 = vpop.permute.xlu0 %4815
        %4817 = vrot.lane.b32.xlu0 %v3104, 56
        %v4818 = vpop.permute.xlu0 %4817
        %4819 = vrot.lane.b32.xlu0 %v3109, 56
        %v4820 = vpop.permute.xlu0 %4819
        %4821 = vrot.lane.b32.xlu0 %v3114, 56
        %v4822 = vpop.permute.xlu0 %4821
        %4823 = vrot.lane.b32.xlu0 %v3119, 56
        %v4824 = vpop.permute.xlu0 %4823
        %4825 = vrot.lane.b32.xlu0 %v3124, 56
        %v4826 = vpop.permute.xlu0 %4825
        %4827 = vrot.lane.b32.xlu0 %v3129, 56
        %v4828 = vpop.permute.xlu0 %4827
        %4829 = vrot.lane.b32.xlu0 %v3134, 56
        %v4830 = vpop.permute.xlu0 %4829
        %v4846 = vsel %vm3763, %v4789, 0
        %v4849 = vsel %vm3763, %v4790, 0
        %v4852 = vsel %vm3763, %v4791, 0
        %v4855 = vsel %vm3763, %v4792, 0
        %v4858 = vsel %vm3763, %v4793, 0
        %v4861 = vsel %vm3763, %v4794, 0
        %v4864 = vsel %vm3763, %v4795, 0
        %v4867 = vsel %vm3763, %v4796, 0
        %v4870 = vsel %vm3763, %v4797, 0
        %v4873 = vsel %vm3763, %v4798, 0
        %v4876 = vsel %vm3763, %v4799, 0
        %v4879 = vsel %vm3763, %v4800, 0
        %v4882 = vsel %vm3763, %v4801, 0
        %v4885 = vsel %vm3763, %v4802, 0
        %4887 = vmatprep.subr.mxu0 0.0
        %4888 = vmatpush1.msra.mxu0 %v4804
        %4889 = vmatprep.subr.mxu0 0.0
        %4890 = vmatpush1.msra.mxu0 %v4806
        %4891 = vmatprep.subr.mxu0 0.0
        %4892 = vmatpush1.msra.mxu0 %v4808
        %4893 = vmatprep.subr.mxu0 0.0
        %4894 = vmatpush1.msra.mxu0 %v4810
        %4895 = vmatprep.subr.mxu0 0.0
        %4896 = vmatpush1.msra.mxu0 %v4812
        %4897 = vmatprep.subr.mxu0 0.0
        %4898 = vmatpush1.msra.mxu0 %v4814
        %4899 = vmatprep.subr.mxu0 0.0
        %4900 = vmatpush1.msra.mxu0 %v4816
        %4901 = vmatprep.subr.mxu0 0.0
        %4902 = vmatpush1.msra.mxu0 %v4818
        %4903 = vmatprep.subr.mxu0 0.0
        %4904 = vmatpush1.msra.mxu0 %v4820
        %4905 = vmatprep.subr.mxu0 0.0
        %4906 = vmatpush1.msra.mxu0 %v4822
        %4907 = vmatprep.subr.mxu0 0.0
        %4908 = vmatpush1.msra.mxu0 %v4824
        %4909 = vmatprep.subr.mxu0 0.0
        %4910 = vmatpush1.msra.mxu0 %v4826
        %4911 = vmatprep.subr.mxu0 0.0
        %4912 = vmatpush1.msra.mxu0 %v4828
        %4913 = vmatprep.subr.mxu0 0.0
        %4914 = vmatpush1.msra.mxu0 %v4830
        %4915 = vmatprep.subr.mxu0 0.0
        %4916 = vmatpush1.msra.mxu0 0.0
        %4917 = vmatprep.subr.mxu0 0.0
        %4918 = vmatpush1.msra.mxu0 0.0
        %4919 = vmatprep.subr.mxu0 0.0
        %4920 = vmatpush1.msra.mxu0 0.0
        %4921 = vmatprep.subr.mxu0 0.0
        %4922 = vmatpush1.msra.mxu0 0.0
        %4923 = vmatprep.subr.mxu0 0.0
        %4924 = vmatpush1.msra.mxu0 0.0
        %4925 = vmatprep.subr.mxu0 0.0
        %4926 = vmatpush1.msra.mxu0 0.0
        %4927 = vmatprep.subr.mxu0 0.0
        %4928 = vmatpush1.msra.mxu0 0.0
        %4929 = vmatprep.subr.mxu0 0.0
        %4930 = vmatpush1.msra.mxu0 0.0
        %4931 = vmatprep.subr.mxu0 0.0
        %4932 = vmatpush1.msra.mxu0 0.0
        %4933 = vmatprep.subr.mxu0 0.0
        %4934 = vmatpush1.msra.mxu0 0.0
        %4935 = vmatprep.subr.mxu0 0.0
        %4936 = vmatpush1.msra.mxu0 0.0
        %4937 = vmatprep.subr.mxu0 0.0
        %4938 = vmatpush1.msra.mxu0 0.0
        %4939 = vmatprep.subr.mxu0 0.0
        %4940 = vmatpush1.msra.mxu0 0.0
        %4941 = vmatprep.subr.mxu0 0.0
        %4942 = vmatpush1.msra.mxu0 0.0
        %4943 = vmatprep.subr.mxu0 0.0
        %4944 = vmatpush1.msra.mxu0 0.0
        %4945 = vmatprep.subr.mxu0 0.0
        %4946 = vmatpush1.msra.mxu0 0.0
        %4947 = vmatprep.subr.mxu0 0.0
        %4948 = vmatpush1.msra.mxu0 0.0
        %4949 = vmatprep.subr.mxu0 0.0
        %4950 = vmatpush1.msra.mxu0 0.0
        %4951 = vmatprep.mubr.f32.mxu0 0.0
        %4952 = vmatmul.mubr.f32.gmra.mrb[0].mxu0 %v4846
        %v4953 = vpop.f32.mrb[0].mxu0
        %v4954 = vadd.f32 0.0, %v4953
        %v4955 = vpop.f32.mrb[0].mxu0
        %4956 = vmatprep.mubr.f32.mxu0 0.0
        %4957 = vmatmul.mubr.f32.gmra.mrb[0].mxu0 %v4849
        %v4958 = vpop.f32.mrb[0].mxu0
        %v4959 = vadd.f32 0.0, %v4958
        %v4960 = vpop.f32.mrb[0].mxu0
        %4961 = vmatprep.mubr.f32.mxu0 0.0
        %4962 = vmatmul.mubr.f32.gmra.mrb[0].mxu0 %v4852
        %v4963 = vpop.f32.mrb[0].mxu0
        %v4964 = vadd.f32 0.0, %v4963
        %v4965 = vpop.f32.mrb[0].mxu0
        %4966 = vmatprep.mubr.f32.mxu0 0.0
        %4967 = vmatmul.mubr.f32.gmra.mrb[0].mxu0 %v4855
        %v4968 = vpop.f32.mrb[0].mxu0
        %v4969 = vadd.f32 0.0, %v4968
        %v4970 = vpop.f32.mrb[0].mxu0
        %4971 = vmatprep.mubr.f32.mxu0 0.0
        %4972 = vmatmul.mubr.f32.gmra.mrb[0].mxu0 %v4858
        %v4973 = vpop.f32.mrb[0].mxu0
        %v4974 = vadd.f32 0.0, %v4973
        %v4975 = vpop.f32.mrb[0].mxu0
        %4976 = vmatprep.mubr.f32.mxu0 0.0
        %4977 = vmatmul.mubr.f32.gmra.mrb[0].mxu0 %v4861
        %v4978 = vpop.f32.mrb[0].mxu0
        %v4979 = vadd.f32 0.0, %v4978
        %v4980 = vpop.f32.mrb[0].mxu0
        %4981 = vmatprep.mubr.f32.mxu0 0.0
        %4982 = vmatmul.mubr.f32.gmra.mrb[0].mxu0 %v4864
        %v4983 = vpop.f32.mrb[0].mxu0
        %v4984 = vadd.f32 0.0, %v4983
        %v4985 = vpop.f32.mrb[0].mxu0
        %4986 = vmatprep.mubr.f32.mxu0 0.0
        %4987 = vmatmul.mubr.f32.gmra.mrb[0].mxu0 %v4867
        %v4988 = vpop.f32.mrb[0].mxu0
        %v4989 = vadd.f32 0.0, %v4988
        %v4990 = vpop.f32.mrb[0].mxu0
        %4991 = vmatprep.mubr.f32.mxu0 0.0
        %4992 = vmatmul.mubr.f32.gmra.mrb[0].mxu0 %v4870
        %v4993 = vpop.f32.mrb[0].mxu0
        %v4994 = vadd.f32 0.0, %v4993
        %v4995 = vpop.f32.mrb[0].mxu0
        %4996 = vmatprep.mubr.f32.mxu0 0.0
        %4997 = vmatmul.mubr.f32.gmra.mrb[0].mxu0 %v4873
        %v4998 = vpop.f32.mrb[0].mxu0
        %v4999 = vadd.f32 0.0, %v4998
        %v5000 = vpop.f32.mrb[0].mxu0
        %5001 = vmatprep.mubr.f32.mxu0 0.0
        %5002 = vmatmul.mubr.f32.gmra.mrb[0].mxu0 %v4876
        %v5003 = vpop.f32.mrb[0].mxu0
        %v5004 = vadd.f32 0.0, %v5003
        %v5005 = vpop.f32.mrb[0].mxu0
        %5006 = vmatprep.mubr.f32.mxu0 0.0
        %5007 = vmatmul.mubr.f32.gmra.mrb[0].mxu0 %v4879
        %v5008 = vpop.f32.mrb[0].mxu0
        %v5009 = vadd.f32 0.0, %v5008
        %v5010 = vpop.f32.mrb[0].mxu0
        %5011 = vmatprep.mubr.f32.mxu0 0.0
        %5012 = vmatmul.mubr.f32.gmra.mrb[0].mxu0 %v4882
        %v5013 = vpop.f32.mrb[0].mxu0
        %v5014 = vadd.f32 0.0, %v5013
        %v5015 = vpop.f32.mrb[0].mxu0
        %5016 = vmatprep.mubr.f32.mxu0 0.0
        %5017 = vmatmul.mubr.f32.gmra.mrb[0].mxu0 %v4885
        %v5018 = vpop.f32.mrb[0].mxu0
        %v5019 = vadd.f32 0.0, %v5018
        %v5020 = vpop.f32.mrb[0].mxu0
        %5021 = vdwg.mxu0
        %s5022 = sadd.s32 %s3137, 2
        %s5023 = sld [smem:[#allocation7 + %s5022]]
        %v5024 = vstv %s5023
        %v5025 = vadd.f32 %v2102, %v5024
        %v5026 = vadd.f32 %v2103, %v5024
        %v5027 = vadd.f32 %v2104, %v5024
        %v5028 = vadd.f32 %v2105, %v5024
        %v5029 = vadd.f32 %v2106, %v5024
        %v5030 = vadd.f32 %v2107, %v5024
        %v5031 = vadd.f32 %v2108, %v5024
        %v5032 = vadd.f32 %v2109, %v5024
        %v5033 = vadd.f32 %v2110, %v5024
        %v5034 = vadd.f32 %v2111, %v5024
        %v5035 = vadd.f32 %v2112, %v5024
        %v5036 = vadd.f32 %v2113, %v5024
        %v5037 = vadd.f32 %v2114, %v5024
        %v5038 = vadd.f32 %v2115, %v5024
        %s5039 = sadd.s32 %s3169, 2
        %s5040 = sld [smem:[#allocation5 + %s5039]]
        %v5041 = vstv %s5040
        %v5042 = vmul.f32 %v3154, %v5041
        %v5043 = vmul.f32 %v3155, %v5041
        %v5044 = vmul.f32 %v3156, %v5041
        %v5045 = vmul.f32 %v3157, %v5041
        %v5046 = vmul.f32 %v3158, %v5041
        %v5047 = vmul.f32 %v3159, %v5041
        %v5048 = vmul.f32 %v3160, %v5041
        %v5049 = vmul.f32 %v3161, %v5041
        %v5050 = vmul.f32 %v3162, %v5041
        %v5051 = vmul.f32 %v3163, %v5041
        %v5052 = vmul.f32 %v3164, %v5041
        %v5053 = vmul.f32 %v3165, %v5041
        %v5054 = vmul.f32 %v3166, %v5041
        %v5055 = vmul.f32 %v3167, %v5041
        %v5056 = vadd.f32 %v5025, %v5042
        %v5057 = vadd.f32 %v5026, %v5043
        %v5058 = vadd.f32 %v5027, %v5044
        %v5059 = vadd.f32 %v5028, %v5045
        %v5060 = vadd.f32 %v5029, %v5046
        %v5061 = vadd.f32 %v5030, %v5047
        %v5062 = vadd.f32 %v5031, %v5048
        %v5063 = vadd.f32 %v5032, %v5049
        %v5064 = vadd.f32 %v5033, %v5050
        %v5065 = vadd.f32 %v5034, %v5051
        %v5066 = vadd.f32 %v5035, %v5052
        %v5067 = vadd.f32 %v5036, %v5053
        %v5068 = vadd.f32 %v5037, %v5054
        %v5069 = vadd.f32 %v5038, %v5055
        %s5070 = sadd.s32 %s3216, 2
        %s5071 = sld [smem:[#allocation5 + %s5070]]
        %v5072 = vstv %s5071
        %v5073 = vmul.f32 %v3201, %v5072
        %v5074 = vmul.f32 %v3202, %v5072
        %v5075 = vmul.f32 %v3203, %v5072
        %v5076 = vmul.f32 %v3204, %v5072
        %v5077 = vmul.f32 %v3205, %v5072
        %v5078 = vmul.f32 %v3206, %v5072
        %v5079 = vmul.f32 %v3207, %v5072
        %v5080 = vmul.f32 %v3208, %v5072
        %v5081 = vmul.f32 %v3209, %v5072
        %v5082 = vmul.f32 %v3210, %v5072
        %v5083 = vmul.f32 %v3211, %v5072
        %v5084 = vmul.f32 %v3212, %v5072
        %v5085 = vmul.f32 %v3213, %v5072
        %v5086 = vmul.f32 %v3214, %v5072
        %v5087 = vadd.f32 %v5056, %v5073
        %v5088 = vadd.f32 %v5057, %v5074
        %v5089 = vadd.f32 %v5058, %v5075
        %v5090 = vadd.f32 %v5059, %v5076
        %v5091 = vadd.f32 %v5060, %v5077
        %v5092 = vadd.f32 %v5061, %v5078
        %v5093 = vadd.f32 %v5062, %v5079
        %v5094 = vadd.f32 %v5063, %v5080
        %v5095 = vadd.f32 %v5064, %v5081
        %v5096 = vadd.f32 %v5065, %v5082
        %v5097 = vadd.f32 %v5066, %v5083
        %v5098 = vadd.f32 %v5067, %v5084
        %v5099 = vadd.f32 %v5068, %v5085
        %v5100 = vadd.f32 %v5069, %v5086
        %s5101 = sadd.s32 %s3263, 2
        %s5102 = sld [smem:[#allocation5 + %s5101]]
        %v5103 = vstv %s5102
        %v5104 = vmul.f32 %v3248, %v5103
        %v5105 = vmul.f32 %v3249, %v5103
        %v5106 = vmul.f32 %v3250, %v5103
        %v5107 = vmul.f32 %v3251, %v5103
        %v5108 = vmul.f32 %v3252, %v5103
        %v5109 = vmul.f32 %v3253, %v5103
        %v5110 = vmul.f32 %v3254, %v5103
        %v5111 = vmul.f32 %v3255, %v5103
        %v5112 = vmul.f32 %v3256, %v5103
        %v5113 = vmul.f32 %v3257, %v5103
        %v5114 = vmul.f32 %v3258, %v5103
        %v5115 = vmul.f32 %v3259, %v5103
        %v5116 = vmul.f32 %v3260, %v5103
        %v5117 = vmul.f32 %v3261, %v5103
        %v5118 = vadd.f32 %v5087, %v5104
        %v5119 = vadd.f32 %v5088, %v5105
        %v5120 = vadd.f32 %v5089, %v5106
        %v5121 = vadd.f32 %v5090, %v5107
        %v5122 = vadd.f32 %v5091, %v5108
        %v5123 = vadd.f32 %v5092, %v5109
        %v5124 = vadd.f32 %v5093, %v5110
        %v5125 = vadd.f32 %v5094, %v5111
        %v5126 = vadd.f32 %v5095, %v5112
        %v5127 = vadd.f32 %v5096, %v5113
        %v5128 = vadd.f32 %v5097, %v5114
        %v5129 = vadd.f32 %v5098, %v5115
        %v5130 = vadd.f32 %v5099, %v5116
        %v5131 = vadd.f32 %v5100, %v5117
        %s5132 = sadd.s32 %s3310, 2
        %s5133 = sld [smem:[#allocation5 + %s5132]]
        %v5134 = vstv %s5133
        %v5135 = vmul.f32 %v3295, %v5134
        %v5136 = vmul.f32 %v3296, %v5134
        %v5137 = vmul.f32 %v3297, %v5134
        %v5138 = vmul.f32 %v3298, %v5134
        %v5139 = vmul.f32 %v3299, %v5134
        %v5140 = vmul.f32 %v3300, %v5134
        %v5141 = vmul.f32 %v3301, %v5134
        %v5142 = vmul.f32 %v3302, %v5134
        %v5143 = vmul.f32 %v3303, %v5134
        %v5144 = vmul.f32 %v3304, %v5134
        %v5145 = vmul.f32 %v3305, %v5134
        %v5146 = vmul.f32 %v3306, %v5134
        %v5147 = vmul.f32 %v3307, %v5134
        %v5148 = vmul.f32 %v3308, %v5134
        %v5149 = vadd.f32 %v5118, %v5135
        %v5150 = vadd.f32 %v5119, %v5136
        %v5151 = vadd.f32 %v5120, %v5137
        %v5152 = vadd.f32 %v5121, %v5138
        %v5153 = vadd.f32 %v5122, %v5139
        %v5154 = vadd.f32 %v5123, %v5140
        %v5155 = vadd.f32 %v5124, %v5141
        %v5156 = vadd.f32 %v5125, %v5142
        %v5157 = vadd.f32 %v5126, %v5143
        %v5158 = vadd.f32 %v5127, %v5144
        %v5159 = vadd.f32 %v5128, %v5145
        %v5160 = vadd.f32 %v5129, %v5146
        %v5161 = vadd.f32 %v5130, %v5147
        %v5162 = vadd.f32 %v5131, %v5148
        %s5163 = sadd.s32 %s3357, 2
        %s5164 = sld [smem:[#allocation5 + %s5163]]
        %v5165 = vstv %s5164
        %v5166 = vmul.f32 %v3342, %v5165
        %v5167 = vmul.f32 %v3343, %v5165
        %v5168 = vmul.f32 %v3344, %v5165
        %v5169 = vmul.f32 %v3345, %v5165
        %v5170 = vmul.f32 %v3346, %v5165
        %v5171 = vmul.f32 %v3347, %v5165
        %v5172 = vmul.f32 %v3348, %v5165
        %v5173 = vmul.f32 %v3349, %v5165
        %v5174 = vmul.f32 %v3350, %v5165
        %v5175 = vmul.f32 %v3351, %v5165
        %v5176 = vmul.f32 %v3352, %v5165
        %v5177 = vmul.f32 %v3353, %v5165
        %v5178 = vmul.f32 %v3354, %v5165
        %v5179 = vmul.f32 %v3355, %v5165
        %v5180 = vadd.f32 %v5149, %v5166
        %v5181 = vadd.f32 %v5150, %v5167
        %v5182 = vadd.f32 %v5151, %v5168
        %v5183 = vadd.f32 %v5152, %v5169
        %v5184 = vadd.f32 %v5153, %v5170
        %v5185 = vadd.f32 %v5154, %v5171
        %v5186 = vadd.f32 %v5155, %v5172
        %v5187 = vadd.f32 %v5156, %v5173
        %v5188 = vadd.f32 %v5157, %v5174
        %v5189 = vadd.f32 %v5158, %v5175
        %v5190 = vadd.f32 %v5159, %v5176
        %v5191 = vadd.f32 %v5160, %v5177
        %v5192 = vadd.f32 %v5161, %v5178
        %v5193 = vadd.f32 %v5162, %v5179
        %s5194 = sadd.s32 %s3404, 2
        %s5195 = sld [smem:[#allocation5 + %s5194]]
        %v5196 = vstv %s5195
        %v5197 = vmul.f32 %v3389, %v5196
        %v5198 = vmul.f32 %v3390, %v5196
        %v5199 = vmul.f32 %v3391, %v5196
        %v5200 = vmul.f32 %v3392, %v5196
        %v5201 = vmul.f32 %v3393, %v5196
        %v5202 = vmul.f32 %v3394, %v5196
        %v5203 = vmul.f32 %v3395, %v5196
        %v5204 = vmul.f32 %v3396, %v5196
        %v5205 = vmul.f32 %v3397, %v5196
        %v5206 = vmul.f32 %v3398, %v5196
        %v5207 = vmul.f32 %v3399, %v5196
        %v5208 = vmul.f32 %v3400, %v5196
        %v5209 = vmul.f32 %v3401, %v5196
        %v5210 = vmul.f32 %v3402, %v5196
        %v5211 = vadd.f32 %v5180, %v5197
        %v5212 = vadd.f32 %v5181, %v5198
        %v5213 = vadd.f32 %v5182, %v5199
        %v5214 = vadd.f32 %v5183, %v5200
        %v5215 = vadd.f32 %v5184, %v5201
        %v5216 = vadd.f32 %v5185, %v5202
        %v5217 = vadd.f32 %v5186, %v5203
        %v5218 = vadd.f32 %v5187, %v5204
        %v5219 = vadd.f32 %v5188, %v5205
        %v5220 = vadd.f32 %v5189, %v5206
        %v5221 = vadd.f32 %v5190, %v5207
        %v5222 = vadd.f32 %v5191, %v5208
        %v5223 = vadd.f32 %v5192, %v5209
        %v5224 = vadd.f32 %v5193, %v5210
        %s5225 = sadd.s32 %s3451, 2
        %s5226 = sld [smem:[#allocation5 + %s5225]]
        %v5227 = vstv %s5226
        %v5228 = vmul.f32 %v3436, %v5227
        %v5229 = vmul.f32 %v3437, %v5227
        %v5230 = vmul.f32 %v3438, %v5227
        %v5231 = vmul.f32 %v3439, %v5227
        %v5232 = vmul.f32 %v3440, %v5227
        %v5233 = vmul.f32 %v3441, %v5227
        %v5234 = vmul.f32 %v3442, %v5227
        %v5235 = vmul.f32 %v3443, %v5227
        %v5236 = vmul.f32 %v3444, %v5227
        %v5237 = vmul.f32 %v3445, %v5227
        %v5238 = vmul.f32 %v3446, %v5227
        %v5239 = vmul.f32 %v3447, %v5227
        %v5240 = vmul.f32 %v3448, %v5227
        %v5241 = vmul.f32 %v3449, %v5227
        %v5242 = vadd.f32 %v5211, %v5228
        %v5243 = vadd.f32 %v5212, %v5229
        %v5244 = vadd.f32 %v5213, %v5230
        %v5245 = vadd.f32 %v5214, %v5231
        %v5246 = vadd.f32 %v5215, %v5232
        %v5247 = vadd.f32 %v5216, %v5233
        %v5248 = vadd.f32 %v5217, %v5234
        %v5249 = vadd.f32 %v5218, %v5235
        %v5250 = vadd.f32 %v5219, %v5236
        %v5251 = vadd.f32 %v5220, %v5237
        %v5252 = vadd.f32 %v5221, %v5238
        %v5253 = vadd.f32 %v5222, %v5239
        %v5254 = vadd.f32 %v5223, %v5240
        %v5255 = vadd.f32 %v5224, %v5241
        %s5256 = sadd.s32 %s3498, 2
        %s5257 = sld [smem:[#allocation5 + %s5256]]
        %v5258 = vstv %s5257
        %v5259 = vmul.f32 %v3483, %v5258
        %v5260 = vmul.f32 %v3484, %v5258
        %v5261 = vmul.f32 %v3485, %v5258
        %v5262 = vmul.f32 %v3486, %v5258
        %v5263 = vmul.f32 %v3487, %v5258
        %v5264 = vmul.f32 %v3488, %v5258
        %v5265 = vmul.f32 %v3489, %v5258
        %v5266 = vmul.f32 %v3490, %v5258
        %v5267 = vmul.f32 %v3491, %v5258
        %v5268 = vmul.f32 %v3492, %v5258
        %v5269 = vmul.f32 %v3493, %v5258
        %v5270 = vmul.f32 %v3494, %v5258
        %v5271 = vmul.f32 %v3495, %v5258
        %v5272 = vmul.f32 %v3496, %v5258
        %v5273 = vadd.f32 %v5242, %v5259
        %v5274 = vadd.f32 %v5243, %v5260
        %v5275 = vadd.f32 %v5244, %v5261
        %v5276 = vadd.f32 %v5245, %v5262
        %v5277 = vadd.f32 %v5246, %v5263
        %v5278 = vadd.f32 %v5247, %v5264
        %v5279 = vadd.f32 %v5248, %v5265
        %v5280 = vadd.f32 %v5249, %v5266
        %v5281 = vadd.f32 %v5250, %v5267
        %v5282 = vadd.f32 %v5251, %v5268
        %v5283 = vadd.f32 %v5252, %v5269
        %v5284 = vadd.f32 %v5253, %v5270
        %v5285 = vadd.f32 %v5254, %v5271
        %v5286 = vadd.f32 %v5255, %v5272
        %5287 = vrot.lane.b32.xlu0 %v3069, 112
        %v5288 = vpop.permute.xlu0 %5287
        %5289 = vrot.lane.b32.xlu0 %v3074, 112
        %v5290 = vpop.permute.xlu0 %5289
        %5291 = vrot.lane.b32.xlu0 %v3079, 112
        %v5292 = vpop.permute.xlu0 %5291
        %5293 = vrot.lane.b32.xlu0 %v3084, 112
        %v5294 = vpop.permute.xlu0 %5293
        %5295 = vrot.lane.b32.xlu0 %v3089, 112
        %v5296 = vpop.permute.xlu0 %5295
        %5297 = vrot.lane.b32.xlu0 %v3094, 112
        %v5298 = vpop.permute.xlu0 %5297
        %5299 = vrot.lane.b32.xlu0 %v3099, 112
        %v5300 = vpop.permute.xlu0 %5299
        %5301 = vrot.lane.b32.xlu0 %v3104, 112
        %v5302 = vpop.permute.xlu0 %5301
        %5303 = vrot.lane.b32.xlu0 %v3109, 112
        %v5304 = vpop.permute.xlu0 %5303
        %5305 = vrot.lane.b32.xlu0 %v3114, 112
        %v5306 = vpop.permute.xlu0 %5305
        %5307 = vrot.lane.b32.xlu0 %v3119, 112
        %v5308 = vpop.permute.xlu0 %5307
        %5309 = vrot.lane.b32.xlu0 %v3124, 112
        %v5310 = vpop.permute.xlu0 %5309
        %5311 = vrot.lane.b32.xlu0 %v3129, 112
        %v5312 = vpop.permute.xlu0 %5311
        %5313 = vrot.lane.b32.xlu0 %v3134, 112
        %v5314 = vpop.permute.xlu0 %5313
        %5315 = vrot.lane.b32.xlu0 %v3069, 80
        %v5316 = vpop.permute.xlu0 %5315
        %5317 = vrot.lane.b32.xlu0 %v3074, 80
        %v5318 = vpop.permute.xlu0 %5317
        %5319 = vrot.lane.b32.xlu0 %v3079, 80
        %v5320 = vpop.permute.xlu0 %5319
        %5321 = vrot.lane.b32.xlu0 %v3084, 80
        %v5322 = vpop.permute.xlu0 %5321
        %5323 = vrot.lane.b32.xlu0 %v3089, 80
        %v5324 = vpop.permute.xlu0 %5323
        %5325 = vrot.lane.b32.xlu0 %v3094, 80
        %v5326 = vpop.permute.xlu0 %5325
        %5327 = vrot.lane.b32.xlu0 %v3099, 80
        %v5328 = vpop.permute.xlu0 %5327
        %5329 = vrot.lane.b32.xlu0 %v3104, 80
        %v5330 = vpop.permute.xlu0 %5329
        %5331 = vrot.lane.b32.xlu0 %v3109, 80
        %v5332 = vpop.permute.xlu0 %5331
        %5333 = vrot.lane.b32.xlu0 %v3114, 80
        %v5334 = vpop.permute.xlu0 %5333
        %5335 = vrot.lane.b32.xlu0 %v3119, 80
        %v5336 = vpop.permute.xlu0 %5335
        %5337 = vrot.lane.b32.xlu0 %v3124, 80
        %v5338 = vpop.permute.xlu0 %5337
        %5339 = vrot.lane.b32.xlu0 %v3129, 80
        %v5340 = vpop.permute.xlu0 %5339
        %5341 = vrot.lane.b32.xlu0 %v3134, 80
        %v5342 = vpop.permute.xlu0 %5341
        %v5343 = vsel %vm3571, %v5288, 0
        %v5345 = vsel %vm3571, %v5290, 0
        %v5347 = vsel %vm3571, %v5292, 0
        %v5349 = vsel %vm3571, %v5294, 0
        %v5351 = vsel %vm3571, %v5296, 0
        %v5353 = vsel %vm3571, %v5298, 0
        %v5355 = vsel %vm3571, %v5300, 0
        %v5357 = vsel %vm3571, %v5302, 0
        %v5359 = vsel %vm3571, %v5304, 0
        %v5361 = vsel %vm3571, %v5306, 0
        %v5363 = vsel %vm3571, %v5308, 0
        %v5365 = vsel %vm3571, %v5310, 0
        %v5367 = vsel %vm3571, %v5312, 0
        %v5369 = vsel %vm3571, %v5314, 0
        %v5371 = vsel %vm3571, %v5316, 0
        %v5373 = vsel %vm3571, %v5318, 0
        %v5375 = vsel %vm3571, %v5320, 0
        %v5377 = vsel %vm3571, %v5322, 0
        %v5379 = vsel %vm3571, %v5324, 0
        %v5381 = vsel %vm3571, %v5326, 0
        %v5383 = vsel %vm3571, %v5328, 0
        %v5385 = vsel %vm3571, %v5330, 0
        %v5387 = vsel %vm3571, %v5332, 0
        %v5389 = vsel %vm3571, %v5334, 0
        %v5391 = vsel %vm3571, %v5336, 0
        %v5393 = vsel %vm3571, %v5338, 0
        %v5395 = vsel %vm3571, %v5340, 0
        %v5397 = vsel %vm3571, %v5342, 0
        %5399 = vmatprep.subr.mxu0 0.0
        %5400 = vmatpush1.xpose.msra.mxu0 %v5371
        %5401 = vmatprep.subr.mxu0 0.0
        %5402 = vmatpush1.xpose.msra.mxu0 %v5373
        %5403 = vmatprep.subr.mxu0 0.0
        %5404 = vmatpush1.xpose.msra.mxu0 %v5375
        %5405 = vmatprep.subr.mxu0 0.0
        %5406 = vmatpush1.xpose.msra.mxu0 %v5377
        %5407 = vmatprep.subr.mxu0 0.0
        %5408 = vmatpush1.xpose.msra.mxu0 %v5379
        %5409 = vmatprep.subr.mxu0 0.0
        %5410 = vmatpush1.xpose.msra.mxu0 %v5381
        %5411 = vmatprep.subr.mxu0 0.0
        %5412 = vmatpush1.xpose.msra.mxu0 %v5383
        %5413 = vmatprep.subr.mxu0 0.0
        %5414 = vmatpush1.xpose.msra.mxu0 %v5385
        %5415 = vmatprep.subr.mxu0 0.0
        %5416 = vmatpush1.xpose.msra.mxu0 %v5387
        %5417 = vmatprep.subr.mxu0 0.0
        %5418 = vmatpush1.xpose.msra.mxu0 %v5389
        %5419 = vmatprep.subr.mxu0 0.0
        %5420 = vmatpush1.xpose.msra.mxu0 %v5391
        %5421 = vmatprep.subr.mxu0 0.0
        %5422 = vmatpush1.xpose.msra.mxu0 %v5393
        %5423 = vmatprep.subr.mxu0 0.0
        %5424 = vmatpush1.xpose.msra.mxu0 %v5395
        %5425 = vmatprep.subr.mxu0 0.0
        %5426 = vmatpush1.xpose.msra.mxu0 %v5397
        %5427 = vmatprep.subr.mxu0 0.0
        %5428 = vmatpush1.xpose.msra.mxu0 0.0
        %5429 = vmatprep.subr.mxu0 0.0
        %5430 = vmatpush1.xpose.msra.mxu0 0.0
        %5431 = vmatprep.subr.mxu0 0.0
        %5432 = vmatpush1.xpose.msra.mxu0 0.0
        %5433 = vmatprep.subr.mxu0 0.0
        %5434 = vmatpush1.xpose.msra.mxu0 0.0
        %5435 = vmatprep.subr.mxu0 0.0
        %5436 = vmatpush1.xpose.msra.mxu0 0.0
        %5437 = vmatprep.subr.mxu0 0.0
        %5438 = vmatpush1.xpose.msra.mxu0 0.0
        %5439 = vmatprep.subr.mxu0 0.0
        %5440 = vmatpush1.xpose.msra.mxu0 0.0
        %5441 = vmatprep.subr.mxu0 0.0
        %5442 = vmatpush1.xpose.msra.mxu0 0.0
        %5443 = vmatprep.subr.mxu0 0.0
        %5444 = vmatpush1.xpose.msra.mxu0 0.0
        %5445 = vmatprep.subr.mxu0 0.0
        %5446 = vmatpush1.xpose.msra.mxu0 0.0
        %5447 = vmatprep.subr.mxu0 0.0
        %5448 = vmatpush1.xpose.msra.mxu0 0.0
        %5449 = vmatprep.subr.mxu0 0.0
        %5450 = vmatpush1.xpose.msra.mxu0 0.0
        %5451 = vmatprep.subr.mxu0 0.0
        %5452 = vmatpush1.xpose.msra.mxu0 0.0
        %5453 = vmatprep.subr.mxu0 0.0
        %5454 = vmatpush1.xpose.msra.mxu0 0.0
        %5455 = vmatprep.subr.mxu0 0.0
        %5456 = vmatpush1.xpose.msra.mxu0 0.0
        %5457 = vmatprep.subr.mxu0 0.0
        %5458 = vmatpush1.xpose.msra.mxu0 0.0
        %5459 = vmatprep.subr.mxu0 0.0
        %5460 = vmatpush1.xpose.msra.mxu0 0.0
        %5461 = vmatprep.subr.mxu0 0.0
        %5462 = vmatpush1.xpose.msra.mxu0 0.0
        %5463 = vmatprep.mubr.f32.mxu0 0.0
        %5464 = vmatmul.mubr.f32.gmra.mrb[0].mxu0 %v5343
        %v5465 = vpop.f32.mrb[0].mxu0
        %v5466 = vadd.f32 %v5273, %v5465
        %v5467 = vpop.f32.mrb[0].mxu0
        %5468 = vmatprep.mubr.f32.mxu0 0.0
        %5469 = vmatmul.mubr.f32.gmra.mrb[0].mxu0 %v5345
        %v5470 = vpop.f32.mrb[0].mxu0
        %v5471 = vadd.f32 %v5274, %v5470
        %v5472 = vpop.f32.mrb[0].mxu0
        %5473 = vmatprep.mubr.f32.mxu0 0.0
        %5474 = vmatmul.mubr.f32.gmra.mrb[0].mxu0 %v5347
        %v5475 = vpop.f32.mrb[0].mxu0
        %v5476 = vadd.f32 %v5275, %v5475
        %v5477 = vpop.f32.mrb[0].mxu0
        %5478 = vmatprep.mubr.f32.mxu0 0.0
        %5479 = vmatmul.mubr.f32.gmra.mrb[0].mxu0 %v5349
        %v5480 = vpop.f32.mrb[0].mxu0
        %v5481 = vadd.f32 %v5276, %v5480
        %v5482 = vpop.f32.mrb[0].mxu0
        %5483 = vmatprep.mubr.f32.mxu0 0.0
        %5484 = vmatmul.mubr.f32.gmra.mrb[0].mxu0 %v5351
        %v5485 = vpop.f32.mrb[0].mxu0
        %v5486 = vadd.f32 %v5277, %v5485
        %v5487 = vpop.f32.mrb[0].mxu0
        %5488 = vmatprep.mubr.f32.mxu0 0.0
        %5489 = vmatmul.mubr.f32.gmra.mrb[0].mxu0 %v5353
        %v5490 = vpop.f32.mrb[0].mxu0
        %v5491 = vadd.f32 %v5278, %v5490
        %v5492 = vpop.f32.mrb[0].mxu0
        %5493 = vmatprep.mubr.f32.mxu0 0.0
        %5494 = vmatmul.mubr.f32.gmra.mrb[0].mxu0 %v5355
        %v5495 = vpop.f32.mrb[0].mxu0
        %v5496 = vadd.f32 %v5279, %v5495
        %v5497 = vpop.f32.mrb[0].mxu0
        %5498 = vmatprep.mubr.f32.mxu0 0.0
        %5499 = vmatmul.mubr.f32.gmra.mrb[0].mxu0 %v5357
        %v5500 = vpop.f32.mrb[0].mxu0
        %v5501 = vadd.f32 %v5280, %v5500
        %v5502 = vpop.f32.mrb[0].mxu0
        %5503 = vmatprep.mubr.f32.mxu0 0.0
        %5504 = vmatmul.mubr.f32.gmra.mrb[0].mxu0 %v5359
        %v5505 = vpop.f32.mrb[0].mxu0
        %v5506 = vadd.f32 %v5281, %v5505
        %v5507 = vpop.f32.mrb[0].mxu0
        %5508 = vmatprep.mubr.f32.mxu0 0.0
        %5509 = vmatmul.mubr.f32.gmra.mrb[0].mxu0 %v5361
        %v5510 = vpop.f32.mrb[0].mxu0
        %v5511 = vadd.f32 %v5282, %v5510
        %v5512 = vpop.f32.mrb[0].mxu0
        %5513 = vmatprep.mubr.f32.mxu0 0.0
        %5514 = vmatmul.mubr.f32.gmra.mrb[0].mxu0 %v5363
        %v5515 = vpop.f32.mrb[0].mxu0
        %v5516 = vadd.f32 %v5283, %v5515
        %v5517 = vpop.f32.mrb[0].mxu0
        %5518 = vmatprep.mubr.f32.mxu0 0.0
        %5519 = vmatmul.mubr.f32.gmra.mrb[0].mxu0 %v5365
        %v5520 = vpop.f32.mrb[0].mxu0
        %v5521 = vadd.f32 %v5284, %v5520
        %v5522 = vpop.f32.mrb[0].mxu0
        %5523 = vmatprep.mubr.f32.mxu0 0.0
        %5524 = vmatmul.mubr.f32.gmra.mrb[0].mxu0 %v5367
        %v5525 = vpop.f32.mrb[0].mxu0
        %v5526 = vadd.f32 %v5285, %v5525
        %v5527 = vpop.f32.mrb[0].mxu0
        %5528 = vmatprep.mubr.f32.mxu0 0.0
        %5529 = vmatmul.mubr.f32.gmra.mrb[0].mxu0 %v5369
        %v5530 = vpop.f32.mrb[0].mxu0
        %v5531 = vadd.f32 %v5286, %v5530
        %v5532 = vpop.f32.mrb[0].mxu0
        %5533 = vdwg.mxu0
        %v5534 = vsel %vm3763, %v5466, -inf
        %5535 = vmax.xlane.f32.xlu0 %v5534
        %v5536 = vpop.xlane.xlu0 %5535
        %v5537 = vsel %vm3763, %v5471, -inf
        %5538 = vmax.xlane.f32.xlu0 %v5537
        %v5539 = vpop.xlane.xlu0 %5538
        %v5540 = vsel %vm3763, %v5476, -inf
        %5541 = vmax.xlane.f32.xlu0 %v5540
        %v5542 = vpop.xlane.xlu0 %5541
        %v5543 = vsel %vm3763, %v5481, -inf
        %5544 = vmax.xlane.f32.xlu0 %v5543
        %v5545 = vpop.xlane.xlu0 %5544
        %v5546 = vsel %vm3763, %v5486, -inf
        %5547 = vmax.xlane.f32.xlu0 %v5546
        %v5548 = vpop.xlane.xlu0 %5547
        %v5549 = vsel %vm3763, %v5491, -inf
        %5550 = vmax.xlane.f32.xlu0 %v5549
        %v5551 = vpop.xlane.xlu0 %5550
        %v5552 = vsel %vm3763, %v5496, -inf
        %5553 = vmax.xlane.f32.xlu0 %v5552
        %v5554 = vpop.xlane.xlu0 %5553
        %v5555 = vsel %vm3763, %v5501, -inf
        %5556 = vmax.xlane.f32.xlu0 %v5555
        %v5557 = vpop.xlane.xlu0 %5556
        %v5558 = vsel %vm3763, %v5506, -inf
        %5559 = vmax.xlane.f32.xlu0 %v5558
        %v5560 = vpop.xlane.xlu0 %5559
        %v5561 = vsel %vm3763, %v5511, -inf
        %5562 = vmax.xlane.f32.xlu0 %v5561
        %v5563 = vpop.xlane.xlu0 %5562
        %v5564 = vsel %vm3763, %v5516, -inf
        %5565 = vmax.xlane.f32.xlu0 %v5564
        %v5566 = vpop.xlane.xlu0 %5565
        %v5567 = vsel %vm3763, %v5521, -inf
        %5568 = vmax.xlane.f32.xlu0 %v5567
        %v5569 = vpop.xlane.xlu0 %5568
        %v5570 = vsel %vm3763, %v5526, -inf
        %5571 = vmax.xlane.f32.xlu0 %v5570
        %v5572 = vpop.xlane.xlu0 %5571
        %v5573 = vsel %vm3763, %v5531, -inf
        %5574 = vmax.xlane.f32.xlu0 %v5573
        %v5575 = vpop.xlane.xlu0 %5574
        %v5576 = vsub.f32 %v5466, %v5536
        %v5577 = vsub.f32 %v5471, %v5539
        %v5578 = vsub.f32 %v5476, %v5542
        %v5579 = vsub.f32 %v5481, %v5545
        %v5580 = vsub.f32 %v5486, %v5548
        %v5581 = vsub.f32 %v5491, %v5551
        %v5582 = vsub.f32 %v5496, %v5554
        %v5583 = vsub.f32 %v5501, %v5557
        %v5584 = vsub.f32 %v5506, %v5560
        %v5585 = vsub.f32 %v5511, %v5563
        %v5586 = vsub.f32 %v5516, %v5566
        %v5587 = vsub.f32 %v5521, %v5569
        %v5588 = vsub.f32 %v5526, %v5572
        %v5589 = vsub.f32 %v5531, %v5575
        %v5590 = vmul.f32 %v5576, 1.442695
        %v5591 = vpow.pop %v5590
        %v5592 = vmul.f32 %v5577, 1.442695
        %v5593 = vpow.pop %v5592
        %v5594 = vmul.f32 %v5578, 1.442695
        %v5595 = vpow.pop %v5594
        %v5596 = vmul.f32 %v5579, 1.442695
        %v5597 = vpow.pop %v5596
        %v5598 = vmul.f32 %v5580, 1.442695
        %v5599 = vpow.pop %v5598
        %v5600 = vmul.f32 %v5581, 1.442695
        %v5601 = vpow.pop %v5600
        %v5602 = vmul.f32 %v5582, 1.442695
        %v5603 = vpow.pop %v5602
        %v5604 = vmul.f32 %v5583, 1.442695
        %v5605 = vpow.pop %v5604
        %v5606 = vmul.f32 %v5584, 1.442695
        %v5607 = vpow.pop %v5606
        %v5608 = vmul.f32 %v5585, 1.442695
        %v5609 = vpow.pop %v5608
        %v5610 = vmul.f32 %v5586, 1.442695
        %v5611 = vpow.pop %v5610
        %v5612 = vmul.f32 %v5587, 1.442695
        %v5613 = vpow.pop %v5612
        %v5614 = vmul.f32 %v5588, 1.442695
        %v5615 = vpow.pop %v5614
        %v5616 = vmul.f32 %v5589, 1.442695
        %v5617 = vpow.pop %v5616
        %v5618 = vsel %vm3763, %v5591, 0.0
        %5619 = vadd.xlane.f32.xlu0 %v5618
        %v5620 = vpop.xlane.xlu0 %5619
        %v5621 = vsel %vm3763, %v5593, 0.0
        %5622 = vadd.xlane.f32.xlu0 %v5621
        %v5623 = vpop.xlane.xlu0 %5622
        %v5624 = vsel %vm3763, %v5595, 0.0
        %5625 = vadd.xlane.f32.xlu0 %v5624
        %v5626 = vpop.xlane.xlu0 %5625
        %v5627 = vsel %vm3763, %v5597, 0.0
        %5628 = vadd.xlane.f32.xlu0 %v5627
        %v5629 = vpop.xlane.xlu0 %5628
        %v5630 = vsel %vm3763, %v5599, 0.0
        %5631 = vadd.xlane.f32.xlu0 %v5630
        %v5632 = vpop.xlane.xlu0 %5631
        %v5633 = vsel %vm3763, %v5601, 0.0
        %5634 = vadd.xlane.f32.xlu0 %v5633
        %v5635 = vpop.xlane.xlu0 %5634
        %v5636 = vsel %vm3763, %v5603, 0.0
        %5637 = vadd.xlane.f32.xlu0 %v5636
        %v5638 = vpop.xlane.xlu0 %5637
        %v5639 = vsel %vm3763, %v5605, 0.0
        %5640 = vadd.xlane.f32.xlu0 %v5639
        %v5641 = vpop.xlane.xlu0 %5640
        %v5642 = vsel %vm3763, %v5607, 0.0
        %5643 = vadd.xlane.f32.xlu0 %v5642
        %v5644 = vpop.xlane.xlu0 %5643
        %v5645 = vsel %vm3763, %v5609, 0.0
        %5646 = vadd.xlane.f32.xlu0 %v5645
        %v5647 = vpop.xlane.xlu0 %5646
        %v5648 = vsel %vm3763, %v5611, 0.0
        %5649 = vadd.xlane.f32.xlu0 %v5648
        %v5650 = vpop.xlane.xlu0 %5649
        %v5651 = vsel %vm3763, %v5613, 0.0
        %5652 = vadd.xlane.f32.xlu0 %v5651
        %v5653 = vpop.xlane.xlu0 %5652
        %v5654 = vsel %vm3763, %v5615, 0.0
        %5655 = vadd.xlane.f32.xlu0 %v5654
        %v5656 = vpop.xlane.xlu0 %5655
        %v5657 = vsel %vm3763, %v5617, 0.0
        %5658 = vadd.xlane.f32.xlu0 %v5657
        %v5659 = vpop.xlane.xlu0 %5658
        %v5660 = vrcp.pop %v5620
        %v5661 = vrcp.pop %v5623
        %v5662 = vrcp.pop %v5626
        %v5663 = vrcp.pop %v5629
        %v5664 = vrcp.pop %v5632
        %v5665 = vrcp.pop %v5635
        %v5666 = vrcp.pop %v5638
        %v5667 = vrcp.pop %v5641
        %v5668 = vrcp.pop %v5644
        %v5669 = vrcp.pop %v5647
        %v5670 = vrcp.pop %v5650
        %v5671 = vrcp.pop %v5653
        %v5672 = vrcp.pop %v5656
        %v5673 = vrcp.pop %v5659
        %v5674 = vmul.f32 %v5591, %v5660
        %v5675 = vmul.f32 %v5593, %v5661
        %v5676 = vmul.f32 %v5595, %v5662
        %v5677 = vmul.f32 %v5597, %v5663
        %v5678 = vmul.f32 %v5599, %v5664
        %v5679 = vmul.f32 %v5601, %v5665
        %v5680 = vmul.f32 %v5603, %v5666
        %v5681 = vmul.f32 %v5605, %v5667
        %v5682 = vmul.f32 %v5607, %v5668
        %v5683 = vmul.f32 %v5609, %v5669
        %v5684 = vmul.f32 %v5611, %v5670
        %v5685 = vmul.f32 %v5613, %v5671
        %v5686 = vmul.f32 %v5615, %v5672
        %v5687 = vmul.f32 %v5617, %v5673
        %5688 = vrot.lane.b32.xlu0 %v3069, 48
        %v5689 = vpop.permute.xlu0 %5688
        %5690 = vrot.lane.b32.xlu0 %v3074, 48
        %v5691 = vpop.permute.xlu0 %5690
        %5692 = vrot.lane.b32.xlu0 %v3079, 48
        %v5693 = vpop.permute.xlu0 %5692
        %5694 = vrot.lane.b32.xlu0 %v3084, 48
        %v5695 = vpop.permute.xlu0 %5694
        %5696 = vrot.lane.b32.xlu0 %v3089, 48
        %v5697 = vpop.permute.xlu0 %5696
        %5698 = vrot.lane.b32.xlu0 %v3094, 48
        %v5699 = vpop.permute.xlu0 %5698
        %5700 = vrot.lane.b32.xlu0 %v3099, 48
        %v5701 = vpop.permute.xlu0 %5700
        %5702 = vrot.lane.b32.xlu0 %v3104, 48
        %v5703 = vpop.permute.xlu0 %5702
        %5704 = vrot.lane.b32.xlu0 %v3109, 48
        %v5705 = vpop.permute.xlu0 %5704
        %5706 = vrot.lane.b32.xlu0 %v3114, 48
        %v5707 = vpop.permute.xlu0 %5706
        %5708 = vrot.lane.b32.xlu0 %v3119, 48
        %v5709 = vpop.permute.xlu0 %5708
        %5710 = vrot.lane.b32.xlu0 %v3124, 48
        %v5711 = vpop.permute.xlu0 %5710
        %5712 = vrot.lane.b32.xlu0 %v3129, 48
        %v5713 = vpop.permute.xlu0 %5712
        %5714 = vrot.lane.b32.xlu0 %v3134, 48
        %v5715 = vpop.permute.xlu0 %5714
        %v5731 = vsel %vm3763, %v5674, 0
        %v5734 = vsel %vm3763, %v5675, 0
        %v5737 = vsel %vm3763, %v5676, 0
        %v5740 = vsel %vm3763, %v5677, 0
        %v5743 = vsel %vm3763, %v5678, 0
        %v5746 = vsel %vm3763, %v5679, 0
        %v5749 = vsel %vm3763, %v5680, 0
        %v5752 = vsel %vm3763, %v5681, 0
        %v5755 = vsel %vm3763, %v5682, 0
        %v5758 = vsel %vm3763, %v5683, 0
        %v5761 = vsel %vm3763, %v5684, 0
        %v5764 = vsel %vm3763, %v5685, 0
        %v5767 = vsel %vm3763, %v5686, 0
        %v5770 = vsel %vm3763, %v5687, 0
        %5772 = vmatprep.subr.mxu0 0.0
        %5773 = vmatpush1.msra.mxu0 %v5689
        %5774 = vmatprep.subr.mxu0 0.0
        %5775 = vmatpush1.msra.mxu0 %v5691
        %5776 = vmatprep.subr.mxu0 0.0
        %5777 = vmatpush1.msra.mxu0 %v5693
        %5778 = vmatprep.subr.mxu0 0.0
        %5779 = vmatpush1.msra.mxu0 %v5695
        %5780 = vmatprep.subr.mxu0 0.0
        %5781 = vmatpush1.msra.mxu0 %v5697
        %5782 = vmatprep.subr.mxu0 0.0
        %5783 = vmatpush1.msra.mxu0 %v5699
        %5784 = vmatprep.subr.mxu0 0.0
        %5785 = vmatpush1.msra.mxu0 %v5701
        %5786 = vmatprep.subr.mxu0 0.0
        %5787 = vmatpush1.msra.mxu0 %v5703
        %5788 = vmatprep.subr.mxu0 0.0
        %5789 = vmatpush1.msra.mxu0 %v5705
        %5790 = vmatprep.subr.mxu0 0.0
        %5791 = vmatpush1.msra.mxu0 %v5707
        %5792 = vmatprep.subr.mxu0 0.0
        %5793 = vmatpush1.msra.mxu0 %v5709
        %5794 = vmatprep.subr.mxu0 0.0
        %5795 = vmatpush1.msra.mxu0 %v5711
        %5796 = vmatprep.subr.mxu0 0.0
        %5797 = vmatpush1.msra.mxu0 %v5713
        %5798 = vmatprep.subr.mxu0 0.0
        %5799 = vmatpush1.msra.mxu0 %v5715
        %5800 = vmatprep.subr.mxu0 0.0
        %5801 = vmatpush1.msra.mxu0 0.0
        %5802 = vmatprep.subr.mxu0 0.0
        %5803 = vmatpush1.msra.mxu0 0.0
        %5804 = vmatprep.subr.mxu0 0.0
        %5805 = vmatpush1.msra.mxu0 0.0
        %5806 = vmatprep.subr.mxu0 0.0
        %5807 = vmatpush1.msra.mxu0 0.0
        %5808 = vmatprep.subr.mxu0 0.0
        %5809 = vmatpush1.msra.mxu0 0.0
        %5810 = vmatprep.subr.mxu0 0.0
        %5811 = vmatpush1.msra.mxu0 0.0
        %5812 = vmatprep.subr.mxu0 0.0
        %5813 = vmatpush1.msra.mxu0 0.0
        %5814 = vmatprep.subr.mxu0 0.0
        %5815 = vmatpush1.msra.mxu0 0.0
        %5816 = vmatprep.subr.mxu0 0.0
        %5817 = vmatpush1.msra.mxu0 0.0
        %5818 = vmatprep.subr.mxu0 0.0
        %5819 = vmatpush1.msra.mxu0 0.0
        %5820 = vmatprep.subr.mxu0 0.0
        %5821 = vmatpush1.msra.mxu0 0.0
        %5822 = vmatprep.subr.mxu0 0.0
        %5823 = vmatpush1.msra.mxu0 0.0
        %5824 = vmatprep.subr.mxu0 0.0
        %5825 = vmatpush1.msra.mxu0 0.0
        %5826 = vmatprep.subr.mxu0 0.0
        %5827 = vmatpush1.msra.mxu0 0.0
        %5828 = vmatprep.subr.mxu0 0.0
        %5829 = vmatpush1.msra.mxu0 0.0
        %5830 = vmatprep.subr.mxu0 0.0
        %5831 = vmatpush1.msra.mxu0 0.0
        %5832 = vmatprep.subr.mxu0 0.0
        %5833 = vmatpush1.msra.mxu0 0.0
        %5834 = vmatprep.subr.mxu0 0.0
        %5835 = vmatpush1.msra.mxu0 0.0
        %5836 = vmatprep.mubr.f32.mxu0 0.0
        %5837 = vmatmul.mubr.f32.gmra.mrb[0].mxu0 %v5731
        %v5838 = vpop.f32.mrb[0].mxu0
        %v5839 = vadd.f32 0.0, %v5838
        %v5840 = vpop.f32.mrb[0].mxu0
        %5841 = vmatprep.mubr.f32.mxu0 0.0
        %5842 = vmatmul.mubr.f32.gmra.mrb[0].mxu0 %v5734
        %v5843 = vpop.f32.mrb[0].mxu0
        %v5844 = vadd.f32 0.0, %v5843
        %v5845 = vpop.f32.mrb[0].mxu0
        %5846 = vmatprep.mubr.f32.mxu0 0.0
        %5847 = vmatmul.mubr.f32.gmra.mrb[0].mxu0 %v5737
        %v5848 = vpop.f32.mrb[0].mxu0
        %v5849 = vadd.f32 0.0, %v5848
        %v5850 = vpop.f32.mrb[0].mxu0
        %5851 = vmatprep.mubr.f32.mxu0 0.0
        %5852 = vmatmul.mubr.f32.gmra.mrb[0].mxu0 %v5740
        %v5853 = vpop.f32.mrb[0].mxu0
        %v5854 = vadd.f32 0.0, %v5853
        %v5855 = vpop.f32.mrb[0].mxu0
        %5856 = vmatprep.mubr.f32.mxu0 0.0
        %5857 = vmatmul.mubr.f32.gmra.mrb[0].mxu0 %v5743
        %v5858 = vpop.f32.mrb[0].mxu0
        %v5859 = vadd.f32 0.0, %v5858
        %v5860 = vpop.f32.mrb[0].mxu0
        %5861 = vmatprep.mubr.f32.mxu0 0.0
        %5862 = vmatmul.mubr.f32.gmra.mrb[0].mxu0 %v5746
        %v5863 = vpop.f32.mrb[0].mxu0
        %v5864 = vadd.f32 0.0, %v5863
        %v5865 = vpop.f32.mrb[0].mxu0
        %5866 = vmatprep.mubr.f32.mxu0 0.0
        %5867 = vmatmul.mubr.f32.gmra.mrb[0].mxu0 %v5749
        %v5868 = vpop.f32.mrb[0].mxu0
        %v5869 = vadd.f32 0.0, %v5868
        %v5870 = vpop.f32.mrb[0].mxu0
        %5871 = vmatprep.mubr.f32.mxu0 0.0
        %5872 = vmatmul.mubr.f32.gmra.mrb[0].mxu0 %v5752
        %v5873 = vpop.f32.mrb[0].mxu0
        %v5874 = vadd.f32 0.0, %v5873
        %v5875 = vpop.f32.mrb[0].mxu0
        %5876 = vmatprep.mubr.f32.mxu0 0.0
        %5877 = vmatmul.mubr.f32.gmra.mrb[0].mxu0 %v5755
        %v5878 = vpop.f32.mrb[0].mxu0
        %v5879 = vadd.f32 0.0, %v5878
        %v5880 = vpop.f32.mrb[0].mxu0
        %5881 = vmatprep.mubr.f32.mxu0 0.0
        %5882 = vmatmul.mubr.f32.gmra.mrb[0].mxu0 %v5758
        %v5883 = vpop.f32.mrb[0].mxu0
        %v5884 = vadd.f32 0.0, %v5883
        %v5885 = vpop.f32.mrb[0].mxu0
        %5886 = vmatprep.mubr.f32.mxu0 0.0
        %5887 = vmatmul.mubr.f32.gmra.mrb[0].mxu0 %v5761
        %v5888 = vpop.f32.mrb[0].mxu0
        %v5889 = vadd.f32 0.0, %v5888
        %v5890 = vpop.f32.mrb[0].mxu0
        %5891 = vmatprep.mubr.f32.mxu0 0.0
        %5892 = vmatmul.mubr.f32.gmra.mrb[0].mxu0 %v5764
        %v5893 = vpop.f32.mrb[0].mxu0
        %v5894 = vadd.f32 0.0, %v5893
        %v5895 = vpop.f32.mrb[0].mxu0
        %5896 = vmatprep.mubr.f32.mxu0 0.0
        %5897 = vmatmul.mubr.f32.gmra.mrb[0].mxu0 %v5767
        %v5898 = vpop.f32.mrb[0].mxu0
        %v5899 = vadd.f32 0.0, %v5898
        %v5900 = vpop.f32.mrb[0].mxu0
        %5901 = vmatprep.mubr.f32.mxu0 0.0
        %5902 = vmatmul.mubr.f32.gmra.mrb[0].mxu0 %v5770
        %v5903 = vpop.f32.mrb[0].mxu0
        %v5904 = vadd.f32 0.0, %v5903
        %v5905 = vpop.f32.mrb[0].mxu0
        %5906 = vdwg.mxu0
        %s5907 = sadd.s32 %s3137, 3
        %s5908 = sld [smem:[#allocation7 + %s5907]]
        %v5909 = vstv %s5908
        %v5910 = vadd.f32 %v2102, %v5909
        %v5911 = vadd.f32 %v2103, %v5909
        %v5912 = vadd.f32 %v2104, %v5909
        %v5913 = vadd.f32 %v2105, %v5909
        %v5914 = vadd.f32 %v2106, %v5909
        %v5915 = vadd.f32 %v2107, %v5909
        %v5916 = vadd.f32 %v2108, %v5909
        %v5917 = vadd.f32 %v2109, %v5909
        %v5918 = vadd.f32 %v2110, %v5909
        %v5919 = vadd.f32 %v2111, %v5909
        %v5920 = vadd.f32 %v2112, %v5909
        %v5921 = vadd.f32 %v2113, %v5909
        %v5922 = vadd.f32 %v2114, %v5909
        %v5923 = vadd.f32 %v2115, %v5909
        %s5924 = sadd.s32 %s3169, 3
        %s5925 = sld [smem:[#allocation5 + %s5924]]
        %v5926 = vstv %s5925
        %v5927 = vmul.f32 %v3154, %v5926
        %v5928 = vmul.f32 %v3155, %v5926
        %v5929 = vmul.f32 %v3156, %v5926
        %v5930 = vmul.f32 %v3157, %v5926
        %v5931 = vmul.f32 %v3158, %v5926
        %v5932 = vmul.f32 %v3159, %v5926
        %v5933 = vmul.f32 %v3160, %v5926
        %v5934 = vmul.f32 %v3161, %v5926
        %v5935 = vmul.f32 %v3162, %v5926
        %v5936 = vmul.f32 %v3163, %v5926
        %v5937 = vmul.f32 %v3164, %v5926
        %v5938 = vmul.f32 %v3165, %v5926
        %v5939 = vmul.f32 %v3166, %v5926
        %v5940 = vmul.f32 %v3167, %v5926
        %v5941 = vadd.f32 %v5910, %v5927
        %v5942 = vadd.f32 %v5911, %v5928
        %v5943 = vadd.f32 %v5912, %v5929
        %v5944 = vadd.f32 %v5913, %v5930
        %v5945 = vadd.f32 %v5914, %v5931
        %v5946 = vadd.f32 %v5915, %v5932
        %v5947 = vadd.f32 %v5916, %v5933
        %v5948 = vadd.f32 %v5917, %v5934
        %v5949 = vadd.f32 %v5918, %v5935
        %v5950 = vadd.f32 %v5919, %v5936
        %v5951 = vadd.f32 %v5920, %v5937
        %v5952 = vadd.f32 %v5921, %v5938
        %v5953 = vadd.f32 %v5922, %v5939
        %v5954 = vadd.f32 %v5923, %v5940
        %s5955 = sadd.s32 %s3216, 3
        %s5956 = sld [smem:[#allocation5 + %s5955]]
        %v5957 = vstv %s5956
        %v5958 = vmul.f32 %v3201, %v5957
        %v5959 = vmul.f32 %v3202, %v5957
        %v5960 = vmul.f32 %v3203, %v5957
        %v5961 = vmul.f32 %v3204, %v5957
        %v5962 = vmul.f32 %v3205, %v5957
        %v5963 = vmul.f32 %v3206, %v5957
        %v5964 = vmul.f32 %v3207, %v5957
        %v5965 = vmul.f32 %v3208, %v5957
        %v5966 = vmul.f32 %v3209, %v5957
        %v5967 = vmul.f32 %v3210, %v5957
        %v5968 = vmul.f32 %v3211, %v5957
        %v5969 = vmul.f32 %v3212, %v5957
        %v5970 = vmul.f32 %v3213, %v5957
        %v5971 = vmul.f32 %v3214, %v5957
        %v5972 = vadd.f32 %v5941, %v5958
        %v5973 = vadd.f32 %v5942, %v5959
        %v5974 = vadd.f32 %v5943, %v5960
        %v5975 = vadd.f32 %v5944, %v5961
        %v5976 = vadd.f32 %v5945, %v5962
        %v5977 = vadd.f32 %v5946, %v5963
        %v5978 = vadd.f32 %v5947, %v5964
        %v5979 = vadd.f32 %v5948, %v5965
        %v5980 = vadd.f32 %v5949, %v5966
        %v5981 = vadd.f32 %v5950, %v5967
        %v5982 = vadd.f32 %v5951, %v5968
        %v5983 = vadd.f32 %v5952, %v5969
        %v5984 = vadd.f32 %v5953, %v5970
        %v5985 = vadd.f32 %v5954, %v5971
        %s5986 = sadd.s32 %s3263, 3
        %s5987 = sld [smem:[#allocation5 + %s5986]]
        %v5988 = vstv %s5987
        %v5989 = vmul.f32 %v3248, %v5988
        %v5990 = vmul.f32 %v3249, %v5988
        %v5991 = vmul.f32 %v3250, %v5988
        %v5992 = vmul.f32 %v3251, %v5988
        %v5993 = vmul.f32 %v3252, %v5988
        %v5994 = vmul.f32 %v3253, %v5988
        %v5995 = vmul.f32 %v3254, %v5988
        %v5996 = vmul.f32 %v3255, %v5988
        %v5997 = vmul.f32 %v3256, %v5988
        %v5998 = vmul.f32 %v3257, %v5988
        %v5999 = vmul.f32 %v3258, %v5988
        %v6000 = vmul.f32 %v3259, %v5988
        %v6001 = vmul.f32 %v3260, %v5988
        %v6002 = vmul.f32 %v3261, %v5988
        %v6003 = vadd.f32 %v5972, %v5989
        %v6004 = vadd.f32 %v5973, %v5990
        %v6005 = vadd.f32 %v5974, %v5991
        %v6006 = vadd.f32 %v5975, %v5992
        %v6007 = vadd.f32 %v5976, %v5993
        %v6008 = vadd.f32 %v5977, %v5994
        %v6009 = vadd.f32 %v5978, %v5995
        %v6010 = vadd.f32 %v5979, %v5996
        %v6011 = vadd.f32 %v5980, %v5997
        %v6012 = vadd.f32 %v5981, %v5998
        %v6013 = vadd.f32 %v5982, %v5999
        %v6014 = vadd.f32 %v5983, %v6000
        %v6015 = vadd.f32 %v5984, %v6001
        %v6016 = vadd.f32 %v5985, %v6002
        %s6017 = sadd.s32 %s3310, 3
        %s6018 = sld [smem:[#allocation5 + %s6017]]
        %v6019 = vstv %s6018
        %v6020 = vmul.f32 %v3295, %v6019
        %v6021 = vmul.f32 %v3296, %v6019
        %v6022 = vmul.f32 %v3297, %v6019
        %v6023 = vmul.f32 %v3298, %v6019
        %v6024 = vmul.f32 %v3299, %v6019
        %v6025 = vmul.f32 %v3300, %v6019
        %v6026 = vmul.f32 %v3301, %v6019
        %v6027 = vmul.f32 %v3302, %v6019
        %v6028 = vmul.f32 %v3303, %v6019
        %v6029 = vmul.f32 %v3304, %v6019
        %v6030 = vmul.f32 %v3305, %v6019
        %v6031 = vmul.f32 %v3306, %v6019
        %v6032 = vmul.f32 %v3307, %v6019
        %v6033 = vmul.f32 %v3308, %v6019
        %v6034 = vadd.f32 %v6003, %v6020
        %v6035 = vadd.f32 %v6004, %v6021
        %v6036 = vadd.f32 %v6005, %v6022
        %v6037 = vadd.f32 %v6006, %v6023
        %v6038 = vadd.f32 %v6007, %v6024
        %v6039 = vadd.f32 %v6008, %v6025
        %v6040 = vadd.f32 %v6009, %v6026
        %v6041 = vadd.f32 %v6010, %v6027
        %v6042 = vadd.f32 %v6011, %v6028
        %v6043 = vadd.f32 %v6012, %v6029
        %v6044 = vadd.f32 %v6013, %v6030
        %v6045 = vadd.f32 %v6014, %v6031
        %v6046 = vadd.f32 %v6015, %v6032
        %v6047 = vadd.f32 %v6016, %v6033
        %s6048 = sadd.s32 %s3357, 3
        %s6049 = sld [smem:[#allocation5 + %s6048]]
        %v6050 = vstv %s6049
        %v6051 = vmul.f32 %v3342, %v6050
        %v6052 = vmul.f32 %v3343, %v6050
        %v6053 = vmul.f32 %v3344, %v6050
        %v6054 = vmul.f32 %v3345, %v6050
        %v6055 = vmul.f32 %v3346, %v6050
        %v6056 = vmul.f32 %v3347, %v6050
        %v6057 = vmul.f32 %v3348, %v6050
        %v6058 = vmul.f32 %v3349, %v6050
        %v6059 = vmul.f32 %v3350, %v6050
        %v6060 = vmul.f32 %v3351, %v6050
        %v6061 = vmul.f32 %v3352, %v6050
        %v6062 = vmul.f32 %v3353, %v6050
        %v6063 = vmul.f32 %v3354, %v6050
        %v6064 = vmul.f32 %v3355, %v6050
        %v6065 = vadd.f32 %v6034, %v6051
        %v6066 = vadd.f32 %v6035, %v6052
        %v6067 = vadd.f32 %v6036, %v6053
        %v6068 = vadd.f32 %v6037, %v6054
        %v6069 = vadd.f32 %v6038, %v6055
        %v6070 = vadd.f32 %v6039, %v6056
        %v6071 = vadd.f32 %v6040, %v6057
        %v6072 = vadd.f32 %v6041, %v6058
        %v6073 = vadd.f32 %v6042, %v6059
        %v6074 = vadd.f32 %v6043, %v6060
        %v6075 = vadd.f32 %v6044, %v6061
        %v6076 = vadd.f32 %v6045, %v6062
        %v6077 = vadd.f32 %v6046, %v6063
        %v6078 = vadd.f32 %v6047, %v6064
        %s6079 = sadd.s32 %s3404, 3
        %s6080 = sld [smem:[#allocation5 + %s6079]]
        %v6081 = vstv %s6080
        %v6082 = vmul.f32 %v3389, %v6081
        %v6083 = vmul.f32 %v3390, %v6081
        %v6084 = vmul.f32 %v3391, %v6081
        %v6085 = vmul.f32 %v3392, %v6081
        %v6086 = vmul.f32 %v3393, %v6081
        %v6087 = vmul.f32 %v3394, %v6081
        %v6088 = vmul.f32 %v3395, %v6081
        %v6089 = vmul.f32 %v3396, %v6081
        %v6090 = vmul.f32 %v3397, %v6081
        %v6091 = vmul.f32 %v3398, %v6081
        %v6092 = vmul.f32 %v3399, %v6081
        %v6093 = vmul.f32 %v3400, %v6081
        %v6094 = vmul.f32 %v3401, %v6081
        %v6095 = vmul.f32 %v3402, %v6081
        %v6096 = vadd.f32 %v6065, %v6082
        %v6097 = vadd.f32 %v6066, %v6083
        %v6098 = vadd.f32 %v6067, %v6084
        %v6099 = vadd.f32 %v6068, %v6085
        %v6100 = vadd.f32 %v6069, %v6086
        %v6101 = vadd.f32 %v6070, %v6087
        %v6102 = vadd.f32 %v6071, %v6088
        %v6103 = vadd.f32 %v6072, %v6089
        %v6104 = vadd.f32 %v6073, %v6090
        %v6105 = vadd.f32 %v6074, %v6091
        %v6106 = vadd.f32 %v6075, %v6092
        %v6107 = vadd.f32 %v6076, %v6093
        %v6108 = vadd.f32 %v6077, %v6094
        %v6109 = vadd.f32 %v6078, %v6095
        %s6110 = sadd.s32 %s3451, 3
        %s6111 = sld [smem:[#allocation5 + %s6110]]
        %v6112 = vstv %s6111
        %v6113 = vmul.f32 %v3436, %v6112
        %v6114 = vmul.f32 %v3437, %v6112
        %v6115 = vmul.f32 %v3438, %v6112
        %v6116 = vmul.f32 %v3439, %v6112
        %v6117 = vmul.f32 %v3440, %v6112
        %v6118 = vmul.f32 %v3441, %v6112
        %v6119 = vmul.f32 %v3442, %v6112
        %v6120 = vmul.f32 %v3443, %v6112
        %v6121 = vmul.f32 %v3444, %v6112
        %v6122 = vmul.f32 %v3445, %v6112
        %v6123 = vmul.f32 %v3446, %v6112
        %v6124 = vmul.f32 %v3447, %v6112
        %v6125 = vmul.f32 %v3448, %v6112
        %v6126 = vmul.f32 %v3449, %v6112
        %v6127 = vadd.f32 %v6096, %v6113
        %v6128 = vadd.f32 %v6097, %v6114
        %v6129 = vadd.f32 %v6098, %v6115
        %v6130 = vadd.f32 %v6099, %v6116
        %v6131 = vadd.f32 %v6100, %v6117
        %v6132 = vadd.f32 %v6101, %v6118
        %v6133 = vadd.f32 %v6102, %v6119
        %v6134 = vadd.f32 %v6103, %v6120
        %v6135 = vadd.f32 %v6104, %v6121
        %v6136 = vadd.f32 %v6105, %v6122
        %v6137 = vadd.f32 %v6106, %v6123
        %v6138 = vadd.f32 %v6107, %v6124
        %v6139 = vadd.f32 %v6108, %v6125
        %v6140 = vadd.f32 %v6109, %v6126
        %s6141 = sadd.s32 %s3498, 3
        %s6142 = sld [smem:[#allocation5 + %s6141]]
        %v6143 = vstv %s6142
        %v6144 = vmul.f32 %v3483, %v6143
        %v6145 = vmul.f32 %v3484, %v6143
        %v6146 = vmul.f32 %v3485, %v6143
        %v6147 = vmul.f32 %v3486, %v6143
        %v6148 = vmul.f32 %v3487, %v6143
        %v6149 = vmul.f32 %v3488, %v6143
        %v6150 = vmul.f32 %v3489, %v6143
        %v6151 = vmul.f32 %v3490, %v6143
        %v6152 = vmul.f32 %v3491, %v6143
        %v6153 = vmul.f32 %v3492, %v6143
        %v6154 = vmul.f32 %v3493, %v6143
        %v6155 = vmul.f32 %v3494, %v6143
        %v6156 = vmul.f32 %v3495, %v6143
        %v6157 = vmul.f32 %v3496, %v6143
        %v6158 = vadd.f32 %v6127, %v6144
        %v6159 = vadd.f32 %v6128, %v6145
        %v6160 = vadd.f32 %v6129, %v6146
        %v6161 = vadd.f32 %v6130, %v6147
        %v6162 = vadd.f32 %v6131, %v6148
        %v6163 = vadd.f32 %v6132, %v6149
        %v6164 = vadd.f32 %v6133, %v6150
        %v6165 = vadd.f32 %v6134, %v6151
        %v6166 = vadd.f32 %v6135, %v6152
        %v6167 = vadd.f32 %v6136, %v6153
        %v6168 = vadd.f32 %v6137, %v6154
        %v6169 = vadd.f32 %v6138, %v6155
        %v6170 = vadd.f32 %v6139, %v6156
        %v6171 = vadd.f32 %v6140, %v6157
        %6172 = vrot.lane.b32.xlu0 %v3069, 104
        %v6173 = vpop.permute.xlu0 %6172
        %6174 = vrot.lane.b32.xlu0 %v3074, 104
        %v6175 = vpop.permute.xlu0 %6174
        %6176 = vrot.lane.b32.xlu0 %v3079, 104
        %v6177 = vpop.permute.xlu0 %6176
        %6178 = vrot.lane.b32.xlu0 %v3084, 104
        %v6179 = vpop.permute.xlu0 %6178
        %6180 = vrot.lane.b32.xlu0 %v3089, 104
        %v6181 = vpop.permute.xlu0 %6180
        %6182 = vrot.lane.b32.xlu0 %v3094, 104
        %v6183 = vpop.permute.xlu0 %6182
        %6184 = vrot.lane.b32.xlu0 %v3099, 104
        %v6185 = vpop.permute.xlu0 %6184
        %6186 = vrot.lane.b32.xlu0 %v3104, 104
        %v6187 = vpop.permute.xlu0 %6186
        %6188 = vrot.lane.b32.xlu0 %v3109, 104
        %v6189 = vpop.permute.xlu0 %6188
        %6190 = vrot.lane.b32.xlu0 %v3114, 104
        %v6191 = vpop.permute.xlu0 %6190
        %6192 = vrot.lane.b32.xlu0 %v3119, 104
        %v6193 = vpop.permute.xlu0 %6192
        %6194 = vrot.lane.b32.xlu0 %v3124, 104
        %v6195 = vpop.permute.xlu0 %6194
        %6196 = vrot.lane.b32.xlu0 %v3129, 104
        %v6197 = vpop.permute.xlu0 %6196
        %6198 = vrot.lane.b32.xlu0 %v3134, 104
        %v6199 = vpop.permute.xlu0 %6198
        %6200 = vrot.lane.b32.xlu0 %v3069, 72
        %v6201 = vpop.permute.xlu0 %6200
        %6202 = vrot.lane.b32.xlu0 %v3074, 72
        %v6203 = vpop.permute.xlu0 %6202
        %6204 = vrot.lane.b32.xlu0 %v3079, 72
        %v6205 = vpop.permute.xlu0 %6204
        %6206 = vrot.lane.b32.xlu0 %v3084, 72
        %v6207 = vpop.permute.xlu0 %6206
        %6208 = vrot.lane.b32.xlu0 %v3089, 72
        %v6209 = vpop.permute.xlu0 %6208
        %6210 = vrot.lane.b32.xlu0 %v3094, 72
        %v6211 = vpop.permute.xlu0 %6210
        %6212 = vrot.lane.b32.xlu0 %v3099, 72
        %v6213 = vpop.permute.xlu0 %6212
        %6214 = vrot.lane.b32.xlu0 %v3104, 72
        %v6215 = vpop.permute.xlu0 %6214
        %6216 = vrot.lane.b32.xlu0 %v3109, 72
        %v6217 = vpop.permute.xlu0 %6216
        %6218 = vrot.lane.b32.xlu0 %v3114, 72
        %v6219 = vpop.permute.xlu0 %6218
        %6220 = vrot.lane.b32.xlu0 %v3119, 72
        %v6221 = vpop.permute.xlu0 %6220
        %6222 = vrot.lane.b32.xlu0 %v3124, 72
        %v6223 = vpop.permute.xlu0 %6222
        %6224 = vrot.lane.b32.xlu0 %v3129, 72
        %v6225 = vpop.permute.xlu0 %6224
        %6226 = vrot.lane.b32.xlu0 %v3134, 72
        %v6227 = vpop.permute.xlu0 %6226
        %v6228 = vsel %vm3571, %v6173, 0
        %v6230 = vsel %vm3571, %v6175, 0
        %v6232 = vsel %vm3571, %v6177, 0
        %v6234 = vsel %vm3571, %v6179, 0
        %v6236 = vsel %vm3571, %v6181, 0
        %v6238 = vsel %vm3571, %v6183, 0
        %v6240 = vsel %vm3571, %v6185, 0
        %v6242 = vsel %vm3571, %v6187, 0
        %v6244 = vsel %vm3571, %v6189, 0
        %v6246 = vsel %vm3571, %v6191, 0
        %v6248 = vsel %vm3571, %v6193, 0
        %v6250 = vsel %vm3571, %v6195, 0
        %v6252 = vsel %vm3571, %v6197, 0
        %v6254 = vsel %vm3571, %v6199, 0
        %v6256 = vsel %vm3571, %v6201, 0
        %v6258 = vsel %vm3571, %v6203, 0
        %v6260 = vsel %vm3571, %v6205, 0
        %v6262 = vsel %vm3571, %v6207, 0
        %v6264 = vsel %vm3571, %v6209, 0
        %v6266 = vsel %vm3571, %v6211, 0
        %v6268 = vsel %vm3571, %v6213, 0
        %v6270 = vsel %vm3571, %v6215, 0
        %v6272 = vsel %vm3571, %v6217, 0
        %v6274 = vsel %vm3571, %v6219, 0
        %v6276 = vsel %vm3571, %v6221, 0
        %v6278 = vsel %vm3571, %v6223, 0
        %v6280 = vsel %vm3571, %v6225, 0
        %v6282 = vsel %vm3571, %v6227, 0
        %6284 = vmatprep.subr.mxu0 0.0
        %6285 = vmatpush1.xpose.msra.mxu0 %v6256
        %6286 = vmatprep.subr.mxu0 0.0
        %6287 = vmatpush1.xpose.msra.mxu0 %v6258
        %6288 = vmatprep.subr.mxu0 0.0
        %6289 = vmatpush1.xpose.msra.mxu0 %v6260
        %6290 = vmatprep.subr.mxu0 0.0
        %6291 = vmatpush1.xpose.msra.mxu0 %v6262
        %6292 = vmatprep.subr.mxu0 0.0
        %6293 = vmatpush1.xpose.msra.mxu0 %v6264
        %6294 = vmatprep.subr.mxu0 0.0
        %6295 = vmatpush1.xpose.msra.mxu0 %v6266
        %6296 = vmatprep.subr.mxu0 0.0
        %6297 = vmatpush1.xpose.msra.mxu0 %v6268
        %6298 = vmatprep.subr.mxu0 0.0
        %6299 = vmatpush1.xpose.msra.mxu0 %v6270
        %6300 = vmatprep.subr.mxu0 0.0
        %6301 = vmatpush1.xpose.msra.mxu0 %v6272
        %6302 = vmatprep.subr.mxu0 0.0
        %6303 = vmatpush1.xpose.msra.mxu0 %v6274
        %6304 = vmatprep.subr.mxu0 0.0
        %6305 = vmatpush1.xpose.msra.mxu0 %v6276
        %6306 = vmatprep.subr.mxu0 0.0
        %6307 = vmatpush1.xpose.msra.mxu0 %v6278
        %6308 = vmatprep.subr.mxu0 0.0
        %6309 = vmatpush1.xpose.msra.mxu0 %v6280
        %6310 = vmatprep.subr.mxu0 0.0
        %6311 = vmatpush1.xpose.msra.mxu0 %v6282
        %6312 = vmatprep.subr.mxu0 0.0
        %6313 = vmatpush1.xpose.msra.mxu0 0.0
        %6314 = vmatprep.subr.mxu0 0.0
        %6315 = vmatpush1.xpose.msra.mxu0 0.0
        %6316 = vmatprep.subr.mxu0 0.0
        %6317 = vmatpush1.xpose.msra.mxu0 0.0
        %6318 = vmatprep.subr.mxu0 0.0
        %6319 = vmatpush1.xpose.msra.mxu0 0.0
        %6320 = vmatprep.subr.mxu0 0.0
        %6321 = vmatpush1.xpose.msra.mxu0 0.0
        %6322 = vmatprep.subr.mxu0 0.0
        %6323 = vmatpush1.xpose.msra.mxu0 0.0
        %6324 = vmatprep.subr.mxu0 0.0
        %6325 = vmatpush1.xpose.msra.mxu0 0.0
        %6326 = vmatprep.subr.mxu0 0.0
        %6327 = vmatpush1.xpose.msra.mxu0 0.0
        %6328 = vmatprep.subr.mxu0 0.0
        %6329 = vmatpush1.xpose.msra.mxu0 0.0
        %6330 = vmatprep.subr.mxu0 0.0
        %6331 = vmatpush1.xpose.msra.mxu0 0.0
        %6332 = vmatprep.subr.mxu0 0.0
        %6333 = vmatpush1.xpose.msra.mxu0 0.0
        %6334 = vmatprep.subr.mxu0 0.0
        %6335 = vmatpush1.xpose.msra.mxu0 0.0
        %6336 = vmatprep.subr.mxu0 0.0
        %6337 = vmatpush1.xpose.msra.mxu0 0.0
        %6338 = vmatprep.subr.mxu0 0.0
        %6339 = vmatpush1.xpose.msra.mxu0 0.0
        %6340 = vmatprep.subr.mxu0 0.0
        %6341 = vmatpush1.xpose.msra.mxu0 0.0
        %6342 = vmatprep.subr.mxu0 0.0
        %6343 = vmatpush1.xpose.msra.mxu0 0.0
        %6344 = vmatprep.subr.mxu0 0.0
        %6345 = vmatpush1.xpose.msra.mxu0 0.0
        %6346 = vmatprep.subr.mxu0 0.0
        %6347 = vmatpush1.xpose.msra.mxu0 0.0
        %6348 = vmatprep.mubr.f32.mxu0 0.0
        %6349 = vmatmul.mubr.f32.gmra.mrb[0].mxu0 %v6228
        %v6350 = vpop.f32.mrb[0].mxu0
        %v6351 = vadd.f32 %v6158, %v6350
        %v6352 = vpop.f32.mrb[0].mxu0
        %6353 = vmatprep.mubr.f32.mxu0 0.0
        %6354 = vmatmul.mubr.f32.gmra.mrb[0].mxu0 %v6230
        %v6355 = vpop.f32.mrb[0].mxu0
        %v6356 = vadd.f32 %v6159, %v6355
        %v6357 = vpop.f32.mrb[0].mxu0
        %6358 = vmatprep.mubr.f32.mxu0 0.0
        %6359 = vmatmul.mubr.f32.gmra.mrb[0].mxu0 %v6232
        %v6360 = vpop.f32.mrb[0].mxu0
        %v6361 = vadd.f32 %v6160, %v6360
        %v6362 = vpop.f32.mrb[0].mxu0
        %6363 = vmatprep.mubr.f32.mxu0 0.0
        %6364 = vmatmul.mubr.f32.gmra.mrb[0].mxu0 %v6234
        %v6365 = vpop.f32.mrb[0].mxu0
        %v6366 = vadd.f32 %v6161, %v6365
        %v6367 = vpop.f32.mrb[0].mxu0
        %6368 = vmatprep.mubr.f32.mxu0 0.0
        %6369 = vmatmul.mubr.f32.gmra.mrb[0].mxu0 %v6236
        %v6370 = vpop.f32.mrb[0].mxu0
        %v6371 = vadd.f32 %v6162, %v6370
        %v6372 = vpop.f32.mrb[0].mxu0
        %6373 = vmatprep.mubr.f32.mxu0 0.0
        %6374 = vmatmul.mubr.f32.gmra.mrb[0].mxu0 %v6238
        %v6375 = vpop.f32.mrb[0].mxu0
        %v6376 = vadd.f32 %v6163, %v6375
        %v6377 = vpop.f32.mrb[0].mxu0
        %6378 = vmatprep.mubr.f32.mxu0 0.0
        %6379 = vmatmul.mubr.f32.gmra.mrb[0].mxu0 %v6240
        %v6380 = vpop.f32.mrb[0].mxu0
        %v6381 = vadd.f32 %v6164, %v6380
        %v6382 = vpop.f32.mrb[0].mxu0
        %6383 = vmatprep.mubr.f32.mxu0 0.0
        %6384 = vmatmul.mubr.f32.gmra.mrb[0].mxu0 %v6242
        %v6385 = vpop.f32.mrb[0].mxu0
        %v6386 = vadd.f32 %v6165, %v6385
        %v6387 = vpop.f32.mrb[0].mxu0
        %6388 = vmatprep.mubr.f32.mxu0 0.0
        %6389 = vmatmul.mubr.f32.gmra.mrb[0].mxu0 %v6244
        %v6390 = vpop.f32.mrb[0].mxu0
        %v6391 = vadd.f32 %v6166, %v6390
        %v6392 = vpop.f32.mrb[0].mxu0
        %6393 = vmatprep.mubr.f32.mxu0 0.0
        %6394 = vmatmul.mubr.f32.gmra.mrb[0].mxu0 %v6246
        %v6395 = vpop.f32.mrb[0].mxu0
        %v6396 = vadd.f32 %v6167, %v6395
        %v6397 = vpop.f32.mrb[0].mxu0
        %6398 = vmatprep.mubr.f32.mxu0 0.0
        %6399 = vmatmul.mubr.f32.gmra.mrb[0].mxu0 %v6248
        %v6400 = vpop.f32.mrb[0].mxu0
        %v6401 = vadd.f32 %v6168, %v6400
        %v6402 = vpop.f32.mrb[0].mxu0
        %6403 = vmatprep.mubr.f32.mxu0 0.0
        %6404 = vmatmul.mubr.f32.gmra.mrb[0].mxu0 %v6250
        %v6405 = vpop.f32.mrb[0].mxu0
        %v6406 = vadd.f32 %v6169, %v6405
        %v6407 = vpop.f32.mrb[0].mxu0
        %6408 = vmatprep.mubr.f32.mxu0 0.0
        %6409 = vmatmul.mubr.f32.gmra.mrb[0].mxu0 %v6252
        %v6410 = vpop.f32.mrb[0].mxu0
        %v6411 = vadd.f32 %v6170, %v6410
        %v6412 = vpop.f32.mrb[0].mxu0
        %6413 = vmatprep.mubr.f32.mxu0 0.0
        %6414 = vmatmul.mubr.f32.gmra.mrb[0].mxu0 %v6254
        %v6415 = vpop.f32.mrb[0].mxu0
        %v6416 = vadd.f32 %v6171, %v6415
        %v6417 = vpop.f32.mrb[0].mxu0
        %6418 = vdwg.mxu0
        %v6419 = vsel %vm3763, %v6351, -inf
        %6420 = vmax.xlane.f32.xlu0 %v6419
        %v6421 = vpop.xlane.xlu0 %6420
        %v6422 = vsel %vm3763, %v6356, -inf
        %6423 = vmax.xlane.f32.xlu0 %v6422
        %v6424 = vpop.xlane.xlu0 %6423
        %v6425 = vsel %vm3763, %v6361, -inf
        %6426 = vmax.xlane.f32.xlu0 %v6425
        %v6427 = vpop.xlane.xlu0 %6426
        %v6428 = vsel %vm3763, %v6366, -inf
        %6429 = vmax.xlane.f32.xlu0 %v6428
        %v6430 = vpop.xlane.xlu0 %6429
        %v6431 = vsel %vm3763, %v6371, -inf
        %6432 = vmax.xlane.f32.xlu0 %v6431
        %v6433 = vpop.xlane.xlu0 %6432
        %v6434 = vsel %vm3763, %v6376, -inf
        %6435 = vmax.xlane.f32.xlu0 %v6434
        %v6436 = vpop.xlane.xlu0 %6435
        %v6437 = vsel %vm3763, %v6381, -inf
        %6438 = vmax.xlane.f32.xlu0 %v6437
        %v6439 = vpop.xlane.xlu0 %6438
        %v6440 = vsel %vm3763, %v6386, -inf
        %6441 = vmax.xlane.f32.xlu0 %v6440
        %v6442 = vpop.xlane.xlu0 %6441
        %v6443 = vsel %vm3763, %v6391, -inf
        %6444 = vmax.xlane.f32.xlu0 %v6443
        %v6445 = vpop.xlane.xlu0 %6444
        %v6446 = vsel %vm3763, %v6396, -inf
        %6447 = vmax.xlane.f32.xlu0 %v6446
        %v6448 = vpop.xlane.xlu0 %6447
        %v6449 = vsel %vm3763, %v6401, -inf
        %6450 = vmax.xlane.f32.xlu0 %v6449
        %v6451 = vpop.xlane.xlu0 %6450
        %v6452 = vsel %vm3763, %v6406, -inf
        %6453 = vmax.xlane.f32.xlu0 %v6452
        %v6454 = vpop.xlane.xlu0 %6453
        %v6455 = vsel %vm3763, %v6411, -inf
        %6456 = vmax.xlane.f32.xlu0 %v6455
        %v6457 = vpop.xlane.xlu0 %6456
        %v6458 = vsel %vm3763, %v6416, -inf
        %6459 = vmax.xlane.f32.xlu0 %v6458
        %v6460 = vpop.xlane.xlu0 %6459
        %v6461 = vsub.f32 %v6351, %v6421
        %v6462 = vsub.f32 %v6356, %v6424
        %v6463 = vsub.f32 %v6361, %v6427
        %v6464 = vsub.f32 %v6366, %v6430
        %v6465 = vsub.f32 %v6371, %v6433
        %v6466 = vsub.f32 %v6376, %v6436
        %v6467 = vsub.f32 %v6381, %v6439
        %v6468 = vsub.f32 %v6386, %v6442
        %v6469 = vsub.f32 %v6391, %v6445
        %v6470 = vsub.f32 %v6396, %v6448
        %v6471 = vsub.f32 %v6401, %v6451
        %v6472 = vsub.f32 %v6406, %v6454
        %v6473 = vsub.f32 %v6411, %v6457
        %v6474 = vsub.f32 %v6416, %v6460
        %v6475 = vmul.f32 %v6461, 1.442695
        %v6476 = vpow.pop %v6475
        %v6477 = vmul.f32 %v6462, 1.442695
        %v6478 = vpow.pop %v6477
        %v6479 = vmul.f32 %v6463, 1.442695
        %v6480 = vpow.pop %v6479
        %v6481 = vmul.f32 %v6464, 1.442695
        %v6482 = vpow.pop %v6481
        %v6483 = vmul.f32 %v6465, 1.442695
        %v6484 = vpow.pop %v6483
        %v6485 = vmul.f32 %v6466, 1.442695
        %v6486 = vpow.pop %v6485
        %v6487 = vmul.f32 %v6467, 1.442695
        %v6488 = vpow.pop %v6487
        %v6489 = vmul.f32 %v6468, 1.442695
        %v6490 = vpow.pop %v6489
        %v6491 = vmul.f32 %v6469, 1.442695
        %v6492 = vpow.pop %v6491
        %v6493 = vmul.f32 %v6470, 1.442695
        %v6494 = vpow.pop %v6493
        %v6495 = vmul.f32 %v6471, 1.442695
        %v6496 = vpow.pop %v6495
        %v6497 = vmul.f32 %v6472, 1.442695
        %v6498 = vpow.pop %v6497
        %v6499 = vmul.f32 %v6473, 1.442695
        %v6500 = vpow.pop %v6499
        %v6501 = vmul.f32 %v6474, 1.442695
        %v6502 = vpow.pop %v6501
        %v6503 = vsel %vm3763, %v6476, 0.0
        %6504 = vadd.xlane.f32.xlu0 %v6503
        %v6505 = vpop.xlane.xlu0 %6504
        %v6506 = vsel %vm3763, %v6478, 0.0
        %6507 = vadd.xlane.f32.xlu0 %v6506
        %v6508 = vpop.xlane.xlu0 %6507
        %v6509 = vsel %vm3763, %v6480, 0.0
        %6510 = vadd.xlane.f32.xlu0 %v6509
        %v6511 = vpop.xlane.xlu0 %6510
        %v6512 = vsel %vm3763, %v6482, 0.0
        %6513 = vadd.xlane.f32.xlu0 %v6512
        %v6514 = vpop.xlane.xlu0 %6513
        %v6515 = vsel %vm3763, %v6484, 0.0
        %6516 = vadd.xlane.f32.xlu0 %v6515
        %v6517 = vpop.xlane.xlu0 %6516
        %v6518 = vsel %vm3763, %v6486, 0.0
        %6519 = vadd.xlane.f32.xlu0 %v6518
        %v6520 = vpop.xlane.xlu0 %6519
        %v6521 = vsel %vm3763, %v6488, 0.0
        %6522 = vadd.xlane.f32.xlu0 %v6521
        %v6523 = vpop.xlane.xlu0 %6522
        %v6524 = vsel %vm3763, %v6490, 0.0
        %6525 = vadd.xlane.f32.xlu0 %v6524
        %v6526 = vpop.xlane.xlu0 %6525
        %v6527 = vsel %vm3763, %v6492, 0.0
        %6528 = vadd.xlane.f32.xlu0 %v6527
        %v6529 = vpop.xlane.xlu0 %6528
        %v6530 = vsel %vm3763, %v6494, 0.0
        %6531 = vadd.xlane.f32.xlu0 %v6530
        %v6532 = vpop.xlane.xlu0 %6531
        %v6533 = vsel %vm3763, %v6496, 0.0
        %6534 = vadd.xlane.f32.xlu0 %v6533
        %v6535 = vpop.xlane.xlu0 %6534
        %v6536 = vsel %vm3763, %v6498, 0.0
        %6537 = vadd.xlane.f32.xlu0 %v6536
        %v6538 = vpop.xlane.xlu0 %6537
        %v6539 = vsel %vm3763, %v6500, 0.0
        %6540 = vadd.xlane.f32.xlu0 %v6539
        %v6541 = vpop.xlane.xlu0 %6540
        %v6542 = vsel %vm3763, %v6502, 0.0
        %6543 = vadd.xlane.f32.xlu0 %v6542
        %v6544 = vpop.xlane.xlu0 %6543
        %v6545 = vrcp.pop %v6505
        %v6546 = vrcp.pop %v6508
        %v6547 = vrcp.pop %v6511
        %v6548 = vrcp.pop %v6514
        %v6549 = vrcp.pop %v6517
        %v6550 = vrcp.pop %v6520
        %v6551 = vrcp.pop %v6523
        %v6552 = vrcp.pop %v6526
        %v6553 = vrcp.pop %v6529
        %v6554 = vrcp.pop %v6532
        %v6555 = vrcp.pop %v6535
        %v6556 = vrcp.pop %v6538
        %v6557 = vrcp.pop %v6541
        %v6558 = vrcp.pop %v6544
        %v6559 = vmul.f32 %v6476, %v6545
        %v6560 = vmul.f32 %v6478, %v6546
        %v6561 = vmul.f32 %v6480, %v6547
        %v6562 = vmul.f32 %v6482, %v6548
        %v6563 = vmul.f32 %v6484, %v6549
        %v6564 = vmul.f32 %v6486, %v6550
        %v6565 = vmul.f32 %v6488, %v6551
        %v6566 = vmul.f32 %v6490, %v6552
        %v6567 = vmul.f32 %v6492, %v6553
        %v6568 = vmul.f32 %v6494, %v6554
        %v6569 = vmul.f32 %v6496, %v6555
        %v6570 = vmul.f32 %v6498, %v6556
        %v6571 = vmul.f32 %v6500, %v6557
        %v6572 = vmul.f32 %v6502, %v6558
        %6573 = vrot.lane.b32.xlu0 %v3069, 40
        %v6574 = vpop.permute.xlu0 %6573
        %6575 = vrot.lane.b32.xlu0 %v3074, 40
        %v6576 = vpop.permute.xlu0 %6575
        %6577 = vrot.lane.b32.xlu0 %v3079, 40
        %v6578 = vpop.permute.xlu0 %6577
        %6579 = vrot.lane.b32.xlu0 %v3084, 40
        %v6580 = vpop.permute.xlu0 %6579
        %6581 = vrot.lane.b32.xlu0 %v3089, 40
        %v6582 = vpop.permute.xlu0 %6581
        %6583 = vrot.lane.b32.xlu0 %v3094, 40
        %v6584 = vpop.permute.xlu0 %6583
        %6585 = vrot.lane.b32.xlu0 %v3099, 40
        %v6586 = vpop.permute.xlu0 %6585
        %6587 = vrot.lane.b32.xlu0 %v3104, 40
        %v6588 = vpop.permute.xlu0 %6587
        %6589 = vrot.lane.b32.xlu0 %v3109, 40
        %v6590 = vpop.permute.xlu0 %6589
        %6591 = vrot.lane.b32.xlu0 %v3114, 40
        %v6592 = vpop.permute.xlu0 %6591
        %6593 = vrot.lane.b32.xlu0 %v3119, 40
        %v6594 = vpop.permute.xlu0 %6593
        %6595 = vrot.lane.b32.xlu0 %v3124, 40
        %v6596 = vpop.permute.xlu0 %6595
        %6597 = vrot.lane.b32.xlu0 %v3129, 40
        %v6598 = vpop.permute.xlu0 %6597
        %6599 = vrot.lane.b32.xlu0 %v3134, 40
        %v6600 = vpop.permute.xlu0 %6599
        %v6616 = vsel %vm3763, %v6559, 0
        %v6619 = vsel %vm3763, %v6560, 0
        %v6622 = vsel %vm3763, %v6561, 0
        %v6625 = vsel %vm3763, %v6562, 0
        %v6628 = vsel %vm3763, %v6563, 0
        %v6631 = vsel %vm3763, %v6564, 0
        %v6634 = vsel %vm3763, %v6565, 0
        %v6637 = vsel %vm3763, %v6566, 0
        %v6640 = vsel %vm3763, %v6567, 0
        %v6643 = vsel %vm3763, %v6568, 0
        %v6646 = vsel %vm3763, %v6569, 0
        %v6649 = vsel %vm3763, %v6570, 0
        %v6652 = vsel %vm3763, %v6571, 0
        %v6655 = vsel %vm3763, %v6572, 0
        %6657 = vmatprep.subr.mxu0 0.0
        %6658 = vmatpush1.msra.mxu0 %v6574
        %6659 = vmatprep.subr.mxu0 0.0
        %6660 = vmatpush1.msra.mxu0 %v6576
        %6661 = vmatprep.subr.mxu0 0.0
        %6662 = vmatpush1.msra.mxu0 %v6578
        %6663 = vmatprep.subr.mxu0 0.0
        %6664 = vmatpush1.msra.mxu0 %v6580
        %6665 = vmatprep.subr.mxu0 0.0
        %6666 = vmatpush1.msra.mxu0 %v6582
        %6667 = vmatprep.subr.mxu0 0.0
        %6668 = vmatpush1.msra.mxu0 %v6584
        %6669 = vmatprep.subr.mxu0 0.0
        %6670 = vmatpush1.msra.mxu0 %v6586
        %6671 = vmatprep.subr.mxu0 0.0
        %6672 = vmatpush1.msra.mxu0 %v6588
        %6673 = vmatprep.subr.mxu0 0.0
        %6674 = vmatpush1.msra.mxu0 %v6590
        %6675 = vmatprep.subr.mxu0 0.0
        %6676 = vmatpush1.msra.mxu0 %v6592
        %6677 = vmatprep.subr.mxu0 0.0
        %6678 = vmatpush1.msra.mxu0 %v6594
        %6679 = vmatprep.subr.mxu0 0.0
        %6680 = vmatpush1.msra.mxu0 %v6596
        %6681 = vmatprep.subr.mxu0 0.0
        %6682 = vmatpush1.msra.mxu0 %v6598
        %6683 = vmatprep.subr.mxu0 0.0
        %6684 = vmatpush1.msra.mxu0 %v6600
        %6685 = vmatprep.subr.mxu0 0.0
        %6686 = vmatpush1.msra.mxu0 0.0
        %6687 = vmatprep.subr.mxu0 0.0
        %6688 = vmatpush1.msra.mxu0 0.0
        %6689 = vmatprep.subr.mxu0 0.0
        %6690 = vmatpush1.msra.mxu0 0.0
        %6691 = vmatprep.subr.mxu0 0.0
        %6692 = vmatpush1.msra.mxu0 0.0
        %6693 = vmatprep.subr.mxu0 0.0
        %6694 = vmatpush1.msra.mxu0 0.0
        %6695 = vmatprep.subr.mxu0 0.0
        %6696 = vmatpush1.msra.mxu0 0.0
        %6697 = vmatprep.subr.mxu0 0.0
        %6698 = vmatpush1.msra.mxu0 0.0
        %6699 = vmatprep.subr.mxu0 0.0
        %6700 = vmatpush1.msra.mxu0 0.0
        %6701 = vmatprep.subr.mxu0 0.0
        %6702 = vmatpush1.msra.mxu0 0.0
        %6703 = vmatprep.subr.mxu0 0.0
        %6704 = vmatpush1.msra.mxu0 0.0
        %6705 = vmatprep.subr.mxu0 0.0
        %6706 = vmatpush1.msra.mxu0 0.0
        %6707 = vmatprep.subr.mxu0 0.0
        %6708 = vmatpush1.msra.mxu0 0.0
        %6709 = vmatprep.subr.mxu0 0.0
        %6710 = vmatpush1.msra.mxu0 0.0
        %6711 = vmatprep.subr.mxu0 0.0
        %6712 = vmatpush1.msra.mxu0 0.0
        %6713 = vmatprep.subr.mxu0 0.0
        %6714 = vmatpush1.msra.mxu0 0.0
        %6715 = vmatprep.subr.mxu0 0.0
        %6716 = vmatpush1.msra.mxu0 0.0
        %6717 = vmatprep.subr.mxu0 0.0
        %6718 = vmatpush1.msra.mxu0 0.0
        %6719 = vmatprep.subr.mxu0 0.0
        %6720 = vmatpush1.msra.mxu0 0.0
        %6721 = vmatprep.mubr.f32.mxu0 0.0
        %6722 = vmatmul.mubr.f32.gmra.mrb[0].mxu0 %v6616
        %v6723 = vpop.f32.mrb[0].mxu0
        %v6724 = vadd.f32 0.0, %v6723
        %v6725 = vpop.f32.mrb[0].mxu0
        %6726 = vmatprep.mubr.f32.mxu0 0.0
        %6727 = vmatmul.mubr.f32.gmra.mrb[0].mxu0 %v6619
        %v6728 = vpop.f32.mrb[0].mxu0
        %v6729 = vadd.f32 0.0, %v6728
        %v6730 = vpop.f32.mrb[0].mxu0
        %6731 = vmatprep.mubr.f32.mxu0 0.0
        %6732 = vmatmul.mubr.f32.gmra.mrb[0].mxu0 %v6622
        %v6733 = vpop.f32.mrb[0].mxu0
        %v6734 = vadd.f32 0.0, %v6733
        %v6735 = vpop.f32.mrb[0].mxu0
        %6736 = vmatprep.mubr.f32.mxu0 0.0
        %6737 = vmatmul.mubr.f32.gmra.mrb[0].mxu0 %v6625
        %v6738 = vpop.f32.mrb[0].mxu0
        %v6739 = vadd.f32 0.0, %v6738
        %v6740 = vpop.f32.mrb[0].mxu0
        %6741 = vmatprep.mubr.f32.mxu0 0.0
        %6742 = vmatmul.mubr.f32.gmra.mrb[0].mxu0 %v6628
        %v6743 = vpop.f32.mrb[0].mxu0
        %v6744 = vadd.f32 0.0, %v6743
        %v6745 = vpop.f32.mrb[0].mxu0
        %6746 = vmatprep.mubr.f32.mxu0 0.0
        %6747 = vmatmul.mubr.f32.gmra.mrb[0].mxu0 %v6631
        %v6748 = vpop.f32.mrb[0].mxu0
        %v6749 = vadd.f32 0.0, %v6748
        %v6750 = vpop.f32.mrb[0].mxu0
        %6751 = vmatprep.mubr.f32.mxu0 0.0
        %6752 = vmatmul.mubr.f32.gmra.mrb[0].mxu0 %v6634
        %v6753 = vpop.f32.mrb[0].mxu0
        %v6754 = vadd.f32 0.0, %v6753
        %v6755 = vpop.f32.mrb[0].mxu0
        %6756 = vmatprep.mubr.f32.mxu0 0.0
        %6757 = vmatmul.mubr.f32.gmra.mrb[0].mxu0 %v6637
        %v6758 = vpop.f32.mrb[0].mxu0
        %v6759 = vadd.f32 0.0, %v6758
        %v6760 = vpop.f32.mrb[0].mxu0
        %6761 = vmatprep.mubr.f32.mxu0 0.0
        %6762 = vmatmul.mubr.f32.gmra.mrb[0].mxu0 %v6640
        %v6763 = vpop.f32.mrb[0].mxu0
        %v6764 = vadd.f32 0.0, %v6763
        %v6765 = vpop.f32.mrb[0].mxu0
        %6766 = vmatprep.mubr.f32.mxu0 0.0
        %6767 = vmatmul.mubr.f32.gmra.mrb[0].mxu0 %v6643
        %v6768 = vpop.f32.mrb[0].mxu0
        %v6769 = vadd.f32 0.0, %v6768
        %v6770 = vpop.f32.mrb[0].mxu0
        %6771 = vmatprep.mubr.f32.mxu0 0.0
        %6772 = vmatmul.mubr.f32.gmra.mrb[0].mxu0 %v6646
        %v6773 = vpop.f32.mrb[0].mxu0
        %v6774 = vadd.f32 0.0, %v6773
        %v6775 = vpop.f32.mrb[0].mxu0
        %6776 = vmatprep.mubr.f32.mxu0 0.0
        %6777 = vmatmul.mubr.f32.gmra.mrb[0].mxu0 %v6649
        %v6778 = vpop.f32.mrb[0].mxu0
        %v6779 = vadd.f32 0.0, %v6778
        %v6780 = vpop.f32.mrb[0].mxu0
        %6781 = vmatprep.mubr.f32.mxu0 0.0
        %6782 = vmatmul.mubr.f32.gmra.mrb[0].mxu0 %v6652
        %v6783 = vpop.f32.mrb[0].mxu0
        %v6784 = vadd.f32 0.0, %v6783
        %v6785 = vpop.f32.mrb[0].mxu0
        %6786 = vmatprep.mubr.f32.mxu0 0.0
        %6787 = vmatmul.mubr.f32.gmra.mrb[0].mxu0 %v6655
        %v6788 = vpop.f32.mrb[0].mxu0
        %v6789 = vadd.f32 0.0, %v6788
        %v6790 = vpop.f32.mrb[0].mxu0
        %6791 = vdwg.mxu0
        %6806 = vrot.lane.b32.xlu0 %v4954, 8
        %v6807 = vpop.permute.xlu0 %6806
        %6808 = vrot.lane.b32.xlu0 %v4959, 8
        %v6809 = vpop.permute.xlu0 %6808
        %6810 = vrot.lane.b32.xlu0 %v4964, 8
        %v6811 = vpop.permute.xlu0 %6810
        %6812 = vrot.lane.b32.xlu0 %v4969, 8
        %v6813 = vpop.permute.xlu0 %6812
        %6814 = vrot.lane.b32.xlu0 %v4974, 8
        %v6815 = vpop.permute.xlu0 %6814
        %6816 = vrot.lane.b32.xlu0 %v4979, 8
        %v6817 = vpop.permute.xlu0 %6816
        %6818 = vrot.lane.b32.xlu0 %v4984, 8
        %v6819 = vpop.permute.xlu0 %6818
        %6820 = vrot.lane.b32.xlu0 %v4989, 8
        %v6821 = vpop.permute.xlu0 %6820
        %6822 = vrot.lane.b32.xlu0 %v4994, 8
        %v6823 = vpop.permute.xlu0 %6822
        %6824 = vrot.lane.b32.xlu0 %v4999, 8
        %v6825 = vpop.permute.xlu0 %6824
        %6826 = vrot.lane.b32.xlu0 %v5004, 8
        %v6827 = vpop.permute.xlu0 %6826
        %6828 = vrot.lane.b32.xlu0 %v5009, 8
        %v6829 = vpop.permute.xlu0 %6828
        %6830 = vrot.lane.b32.xlu0 %v5014, 8
        %v6831 = vpop.permute.xlu0 %6830
        %6832 = vrot.lane.b32.xlu0 %v5019, 8
        %v6833 = vpop.permute.xlu0 %6832
        %6862 = vrot.lane.b32.xlu0 %v5839, 16
        %v6863 = vpop.permute.xlu0 %6862
        %6864 = vrot.lane.b32.xlu0 %v5844, 16
        %v6865 = vpop.permute.xlu0 %6864
        %6866 = vrot.lane.b32.xlu0 %v5849, 16
        %v6867 = vpop.permute.xlu0 %6866
        %6868 = vrot.lane.b32.xlu0 %v5854, 16
        %v6869 = vpop.permute.xlu0 %6868
        %6870 = vrot.lane.b32.xlu0 %v5859, 16
        %v6871 = vpop.permute.xlu0 %6870
        %6872 = vrot.lane.b32.xlu0 %v5864, 16
        %v6873 = vpop.permute.xlu0 %6872
        %6874 = vrot.lane.b32.xlu0 %v5869, 16
        %v6875 = vpop.permute.xlu0 %6874
        %6876 = vrot.lane.b32.xlu0 %v5874, 16
        %v6877 = vpop.permute.xlu0 %6876
        %6878 = vrot.lane.b32.xlu0 %v5879, 16
        %v6879 = vpop.permute.xlu0 %6878
        %6880 = vrot.lane.b32.xlu0 %v5884, 16
        %v6881 = vpop.permute.xlu0 %6880
        %6882 = vrot.lane.b32.xlu0 %v5889, 16
        %v6883 = vpop.permute.xlu0 %6882
        %6884 = vrot.lane.b32.xlu0 %v5894, 16
        %v6885 = vpop.permute.xlu0 %6884
        %6886 = vrot.lane.b32.xlu0 %v5899, 16
        %v6887 = vpop.permute.xlu0 %6886
        %6888 = vrot.lane.b32.xlu0 %v5904, 16
        %v6889 = vpop.permute.xlu0 %6888
        %6918 = vrot.lane.b32.xlu0 %v6724, 24
        %v6919 = vpop.permute.xlu0 %6918
        %6920 = vrot.lane.b32.xlu0 %v6729, 24
        %v6921 = vpop.permute.xlu0 %6920
        %6922 = vrot.lane.b32.xlu0 %v6734, 24
        %v6923 = vpop.permute.xlu0 %6922
        %6924 = vrot.lane.b32.xlu0 %v6739, 24
        %v6925 = vpop.permute.xlu0 %6924
        %6926 = vrot.lane.b32.xlu0 %v6744, 24
        %v6927 = vpop.permute.xlu0 %6926
        %6928 = vrot.lane.b32.xlu0 %v6749, 24
        %v6929 = vpop.permute.xlu0 %6928
        %6930 = vrot.lane.b32.xlu0 %v6754, 24
        %v6931 = vpop.permute.xlu0 %6930
        %6932 = vrot.lane.b32.xlu0 %v6759, 24
        %v6933 = vpop.permute.xlu0 %6932
        %6934 = vrot.lane.b32.xlu0 %v6764, 24
        %v6935 = vpop.permute.xlu0 %6934
        %6936 = vrot.lane.b32.xlu0 %v6769, 24
        %v6937 = vpop.permute.xlu0 %6936
        %6938 = vrot.lane.b32.xlu0 %v6774, 24
        %v6939 = vpop.permute.xlu0 %6938
        %6940 = vrot.lane.b32.xlu0 %v6779, 24
        %v6941 = vpop.permute.xlu0 %6940
        %6942 = vrot.lane.b32.xlu0 %v6784, 24
        %v6943 = vpop.permute.xlu0 %6942
        %6944 = vrot.lane.b32.xlu0 %v6789, 24
        %v6945 = vpop.permute.xlu0 %6944
        %v6960 = vsel %vm3571, %v4069, %v6807
        %v6961 = vsel %vm3571, %v4074, %v6809
        %v6962 = vsel %vm3571, %v4079, %v6811
        %v6963 = vsel %vm3571, %v4084, %v6813
        %v6964 = vsel %vm3571, %v4089, %v6815
        %v6965 = vsel %vm3571, %v4094, %v6817
        %v6966 = vsel %vm3571, %v4099, %v6819
        %v6967 = vsel %vm3571, %v4104, %v6821
        %v6968 = vsel %vm3571, %v4109, %v6823
        %v6969 = vsel %vm3571, %v4114, %v6825
        %v6970 = vsel %vm3571, %v4119, %v6827
        %v6971 = vsel %vm3571, %v4124, %v6829
        %v6972 = vsel %vm3571, %v4129, %v6831
        %v6973 = vsel %vm3571, %v4134, %v6833
        %vm6974 = vcmask 130048
        %v6975 = vsel %vm6974, %v6960, %v6863
        %v6976 = vsel %vm6974, %v6961, %v6865
        %v6977 = vsel %vm6974, %v6962, %v6867
        %v6978 = vsel %vm6974, %v6963, %v6869
        %v6979 = vsel %vm6974, %v6964, %v6871
        %v6980 = vsel %vm6974, %v6965, %v6873
        %v6981 = vsel %vm6974, %v6966, %v6875
        %v6982 = vsel %vm6974, %v6967, %v6877
        %v6983 = vsel %vm6974, %v6968, %v6879
        %v6984 = vsel %vm6974, %v6969, %v6881
        %v6985 = vsel %vm6974, %v6970, %v6883
        %v6986 = vsel %vm6974, %v6971, %v6885
        %v6987 = vsel %vm6974, %v6972, %v6887
        %v6988 = vsel %vm6974, %v6973, %v6889
        %vm6989 = vcmask 195584
        %v6990 = vsel %vm6989, %v6975, %v6919
        %v6991 = vsel %vm6989, %v6976, %v6921
        %v6992 = vsel %vm6989, %v6977, %v6923
        %v6993 = vsel %vm6989, %v6978, %v6925
        %v6994 = vsel %vm6989, %v6979, %v6927
        %v6995 = vsel %vm6989, %v6980, %v6929
        %v6996 = vsel %vm6989, %v6981, %v6931
        %v6997 = vsel %vm6989, %v6982, %v6933
        %v6998 = vsel %vm6989, %v6983, %v6935
        %v6999 = vsel %vm6989, %v6984, %v6937
        %v7000 = vsel %vm6989, %v6985, %v6939
        %v7001 = vsel %vm6989, %v6986, %v6941
        %v7002 = vsel %vm6989, %v6987, %v6943
        %v7003 = vsel %vm6989, %v6988, %v6945
        %v7004 = vxor.u32 %v3069, 2147483648
        %v7005 = vxor.u32 %v3074, 2147483648
        %v7006 = vxor.u32 %v3079, 2147483648
        %v7007 = vxor.u32 %v3084, 2147483648
        %v7008 = vxor.u32 %v3089, 2147483648
        %v7009 = vxor.u32 %v3094, 2147483648
        %v7010 = vxor.u32 %v3099, 2147483648
        %v7011 = vxor.u32 %v3104, 2147483648
        %v7012 = vxor.u32 %v3109, 2147483648
        %v7013 = vxor.u32 %v3114, 2147483648
        %v7014 = vxor.u32 %v3119, 2147483648
        %v7015 = vxor.u32 %v3124, 2147483648
        %v7016 = vxor.u32 %v3129, 2147483648
        %v7017 = vxor.u32 %v3134, 2147483648
        %v7018 = vmul.f32 %v7004, 1.442695
        %v7019 = vpow.pop %v7018
        %v7020 = vmul.f32 %v7005, 1.442695
        %v7021 = vpow.pop %v7020
        %v7022 = vmul.f32 %v7006, 1.442695
        %v7023 = vpow.pop %v7022
        %v7024 = vmul.f32 %v7007, 1.442695
        %v7025 = vpow.pop %v7024
        %v7026 = vmul.f32 %v7008, 1.442695
        %v7027 = vpow.pop %v7026
        %v7028 = vmul.f32 %v7009, 1.442695
        %v7029 = vpow.pop %v7028
        %v7030 = vmul.f32 %v7010, 1.442695
        %v7031 = vpow.pop %v7030
        %v7032 = vmul.f32 %v7011, 1.442695
        %v7033 = vpow.pop %v7032
        %v7034 = vmul.f32 %v7012, 1.442695
        %v7035 = vpow.pop %v7034
        %v7036 = vmul.f32 %v7013, 1.442695
        %v7037 = vpow.pop %v7036
        %v7038 = vmul.f32 %v7014, 1.442695
        %v7039 = vpow.pop %v7038
        %v7040 = vmul.f32 %v7015, 1.442695
        %v7041 = vpow.pop %v7040
        %v7042 = vmul.f32 %v7016, 1.442695
        %v7043 = vpow.pop %v7042
        %v7044 = vmul.f32 %v7017, 1.442695
        %v7045 = vpow.pop %v7044
        %v7046 = vadd.f32 %v7019, 1.0
        %v7047 = vadd.f32 %v7021, 1.0
        %v7048 = vadd.f32 %v7023, 1.0
        %v7049 = vadd.f32 %v7025, 1.0
        %v7050 = vadd.f32 %v7027, 1.0
        %v7051 = vadd.f32 %v7029, 1.0
        %v7052 = vadd.f32 %v7031, 1.0
        %v7053 = vadd.f32 %v7033, 1.0
        %v7054 = vadd.f32 %v7035, 1.0
        %v7055 = vadd.f32 %v7037, 1.0
        %v7056 = vadd.f32 %v7039, 1.0
        %v7057 = vadd.f32 %v7041, 1.0
        %v7058 = vadd.f32 %v7043, 1.0
        %v7059 = vadd.f32 %v7045, 1.0
        %v7060 = vrcp.pop %v7046
        %v7061 = vmul.f32 1.0, %v7060
        %v7062 = vrcp.pop %v7047
        %v7063 = vmul.f32 1.0, %v7062
        %v7064 = vrcp.pop %v7048
        %v7065 = vmul.f32 1.0, %v7064
        %v7066 = vrcp.pop %v7049
        %v7067 = vmul.f32 1.0, %v7066
        %v7068 = vrcp.pop %v7050
        %v7069 = vmul.f32 1.0, %v7068
        %v7070 = vrcp.pop %v7051
        %v7071 = vmul.f32 1.0, %v7070
        %v7072 = vrcp.pop %v7052
        %v7073 = vmul.f32 1.0, %v7072
        %v7074 = vrcp.pop %v7053
        %v7075 = vmul.f32 1.0, %v7074
        %v7076 = vrcp.pop %v7054
        %v7077 = vmul.f32 1.0, %v7076
        %v7078 = vrcp.pop %v7055
        %v7079 = vmul.f32 1.0, %v7078
        %v7080 = vrcp.pop %v7056
        %v7081 = vmul.f32 1.0, %v7080
        %v7082 = vrcp.pop %v7057
        %v7083 = vmul.f32 1.0, %v7082
        %v7084 = vrcp.pop %v7058
        %v7085 = vmul.f32 1.0, %v7084
        %v7086 = vrcp.pop %v7059
        %v7087 = vmul.f32 1.0, %v7086
        %7102 = vrot.lane.b32.xlu0 %v7061, 32
        %v7103 = vpop.permute.xlu0 %7102
        %7104 = vrot.lane.b32.xlu0 %v7063, 32
        %v7105 = vpop.permute.xlu0 %7104
        %7106 = vrot.lane.b32.xlu0 %v7065, 32
        %v7107 = vpop.permute.xlu0 %7106
        %7108 = vrot.lane.b32.xlu0 %v7067, 32
        %v7109 = vpop.permute.xlu0 %7108
        %7110 = vrot.lane.b32.xlu0 %v7069, 32
        %v7111 = vpop.permute.xlu0 %7110
        %7112 = vrot.lane.b32.xlu0 %v7071, 32
        %v7113 = vpop.permute.xlu0 %7112
        %7114 = vrot.lane.b32.xlu0 %v7073, 32
        %v7115 = vpop.permute.xlu0 %7114
        %7116 = vrot.lane.b32.xlu0 %v7075, 32
        %v7117 = vpop.permute.xlu0 %7116
        %7118 = vrot.lane.b32.xlu0 %v7077, 32
        %v7119 = vpop.permute.xlu0 %7118
        %7120 = vrot.lane.b32.xlu0 %v7079, 32
        %v7121 = vpop.permute.xlu0 %7120
        %7122 = vrot.lane.b32.xlu0 %v7081, 32
        %v7123 = vpop.permute.xlu0 %7122
        %7124 = vrot.lane.b32.xlu0 %v7083, 32
        %v7125 = vpop.permute.xlu0 %7124
        %7126 = vrot.lane.b32.xlu0 %v7085, 32
        %v7127 = vpop.permute.xlu0 %7126
        %7128 = vrot.lane.b32.xlu0 %v7087, 32
        %v7129 = vpop.permute.xlu0 %7128
        %v7144 = vmul.f32 %v6990, %v7103
        %v7145 = vmul.f32 %v6991, %v7105
        %v7146 = vmul.f32 %v6992, %v7107
        %v7147 = vmul.f32 %v6993, %v7109
        %v7148 = vmul.f32 %v6994, %v7111
        %v7149 = vmul.f32 %v6995, %v7113
        %v7150 = vmul.f32 %v6996, %v7115
        %v7151 = vmul.f32 %v6997, %v7117
        %v7152 = vmul.f32 %v6998, %v7119
        %v7153 = vmul.f32 %v6999, %v7121
        %v7154 = vmul.f32 %v7000, %v7123
        %v7155 = vmul.f32 %v7001, %v7125
        %v7156 = vmul.f32 %v7002, %v7127
        %v7157 = vmul.f32 %v7003, %v7129
        %v7158 = vld [vmem:[%s954] sm:$0xff]
        %v7159 = vld [vmem:[%s954 + $0x8] sm:$0xff]
        %v7160 = vld [vmem:[%s954 + $0x10] sm:$0xff]
        %v7161 = vld [vmem:[%s954 + $0x18] sm:$0xff]
        %v7163 = vsel %vm2116, %v7144, 0
        %v7166 = vsel %vm2116, %v7145, 0
        %v7169 = vsel %vm2116, %v7146, 0
        %v7172 = vsel %vm2116, %v7147, 0
        %v7175 = vsel %vm2116, %v7148, 0
        %v7178 = vsel %vm2116, %v7149, 0
        %v7181 = vsel %vm2116, %v7150, 0
        %v7184 = vsel %vm2116, %v7151, 0
        %v7187 = vsel %vm2116, %v7152, 0
        %v7190 = vsel %vm2116, %v7153, 0
        %v7193 = vsel %vm2116, %v7154, 0
        %v7196 = vsel %vm2116, %v7155, 0
        %v7199 = vsel %vm2116, %v7156, 0
        %v7202 = vsel %vm2116, %v7157, 0
        %7204 = vmatprep.subr.mxu0 0.0
        %7205 = vmatpush1.msra.mxu0 %v7158
        %7206 = vmatprep.subr.mxu0 0.0
        %7207 = vmatpush1.msra.mxu0 %v7159
        %7208 = vmatprep.subr.mxu0 0.0
        %7209 = vmatpush1.msra.mxu0 %v7160
        %7210 = vmatprep.subr.mxu0 0.0
        %7211 = vmatpush1.msra.mxu0 %v7161
        %7212 = vmatprep.subr.mxu0 0.0
        %7213 = vmatpush1.msra.mxu0 0.0
        %7214 = vmatprep.subr.mxu0 0.0
        %7215 = vmatpush1.msra.mxu0 0.0
        %7216 = vmatprep.subr.mxu0 0.0
        %7217 = vmatpush1.msra.mxu0 0.0
        %7218 = vmatprep.subr.mxu0 0.0
        %7219 = vmatpush1.msra.mxu0 0.0
        %7220 = vmatprep.subr.mxu0 0.0
        %7221 = vmatpush1.msra.mxu0 0.0
        %7222 = vmatprep.subr.mxu0 0.0
        %7223 = vmatpush1.msra.mxu0 0.0
        %7224 = vmatprep.subr.mxu0 0.0
        %7225 = vmatpush1.msra.mxu0 0.0
        %7226 = vmatprep.subr.mxu0 0.0
        %7227 = vmatpush1.msra.mxu0 0.0
        %7228 = vmatprep.subr.mxu0 0.0
        %7229 = vmatpush1.msra.mxu0 0.0
        %7230 = vmatprep.subr.mxu0 0.0
        %7231 = vmatpush1.msra.mxu0 0.0
        %7232 = vmatprep.subr.mxu0 0.0
        %7233 = vmatpush1.msra.mxu0 0.0
        %7234 = vmatprep.subr.mxu0 0.0
        %7235 = vmatpush1.msra.mxu0 0.0
        %7236 = vmatprep.subr.mxu0 0.0
        %7237 = vmatpush1.msra.mxu0 0.0
        %7238 = vmatprep.subr.mxu0 0.0
        %7239 = vmatpush1.msra.mxu0 0.0
        %7240 = vmatprep.subr.mxu0 0.0
        %7241 = vmatpush1.msra.mxu0 0.0
        %7242 = vmatprep.subr.mxu0 0.0
        %7243 = vmatpush1.msra.mxu0 0.0
        %7244 = vmatprep.subr.mxu0 0.0
        %7245 = vmatpush1.msra.mxu0 0.0
        %7246 = vmatprep.subr.mxu0 0.0
        %7247 = vmatpush1.msra.mxu0 0.0
        %7248 = vmatprep.subr.mxu0 0.0
        %7249 = vmatpush1.msra.mxu0 0.0
        %7250 = vmatprep.subr.mxu0 0.0
        %7251 = vmatpush1.msra.mxu0 0.0
        %7252 = vmatprep.subr.mxu0 0.0
        %7253 = vmatpush1.msra.mxu0 0.0
        %7254 = vmatprep.subr.mxu0 0.0
        %7255 = vmatpush1.msra.mxu0 0.0
        %7256 = vmatprep.subr.mxu0 0.0
        %7257 = vmatpush1.msra.mxu0 0.0
        %7258 = vmatprep.subr.mxu0 0.0
        %7259 = vmatpush1.msra.mxu0 0.0
        %7260 = vmatprep.subr.mxu0 0.0
        %7261 = vmatpush1.msra.mxu0 0.0
        %7262 = vmatprep.subr.mxu0 0.0
        %7263 = vmatpush1.msra.mxu0 0.0
        %7264 = vmatprep.subr.mxu0 0.0
        %7265 = vmatpush1.msra.mxu0 0.0
        %7266 = vmatprep.subr.mxu0 0.0
        %7267 = vmatpush1.msra.mxu0 0.0
        %7268 = vmatprep.mubr.f32.mxu0 0.0
        %7269 = vmatmul.mubr.f32.gmra.mrb[0].mxu0 %v7163
        %v7270 = vpop.f32.mrb[0].mxu0
        %v7271 = vadd.f32 0.0, %v7270
        %v7272 = vpop.f32.mrb[0].mxu0
        %7273 = vmatprep.mubr.f32.mxu0 0.0
        %7274 = vmatmul.mubr.f32.gmra.mrb[0].mxu0 %v7166
        %v7275 = vpop.f32.mrb[0].mxu0
        %v7276 = vadd.f32 0.0, %v7275
        %v7277 = vpop.f32.mrb[0].mxu0
        %7278 = vmatprep.mubr.f32.mxu0 0.0
        %7279 = vmatmul.mubr.f32.gmra.mrb[0].mxu0 %v7169
        %v7280 = vpop.f32.mrb[0].mxu0
        %v7281 = vadd.f32 0.0, %v7280
        %v7282 = vpop.f32.mrb[0].mxu0
        %7283 = vmatprep.mubr.f32.mxu0 0.0
        %7284 = vmatmul.mubr.f32.gmra.mrb[0].mxu0 %v7172
        %v7285 = vpop.f32.mrb[0].mxu0
        %v7286 = vadd.f32 0.0, %v7285
        %v7287 = vpop.f32.mrb[0].mxu0
        %7288 = vmatprep.mubr.f32.mxu0 0.0
        %7289 = vmatmul.mubr.f32.gmra.mrb[0].mxu0 %v7175
        %v7290 = vpop.f32.mrb[0].mxu0
        %v7291 = vadd.f32 0.0, %v7290
        %v7292 = vpop.f32.mrb[0].mxu0
        %7293 = vmatprep.mubr.f32.mxu0 0.0
        %7294 = vmatmul.mubr.f32.gmra.mrb[0].mxu0 %v7178
        %v7295 = vpop.f32.mrb[0].mxu0
        %v7296 = vadd.f32 0.0, %v7295
        %v7297 = vpop.f32.mrb[0].mxu0
        %7298 = vmatprep.mubr.f32.mxu0 0.0
        %7299 = vmatmul.mubr.f32.gmra.mrb[0].mxu0 %v7181
        %v7300 = vpop.f32.mrb[0].mxu0
        %v7301 = vadd.f32 0.0, %v7300
        %v7302 = vpop.f32.mrb[0].mxu0
        %7303 = vmatprep.mubr.f32.mxu0 0.0
        %7304 = vmatmul.mubr.f32.gmra.mrb[0].mxu0 %v7184
        %v7305 = vpop.f32.mrb[0].mxu0
        %v7306 = vadd.f32 0.0, %v7305
        %v7307 = vpop.f32.mrb[0].mxu0
        %7308 = vmatprep.mubr.f32.mxu0 0.0
        %7309 = vmatmul.mubr.f32.gmra.mrb[0].mxu0 %v7187
        %v7310 = vpop.f32.mrb[0].mxu0
        %v7311 = vadd.f32 0.0, %v7310
        %v7312 = vpop.f32.mrb[0].mxu0
        %7313 = vmatprep.mubr.f32.mxu0 0.0
        %7314 = vmatmul.mubr.f32.gmra.mrb[0].mxu0 %v7190
        %v7315 = vpop.f32.mrb[0].mxu0
        %v7316 = vadd.f32 0.0, %v7315
        %v7317 = vpop.f32.mrb[0].mxu0
        %7318 = vmatprep.mubr.f32.mxu0 0.0
        %7319 = vmatmul.mubr.f32.gmra.mrb[0].mxu0 %v7193
        %v7320 = vpop.f32.mrb[0].mxu0
        %v7321 = vadd.f32 0.0, %v7320
        %v7322 = vpop.f32.mrb[0].mxu0
        %7323 = vmatprep.mubr.f32.mxu0 0.0
        %7324 = vmatmul.mubr.f32.gmra.mrb[0].mxu0 %v7196
        %v7325 = vpop.f32.mrb[0].mxu0
        %v7326 = vadd.f32 0.0, %v7325
        %v7327 = vpop.f32.mrb[0].mxu0
        %7328 = vmatprep.mubr.f32.mxu0 0.0
        %7329 = vmatmul.mubr.f32.gmra.mrb[0].mxu0 %v7199
        %v7330 = vpop.f32.mrb[0].mxu0
        %v7331 = vadd.f32 0.0, %v7330
        %v7332 = vpop.f32.mrb[0].mxu0
        %7333 = vmatprep.mubr.f32.mxu0 0.0
        %7334 = vmatmul.mubr.f32.gmra.mrb[0].mxu0 %v7202
        %v7335 = vpop.f32.mrb[0].mxu0
        %v7336 = vadd.f32 0.0, %v7335
        %v7337 = vpop.f32.mrb[0].mxu0
        %7338 = vdwg.mxu0
        %v7339 = vmul.f32 %v2545, %v7271
        %v7340 = vmul.f32 %v2547, %v7276
        %v7341 = vmul.f32 %v2549, %v7281
        %v7342 = vmul.f32 %v2551, %v7286
        %v7343 = vmul.f32 %v2553, %v7291
        %v7344 = vmul.f32 %v2555, %v7296
        %v7345 = vmul.f32 %v2557, %v7301
        %v7346 = vmul.f32 %v2559, %v7306
        %v7347 = vmul.f32 %v2561, %v7311
        %v7348 = vmul.f32 %v2563, %v7316
        %v7349 = vmul.f32 %v2565, %v7321
        %v7350 = vmul.f32 %v2567, %v7326
        %v7351 = vmul.f32 %v2569, %v7331
        %v7352 = vmul.f32 %v2571, %v7336
        %v7353 = vld [vmem:[%s965] sm:$0x1]
        %v7355 = vlaneseq
        %v7356 = vshrl.u32 %v7355, 7
        %v7357 = vsub.s32 0, %v7356
        %v7358 = vrot.slane %v7353, %v7357
        %v7360 = vmul.f32 %v2074, %v7358
        %v7361 = vmul.f32 %v2075, %v7358
        %v7362 = vmul.f32 %v2076, %v7358
        %v7363 = vmul.f32 %v2077, %v7358
        %v7364 = vmul.f32 %v2078, %v7358
        %v7365 = vmul.f32 %v2079, %v7358
        %v7366 = vmul.f32 %v2080, %v7358
        %v7367 = vmul.f32 %v2081, %v7358
        %v7368 = vmul.f32 %v2082, %v7358
        %v7369 = vmul.f32 %v2083, %v7358
        %v7370 = vmul.f32 %v2084, %v7358
        %v7371 = vmul.f32 %v2085, %v7358
        %v7372 = vmul.f32 %v2086, %v7358
        %v7373 = vmul.f32 %v2087, %v7358
        %v7374 = vld [vmem:[%s970] sm:$0xff]
        %v7375 = vld [vmem:[%s970 + $0x8] sm:$0xff]
        %v7376 = vld [vmem:[%s970 + $0x10] sm:$0xff]
        %v7377 = vld [vmem:[%s970 + $0x18] sm:$0xff]
        %v7378 = vld [vmem:[%s973] sm:$0x1]
        %v7380 = vlaneseq
        %v7381 = vshrl.u32 %v7380, 7
        %v7382 = vsub.s32 0, %v7381
        %v7383 = vrot.slane %v7378, %v7382
        %v7386 = vsel %vm2116, %v7360, 0
        %v7389 = vsel %vm2116, %v7361, 0
        %v7392 = vsel %vm2116, %v7362, 0
        %v7395 = vsel %vm2116, %v7363, 0
        %v7398 = vsel %vm2116, %v7364, 0
        %v7401 = vsel %vm2116, %v7365, 0
        %v7404 = vsel %vm2116, %v7366, 0
        %v7407 = vsel %vm2116, %v7367, 0
        %v7410 = vsel %vm2116, %v7368, 0
        %v7413 = vsel %vm2116, %v7369, 0
        %v7416 = vsel %vm2116, %v7370, 0
        %v7419 = vsel %vm2116, %v7371, 0
        %v7422 = vsel %vm2116, %v7372, 0
        %v7425 = vsel %vm2116, %v7373, 0
        %7427 = vmatprep.subr.mxu0 0.0
        %7428 = vmatpush1.msra.mxu0 %v7374
        %7429 = vmatprep.subr.mxu0 0.0
        %7430 = vmatpush1.msra.mxu0 %v7375
        %7431 = vmatprep.subr.mxu0 0.0
        %7432 = vmatpush1.msra.mxu0 %v7376
        %7433 = vmatprep.subr.mxu0 0.0
        %7434 = vmatpush1.msra.mxu0 %v7377
        %7435 = vmatprep.subr.mxu0 0.0
        %7436 = vmatpush1.msra.mxu0 0.0
        %7437 = vmatprep.subr.mxu0 0.0
        %7438 = vmatpush1.msra.mxu0 0.0
        %7439 = vmatprep.subr.mxu0 0.0
        %7440 = vmatpush1.msra.mxu0 0.0
        %7441 = vmatprep.subr.mxu0 0.0
        %7442 = vmatpush1.msra.mxu0 0.0
        %7443 = vmatprep.subr.mxu0 0.0
        %7444 = vmatpush1.msra.mxu0 0.0
        %7445 = vmatprep.subr.mxu0 0.0
        %7446 = vmatpush1.msra.mxu0 0.0
        %7447 = vmatprep.subr.mxu0 0.0
        %7448 = vmatpush1.msra.mxu0 0.0
        %7449 = vmatprep.subr.mxu0 0.0
        %7450 = vmatpush1.msra.mxu0 0.0
        %7451 = vmatprep.subr.mxu0 0.0
        %7452 = vmatpush1.msra.mxu0 0.0
        %7453 = vmatprep.subr.mxu0 0.0
        %7454 = vmatpush1.msra.mxu0 0.0
        %7455 = vmatprep.subr.mxu0 0.0
        %7456 = vmatpush1.msra.mxu0 0.0
        %7457 = vmatprep.subr.mxu0 0.0
        %7458 = vmatpush1.msra.mxu0 0.0
        %7459 = vmatprep.subr.mxu0 0.0
        %7460 = vmatpush1.msra.mxu0 0.0
        %7461 = vmatprep.subr.mxu0 0.0
        %7462 = vmatpush1.msra.mxu0 0.0
        %7463 = vmatprep.subr.mxu0 0.0
        %7464 = vmatpush1.msra.mxu0 0.0
        %7465 = vmatprep.subr.mxu0 0.0
        %7466 = vmatpush1.msra.mxu0 0.0
        %7467 = vmatprep.subr.mxu0 0.0
        %7468 = vmatpush1.msra.mxu0 0.0
        %7469 = vmatprep.subr.mxu0 0.0
        %7470 = vmatpush1.msra.mxu0 0.0
        %7471 = vmatprep.subr.mxu0 0.0
        %7472 = vmatpush1.msra.mxu0 0.0
        %7473 = vmatprep.subr.mxu0 0.0
        %7474 = vmatpush1.msra.mxu0 0.0
        %7475 = vmatprep.subr.mxu0 0.0
        %7476 = vmatpush1.msra.mxu0 0.0
        %7477 = vmatprep.subr.mxu0 0.0
        %7478 = vmatpush1.msra.mxu0 0.0
        %7479 = vmatprep.subr.mxu0 0.0
        %7480 = vmatpush1.msra.mxu0 0.0
        %7481 = vmatprep.subr.mxu0 0.0
        %7482 = vmatpush1.msra.mxu0 0.0
        %7483 = vmatprep.subr.mxu0 0.0
        %7484 = vmatpush1.msra.mxu0 0.0
        %7485 = vmatprep.subr.mxu0 0.0
        %7486 = vmatpush1.msra.mxu0 0.0
        %7487 = vmatprep.subr.mxu0 0.0
        %7488 = vmatpush1.msra.mxu0 0.0
        %7489 = vmatprep.subr.mxu0 0.0
        %7490 = vmatpush1.msra.mxu0 0.0
        %7491 = vmatprep.mubr.f32.mxu0 0.0
        %7492 = vmatmul.mubr.f32.gmra.mrb[0].mxu0 %v7386
        %v7493 = vpop.f32.mrb[0].mxu0
        %v7494 = vadd.f32 %v7383, %v7493
        %v7495 = vpop.f32.mrb[0].mxu0
        %7496 = vmatprep.mubr.f32.mxu0 0.0
        %7497 = vmatmul.mubr.f32.gmra.mrb[0].mxu0 %v7389
        %v7498 = vpop.f32.mrb[0].mxu0
        %v7499 = vadd.f32 %v7383, %v7498
        %v7500 = vpop.f32.mrb[0].mxu0
        %7501 = vmatprep.mubr.f32.mxu0 0.0
        %7502 = vmatmul.mubr.f32.gmra.mrb[0].mxu0 %v7392
        %v7503 = vpop.f32.mrb[0].mxu0
        %v7504 = vadd.f32 %v7383, %v7503
        %v7505 = vpop.f32.mrb[0].mxu0
        %7506 = vmatprep.mubr.f32.mxu0 0.0
        %7507 = vmatmul.mubr.f32.gmra.mrb[0].mxu0 %v7395
        %v7508 = vpop.f32.mrb[0].mxu0
        %v7509 = vadd.f32 %v7383, %v7508
        %v7510 = vpop.f32.mrb[0].mxu0
        %7511 = vmatprep.mubr.f32.mxu0 0.0
        %7512 = vmatmul.mubr.f32.gmra.mrb[0].mxu0 %v7398
        %v7513 = vpop.f32.mrb[0].mxu0
        %v7514 = vadd.f32 %v7383, %v7513
        %v7515 = vpop.f32.mrb[0].mxu0
        %7516 = vmatprep.mubr.f32.mxu0 0.0
        %7517 = vmatmul.mubr.f32.gmra.mrb[0].mxu0 %v7401
        %v7518 = vpop.f32.mrb[0].mxu0
        %v7519 = vadd.f32 %v7383, %v7518
        %v7520 = vpop.f32.mrb[0].mxu0
        %7521 = vmatprep.mubr.f32.mxu0 0.0
        %7522 = vmatmul.mubr.f32.gmra.mrb[0].mxu0 %v7404
        %v7523 = vpop.f32.mrb[0].mxu0
        %v7524 = vadd.f32 %v7383, %v7523
        %v7525 = vpop.f32.mrb[0].mxu0
        %7526 = vmatprep.mubr.f32.mxu0 0.0
        %7527 = vmatmul.mubr.f32.gmra.mrb[0].mxu0 %v7407
        %v7528 = vpop.f32.mrb[0].mxu0
        %v7529 = vadd.f32 %v7383, %v7528
        %v7530 = vpop.f32.mrb[0].mxu0
        %7531 = vmatprep.mubr.f32.mxu0 0.0
        %7532 = vmatmul.mubr.f32.gmra.mrb[0].mxu0 %v7410
        %v7533 = vpop.f32.mrb[0].mxu0
        %v7534 = vadd.f32 %v7383, %v7533
        %v7535 = vpop.f32.mrb[0].mxu0
        %7536 = vmatprep.mubr.f32.mxu0 0.0
        %7537 = vmatmul.mubr.f32.gmra.mrb[0].mxu0 %v7413
        %v7538 = vpop.f32.mrb[0].mxu0
        %v7539 = vadd.f32 %v7383, %v7538
        %v7540 = vpop.f32.mrb[0].mxu0
        %7541 = vmatprep.mubr.f32.mxu0 0.0
        %7542 = vmatmul.mubr.f32.gmra.mrb[0].mxu0 %v7416
        %v7543 = vpop.f32.mrb[0].mxu0
        %v7544 = vadd.f32 %v7383, %v7543
        %v7545 = vpop.f32.mrb[0].mxu0
        %7546 = vmatprep.mubr.f32.mxu0 0.0
        %7547 = vmatmul.mubr.f32.gmra.mrb[0].mxu0 %v7419
        %v7548 = vpop.f32.mrb[0].mxu0
        %v7549 = vadd.f32 %v7383, %v7548
        %v7550 = vpop.f32.mrb[0].mxu0
        %7551 = vmatprep.mubr.f32.mxu0 0.0
        %7552 = vmatmul.mubr.f32.gmra.mrb[0].mxu0 %v7422
        %v7553 = vpop.f32.mrb[0].mxu0
        %v7554 = vadd.f32 %v7383, %v7553
        %v7555 = vpop.f32.mrb[0].mxu0
        %7556 = vmatprep.mubr.f32.mxu0 0.0
        %7557 = vmatmul.mubr.f32.gmra.mrb[0].mxu0 %v7425
        %v7558 = vpop.f32.mrb[0].mxu0
        %v7559 = vadd.f32 %v7383, %v7558
        %v7560 = vpop.f32.mrb[0].mxu0
        %7561 = vdwg.mxu0
        %v7562 = vxor.u32 %v7494, 2147483648
        %v7563 = vxor.u32 %v7499, 2147483648
        %v7564 = vxor.u32 %v7504, 2147483648
        %v7565 = vxor.u32 %v7509, 2147483648
        %v7566 = vxor.u32 %v7514, 2147483648
        %v7567 = vxor.u32 %v7519, 2147483648
        %v7568 = vxor.u32 %v7524, 2147483648
        %v7569 = vxor.u32 %v7529, 2147483648
        %v7570 = vxor.u32 %v7534, 2147483648
        %v7571 = vxor.u32 %v7539, 2147483648
        %v7572 = vxor.u32 %v7544, 2147483648
        %v7573 = vxor.u32 %v7549, 2147483648
        %v7574 = vxor.u32 %v7554, 2147483648
        %v7575 = vxor.u32 %v7559, 2147483648
        %v7576 = vmul.f32 %v7562, 1.442695
        %v7577 = vpow.pop %v7576
        %v7578 = vmul.f32 %v7563, 1.442695
        %v7579 = vpow.pop %v7578
        %v7580 = vmul.f32 %v7564, 1.442695
        %v7581 = vpow.pop %v7580
        %v7582 = vmul.f32 %v7565, 1.442695
        %v7583 = vpow.pop %v7582
        %v7584 = vmul.f32 %v7566, 1.442695
        %v7585 = vpow.pop %v7584
        %v7586 = vmul.f32 %v7567, 1.442695
        %v7587 = vpow.pop %v7586
        %v7588 = vmul.f32 %v7568, 1.442695
        %v7589 = vpow.pop %v7588
        %v7590 = vmul.f32 %v7569, 1.442695
        %v7591 = vpow.pop %v7590
        %v7592 = vmul.f32 %v7570, 1.442695
        %v7593 = vpow.pop %v7592
        %v7594 = vmul.f32 %v7571, 1.442695
        %v7595 = vpow.pop %v7594
        %v7596 = vmul.f32 %v7572, 1.442695
        %v7597 = vpow.pop %v7596
        %v7598 = vmul.f32 %v7573, 1.442695
        %v7599 = vpow.pop %v7598
        %v7600 = vmul.f32 %v7574, 1.442695
        %v7601 = vpow.pop %v7600
        %v7602 = vmul.f32 %v7575, 1.442695
        %v7603 = vpow.pop %v7602
        %v7604 = vadd.f32 %v7577, 1.0
        %v7605 = vadd.f32 %v7579, 1.0
        %v7606 = vadd.f32 %v7581, 1.0
        %v7607 = vadd.f32 %v7583, 1.0
        %v7608 = vadd.f32 %v7585, 1.0
        %v7609 = vadd.f32 %v7587, 1.0
        %v7610 = vadd.f32 %v7589, 1.0
        %v7611 = vadd.f32 %v7591, 1.0
        %v7612 = vadd.f32 %v7593, 1.0
        %v7613 = vadd.f32 %v7595, 1.0
        %v7614 = vadd.f32 %v7597, 1.0
        %v7615 = vadd.f32 %v7599, 1.0
        %v7616 = vadd.f32 %v7601, 1.0
        %v7617 = vadd.f32 %v7603, 1.0
        %v7618 = vrcp.pop %v7604
        %v7619 = vmul.f32 1.0, %v7618
        %v7620 = vrcp.pop %v7605
        %v7621 = vmul.f32 1.0, %v7620
        %v7622 = vrcp.pop %v7606
        %v7623 = vmul.f32 1.0, %v7622
        %v7624 = vrcp.pop %v7607
        %v7625 = vmul.f32 1.0, %v7624
        %v7626 = vrcp.pop %v7608
        %v7627 = vmul.f32 1.0, %v7626
        %v7628 = vrcp.pop %v7609
        %v7629 = vmul.f32 1.0, %v7628
        %v7630 = vrcp.pop %v7610
        %v7631 = vmul.f32 1.0, %v7630
        %v7632 = vrcp.pop %v7611
        %v7633 = vmul.f32 1.0, %v7632
        %v7634 = vrcp.pop %v7612
        %v7635 = vmul.f32 1.0, %v7634
        %v7636 = vrcp.pop %v7613
        %v7637 = vmul.f32 1.0, %v7636
        %v7638 = vrcp.pop %v7614
        %v7639 = vmul.f32 1.0, %v7638
        %v7640 = vrcp.pop %v7615
        %v7641 = vmul.f32 1.0, %v7640
        %v7642 = vrcp.pop %v7616
        %v7643 = vmul.f32 1.0, %v7642
        %v7644 = vrcp.pop %v7617
        %v7645 = vmul.f32 1.0, %v7644
        %v7646 = vmul.f32 %v7619, %v2286
        %v7647 = vmul.f32 %v7621, %v2287
        %v7648 = vmul.f32 %v7623, %v2288
        %v7649 = vmul.f32 %v7625, %v2289
        %v7650 = vmul.f32 %v7627, %v2290
        %v7651 = vmul.f32 %v7629, %v2291
        %v7652 = vmul.f32 %v7631, %v2292
        %v7653 = vmul.f32 %v7633, %v2293
        %v7654 = vmul.f32 %v7635, %v2294
        %v7655 = vmul.f32 %v7637, %v2295
        %v7656 = vmul.f32 %v7639, %v2296
        %v7657 = vmul.f32 %v7641, %v2297
        %v7658 = vmul.f32 %v7643, %v2298
        %v7659 = vmul.f32 %v7645, %v2299
        %7674 = vrot.lane.b32.xlu0 %v7494, 96
        %v7675 = vpop.permute.xlu0 %7674
        %7676 = vrot.lane.b32.xlu0 %v7499, 96
        %v7677 = vpop.permute.xlu0 %7676
        %7678 = vrot.lane.b32.xlu0 %v7504, 96
        %v7679 = vpop.permute.xlu0 %7678
        %7680 = vrot.lane.b32.xlu0 %v7509, 96
        %v7681 = vpop.permute.xlu0 %7680
        %7682 = vrot.lane.b32.xlu0 %v7514, 96
        %v7683 = vpop.permute.xlu0 %7682
        %7684 = vrot.lane.b32.xlu0 %v7519, 96
        %v7685 = vpop.permute.xlu0 %7684
        %7686 = vrot.lane.b32.xlu0 %v7524, 96
        %v7687 = vpop.permute.xlu0 %7686
        %7688 = vrot.lane.b32.xlu0 %v7529, 96
        %v7689 = vpop.permute.xlu0 %7688
        %7690 = vrot.lane.b32.xlu0 %v7534, 96
        %v7691 = vpop.permute.xlu0 %7690
        %7692 = vrot.lane.b32.xlu0 %v7539, 96
        %v7693 = vpop.permute.xlu0 %7692
        %7694 = vrot.lane.b32.xlu0 %v7544, 96
        %v7695 = vpop.permute.xlu0 %7694
        %7696 = vrot.lane.b32.xlu0 %v7549, 96
        %v7697 = vpop.permute.xlu0 %7696
        %7698 = vrot.lane.b32.xlu0 %v7554, 96
        %v7699 = vpop.permute.xlu0 %7698
        %7700 = vrot.lane.b32.xlu0 %v7559, 96
        %v7701 = vpop.permute.xlu0 %7700
        %v7716 = vadd.f32 %v7646, %v7675
        %v7717 = vadd.f32 %v7647, %v7677
        %v7718 = vadd.f32 %v7648, %v7679
        %v7719 = vadd.f32 %v7649, %v7681
        %v7720 = vadd.f32 %v7650, %v7683
        %v7721 = vadd.f32 %v7651, %v7685
        %v7722 = vadd.f32 %v7652, %v7687
        %v7723 = vadd.f32 %v7653, %v7689
        %v7724 = vadd.f32 %v7654, %v7691
        %v7725 = vadd.f32 %v7655, %v7693
        %v7726 = vadd.f32 %v7656, %v7695
        %v7727 = vadd.f32 %v7657, %v7697
        %v7728 = vadd.f32 %v7658, %v7699
        %v7729 = vadd.f32 %v7659, %v7701
        %v7730 = vld [vmem:[%s978] sm:$0xff]
        %v7731 = vld [vmem:[%s978 + $0x8] sm:$0xff]
        %v7732 = vld [vmem:[%s978 + $0x10] sm:$0xff]
        %v7733 = vld [vmem:[%s978 + $0x18] sm:$0xff]
        %v7735 = vsel %vm2116, %v7716, 0
        %v7738 = vsel %vm2116, %v7717, 0
        %v7741 = vsel %vm2116, %v7718, 0
        %v7744 = vsel %vm2116, %v7719, 0
        %v7747 = vsel %vm2116, %v7720, 0
        %v7750 = vsel %vm2116, %v7721, 0
        %v7753 = vsel %vm2116, %v7722, 0
        %v7756 = vsel %vm2116, %v7723, 0
        %v7759 = vsel %vm2116, %v7724, 0
        %v7762 = vsel %vm2116, %v7725, 0
        %v7765 = vsel %vm2116, %v7726, 0
        %v7768 = vsel %vm2116, %v7727, 0
        %v7771 = vsel %vm2116, %v7728, 0
        %v7774 = vsel %vm2116, %v7729, 0
        %7776 = vmatprep.subr.mxu0 0.0
        %7777 = vmatpush1.msra.mxu0 %v7730
        %7778 = vmatprep.subr.mxu0 0.0
        %7779 = vmatpush1.msra.mxu0 %v7731
        %7780 = vmatprep.subr.mxu0 0.0
        %7781 = vmatpush1.msra.mxu0 %v7732
        %7782 = vmatprep.subr.mxu0 0.0
        %7783 = vmatpush1.msra.mxu0 %v7733
        %7784 = vmatprep.subr.mxu0 0.0
        %7785 = vmatpush1.msra.mxu0 0.0
        %7786 = vmatprep.subr.mxu0 0.0
        %7787 = vmatpush1.msra.mxu0 0.0
        %7788 = vmatprep.subr.mxu0 0.0
        %7789 = vmatpush1.msra.mxu0 0.0
        %7790 = vmatprep.subr.mxu0 0.0
        %7791 = vmatpush1.msra.mxu0 0.0
        %7792 = vmatprep.subr.mxu0 0.0
        %7793 = vmatpush1.msra.mxu0 0.0
        %7794 = vmatprep.subr.mxu0 0.0
        %7795 = vmatpush1.msra.mxu0 0.0
        %7796 = vmatprep.subr.mxu0 0.0
        %7797 = vmatpush1.msra.mxu0 0.0
        %7798 = vmatprep.subr.mxu0 0.0
        %7799 = vmatpush1.msra.mxu0 0.0
        %7800 = vmatprep.subr.mxu0 0.0
        %7801 = vmatpush1.msra.mxu0 0.0
        %7802 = vmatprep.subr.mxu0 0.0
        %7803 = vmatpush1.msra.mxu0 0.0
        %7804 = vmatprep.subr.mxu0 0.0
        %7805 = vmatpush1.msra.mxu0 0.0
        %7806 = vmatprep.subr.mxu0 0.0
        %7807 = vmatpush1.msra.mxu0 0.0
        %7808 = vmatprep.subr.mxu0 0.0
        %7809 = vmatpush1.msra.mxu0 0.0
        %7810 = vmatprep.subr.mxu0 0.0
        %7811 = vmatpush1.msra.mxu0 0.0
        %7812 = vmatprep.subr.mxu0 0.0
        %7813 = vmatpush1.msra.mxu0 0.0
        %7814 = vmatprep.subr.mxu0 0.0
        %7815 = vmatpush1.msra.mxu0 0.0
        %7816 = vmatprep.subr.mxu0 0.0
        %7817 = vmatpush1.msra.mxu0 0.0
        %7818 = vmatprep.subr.mxu0 0.0
        %7819 = vmatpush1.msra.mxu0 0.0
        %7820 = vmatprep.subr.mxu0 0.0
        %7821 = vmatpush1.msra.mxu0 0.0
        %7822 = vmatprep.subr.mxu0 0.0
        %7823 = vmatpush1.msra.mxu0 0.0
        %7824 = vmatprep.subr.mxu0 0.0
        %7825 = vmatpush1.msra.mxu0 0.0
        %7826 = vmatprep.subr.mxu0 0.0
        %7827 = vmatpush1.msra.mxu0 0.0
        %7828 = vmatprep.subr.mxu0 0.0
        %7829 = vmatpush1.msra.mxu0 0.0
        %7830 = vmatprep.subr.mxu0 0.0
        %7831 = vmatpush1.msra.mxu0 0.0
        %7832 = vmatprep.subr.mxu0 0.0
        %7833 = vmatpush1.msra.mxu0 0.0
        %7834 = vmatprep.subr.mxu0 0.0
        %7835 = vmatpush1.msra.mxu0 0.0
        %7836 = vmatprep.subr.mxu0 0.0
        %7837 = vmatpush1.msra.mxu0 0.0
        %7838 = vmatprep.subr.mxu0 0.0
        %7839 = vmatpush1.msra.mxu0 0.0
        %7840 = vmatprep.mubr.f32.mxu0 0.0
        %7841 = vmatmul.mubr.f32.gmra.mrb[0].mxu0 %v7735
        %v7842 = vpop.f32.mrb[0].mxu0
        %v7843 = vadd.f32 0.0, %v7842
        %v7844 = vpop.f32.mrb[0].mxu0
        %7845 = vmatprep.mubr.f32.mxu0 0.0
        %7846 = vmatmul.mubr.f32.gmra.mrb[0].mxu0 %v7738
        %v7847 = vpop.f32.mrb[0].mxu0
        %v7848 = vadd.f32 0.0, %v7847
        %v7849 = vpop.f32.mrb[0].mxu0
        %7850 = vmatprep.mubr.f32.mxu0 0.0
        %7851 = vmatmul.mubr.f32.gmra.mrb[0].mxu0 %v7741
        %v7852 = vpop.f32.mrb[0].mxu0
        %v7853 = vadd.f32 0.0, %v7852
        %v7854 = vpop.f32.mrb[0].mxu0
        %7855 = vmatprep.mubr.f32.mxu0 0.0
        %7856 = vmatmul.mubr.f32.gmra.mrb[0].mxu0 %v7744
        %v7857 = vpop.f32.mrb[0].mxu0
        %v7858 = vadd.f32 0.0, %v7857
        %v7859 = vpop.f32.mrb[0].mxu0
        %7860 = vmatprep.mubr.f32.mxu0 0.0
        %7861 = vmatmul.mubr.f32.gmra.mrb[0].mxu0 %v7747
        %v7862 = vpop.f32.mrb[0].mxu0
        %v7863 = vadd.f32 0.0, %v7862
        %v7864 = vpop.f32.mrb[0].mxu0
        %7865 = vmatprep.mubr.f32.mxu0 0.0
        %7866 = vmatmul.mubr.f32.gmra.mrb[0].mxu0 %v7750
        %v7867 = vpop.f32.mrb[0].mxu0
        %v7868 = vadd.f32 0.0, %v7867
        %v7869 = vpop.f32.mrb[0].mxu0
        %7870 = vmatprep.mubr.f32.mxu0 0.0
        %7871 = vmatmul.mubr.f32.gmra.mrb[0].mxu0 %v7753
        %v7872 = vpop.f32.mrb[0].mxu0
        %v7873 = vadd.f32 0.0, %v7872
        %v7874 = vpop.f32.mrb[0].mxu0
        %7875 = vmatprep.mubr.f32.mxu0 0.0
        %7876 = vmatmul.mubr.f32.gmra.mrb[0].mxu0 %v7756
        %v7877 = vpop.f32.mrb[0].mxu0
        %v7878 = vadd.f32 0.0, %v7877
        %v7879 = vpop.f32.mrb[0].mxu0
        %7880 = vmatprep.mubr.f32.mxu0 0.0
        %7881 = vmatmul.mubr.f32.gmra.mrb[0].mxu0 %v7759
        %v7882 = vpop.f32.mrb[0].mxu0
        %v7883 = vadd.f32 0.0, %v7882
        %v7884 = vpop.f32.mrb[0].mxu0
        %7885 = vmatprep.mubr.f32.mxu0 0.0
        %7886 = vmatmul.mubr.f32.gmra.mrb[0].mxu0 %v7762
        %v7887 = vpop.f32.mrb[0].mxu0
        %v7888 = vadd.f32 0.0, %v7887
        %v7889 = vpop.f32.mrb[0].mxu0
        %7890 = vmatprep.mubr.f32.mxu0 0.0
        %7891 = vmatmul.mubr.f32.gmra.mrb[0].mxu0 %v7765
        %v7892 = vpop.f32.mrb[0].mxu0
        %v7893 = vadd.f32 0.0, %v7892
        %v7894 = vpop.f32.mrb[0].mxu0
        %7895 = vmatprep.mubr.f32.mxu0 0.0
        %7896 = vmatmul.mubr.f32.gmra.mrb[0].mxu0 %v7768
        %v7897 = vpop.f32.mrb[0].mxu0
        %v7898 = vadd.f32 0.0, %v7897
        %v7899 = vpop.f32.mrb[0].mxu0
        %7900 = vmatprep.mubr.f32.mxu0 0.0
        %7901 = vmatmul.mubr.f32.gmra.mrb[0].mxu0 %v7771
        %v7902 = vpop.f32.mrb[0].mxu0
        %v7903 = vadd.f32 0.0, %v7902
        %v7904 = vpop.f32.mrb[0].mxu0
        %7905 = vmatprep.mubr.f32.mxu0 0.0
        %7906 = vmatmul.mubr.f32.gmra.mrb[0].mxu0 %v7774
        %v7907 = vpop.f32.mrb[0].mxu0
        %v7908 = vadd.f32 0.0, %v7907
        %v7909 = vpop.f32.mrb[0].mxu0
        %7910 = vdwg.mxu0
        %v7911 = vxor.u32 %v7843, 2147483648
        %v7912 = vxor.u32 %v7848, 2147483648
        %v7913 = vxor.u32 %v7853, 2147483648
        %v7914 = vxor.u32 %v7858, 2147483648
        %v7915 = vxor.u32 %v7863, 2147483648
        %v7916 = vxor.u32 %v7868, 2147483648
        %v7917 = vxor.u32 %v7873, 2147483648
        %v7918 = vxor.u32 %v7878, 2147483648
        %v7919 = vxor.u32 %v7883, 2147483648
        %v7920 = vxor.u32 %v7888, 2147483648
        %v7921 = vxor.u32 %v7893, 2147483648
        %v7922 = vxor.u32 %v7898, 2147483648
        %v7923 = vxor.u32 %v7903, 2147483648
        %v7924 = vxor.u32 %v7908, 2147483648
        %v7925 = vmul.f32 %v7911, 1.442695
        %v7926 = vpow.pop %v7925
        %v7927 = vmul.f32 %v7912, 1.442695
        %v7928 = vpow.pop %v7927
        %v7929 = vmul.f32 %v7913, 1.442695
        %v7930 = vpow.pop %v7929
        %v7931 = vmul.f32 %v7914, 1.442695
        %v7932 = vpow.pop %v7931
        %v7933 = vmul.f32 %v7915, 1.442695
        %v7934 = vpow.pop %v7933
        %v7935 = vmul.f32 %v7916, 1.442695
        %v7936 = vpow.pop %v7935
        %v7937 = vmul.f32 %v7917, 1.442695
        %v7938 = vpow.pop %v7937
        %v7939 = vmul.f32 %v7918, 1.442695
        %v7940 = vpow.pop %v7939
        %v7941 = vmul.f32 %v7919, 1.442695
        %v7942 = vpow.pop %v7941
        %v7943 = vmul.f32 %v7920, 1.442695
        %v7944 = vpow.pop %v7943
        %v7945 = vmul.f32 %v7921, 1.442695
        %v7946 = vpow.pop %v7945
        %v7947 = vmul.f32 %v7922, 1.442695
        %v7948 = vpow.pop %v7947
        %v7949 = vmul.f32 %v7923, 1.442695
        %v7950 = vpow.pop %v7949
        %v7951 = vmul.f32 %v7924, 1.442695
        %v7952 = vpow.pop %v7951
        %v7953 = vadd.f32 %v7926, 1.0
        %v7954 = vadd.f32 %v7928, 1.0
        %v7955 = vadd.f32 %v7930, 1.0
        %v7956 = vadd.f32 %v7932, 1.0
        %v7957 = vadd.f32 %v7934, 1.0
        %v7958 = vadd.f32 %v7936, 1.0
        %v7959 = vadd.f32 %v7938, 1.0
        %v7960 = vadd.f32 %v7940, 1.0
        %v7961 = vadd.f32 %v7942, 1.0
        %v7962 = vadd.f32 %v7944, 1.0
        %v7963 = vadd.f32 %v7946, 1.0
        %v7964 = vadd.f32 %v7948, 1.0
        %v7965 = vadd.f32 %v7950, 1.0
        %v7966 = vadd.f32 %v7952, 1.0
        %v7967 = vrcp.pop %v7953
        %v7968 = vmul.f32 1.0, %v7967
        %v7969 = vrcp.pop %v7954
        %v7970 = vmul.f32 1.0, %v7969
        %v7971 = vrcp.pop %v7955
        %v7972 = vmul.f32 1.0, %v7971
        %v7973 = vrcp.pop %v7956
        %v7974 = vmul.f32 1.0, %v7973
        %v7975 = vrcp.pop %v7957
        %v7976 = vmul.f32 1.0, %v7975
        %v7977 = vrcp.pop %v7958
        %v7978 = vmul.f32 1.0, %v7977
        %v7979 = vrcp.pop %v7959
        %v7980 = vmul.f32 1.0, %v7979
        %v7981 = vrcp.pop %v7960
        %v7982 = vmul.f32 1.0, %v7981
        %v7983 = vrcp.pop %v7961
        %v7984 = vmul.f32 1.0, %v7983
        %v7985 = vrcp.pop %v7962
        %v7986 = vmul.f32 1.0, %v7985
        %v7987 = vrcp.pop %v7963
        %v7988 = vmul.f32 1.0, %v7987
        %v7989 = vrcp.pop %v7964
        %v7990 = vmul.f32 1.0, %v7989
        %v7991 = vrcp.pop %v7965
        %v7992 = vmul.f32 1.0, %v7991
        %v7993 = vrcp.pop %v7966
        %v7994 = vmul.f32 1.0, %v7993
        %v7995 = vmul.f32 %v7843, %v7968
        %v7996 = vmul.f32 %v7848, %v7970
        %v7997 = vmul.f32 %v7853, %v7972
        %v7998 = vmul.f32 %v7858, %v7974
        %v7999 = vmul.f32 %v7863, %v7976
        %v8000 = vmul.f32 %v7868, %v7978
        %v8001 = vmul.f32 %v7873, %v7980
        %v8002 = vmul.f32 %v7878, %v7982
        %v8003 = vmul.f32 %v7883, %v7984
        %v8004 = vmul.f32 %v7888, %v7986
        %v8005 = vmul.f32 %v7893, %v7988
        %v8006 = vmul.f32 %v7898, %v7990
        %v8007 = vmul.f32 %v7903, %v7992
        %v8008 = vmul.f32 %v7908, %v7994
        %8023 = vrot.lane.b32.xlu0 %v7843, 64
        %v8024 = vpop.permute.xlu0 %8023
        %8025 = vrot.lane.b32.xlu0 %v7848, 64
        %v8026 = vpop.permute.xlu0 %8025
        %8027 = vrot.lane.b32.xlu0 %v7853, 64
        %v8028 = vpop.permute.xlu0 %8027
        %8029 = vrot.lane.b32.xlu0 %v7858, 64
        %v8030 = vpop.permute.xlu0 %8029
        %8031 = vrot.lane.b32.xlu0 %v7863, 64
        %v8032 = vpop.permute.xlu0 %8031
        %8033 = vrot.lane.b32.xlu0 %v7868, 64
        %v8034 = vpop.permute.xlu0 %8033
        %8035 = vrot.lane.b32.xlu0 %v7873, 64
        %v8036 = vpop.permute.xlu0 %8035
        %8037 = vrot.lane.b32.xlu0 %v7878, 64
        %v8038 = vpop.permute.xlu0 %8037
        %8039 = vrot.lane.b32.xlu0 %v7883, 64
        %v8040 = vpop.permute.xlu0 %8039
        %8041 = vrot.lane.b32.xlu0 %v7888, 64
        %v8042 = vpop.permute.xlu0 %8041
        %8043 = vrot.lane.b32.xlu0 %v7893, 64
        %v8044 = vpop.permute.xlu0 %8043
        %8045 = vrot.lane.b32.xlu0 %v7898, 64
        %v8046 = vpop.permute.xlu0 %8045
        %8047 = vrot.lane.b32.xlu0 %v7903, 64
        %v8048 = vpop.permute.xlu0 %8047
        %8049 = vrot.lane.b32.xlu0 %v7908, 64
        %v8050 = vpop.permute.xlu0 %8049
        %v8065 = vmul.f32 %v7995, %v8024
        %v8066 = vmul.f32 %v7996, %v8026
        %v8067 = vmul.f32 %v7997, %v8028
        %v8068 = vmul.f32 %v7998, %v8030
        %v8069 = vmul.f32 %v7999, %v8032
        %v8070 = vmul.f32 %v8000, %v8034
        %v8071 = vmul.f32 %v8001, %v8036
        %v8072 = vmul.f32 %v8002, %v8038
        %v8073 = vmul.f32 %v8003, %v8040
        %v8074 = vmul.f32 %v8004, %v8042
        %v8075 = vmul.f32 %v8005, %v8044
        %v8076 = vmul.f32 %v8006, %v8046
        %v8077 = vmul.f32 %v8007, %v8048
        %v8078 = vmul.f32 %v8008, %v8050
        %8079 = vrot.lane.b32.xlu0 %v7716, 32
        %v8080 = vpop.permute.xlu0 %8079
        %8081 = vrot.lane.b32.xlu0 %v7717, 32
        %v8082 = vpop.permute.xlu0 %8081
        %8083 = vrot.lane.b32.xlu0 %v7718, 32
        %v8084 = vpop.permute.xlu0 %8083
        %8085 = vrot.lane.b32.xlu0 %v7719, 32
        %v8086 = vpop.permute.xlu0 %8085
        %8087 = vrot.lane.b32.xlu0 %v7720, 32
        %v8088 = vpop.permute.xlu0 %8087
        %8089 = vrot.lane.b32.xlu0 %v7721, 32
        %v8090 = vpop.permute.xlu0 %8089
        %8091 = vrot.lane.b32.xlu0 %v7722, 32
        %v8092 = vpop.permute.xlu0 %8091
        %8093 = vrot.lane.b32.xlu0 %v7723, 32
        %v8094 = vpop.permute.xlu0 %8093
        %8095 = vrot.lane.b32.xlu0 %v7724, 32
        %v8096 = vpop.permute.xlu0 %8095
        %8097 = vrot.lane.b32.xlu0 %v7725, 32
        %v8098 = vpop.permute.xlu0 %8097
        %8099 = vrot.lane.b32.xlu0 %v7726, 32
        %v8100 = vpop.permute.xlu0 %8099
        %8101 = vrot.lane.b32.xlu0 %v7727, 32
        %v8102 = vpop.permute.xlu0 %8101
        %8103 = vrot.lane.b32.xlu0 %v7728, 32
        %v8104 = vpop.permute.xlu0 %8103
        %8105 = vrot.lane.b32.xlu0 %v7729, 32
        %v8106 = vpop.permute.xlu0 %8105
        %v8121 = vmul.f32 %v2545, %v8080
        %v8122 = vmul.f32 %v2547, %v8082
        %v8123 = vmul.f32 %v2549, %v8084
        %v8124 = vmul.f32 %v2551, %v8086
        %v8125 = vmul.f32 %v2553, %v8088
        %v8126 = vmul.f32 %v2555, %v8090
        %v8127 = vmul.f32 %v2557, %v8092
        %v8128 = vmul.f32 %v2559, %v8094
        %v8129 = vmul.f32 %v2561, %v8096
        %v8130 = vmul.f32 %v2563, %v8098
        %v8131 = vmul.f32 %v2565, %v8100
        %v8132 = vmul.f32 %v2567, %v8102
        %v8133 = vmul.f32 %v2569, %v8104
        %v8134 = vmul.f32 %v2571, %v8106
        %v8135 = vld [vmem:[%s983] sm:$0xff]
        %v8136 = vld [vmem:[%s983 + $0x8] sm:$0xff]
        %v8137 = vld [vmem:[%s983 + $0x10] sm:$0xff]
        %v8138 = vld [vmem:[%s983 + $0x18] sm:$0xff]
        %v8139 = vld [vmem:[%s983 + $0x20] sm:$0xff]
        %v8140 = vld [vmem:[%s983 + $0x28] sm:$0xff]
        %v8141 = vld [vmem:[%s983 + $0x30] sm:$0xff]
        %v8142 = vld [vmem:[%s983 + $0x38] sm:$0xff]
        %vm8143 = vcmask 523264
        %v8145 = vsel %vm8143, %v8065, 0
        %v8148 = vsel %vm8143, %v8066, 0
        %v8151 = vsel %vm8143, %v8067, 0
        %v8154 = vsel %vm8143, %v8068, 0
        %v8157 = vsel %vm8143, %v8069, 0
        %v8160 = vsel %vm8143, %v8070, 0
        %v8163 = vsel %vm8143, %v8071, 0
        %v8166 = vsel %vm8143, %v8072, 0
        %v8169 = vsel %vm8143, %v8073, 0
        %v8172 = vsel %vm8143, %v8074, 0
        %v8175 = vsel %vm8143, %v8075, 0
        %v8178 = vsel %vm8143, %v8076, 0
        %v8181 = vsel %vm8143, %v8077, 0
        %v8184 = vsel %vm8143, %v8078, 0
        %8186 = vmatprep.subr.mxu0 0.0
        %8187 = vmatpush1.msra.mxu0 %v8135
        %8188 = vmatprep.subr.mxu0 0.0
        %8189 = vmatpush1.msra.mxu0 %v8136
        %8190 = vmatprep.subr.mxu0 0.0
        %8191 = vmatpush1.msra.mxu0 %v8137
        %8192 = vmatprep.subr.mxu0 0.0
        %8193 = vmatpush1.msra.mxu0 %v8138
        %8194 = vmatprep.subr.mxu0 0.0
        %8195 = vmatpush1.msra.mxu0 %v8139
        %8196 = vmatprep.subr.mxu0 0.0
        %8197 = vmatpush1.msra.mxu0 %v8140
        %8198 = vmatprep.subr.mxu0 0.0
        %8199 = vmatpush1.msra.mxu0 %v8141
        %8200 = vmatprep.subr.mxu0 0.0
        %8201 = vmatpush1.msra.mxu0 %v8142
        %8202 = vmatprep.subr.mxu0 0.0
        %8203 = vmatpush1.msra.mxu0 0.0
        %8204 = vmatprep.subr.mxu0 0.0
        %8205 = vmatpush1.msra.mxu0 0.0
        %8206 = vmatprep.subr.mxu0 0.0
        %8207 = vmatpush1.msra.mxu0 0.0
        %8208 = vmatprep.subr.mxu0 0.0
        %8209 = vmatpush1.msra.mxu0 0.0
        %8210 = vmatprep.subr.mxu0 0.0
        %8211 = vmatpush1.msra.mxu0 0.0
        %8212 = vmatprep.subr.mxu0 0.0
        %8213 = vmatpush1.msra.mxu0 0.0
        %8214 = vmatprep.subr.mxu0 0.0
        %8215 = vmatpush1.msra.mxu0 0.0
        %8216 = vmatprep.subr.mxu0 0.0
        %8217 = vmatpush1.msra.mxu0 0.0
        %8218 = vmatprep.subr.mxu0 0.0
        %8219 = vmatpush1.msra.mxu0 0.0
        %8220 = vmatprep.subr.mxu0 0.0
        %8221 = vmatpush1.msra.mxu0 0.0
        %8222 = vmatprep.subr.mxu0 0.0
        %8223 = vmatpush1.msra.mxu0 0.0
        %8224 = vmatprep.subr.mxu0 0.0
        %8225 = vmatpush1.msra.mxu0 0.0
        %8226 = vmatprep.subr.mxu0 0.0
        %8227 = vmatpush1.msra.mxu0 0.0
        %8228 = vmatprep.subr.mxu0 0.0
        %8229 = vmatpush1.msra.mxu0 0.0
        %8230 = vmatprep.subr.mxu0 0.0
        %8231 = vmatpush1.msra.mxu0 0.0
        %8232 = vmatprep.subr.mxu0 0.0
        %8233 = vmatpush1.msra.mxu0 0.0
        %8234 = vmatprep.subr.mxu0 0.0
        %8235 = vmatpush1.msra.mxu0 0.0
        %8236 = vmatprep.subr.mxu0 0.0
        %8237 = vmatpush1.msra.mxu0 0.0
        %8238 = vmatprep.subr.mxu0 0.0
        %8239 = vmatpush1.msra.mxu0 0.0
        %8240 = vmatprep.subr.mxu0 0.0
        %8241 = vmatpush1.msra.mxu0 0.0
        %8242 = vmatprep.subr.mxu0 0.0
        %8243 = vmatpush1.msra.mxu0 0.0
        %8244 = vmatprep.subr.mxu0 0.0
        %8245 = vmatpush1.msra.mxu0 0.0
        %8246 = vmatprep.subr.mxu0 0.0
        %8247 = vmatpush1.msra.mxu0 0.0
        %8248 = vmatprep.subr.mxu0 0.0
        %8249 = vmatpush1.msra.mxu0 0.0
        %8250 = vmatprep.mubr.f32.mxu0 0.0
        %8251 = vmatmul.mubr.f32.gmra.mrb[0].mxu0 %v8145
        %v8252 = vpop.f32.mrb[0].mxu0
        %v8253 = vadd.f32 0.0, %v8252
        %v8254 = vpop.f32.mrb[0].mxu0
        %8255 = vmatprep.mubr.f32.mxu0 0.0
        %8256 = vmatmul.mubr.f32.gmra.mrb[0].mxu0 %v8148
        %v8257 = vpop.f32.mrb[0].mxu0
        %v8258 = vadd.f32 0.0, %v8257
        %v8259 = vpop.f32.mrb[0].mxu0
        %8260 = vmatprep.mubr.f32.mxu0 0.0
        %8261 = vmatmul.mubr.f32.gmra.mrb[0].mxu0 %v8151
        %v8262 = vpop.f32.mrb[0].mxu0
        %v8263 = vadd.f32 0.0, %v8262
        %v8264 = vpop.f32.mrb[0].mxu0
        %8265 = vmatprep.mubr.f32.mxu0 0.0
        %8266 = vmatmul.mubr.f32.gmra.mrb[0].mxu0 %v8154
        %v8267 = vpop.f32.mrb[0].mxu0
        %v8268 = vadd.f32 0.0, %v8267
        %v8269 = vpop.f32.mrb[0].mxu0
        %8270 = vmatprep.mubr.f32.mxu0 0.0
        %8271 = vmatmul.mubr.f32.gmra.mrb[0].mxu0 %v8157
        %v8272 = vpop.f32.mrb[0].mxu0
        %v8273 = vadd.f32 0.0, %v8272
        %v8274 = vpop.f32.mrb[0].mxu0
        %8275 = vmatprep.mubr.f32.mxu0 0.0
        %8276 = vmatmul.mubr.f32.gmra.mrb[0].mxu0 %v8160
        %v8277 = vpop.f32.mrb[0].mxu0
        %v8278 = vadd.f32 0.0, %v8277
        %v8279 = vpop.f32.mrb[0].mxu0
        %8280 = vmatprep.mubr.f32.mxu0 0.0
        %8281 = vmatmul.mubr.f32.gmra.mrb[0].mxu0 %v8163
        %v8282 = vpop.f32.mrb[0].mxu0
        %v8283 = vadd.f32 0.0, %v8282
        %v8284 = vpop.f32.mrb[0].mxu0
        %8285 = vmatprep.mubr.f32.mxu0 0.0
        %8286 = vmatmul.mubr.f32.gmra.mrb[0].mxu0 %v8166
        %v8287 = vpop.f32.mrb[0].mxu0
        %v8288 = vadd.f32 0.0, %v8287
        %v8289 = vpop.f32.mrb[0].mxu0
        %8290 = vmatprep.mubr.f32.mxu0 0.0
        %8291 = vmatmul.mubr.f32.gmra.mrb[0].mxu0 %v8169
        %v8292 = vpop.f32.mrb[0].mxu0
        %v8293 = vadd.f32 0.0, %v8292
        %v8294 = vpop.f32.mrb[0].mxu0
        %8295 = vmatprep.mubr.f32.mxu0 0.0
        %8296 = vmatmul.mubr.f32.gmra.mrb[0].mxu0 %v8172
        %v8297 = vpop.f32.mrb[0].mxu0
        %v8298 = vadd.f32 0.0, %v8297
        %v8299 = vpop.f32.mrb[0].mxu0
        %8300 = vmatprep.mubr.f32.mxu0 0.0
        %8301 = vmatmul.mubr.f32.gmra.mrb[0].mxu0 %v8175
        %v8302 = vpop.f32.mrb[0].mxu0
        %v8303 = vadd.f32 0.0, %v8302
        %v8304 = vpop.f32.mrb[0].mxu0
        %8305 = vmatprep.mubr.f32.mxu0 0.0
        %8306 = vmatmul.mubr.f32.gmra.mrb[0].mxu0 %v8178
        %v8307 = vpop.f32.mrb[0].mxu0
        %v8308 = vadd.f32 0.0, %v8307
        %v8309 = vpop.f32.mrb[0].mxu0
        %8310 = vmatprep.mubr.f32.mxu0 0.0
        %8311 = vmatmul.mubr.f32.gmra.mrb[0].mxu0 %v8181
        %v8312 = vpop.f32.mrb[0].mxu0
        %v8313 = vadd.f32 0.0, %v8312
        %v8314 = vpop.f32.mrb[0].mxu0
        %8315 = vmatprep.mubr.f32.mxu0 0.0
        %8316 = vmatmul.mubr.f32.gmra.mrb[0].mxu0 %v8184
        %v8317 = vpop.f32.mrb[0].mxu0
        %v8318 = vadd.f32 0.0, %v8317
        %v8319 = vpop.f32.mrb[0].mxu0
        %8320 = vdwg.mxu0
        %8335 = vrot.lane.b32.xlu0 %v8253, 32
        %v8336 = vpop.permute.xlu0 %8335
        %8337 = vrot.lane.b32.xlu0 %v8258, 32
        %v8338 = vpop.permute.xlu0 %8337
        %8339 = vrot.lane.b32.xlu0 %v8263, 32
        %v8340 = vpop.permute.xlu0 %8339
        %8341 = vrot.lane.b32.xlu0 %v8268, 32
        %v8342 = vpop.permute.xlu0 %8341
        %8343 = vrot.lane.b32.xlu0 %v8273, 32
        %v8344 = vpop.permute.xlu0 %8343
        %8345 = vrot.lane.b32.xlu0 %v8278, 32
        %v8346 = vpop.permute.xlu0 %8345
        %8347 = vrot.lane.b32.xlu0 %v8283, 32
        %v8348 = vpop.permute.xlu0 %8347
        %8349 = vrot.lane.b32.xlu0 %v8288, 32
        %v8350 = vpop.permute.xlu0 %8349
        %8351 = vrot.lane.b32.xlu0 %v8293, 32
        %v8352 = vpop.permute.xlu0 %8351
        %8353 = vrot.lane.b32.xlu0 %v8298, 32
        %v8354 = vpop.permute.xlu0 %8353
        %8355 = vrot.lane.b32.xlu0 %v8303, 32
        %v8356 = vpop.permute.xlu0 %8355
        %8357 = vrot.lane.b32.xlu0 %v8308, 32
        %v8358 = vpop.permute.xlu0 %8357
        %8359 = vrot.lane.b32.xlu0 %v8313, 32
        %v8360 = vpop.permute.xlu0 %8359
        %8361 = vrot.lane.b32.xlu0 %v8318, 32
        %v8362 = vpop.permute.xlu0 %8361
        %v8377 = vmul.f32 %v8121, %v8336
        %v8378 = vmul.f32 %v8122, %v8338
        %v8379 = vmul.f32 %v8123, %v8340
        %v8380 = vmul.f32 %v8124, %v8342
        %v8381 = vmul.f32 %v8125, %v8344
        %v8382 = vmul.f32 %v8126, %v8346
        %v8383 = vmul.f32 %v8127, %v8348
        %v8384 = vmul.f32 %v8128, %v8350
        %v8385 = vmul.f32 %v8129, %v8352
        %v8386 = vmul.f32 %v8130, %v8354
        %v8387 = vmul.f32 %v8131, %v8356
        %v8388 = vmul.f32 %v8132, %v8358
        %v8389 = vmul.f32 %v8133, %v8360
        %v8390 = vmul.f32 %v8134, %v8362
        %8405 = vrot.lane.b32.xlu0 %v8377, 96
        %v8406 = vpop.permute.xlu0 %8405
        %8407 = vrot.lane.b32.xlu0 %v8378, 96
        %v8408 = vpop.permute.xlu0 %8407
        %8409 = vrot.lane.b32.xlu0 %v8379, 96
        %v8410 = vpop.permute.xlu0 %8409
        %8411 = vrot.lane.b32.xlu0 %v8380, 96
        %v8412 = vpop.permute.xlu0 %8411
        %8413 = vrot.lane.b32.xlu0 %v8381, 96
        %v8414 = vpop.permute.xlu0 %8413
        %8415 = vrot.lane.b32.xlu0 %v8382, 96
        %v8416 = vpop.permute.xlu0 %8415
        %8417 = vrot.lane.b32.xlu0 %v8383, 96
        %v8418 = vpop.permute.xlu0 %8417
        %8419 = vrot.lane.b32.xlu0 %v8384, 96
        %v8420 = vpop.permute.xlu0 %8419
        %8421 = vrot.lane.b32.xlu0 %v8385, 96
        %v8422 = vpop.permute.xlu0 %8421
        %8423 = vrot.lane.b32.xlu0 %v8386, 96
        %v8424 = vpop.permute.xlu0 %8423
        %8425 = vrot.lane.b32.xlu0 %v8387, 96
        %v8426 = vpop.permute.xlu0 %8425
        %8427 = vrot.lane.b32.xlu0 %v8388, 96
        %v8428 = vpop.permute.xlu0 %8427
        %8429 = vrot.lane.b32.xlu0 %v8389, 96
        %v8430 = vpop.permute.xlu0 %8429
        %8431 = vrot.lane.b32.xlu0 %v8390, 96
        %v8432 = vpop.permute.xlu0 %8431
        %v8447 = vadd.f32 %v7339, %v8406
        %v8448 = vadd.f32 %v7340, %v8408
        %v8449 = vadd.f32 %v7341, %v8410
        %v8450 = vadd.f32 %v7342, %v8412
        %v8451 = vadd.f32 %v7343, %v8414
        %v8452 = vadd.f32 %v7344, %v8416
        %v8453 = vadd.f32 %v7345, %v8418
        %v8454 = vadd.f32 %v7346, %v8420
        %v8455 = vadd.f32 %v7347, %v8422
        %v8456 = vadd.f32 %v7348, %v8424
        %v8457 = vadd.f32 %v7349, %v8426
        %v8458 = vadd.f32 %v7350, %v8428
        %v8459 = vadd.f32 %v7351, %v8430
        %v8460 = vadd.f32 %v7352, %v8432
        %8461 = vst.msk [vmem:[#allocation2] sm:$0xff] %vm2116, %v8447
        %8462 = vst.msk [vmem:[#allocation2 + $0x8] sm:$0xff] %vm2116, %v8448
        %8463 = vst.msk [vmem:[#allocation2 + $0x10] sm:$0xff] %vm2116, %v8449
        %8464 = vst.msk [vmem:[#allocation2 + $0x18] sm:$0xff] %vm2116, %v8450
        %8465 = vst.msk [vmem:[#allocation2 + $0x20] sm:$0xff] %vm2116, %v8451
        %8466 = vst.msk [vmem:[#allocation2 + $0x28] sm:$0xff] %vm2116, %v8452
        %8467 = vst.msk [vmem:[#allocation2 + $0x30] sm:$0xff] %vm2116, %v8453
        %8468 = vst.msk [vmem:[#allocation2 + $0x38] sm:$0xff] %vm2116, %v8454
        %8469 = vst.msk [vmem:[#allocation2 + $0x40] sm:$0xff] %vm2116, %v8455
        %8470 = vst.msk [vmem:[#allocation2 + $0x48] sm:$0xff] %vm2116, %v8456
        %8471 = vst.msk [vmem:[#allocation2 + $0x50] sm:$0xff] %vm2116, %v8457
        %8472 = vst.msk [vmem:[#allocation2 + $0x58] sm:$0xff] %vm2116, %v8458
        %8473 = vst.msk [vmem:[#allocation2 + $0x60] sm:$0xff] %vm2116, %v8459
        %8474 = vst.msk [vmem:[#allocation2 + $0x68] sm:$0xff] %vm2116, %v8460
        %p8475 = scmp.eq.s32.totalorder %s40, 1
        // Predicated region
        $region121: #{atom_attention_decoder.3} parent=107 // pred_check
          %p8476 = pneg %p8475
        $region122: #{atom_attention_decoder.3} parent=107 // pred_check_branch
          %8478 = sbr.rel (%p8476) target = $region124
        $region123: #{atom_attention_decoder.3} parent=107 // pred_region
          %v8479 = vsel %vm2116, %v8447, 0.0
          %8480 = vadd.xlane.f32.xlu0 %v8479
          %v8481 = vpop.xlane.xlu0 %8480
          %v8482 = vsel %vm2116, %v8448, 0.0
          %8483 = vadd.xlane.f32.xlu0 %v8482
          %v8484 = vpop.xlane.xlu0 %8483
          %v8485 = vsel %vm2116, %v8449, 0.0
          %8486 = vadd.xlane.f32.xlu0 %v8485
          %v8487 = vpop.xlane.xlu0 %8486
          %v8488 = vsel %vm2116, %v8450, 0.0
          %8489 = vadd.xlane.f32.xlu0 %v8488
          %v8490 = vpop.xlane.xlu0 %8489
          %v8491 = vsel %vm2116, %v8451, 0.0
          %8492 = vadd.xlane.f32.xlu0 %v8491
          %v8493 = vpop.xlane.xlu0 %8492
          %v8494 = vsel %vm2116, %v8452, 0.0
          %8495 = vadd.xlane.f32.xlu0 %v8494
          %v8496 = vpop.xlane.xlu0 %8495
          %v8497 = vsel %vm2116, %v8453, 0.0
          %8498 = vadd.xlane.f32.xlu0 %v8497
          %v8499 = vpop.xlane.xlu0 %8498
          %v8500 = vsel %vm2116, %v8454, 0.0
          %8501 = vadd.xlane.f32.xlu0 %v8500
          %v8502 = vpop.xlane.xlu0 %8501
          %v8503 = vsel %vm2116, %v8455, 0.0
          %8504 = vadd.xlane.f32.xlu0 %v8503
          %v8505 = vpop.xlane.xlu0 %8504
          %v8506 = vsel %vm2116, %v8456, 0.0
          %8507 = vadd.xlane.f32.xlu0 %v8506
          %v8508 = vpop.xlane.xlu0 %8507
          %v8509 = vsel %vm2116, %v8457, 0.0
          %8510 = vadd.xlane.f32.xlu0 %v8509
          %v8511 = vpop.xlane.xlu0 %8510
          %v8512 = vsel %vm2116, %v8458, 0.0
          %8513 = vadd.xlane.f32.xlu0 %v8512
          %v8514 = vpop.xlane.xlu0 %8513
          %v8515 = vsel %vm2116, %v8459, 0.0
          %8516 = vadd.xlane.f32.xlu0 %v8515
          %v8517 = vpop.xlane.xlu0 %8516
          %v8518 = vsel %vm2116, %v8460, 0.0
          %8519 = vadd.xlane.f32.xlu0 %v8518
          %v8520 = vpop.xlane.xlu0 %8519
          %v8521 = vmul.f32 %v8481, %v2159
          %v8522 = vmul.f32 %v8484, %v2159
          %v8523 = vmul.f32 %v8487, %v2159
          %v8524 = vmul.f32 %v8490, %v2159
          %v8525 = vmul.f32 %v8493, %v2159
          %v8526 = vmul.f32 %v8496, %v2159
          %v8527 = vmul.f32 %v8499, %v2159
          %v8528 = vmul.f32 %v8502, %v2159
          %v8529 = vmul.f32 %v8505, %v2159
          %v8530 = vmul.f32 %v8508, %v2159
          %v8531 = vmul.f32 %v8511, %v2159
          %v8532 = vmul.f32 %v8514, %v2159
          %v8533 = vmul.f32 %v8517, %v2159
          %v8534 = vmul.f32 %v8520, %v2159
          %v8535 = vsub.f32 %v8447, %v8521
          %v8536 = vsub.f32 %v8448, %v8522
          %v8537 = vsub.f32 %v8449, %v8523
          %v8538 = vsub.f32 %v8450, %v8524
          %v8539 = vsub.f32 %v8451, %v8525
          %v8540 = vsub.f32 %v8452, %v8526
          %v8541 = vsub.f32 %v8453, %v8527
          %v8542 = vsub.f32 %v8454, %v8528
          %v8543 = vsub.f32 %v8455, %v8529
          %v8544 = vsub.f32 %v8456, %v8530
          %v8545 = vsub.f32 %v8457, %v8531
          %v8546 = vsub.f32 %v8458, %v8532
          %v8547 = vsub.f32 %v8459, %v8533
          %v8548 = vsub.f32 %v8460, %v8534
          %v8549 = vmul.f32 %v8535, %v8535
          %v8550 = vmul.f32 %v8536, %v8536
          %v8551 = vmul.f32 %v8537, %v8537
          %v8552 = vmul.f32 %v8538, %v8538
          %v8553 = vmul.f32 %v8539, %v8539
          %v8554 = vmul.f32 %v8540, %v8540
          %v8555 = vmul.f32 %v8541, %v8541
          %v8556 = vmul.f32 %v8542, %v8542
          %v8557 = vmul.f32 %v8543, %v8543
          %v8558 = vmul.f32 %v8544, %v8544
          %v8559 = vmul.f32 %v8545, %v8545
          %v8560 = vmul.f32 %v8546, %v8546
          %v8561 = vmul.f32 %v8547, %v8547
          %v8562 = vmul.f32 %v8548, %v8548
          %v8563 = vsel %vm2116, %v8549, 0.0
          %8564 = vadd.xlane.f32.xlu0 %v8563
          %v8565 = vpop.xlane.xlu0 %8564
          %v8566 = vsel %vm2116, %v8550, 0.0
          %8567 = vadd.xlane.f32.xlu0 %v8566
          %v8568 = vpop.xlane.xlu0 %8567
          %v8569 = vsel %vm2116, %v8551, 0.0
          %8570 = vadd.xlane.f32.xlu0 %v8569
          %v8571 = vpop.xlane.xlu0 %8570
          %v8572 = vsel %vm2116, %v8552, 0.0
          %8573 = vadd.xlane.f32.xlu0 %v8572
          %v8574 = vpop.xlane.xlu0 %8573
          %v8575 = vsel %vm2116, %v8553, 0.0
          %8576 = vadd.xlane.f32.xlu0 %v8575
          %v8577 = vpop.xlane.xlu0 %8576
          %v8578 = vsel %vm2116, %v8554, 0.0
          %8579 = vadd.xlane.f32.xlu0 %v8578
          %v8580 = vpop.xlane.xlu0 %8579
          %v8581 = vsel %vm2116, %v8555, 0.0
          %8582 = vadd.xlane.f32.xlu0 %v8581
          %v8583 = vpop.xlane.xlu0 %8582
          %v8584 = vsel %vm2116, %v8556, 0.0
          %8585 = vadd.xlane.f32.xlu0 %v8584
          %v8586 = vpop.xlane.xlu0 %8585
          %v8587 = vsel %vm2116, %v8557, 0.0
          %8588 = vadd.xlane.f32.xlu0 %v8587
          %v8589 = vpop.xlane.xlu0 %8588
          %v8590 = vsel %vm2116, %v8558, 0.0
          %8591 = vadd.xlane.f32.xlu0 %v8590
          %v8592 = vpop.xlane.xlu0 %8591
          %v8593 = vsel %vm2116, %v8559, 0.0
          %8594 = vadd.xlane.f32.xlu0 %v8593
          %v8595 = vpop.xlane.xlu0 %8594
          %v8596 = vsel %vm2116, %v8560, 0.0
          %8597 = vadd.xlane.f32.xlu0 %v8596
          %v8598 = vpop.xlane.xlu0 %8597
          %v8599 = vsel %vm2116, %v8561, 0.0
          %8600 = vadd.xlane.f32.xlu0 %v8599
          %v8601 = vpop.xlane.xlu0 %8600
          %v8602 = vsel %vm2116, %v8562, 0.0
          %8603 = vadd.xlane.f32.xlu0 %v8602
          %v8604 = vpop.xlane.xlu0 %8603
          %v8605 = vmul.f32 %v8565, %v2159
          %v8606 = vmul.f32 %v8568, %v2159
          %v8607 = vmul.f32 %v8571, %v2159
          %v8608 = vmul.f32 %v8574, %v2159
          %v8609 = vmul.f32 %v8577, %v2159
          %v8610 = vmul.f32 %v8580, %v2159
          %v8611 = vmul.f32 %v8583, %v2159
          %v8612 = vmul.f32 %v8586, %v2159
          %v8613 = vmul.f32 %v8589, %v2159
          %v8614 = vmul.f32 %v8592, %v2159
          %v8615 = vmul.f32 %v8595, %v2159
          %v8616 = vmul.f32 %v8598, %v2159
          %v8617 = vmul.f32 %v8601, %v2159
          %v8618 = vmul.f32 %v8604, %v2159
          %v8619 = vadd.f32 %v8605, 1e-05
          %v8620 = vadd.f32 %v8606, 1e-05
          %v8621 = vadd.f32 %v8607, 1e-05
          %v8622 = vadd.f32 %v8608, 1e-05
          %v8623 = vadd.f32 %v8609, 1e-05
          %v8624 = vadd.f32 %v8610, 1e-05
          %v8625 = vadd.f32 %v8611, 1e-05
          %v8626 = vadd.f32 %v8612, 1e-05
          %v8627 = vadd.f32 %v8613, 1e-05
          %v8628 = vadd.f32 %v8614, 1e-05
          %v8629 = vadd.f32 %v8615, 1e-05
          %v8630 = vadd.f32 %v8616, 1e-05
          %v8631 = vadd.f32 %v8617, 1e-05
          %v8632 = vadd.f32 %v8618, 1e-05
          %v8633 = vrsqrt.pop %v8619
          %v8634 = vrsqrt.pop %v8620
          %v8635 = vrsqrt.pop %v8621
          %v8636 = vrsqrt.pop %v8622
          %v8637 = vrsqrt.pop %v8623
          %v8638 = vrsqrt.pop %v8624
          %v8639 = vrsqrt.pop %v8625
          %v8640 = vrsqrt.pop %v8626
          %v8641 = vrsqrt.pop %v8627
          %v8642 = vrsqrt.pop %v8628
          %v8643 = vrsqrt.pop %v8629
          %v8644 = vrsqrt.pop %v8630
          %v8645 = vrsqrt.pop %v8631
          %v8646 = vrsqrt.pop %v8632
          %v8647 = vmul.f32 %v8535, %v8633
          %v8648 = vmul.f32 %v8536, %v8634
          %v8649 = vmul.f32 %v8537, %v8635
          %v8650 = vmul.f32 %v8538, %v8636
          %v8651 = vmul.f32 %v8539, %v8637
          %v8652 = vmul.f32 %v8540, %v8638
          %v8653 = vmul.f32 %v8541, %v8639
          %v8654 = vmul.f32 %v8542, %v8640
          %v8655 = vmul.f32 %v8543, %v8641
          %v8656 = vmul.f32 %v8544, %v8642
          %v8657 = vmul.f32 %v8545, %v8643
          %v8658 = vmul.f32 %v8546, %v8644
          %v8659 = vmul.f32 %v8547, %v8645
          %v8660 = vmul.f32 %v8548, %v8646
          %v8661 = vld [vmem:[%s19] sm:$0x1]
          %v8663 = vlaneseq
          %v8664 = vshrl.u32 %v8663, 7
          %v8665 = vsub.s32 0, %v8664
          %v8666 = vrot.slane %v8661, %v8665
          %v8668 = vmul.f32 %v8647, %v8666
          %v8669 = vmul.f32 %v8648, %v8666
          %v8670 = vmul.f32 %v8649, %v8666
          %v8671 = vmul.f32 %v8650, %v8666
          %v8672 = vmul.f32 %v8651, %v8666
          %v8673 = vmul.f32 %v8652, %v8666
          %v8674 = vmul.f32 %v8653, %v8666
          %v8675 = vmul.f32 %v8654, %v8666
          %v8676 = vmul.f32 %v8655, %v8666
          %v8677 = vmul.f32 %v8656, %v8666
          %v8678 = vmul.f32 %v8657, %v8666
          %v8679 = vmul.f32 %v8658, %v8666
          %v8680 = vmul.f32 %v8659, %v8666
          %v8681 = vmul.f32 %v8660, %v8666
          %v8682 = vld [vmem:[%s20] sm:$0x1]
          %v8684 = vlaneseq
          %v8685 = vshrl.u32 %v8684, 7
          %v8686 = vsub.s32 0, %v8685
          %v8687 = vrot.slane %v8682, %v8686
          %v8689 = vadd.f32 %v8668, %v8687
          %v8690 = vadd.f32 %v8669, %v8687
          %v8691 = vadd.f32 %v8670, %v8687
          %v8692 = vadd.f32 %v8671, %v8687
          %v8693 = vadd.f32 %v8672, %v8687
          %v8694 = vadd.f32 %v8673, %v8687
          %v8695 = vadd.f32 %v8674, %v8687
          %v8696 = vadd.f32 %v8675, %v8687
          %v8697 = vadd.f32 %v8676, %v8687
          %v8698 = vadd.f32 %v8677, %v8687
          %v8699 = vadd.f32 %v8678, %v8687
          %v8700 = vadd.f32 %v8679, %v8687
          %v8701 = vadd.f32 %v8680, %v8687
          %v8702 = vadd.f32 %v8681, %v8687
          %v8703 = vld [vmem:[%s21] sm:$0xff]
          %v8704 = vld [vmem:[%s21 + $0x8] sm:$0xff]
          %v8705 = vld [vmem:[%s21 + $0x10] sm:$0xff]
          %v8706 = vld [vmem:[%s21 + $0x18] sm:$0xff]
          %v8708 = vsel %vm2116, %v8689, 0
          %v8711 = vsel %vm2116, %v8690, 0
          %v8714 = vsel %vm2116, %v8691, 0
          %v8717 = vsel %vm2116, %v8692, 0
          %v8720 = vsel %vm2116, %v8693, 0
          %v8723 = vsel %vm2116, %v8694, 0
          %v8726 = vsel %vm2116, %v8695, 0
          %v8729 = vsel %vm2116, %v8696, 0
          %v8732 = vsel %vm2116, %v8697, 0
          %v8735 = vsel %vm2116, %v8698, 0
          %v8738 = vsel %vm2116, %v8699, 0
          %v8741 = vsel %vm2116, %v8700, 0
          %v8744 = vsel %vm2116, %v8701, 0
          %v8747 = vsel %vm2116, %v8702, 0
          %8749 = vmatprep.subr.mxu0 0.0
          %8750 = vmatpush1.msra.mxu0 %v8703
          %8751 = vmatprep.subr.mxu0 0.0
          %8752 = vmatpush1.msra.mxu0 %v8704
          %8753 = vmatprep.subr.mxu0 0.0
          %8754 = vmatpush1.msra.mxu0 %v8705
          %8755 = vmatprep.subr.mxu0 0.0
          %8756 = vmatpush1.msra.mxu0 %v8706
          %8757 = vmatprep.subr.mxu0 0.0
          %8758 = vmatpush1.msra.mxu0 0.0
          %8759 = vmatprep.subr.mxu0 0.0
          %8760 = vmatpush1.msra.mxu0 0.0
          %8761 = vmatprep.subr.mxu0 0.0
          %8762 = vmatpush1.msra.mxu0 0.0
          %8763 = vmatprep.subr.mxu0 0.0
          %8764 = vmatpush1.msra.mxu0 0.0
          %8765 = vmatprep.subr.mxu0 0.0
          %8766 = vmatpush1.msra.mxu0 0.0
          %8767 = vmatprep.subr.mxu0 0.0
          %8768 = vmatpush1.msra.mxu0 0.0
          %8769 = vmatprep.subr.mxu0 0.0
          %8770 = vmatpush1.msra.mxu0 0.0
          %8771 = vmatprep.subr.mxu0 0.0
          %8772 = vmatpush1.msra.mxu0 0.0
          %8773 = vmatprep.subr.mxu0 0.0
          %8774 = vmatpush1.msra.mxu0 0.0
          %8775 = vmatprep.subr.mxu0 0.0
          %8776 = vmatpush1.msra.mxu0 0.0
          %8777 = vmatprep.subr.mxu0 0.0
          %8778 = vmatpush1.msra.mxu0 0.0
          %8779 = vmatprep.subr.mxu0 0.0
          %8780 = vmatpush1.msra.mxu0 0.0
          %8781 = vmatprep.subr.mxu0 0.0
          %8782 = vmatpush1.msra.mxu0 0.0
          %8783 = vmatprep.subr.mxu0 0.0
          %8784 = vmatpush1.msra.mxu0 0.0
          %8785 = vmatprep.subr.mxu0 0.0
          %8786 = vmatpush1.msra.mxu0 0.0
          %8787 = vmatprep.subr.mxu0 0.0
          %8788 = vmatpush1.msra.mxu0 0.0
          %8789 = vmatprep.subr.mxu0 0.0
          %8790 = vmatpush1.msra.mxu0 0.0
          %8791 = vmatprep.subr.mxu0 0.0
          %8792 = vmatpush1.msra.mxu0 0.0
          %8793 = vmatprep.subr.mxu0 0.0
          %8794 = vmatpush1.msra.mxu0 0.0
          %8795 = vmatprep.subr.mxu0 0.0
          %8796 = vmatpush1.msra.mxu0 0.0
          %8797 = vmatprep.subr.mxu0 0.0
          %8798 = vmatpush1.msra.mxu0 0.0
          %8799 = vmatprep.subr.mxu0 0.0
          %8800 = vmatpush1.msra.mxu0 0.0
          %8801 = vmatprep.subr.mxu0 0.0
          %8802 = vmatpush1.msra.mxu0 0.0
          %8803 = vmatprep.subr.mxu0 0.0
          %8804 = vmatpush1.msra.mxu0 0.0
          %8805 = vmatprep.subr.mxu0 0.0
          %8806 = vmatpush1.msra.mxu0 0.0
          %8807 = vmatprep.subr.mxu0 0.0
          %8808 = vmatpush1.msra.mxu0 0.0
          %8809 = vmatprep.subr.mxu0 0.0
          %8810 = vmatpush1.msra.mxu0 0.0
          %8811 = vmatprep.subr.mxu0 0.0
          %8812 = vmatpush1.msra.mxu0 0.0
          %8813 = vmatprep.mubr.f32.mxu0 0.0
          %8814 = vmatmul.mubr.f32.gmra.mrb[0].mxu0 %v8708
          %v8815 = vpop.f32.mrb[0].mxu0
          %v8816 = vadd.f32 0.0, %v8815
          %v8817 = vpop.f32.mrb[0].mxu0
          %8818 = vmatprep.mubr.f32.mxu0 0.0
          %8819 = vmatmul.mubr.f32.gmra.mrb[0].mxu0 %v8711
          %v8820 = vpop.f32.mrb[0].mxu0
          %v8821 = vadd.f32 0.0, %v8820
          %v8822 = vpop.f32.mrb[0].mxu0
          %8823 = vmatprep.mubr.f32.mxu0 0.0
          %8824 = vmatmul.mubr.f32.gmra.mrb[0].mxu0 %v8714
          %v8825 = vpop.f32.mrb[0].mxu0
          %v8826 = vadd.f32 0.0, %v8825
          %v8827 = vpop.f32.mrb[0].mxu0
          %8828 = vmatprep.mubr.f32.mxu0 0.0
          %8829 = vmatmul.mubr.f32.gmra.mrb[0].mxu0 %v8717
          %v8830 = vpop.f32.mrb[0].mxu0
          %v8831 = vadd.f32 0.0, %v8830
          %v8832 = vpop.f32.mrb[0].mxu0
          %8833 = vmatprep.mubr.f32.mxu0 0.0
          %8834 = vmatmul.mubr.f32.gmra.mrb[0].mxu0 %v8720
          %v8835 = vpop.f32.mrb[0].mxu0
          %v8836 = vadd.f32 0.0, %v8835
          %v8837 = vpop.f32.mrb[0].mxu0
          %8838 = vmatprep.mubr.f32.mxu0 0.0
          %8839 = vmatmul.mubr.f32.gmra.mrb[0].mxu0 %v8723
          %v8840 = vpop.f32.mrb[0].mxu0
          %v8841 = vadd.f32 0.0, %v8840
          %v8842 = vpop.f32.mrb[0].mxu0
          %8843 = vmatprep.mubr.f32.mxu0 0.0
          %8844 = vmatmul.mubr.f32.gmra.mrb[0].mxu0 %v8726
          %v8845 = vpop.f32.mrb[0].mxu0
          %v8846 = vadd.f32 0.0, %v8845
          %v8847 = vpop.f32.mrb[0].mxu0
          %8848 = vmatprep.mubr.f32.mxu0 0.0
          %8849 = vmatmul.mubr.f32.gmra.mrb[0].mxu0 %v8729
          %v8850 = vpop.f32.mrb[0].mxu0
          %v8851 = vadd.f32 0.0, %v8850
          %v8852 = vpop.f32.mrb[0].mxu0
          %8853 = vmatprep.mubr.f32.mxu0 0.0
          %8854 = vmatmul.mubr.f32.gmra.mrb[0].mxu0 %v8732
          %v8855 = vpop.f32.mrb[0].mxu0
          %v8856 = vadd.f32 0.0, %v8855
          %v8857 = vpop.f32.mrb[0].mxu0
          %8858 = vmatprep.mubr.f32.mxu0 0.0
          %8859 = vmatmul.mubr.f32.gmra.mrb[0].mxu0 %v8735
          %v8860 = vpop.f32.mrb[0].mxu0
          %v8861 = vadd.f32 0.0, %v8860
          %v8862 = vpop.f32.mrb[0].mxu0
          %8863 = vmatprep.mubr.f32.mxu0 0.0
          %8864 = vmatmul.mubr.f32.gmra.mrb[0].mxu0 %v8738
          %v8865 = vpop.f32.mrb[0].mxu0
          %v8866 = vadd.f32 0.0, %v8865
          %v8867 = vpop.f32.mrb[0].mxu0
          %8868 = vmatprep.mubr.f32.mxu0 0.0
          %8869 = vmatmul.mubr.f32.gmra.mrb[0].mxu0 %v8741
          %v8870 = vpop.f32.mrb[0].mxu0
          %v8871 = vadd.f32 0.0, %v8870
          %v8872 = vpop.f32.mrb[0].mxu0
          %8873 = vmatprep.mubr.f32.mxu0 0.0
          %8874 = vmatmul.mubr.f32.gmra.mrb[0].mxu0 %v8744
          %v8875 = vpop.f32.mrb[0].mxu0
          %v8876 = vadd.f32 0.0, %v8875
          %v8877 = vpop.f32.mrb[0].mxu0
          %8878 = vmatprep.mubr.f32.mxu0 0.0
          %8879 = vmatmul.mubr.f32.gmra.mrb[0].mxu0 %v8747
          %v8880 = vpop.f32.mrb[0].mxu0
          %v8881 = vadd.f32 0.0, %v8880
          %v8882 = vpop.f32.mrb[0].mxu0
          %8883 = vdwg.mxu0
          %vm8884 = vcmask 23552
          %8885 = vst.msk [vmem:[%s988] sm:$0xff] %vm8884, %v8816
          %8886 = vst.msk [vmem:[%s988 + $0x8] sm:$0xff] %vm8884, %v8821
          %8887 = vst.msk [vmem:[%s988 + $0x10] sm:$0xff] %vm8884, %v8826
          %8888 = vst.msk [vmem:[%s988 + $0x18] sm:$0xff] %vm8884, %v8831
          %8889 = vst.msk [vmem:[%s988 + $0x20] sm:$0xff] %vm8884, %v8836
          %8890 = vst.msk [vmem:[%s988 + $0x28] sm:$0xff] %vm8884, %v8841
          %8891 = vst.msk [vmem:[%s988 + $0x30] sm:$0xff] %vm8884, %v8846
          %8892 = vst.msk [vmem:[%s988 + $0x38] sm:$0xff] %vm8884, %v8851
          %8893 = vst.msk [vmem:[%s988 + $0x40] sm:$0xff] %vm8884, %v8856
          %8894 = vst.msk [vmem:[%s988 + $0x48] sm:$0xff] %vm8884, %v8861
          %8895 = vst.msk [vmem:[%s988 + $0x50] sm:$0xff] %vm8884, %v8866
          %8896 = vst.msk [vmem:[%s988 + $0x58] sm:$0xff] %vm8884, %v8871
          %8897 = vst.msk [vmem:[%s988 + $0x60] sm:$0xff] %vm8884, %v8876
          %8898 = vst.msk [vmem:[%s988 + $0x68] sm:$0xff] %vm8884, %v8881
        $region124: #{atom_attention_decoder.3} parent=107 // pred_fallthru
          _
        %p8899 = scmp.lt.s32.totalorder %s39, 1
        %s8900 = scalar_select %p8899, %s39, 1
        %s8901 = smul.addr %s8900, 14
        %s8902 = smul.addr %s8901, 8
        %s8903 = scalar_lea.vmem %s22, %s8902
        // Predicated region
        $region125: #{atom_attention_decoder.3} parent=107 // pred_check
          %p8904 = pneg %p607
        $region126: #{atom_attention_decoder.3} parent=107 // pred_check_branch
          %8906 = sbr.rel (%p8904) target = $region128
        $region127: #{atom_attention_decoder.3} parent=107 // pred_region
          _
        $region128: #{atom_attention_decoder.3} parent=107 // pred_fallthru
          _
      $region108: #{atom_attention_decoder.3} parent=5 // pred_fallthru
        _
      %p8907 = scmp.le.s32.totalorder 2, %s30
      // Predicated region
      $region129: #{atom_attention_decoder.3} parent=5 // pred_check
        %p8908 = pneg %p8907
      $region130: #{atom_attention_decoder.3} parent=5 // pred_check_branch
        %8910 = sbr.rel (%p8908) target = $region132
      $region131: #{atom_attention_decoder.3} parent=5 // pred_region
        %s8911 = ssub.s32 %s30, 2
        // Predicated region
        $region133: #{atom_attention_decoder.3} parent=131 // pred_check
          %p8912 = pneg %p613
        $region134: #{atom_attention_decoder.3} parent=131 // pred_check_branch
          %8914 = sbr.rel (%p8912) target = $region136
        $region135: #{atom_attention_decoder.3} parent=131 // pred_region
          %p8915 = scmp.lt.s32.totalorder %s41, 1
          %s8916 = scalar_select %p8915, %s41, 1
          %s8917 = smul.addr %s8916, 14
          %s8918 = smul.addr %s8917, 8
          %s8919 = scalar_lea.vmem %s22, %s8918
        $region136: #{atom_attention_decoder.3} parent=131 // pred_fallthru
          _
      $region132: #{atom_attention_decoder.3} parent=5 // pred_fallthru
        _
    $region6: #{atom_attention_decoder.3} parent=1 // loop_footer
      %s34 = sadd.s32 1, %s30
    $region7: #{atom_attention_decoder.3} parent=1 // loop_footer_branch
      %29 = sbr.rel target = $region3
    $region8: #{atom_attention_decoder.3} parent=1 // loop_exit
      _
    %8920 = vsyncpa [#allocation6], 1
    %s8921 = scalar_lea.sflag [#allocation6], 1
    %8922 = vsyncpa %s8921, 1
    %8923 = vsyncpa [#allocation8], 1

</llo_original>
